<compile_context>
chip_gen: v6e
topology: v6e:2x2x1
jax: 0.10.0
libtpu: 0.0.40
codegen_flags: <defaults>
</compile_context>

<pallas_src>
import functools
import math

import jax
import jax.numpy as jnp
import numpy as np
from jax import lax
from jax.experimental import pallas as pl
from jax.experimental.pallas import tpu as pltpu

HIDDEN = 128  # fixed by the module (hidden_size = 128, la -> 256)


def actor_kernel(max_action, att_scale, seq_len, batch,
                 hist_ref, state_ref, h0_ref, c0_ref,
                 wih0_ref, whh0_ref, b0_ref,
                 wih1_ref, whh1_ref, b1_ref,
                 wla_ref, bla_ref,
                 wl1_ref, bl1_ref,
                 wl2_ref, bl2_ref,
                 wl3_ref, bl3_ref,
                 scored_out_ref, action_ref,
                 xproj_scr, whh0_scr, wih1_scr, whh1_scr):
    H = HIDDEN
    T = seq_len
    B = batch  # padded batch (multiple of 8)

    # ---- independent state-MLP branch first (can hide under the LSTM) ----
    # (the last row of PyTorch's cat([scored_x1, x2], dim=1) is exactly x2, so the
    #  returned action only depends on this branch)
    st = state_ref[...]
    x2 = jnp.maximum(jnp.dot(st, wl1_ref[...],
                             preferred_element_type=jnp.float32) + bl1_ref[...], 0.0)
    x2 = jnp.maximum(jnp.dot(x2, wl2_ref[...],
                             preferred_element_type=jnp.float32) + bl2_ref[...], 0.0)
    act = jnp.tanh(jnp.dot(x2, wl3_ref[...],
                           preferred_element_type=jnp.float32) + bl3_ref[...])
    action_ref[...] = max_action * act

    # ---- one-time f32 up-convert of the bf16 recurrent weights into VMEM scratch
    # (HBM->VMEM DMA was bf16; the loop's dots stream from these f32 refs so no
    #  big weight value stays live across the unrolled T-loop) ----
    whh0_scr[...] = whh0_ref[...].astype(jnp.float32)
    wih1_scr[...] = wih1_ref[...].astype(jnp.float32)
    whh1_scr[...] = whh1_ref[...].astype(jnp.float32)

    # ---- batched layer-0 input projection for all timesteps (one matmul) ----
    # hist_ref is time-major and flattened: [T*B, F]
    xproj_scr[...] = (jnp.dot(hist_ref[...], wih0_ref[...].astype(jnp.float32),
                              preferred_element_type=jnp.float32) + b0_ref[...])

    def gates_to_hc(g, c):
        # sigmoid(x) = 0.5*(tanh(x/2)+1); the 0.5 is folded into the i/f/o gate
        # weight columns at prep time, so ONE tanh over the whole [B, 4H] block
        # replaces 3 sigmoids + 1 tanh. PyTorch gate order: i, f, g, o.
        t = jnp.tanh(g)
        i_g = 0.5 * (t[:, 0:H] + 1.0)
        f_g = 0.5 * (t[:, H:2 * H] + 1.0)
        g_g = t[:, 2 * H:3 * H]
        o_g = 0.5 * (t[:, 3 * H:4 * H] + 1.0)
        c_new = f_g * c + i_g * g_g
        h_new = o_g * jnp.tanh(c_new)
        return h_new, c_new

    # ---- 2-layer LSTM over time: 3 matmuls per step, fully unrolled ----
    def lstm_step(t, carry):
        h_a, c_a, h_b, c_b = carry
        row = t * B
        # layer 0: x-path precomputed; only the recurrent matmul remains
        g0 = (xproj_scr[pl.ds(row, B), :]
              + jnp.dot(h_a, whh0_scr[...], preferred_element_type=jnp.float32))
        h_a, c_a = gates_to_hc(g0, c_a)
        # layer 1: two accumulating dots, no lane concat on the critical path
        g1 = (jnp.dot(h_a, wih1_scr[...], preferred_element_type=jnp.float32)
              + jnp.dot(h_b, whh1_scr[...], preferred_element_type=jnp.float32)
              + b1_ref[...])
        h_b, c_b = gates_to_hc(g1, c_b)
        scored_out_ref[pl.ds(row, B), :] = h_b   # full-tile, unmasked store
        return (h_a, c_a, h_b, c_b)

    init = (h0_ref[0], c0_ref[0], h0_ref[1], c0_ref[1])
    h_a, c_a, h_b, c_b = lax.fori_loop(0, T, lstm_step, init, unroll=True)

    # ---- attention, fully vectorized in the flat [T*B, ...] layout ----
    # k = cat(ht[0], ht[1]) with the 1/sqrt(d) scale folded in (d = original batch)
    k = jnp.concatenate([h_a, h_b], axis=1) * att_scale            # [B, 2H]
    x1 = scored_out_ref[...]                                       # [T*B, H]
    u = jnp.tanh(jnp.dot(x1, wla_ref[...].astype(jnp.float32),
                         preferred_element_type=jnp.float32) + bla_ref[...])  # [T*B, 2H]
    # reshapes below are tile-aligned because B == 8 (one full sublane block)
    att = jnp.sum(u.reshape(T, B, 2 * H) * k[None, :, :],
                  axis=-1, keepdims=True)                          # [T, B, 1]

    # softmax over the time axis (PyTorch: softmax(att, dim=1) on [B, T, 1])
    att = att - jnp.max(att, axis=0, keepdims=True)
    p = jnp.exp(att)
    att_score = p / jnp.sum(p, axis=0, keepdims=True)              # exact divide
    scored_out_ref[...] = (x1.reshape(T, B, H) * att_score).reshape(T * B, H)


def actor_forward(history, state, params, h0, c0, max_action):
    B, T, F_in = history.shape
    H = HIDDEN
    n_actions = params["wl3"].shape[1]

    # ---- pad batch to a full sublane (8) so every [B, X] tile is unmasked ----
    B_pad = ((B + 7) // 8) * 8
    pad = B_pad - B
    if pad:
        history = jnp.pad(history, ((0, pad), (0, 0), (0, 0)))
        state = jnp.pad(state, ((0, pad), (0, 0)))
        h0 = jnp.pad(h0, ((0, 0), (0, pad), (0, 0)))
        c0 = jnp.pad(c0, ((0, 0), (0, pad), (0, 0)))

    # time-major + flattened [T*B_pad, F] so the kernel does one big input projection
    hist_flat = jnp.transpose(history, (1, 0, 2)).reshape(T * B_pad, F_in)

    # fold sigmoid(x) = 0.5*(tanh(x/2)+1): scale i/f/o gate columns by 0.5
    gate_scale = jnp.asarray(
        np.concatenate([np.full(H, 0.5), np.full(H, 0.5),
                        np.ones(H), np.full(H, 0.5)]).astype(np.float32))

    def ifo(w):
        return w * gate_scale

    # big LSTM / attention weights travel as bf16 (half the HBM->VMEM DMA bytes)
    wih0 = ifo(params["wih0"]).astype(jnp.bfloat16)
    whh0 = ifo(params["whh0"]).astype(jnp.bfloat16)
    b0 = ifo(params["b0"])
    wih1 = ifo(params["wih1"]).astype(jnp.bfloat16)
    whh1 = ifo(params["whh1"]).astype(jnp.bfloat16)
    b1 = ifo(params["b1"])
    wla = params["wla"].astype(jnp.bfloat16)

    kernel = functools.partial(actor_kernel, float(max_action),
                               1.0 / math.sqrt(B), T, B_pad)
    vmem = pl.BlockSpec(memory_space=pltpu.MemorySpace.VMEM)

    args = (hist_flat, state, h0, c0,
            wih0, whh0, b0,
            wih1, whh1, b1,
            wla, params["bla"],
            params["wl1"], params["bl1"],
            params["wl2"], params["bl2"],
            params["wl3"], params["bl3"])

    scored_flat, action = pl.pallas_call(
        kernel,
        out_shape=(jax.ShapeDtypeStruct((T * B_pad, H), jnp.float32),
                   jax.ShapeDtypeStruct((B_pad, n_actions), jnp.float32)),
        in_specs=[vmem] * len(args),
        out_specs=(vmem, vmem),
        scratch_shapes=[pltpu.VMEM((T * B_pad, 4 * H), jnp.float32),  # x-projection
                        pltpu.VMEM((H, 4 * H), jnp.float32),          # whh0 (f32)
                        pltpu.VMEM((H, 4 * H), jnp.float32),          # wih1 (f32)
                        pltpu.VMEM((H, 4 * H), jnp.float32)],         # whh1 (f32)
    )(*args)

    # auxiliary output (scored_x1) back to batch-first; action is the module output
    scored = jnp.transpose(scored_flat.reshape(T, B_pad, H), (1, 0, 2))[:B]
    return scored, action[:B]


def init_params(key, n_states, n_actions):
    """Deterministic init mimicking the PyTorch module's __init__."""
    H = HIDDEN
    IN = n_states + n_actions
    ks = jax.random.split(key, 16)

    def u(k, shape, lo, hi):
        return jax.random.uniform(k, shape, jnp.float32, lo, hi)

    s = 1.0 / math.sqrt(H)
    # nn.LSTM default init: U(-1/sqrt(H), 1/sqrt(H)); stored [4H, in] -> transpose
    w_ih0 = u(ks[0], (4 * H, IN), -s, s)
    w_hh0 = u(ks[1], (4 * H, H), -s, s)
    b_ih0 = u(ks[2], (4 * H,), -s, s)
    b_hh0 = u(ks[3], (4 * H,), -s, s)
    w_ih1 = u(ks[4], (4 * H, H), -s, s)
    w_hh1 = u(ks[5], (4 * H, H), -s, s)
    b_ih1 = u(ks[6], (4 * H,), -s, s)
    b_hh1 = u(ks[7], (4 * H,), -s, s)

    s1 = 1.0 / math.sqrt(n_states)
    wl1 = u(ks[8], (H, n_states), -s1, s1)
    bl1 = u(ks[9], (H,), -s1, s1)
    s2 = 1.0 / math.sqrt(H)
    wl2 = u(ks[10], (H, H), -s2, s2)
    bl2 = u(ks[11], (H,), -s2, s2)
    wl3 = u(ks[12], (n_actions, H), -0.003, 0.003)   # init_w
    bl3 = u(ks[13], (n_actions,), -0.003, 0.003)
    wla = u(ks[14], (2 * H, H), -0.1, 0.1)
    bla = u(ks[15], (2 * H,), -0.1, 0.1)

    return dict(
        wih0=w_ih0.T, whh0=w_hh0.T, b0=(b_ih0 + b_hh0).reshape(1, 4 * H),
        wih1=w_ih1.T, whh1=w_hh1.T, b1=(b_ih1 + b_hh1).reshape(1, 4 * H),
        wla=wla.T, bla=bla.reshape(1, 2 * H),
        wl1=wl1.T, bl1=bl1.reshape(1, H),
        wl2=wl2.T, bl2=bl2.reshape(1, H),
        wl3=wl3.T, bl3=bl3.reshape(1, n_actions),
    )


def actor_reference(history, state, params, h0, c0, max_action):
    """Pure-JAX reference mirroring the PyTorch forward."""
    H = HIDDEN

    def cell(x, h, c, wih, whh, b):
        g = x @ wih + h @ whh + b
        i = jax.nn.sigmoid(g[:, :H])
        f = jax.nn.sigmoid(g[:, H:2 * H])
        gg = jnp.tanh(g[:, 2 * H:3 * H])
        o = jax.nn.sigmoid(g[:, 3 * H:])
        c = f * c + i * gg
        return o * jnp.tanh(c), c

    def scan_step(carry, x_t):
        h_a, c_a, h_b, c_b = carry
        h_a, c_a = cell(x_t, h_a, c_a, params["wih0"], params["whh0"], params["b0"])
        h_b, c_b = cell(h_a, h_b, c_b, params["wih1"], params["whh1"], params["b1"])
        return (h_a, c_a, h_b, c_b), h_b

    hist_t = jnp.transpose(history, (1, 0, 2))
    (h_a, _, h_b, _), x1_t = lax.scan(scan_step, (h0[0], c0[0], h0[1], c0[1]), hist_t)
    x1 = jnp.transpose(x1_t, (1, 0, 2))                       # [B, T, H]
    k = jnp.concatenate([h_a, h_b], axis=1)                   # [B, 2H]
    u = jnp.tanh(x1 @ params["wla"] + params["bla"])          # [B, T, 2H]
    att = jnp.einsum("btc,bc->bt", u, k) / math.sqrt(history.shape[0])
    att_score = jax.nn.softmax(att, axis=1)[..., None]
    scored = x1 * att_score
    x2 = jax.nn.relu(state @ params["wl1"] + params["bl1"])
    x2 = jax.nn.relu(x2 @ params["wl2"] + params["bl2"])
    action = max_action * jnp.tanh(x2 @ params["wl3"] + params["bl3"])
    return scored, action


if __name__ == "__main__":
    n_states, n_actions = 8, 4
    B, T = 2, 6
    max_action = 2.0

    key = jax.random.PRNGKey(0)
    kp, kh, kc, khist, kstate = jax.random.split(key, 5)
    params = init_params(kp, n_states, n_actions)
    h0 = jax.random.normal(kh, (2, B, HIDDEN), jnp.float32)
    c0 = jax.random.normal(kc, (2, B, HIDDEN), jnp.float32)
    history = jax.random.normal(khist, (B, T, n_states + n_actions), jnp.float32)
    state = jax.random.normal(kstate, (B, n_states), jnp.float32)

    scored, action = jax.block_until_ready(
        actor_forward(history, state, params, h0, c0, max_action))

    # reference uses the same bf16-rounded weights the kernel consumes, in f32 math
    params_ref = dict(params)
    for name in ("wih0", "whh0", "wih1", "whh1", "wla"):
        params_ref[name] = params[name].astype(jnp.bfloat16).astype(jnp.float32)
    scored_exp, action_exp = actor_reference(history, state, params_ref, h0, c0,
                                             max_action)

    np.testing.assert_allclose(np.asarray(action), np.asarray(action_exp),
                               rtol=1e-3, atol=1e-3)
    np.testing.assert_allclose(np.asarray(scored), np.asarray(scored_exp),
                               rtol=2e-3, atol=2e-3)
    assert scored.shape == (B, T, HIDDEN)
    assert action.shape == (B, n_actions)
    print("KERNEL_OK")
</pallas_src>

<mosaic_0001>
module attributes {stable_mosaic.version = 11 : i64} {
  func.func @actor_kernel(%arg0: memref<48x12xf32, #tpu.memory_space<vmem>>, %arg1: memref<8x8xf32, #tpu.memory_space<vmem>>, %arg2: memref<2x8x128xf32, #tpu.memory_space<vmem>>, %arg3: memref<2x8x128xf32, #tpu.memory_space<vmem>>, %arg4: memref<12x512xbf16, #tpu.memory_space<vmem>>, %arg5: memref<128x512xbf16, #tpu.memory_space<vmem>>, %arg6: memref<1x512xf32, #tpu.memory_space<vmem>>, %arg7: memref<128x512xbf16, #tpu.memory_space<vmem>>, %arg8: memref<128x512xbf16, #tpu.memory_space<vmem>>, %arg9: memref<1x512xf32, #tpu.memory_space<vmem>>, %arg10: memref<128x256xbf16, #tpu.memory_space<vmem>>, %arg11: memref<1x256xf32, #tpu.memory_space<vmem>>, %arg12: memref<8x128xf32, #tpu.memory_space<vmem>>, %arg13: memref<1x128xf32, #tpu.memory_space<vmem>>, %arg14: memref<128x128xf32, #tpu.memory_space<vmem>>, %arg15: memref<1x128xf32, #tpu.memory_space<vmem>>, %arg16: memref<128x4xf32, #tpu.memory_space<vmem>>, %arg17: memref<1x4xf32, #tpu.memory_space<vmem>>, %arg18: memref<48x128xf32, #tpu.memory_space<vmem>>, %arg19: memref<8x4xf32, #tpu.memory_space<vmem>>, %arg20: memref<48x512xf32, #tpu.memory_space<vmem>>, %arg21: memref<128x512xf32, #tpu.memory_space<vmem>>, %arg22: memref<128x512xf32, #tpu.memory_space<vmem>>, %arg23: memref<128x512xf32, #tpu.memory_space<vmem>>) attributes {dimension_semantics = [], scalar_prefetch = 0 : i64, scratch_operands = 4 : i64, tpu.core_type = #tpu.core_type<tc>} {
    %c0 = arith.constant 0 : index
    %c0_0 = arith.constant 0 : index
    %0 = vector.load %arg1[%c0, %c0_0] : memref<8x8xf32, #tpu.memory_space<vmem>>, vector<8x8xf32>
    %c0_1 = arith.constant 0 : index
    %c0_2 = arith.constant 0 : index
    %1 = vector.load %arg12[%c0_1, %c0_2] : memref<8x128xf32, #tpu.memory_space<vmem>>, vector<8x128xf32>
    %cst = arith.constant dense<0.000000e+00> : vector<8x128xf32>
    %2 = tpu.matmul %0, %1, %cst {dimension_numbers = #tpu.dot_dimension_numbers<[1], [0], [0], [1], [0, 0, 1, 1], [], []>} : vector<8x8xf32>, vector<8x128xf32>, vector<8x128xf32> -> vector<8x128xf32>
    %c0_3 = arith.constant 0 : index
    %c0_4 = arith.constant 0 : index
    %3 = vector.load %arg13[%c0_3, %c0_4] : memref<1x128xf32, #tpu.memory_space<vmem>>, vector<1x128xf32>
    %4 = vector.broadcast %3 : vector<1x128xf32> to vector<8x128xf32>
    %5 = arith.addf %2, %4 : vector<8x128xf32>
    %cst_5 = arith.constant 0.000000e+00 : f32
    %6 = vector.broadcast %cst_5 : f32 to vector<8x128xf32>
    %7 = arith.maximumf %5, %6 : vector<8x128xf32>
    %c0_6 = arith.constant 0 : index
    %c0_7 = arith.constant 0 : index
    %8 = vector.load %arg14[%c0_6, %c0_7] : memref<128x128xf32, #tpu.memory_space<vmem>>, vector<128x128xf32>
    %cst_8 = arith.constant dense<0.000000e+00> : vector<8x128xf32>
    %9 = tpu.matmul %7, %8, %cst_8 {dimension_numbers = #tpu.dot_dimension_numbers<[1], [0], [0], [1], [0, 0, 1, 1], [], []>} : vector<8x128xf32>, vector<128x128xf32>, vector<8x128xf32> -> vector<8x128xf32>
    %c0_9 = arith.constant 0 : index
    %c0_10 = arith.constant 0 : index
    %10 = vector.load %arg15[%c0_9, %c0_10] : memref<1x128xf32, #tpu.memory_space<vmem>>, vector<1x128xf32>
    %11 = vector.broadcast %10 : vector<1x128xf32> to vector<8x128xf32>
    %12 = arith.addf %9, %11 : vector<8x128xf32>
    %cst_11 = arith.constant 0.000000e+00 : f32
    %13 = vector.broadcast %cst_11 : f32 to vector<8x128xf32>
    %14 = arith.maximumf %12, %13 : vector<8x128xf32>
    %c0_12 = arith.constant 0 : index
    %c0_13 = arith.constant 0 : index
    %15 = vector.load %arg16[%c0_12, %c0_13] : memref<128x4xf32, #tpu.memory_space<vmem>>, vector<128x4xf32>
    %cst_14 = arith.constant dense<0.000000e+00> : vector<8x4xf32>
    %16 = tpu.matmul %14, %15, %cst_14 {dimension_numbers = #tpu.dot_dimension_numbers<[1], [0], [0], [1], [0, 0, 1, 1], [], []>} : vector<8x128xf32>, vector<128x4xf32>, vector<8x4xf32> -> vector<8x4xf32>
    %c0_15 = arith.constant 0 : index
    %c0_16 = arith.constant 0 : index
    %17 = vector.load %arg17[%c0_15, %c0_16] : memref<1x4xf32, #tpu.memory_space<vmem>>, vector<1x4xf32>
    %18 = vector.broadcast %17 : vector<1x4xf32> to vector<8x4xf32>
    %19 = arith.addf %16, %18 : vector<8x4xf32>
    %20 = math.tanh %19 : vector<8x4xf32>
    %cst_17 = arith.constant 2.000000e+00 : f32
    %21 = vector.broadcast %cst_17 : f32 to vector<8x4xf32>
    %22 = arith.mulf %21, %20 : vector<8x4xf32>
    %c0_18 = arith.constant 0 : index
    %c0_19 = arith.constant 0 : index
    %23 = vector.load %arg19[%c0_18, %c0_19] : memref<8x4xf32, #tpu.memory_space<vmem>>, vector<8x4xf32>
    tpu.vector_store %arg19[%c0_18, %c0_19], %22 {strides = array<i32>} : memref<8x4xf32, #tpu.memory_space<vmem>>, vector<8x4xf32>,
    %c0_20 = arith.constant 0 : index
    %c0_21 = arith.constant 0 : index
    %24 = vector.load %arg5[%c0_20, %c0_21] : memref<128x512xbf16, #tpu.memory_space<vmem>>, vector<128x512xbf16>
    %25 = arith.extf %24 : vector<128x512xbf16> to vector<128x512xf32>
    %c0_22 = arith.constant 0 : index
    %c0_23 = arith.constant 0 : index
    %26 = vector.load %arg21[%c0_22, %c0_23] : memref<128x512xf32, #tpu.memory_space<vmem>>, vector<128x512xf32>
    tpu.vector_store %arg21[%c0_22, %c0_23], %25 {strides = array<i32>} : memref<128x512xf32, #tpu.memory_space<vmem>>, vector<128x512xf32>,
    %c0_24 = arith.constant 0 : index
    %c0_25 = arith.constant 0 : index
    %27 = vector.load %arg7[%c0_24, %c0_25] : memref<128x512xbf16, #tpu.memory_space<vmem>>, vector<128x512xbf16>
    %28 = arith.extf %27 : vector<128x512xbf16> to vector<128x512xf32>
    %c0_26 = arith.constant 0 : index
    %c0_27 = arith.constant 0 : index
    %29 = vector.load %arg22[%c0_26, %c0_27] : memref<128x512xf32, #tpu.memory_space<vmem>>, vector<128x512xf32>
    tpu.vector_store %arg22[%c0_26, %c0_27], %28 {strides = array<i32>} : memref<128x512xf32, #tpu.memory_space<vmem>>, vector<128x512xf32>,
    %c0_28 = arith.constant 0 : index
    %c0_29 = arith.constant 0 : index
    %30 = vector.load %arg8[%c0_28, %c0_29] : memref<128x512xbf16, #tpu.memory_space<vmem>>, vector<128x512xbf16>
    %31 = arith.extf %30 : vector<128x512xbf16> to vector<128x512xf32>
    %c0_30 = arith.constant 0 : index
    %c0_31 = arith.constant 0 : index
    %32 = vector.load %arg23[%c0_30, %c0_31] : memref<128x512xf32, #tpu.memory_space<vmem>>, vector<128x512xf32>
    tpu.vector_store %arg23[%c0_30, %c0_31], %31 {strides = array<i32>} : memref<128x512xf32, #tpu.memory_space<vmem>>, vector<128x512xf32>,
    %c0_32 = arith.constant 0 : index
    %c0_33 = arith.constant 0 : index
    %33 = vector.load %arg0[%c0_32, %c0_33] : memref<48x12xf32, #tpu.memory_space<vmem>>, vector<48x12xf32>
    %c0_34 = arith.constant 0 : index
    %c0_35 = arith.constant 0 : index
    %34 = vector.load %arg4[%c0_34, %c0_35] : memref<12x512xbf16, #tpu.memory_space<vmem>>, vector<12x512xbf16>
    %35 = arith.extf %34 : vector<12x512xbf16> to vector<12x512xf32>
    %cst_36 = arith.constant dense<0.000000e+00> : vector<48x512xf32>
    %36 = tpu.matmul %33, %35, %cst_36 {dimension_numbers = #tpu.dot_dimension_numbers<[1], [0], [0], [1], [0, 0, 1, 1], [], []>} : vector<48x12xf32>, vector<12x512xf32>, vector<48x512xf32> -> vector<48x512xf32>
    %c0_37 = arith.constant 0 : index
    %c0_38 = arith.constant 0 : index
    %37 = vector.load %arg6[%c0_37, %c0_38] : memref<1x512xf32, #tpu.memory_space<vmem>>, vector<1x512xf32>
    %38 = vector.broadcast %37 : vector<1x512xf32> to vector<48x512xf32>
    %39 = arith.addf %36, %38 : vector<48x512xf32>
    %c0_39 = arith.constant 0 : index
    %c0_40 = arith.constant 0 : index
    %40 = vector.load %arg20[%c0_39, %c0_40] : memref<48x512xf32, #tpu.memory_space<vmem>>, vector<48x512xf32>
    tpu.vector_store %arg20[%c0_39, %c0_40], %39 {strides = array<i32>} : memref<48x512xf32, #tpu.memory_space<vmem>>, vector<48x512xf32>,
    %c0_41 = arith.constant 0 : index
    %c0_42 = arith.constant 0 : index
    %c0_43 = arith.constant 0 : index
    %41 = vector.load %arg2[%c0_41, %c0_42, %c0_43] : memref<2x8x128xf32, #tpu.memory_space<vmem>>, vector<1x8x128xf32>
    %42 = vector.shape_cast %41 : vector<1x8x128xf32> to vector<8x128xf32>
    %c0_44 = arith.constant 0 : index
    %c0_45 = arith.constant 0 : index
    %c0_46 = arith.constant 0 : index
    %43 = vector.load %arg3[%c0_44, %c0_45, %c0_46] : memref<2x8x128xf32, #tpu.memory_space<vmem>>, vector<1x8x128xf32>
    %44 = vector.shape_cast %43 : vector<1x8x128xf32> to vector<8x128xf32>
    %c1 = arith.constant 1 : index
    %c0_47 = arith.constant 0 : index
    %c0_48 = arith.constant 0 : index
    %45 = vector.load %arg2[%c1, %c0_47, %c0_48] : memref<2x8x128xf32, #tpu.memory_space<vmem>>, vector<1x8x128xf32>
    %46 = vector.shape_cast %45 : vector<1x8x128xf32> to vector<8x128xf32>
    %c1_49 = arith.constant 1 : index
    %c0_50 = arith.constant 0 : index
    %c0_51 = arith.constant 0 : index
    %47 = vector.load %arg3[%c1_49, %c0_50, %c0_51] : memref<2x8x128xf32, #tpu.memory_space<vmem>>, vector<1x8x128xf32>
    %48 = vector.shape_cast %47 : vector<1x8x128xf32> to vector<8x128xf32>
    %c0_i32 = arith.constant 0 : i32
    %c8_i32 = arith.constant 8 : i32
    %49 = arith.muli %c0_i32, %c8_i32 : i32
    %50 = arith.index_cast %49 : i32 to index
    %c0_52 = arith.constant 0 : index
    %51 = vector.load %arg20[%50, %c0_52] : memref<48x512xf32, #tpu.memory_space<vmem>>, vector<8x512xf32>
    %c0_53 = arith.constant 0 : index
    %c0_54 = arith.constant 0 : index
    %52 = vector.load %arg21[%c0_53, %c0_54] : memref<128x512xf32, #tpu.memory_space<vmem>>, vector<128x512xf32>
    %cst_55 = arith.constant dense<0.000000e+00> : vector<8x512xf32>
    %53 = tpu.matmul %42, %52, %cst_55 {dimension_numbers = #tpu.dot_dimension_numbers<[1], [0], [0], [1], [0, 0, 1, 1], [], []>} : vector<8x128xf32>, vector<128x512xf32>, vector<8x512xf32> -> vector<8x512xf32>
    %54 = arith.addf %51, %53 : vector<8x512xf32>
    %55 = math.tanh %54 : vector<8x512xf32>
    %56 = vector.extract_strided_slice %55 {offsets = [0, 0], sizes = [8, 128], strides = [1, 1]} : vector<8x512xf32> to vector<8x128xf32>
    %cst_56 = arith.constant 1.000000e+00 : f32
    %57 = vector.broadcast %cst_56 : f32 to vector<8x128xf32>
    %58 = arith.addf %56, %57 : vector<8x128xf32>
    %cst_57 = arith.constant 5.000000e-01 : f32
    %59 = vector.broadcast %cst_57 : f32 to vector<8x128xf32>
    %60 = arith.mulf %59, %58 : vector<8x128xf32>
    %61 = vector.extract_strided_slice %55 {offsets = [0, 128], sizes = [8, 128], strides = [1, 1]} : vector<8x512xf32> to vector<8x128xf32>
    %cst_58 = arith.constant 1.000000e+00 : f32
    %62 = vector.broadcast %cst_58 : f32 to vector<8x128xf32>
    %63 = arith.addf %61, %62 : vector<8x128xf32>
    %cst_59 = arith.constant 5.000000e-01 : f32
    %64 = vector.broadcast %cst_59 : f32 to vector<8x128xf32>
    %65 = arith.mulf %64, %63 : vector<8x128xf32>
    %66 = vector.extract_strided_slice %55 {offsets = [0, 256], sizes = [8, 128], strides = [1, 1]} : vector<8x512xf32> to vector<8x128xf32>
    %67 = vector.extract_strided_slice %55 {offsets = [0, 384], sizes = [8, 128], strides = [1, 1]} : vector<8x512xf32> to vector<8x128xf32>
    %cst_60 = arith.constant 1.000000e+00 : f32
    %68 = vector.broadcast %cst_60 : f32 to vector<8x128xf32>
    %69 = arith.addf %67, %68 : vector<8x128xf32>
    %cst_61 = arith.constant 5.000000e-01 : f32
    %70 = vector.broadcast %cst_61 : f32 to vector<8x128xf32>
    %71 = arith.mulf %70, %69 : vector<8x128xf32>
    %72 = arith.mulf %65, %44 : vector<8x128xf32>
    %73 = arith.mulf %60, %66 : vector<8x128xf32>
    %74 = arith.addf %72, %73 : vector<8x128xf32>
    %75 = math.tanh %74 : vector<8x128xf32>
    %76 = arith.mulf %71, %75 : vector<8x128xf32>
    %c0_62 = arith.constant 0 : index
    %c0_63 = arith.constant 0 : index
    %77 = vector.load %arg22[%c0_62, %c0_63] : memref<128x512xf32, #tpu.memory_space<vmem>>, vector<128x512xf32>
    %cst_64 = arith.constant dense<0.000000e+00> : vector<8x512xf32>
    %78 = tpu.matmul %76, %77, %cst_64 {dimension_numbers = #tpu.dot_dimension_numbers<[1], [0], [0], [1], [0, 0, 1, 1], [], []>} : vector<8x128xf32>, vector<128x512xf32>, vector<8x512xf32> -> vector<8x512xf32>
    %c0_65 = arith.constant 0 : index
    %c0_66 = arith.constant 0 : index
    %79 = vector.load %arg23[%c0_65, %c0_66] : memref<128x512xf32, #tpu.memory_space<vmem>>, vector<128x512xf32>
    %cst_67 = arith.constant dense<0.000000e+00> : vector<8x512xf32>
    %80 = tpu.matmul %46, %79, %cst_67 {dimension_numbers = #tpu.dot_dimension_numbers<[1], [0], [0], [1], [0, 0, 1, 1], [], []>} : vector<8x128xf32>, vector<128x512xf32>, vector<8x512xf32> -> vector<8x512xf32>
    %81 = arith.addf %78, %80 : vector<8x512xf32>
    %c0_68 = arith.constant 0 : index
    %c0_69 = arith.constant 0 : index
    %82 = vector.load %arg9[%c0_68, %c0_69] : memref<1x512xf32, #tpu.memory_space<vmem>>, vector<1x512xf32>
    %83 = vector.broadcast %82 : vector<1x512xf32> to vector<8x512xf32>
    %84 = arith.addf %81, %83 : vector<8x512xf32>
    %85 = math.tanh %84 : vector<8x512xf32>
    %86 = vector.extract_strided_slice %85 {offsets = [0, 0], sizes = [8, 128], strides = [1, 1]} : vector<8x512xf32> to vector<8x128xf32>
    %cst_70 = arith.constant 1.000000e+00 : f32
    %87 = vector.broadcast %cst_70 : f32 to vector<8x128xf32>
    %88 = arith.addf %86, %87 : vector<8x128xf32>
    %cst_71 = arith.constant 5.000000e-01 : f32
    %89 = vector.broadcast %cst_71 : f32 to vector<8x128xf32>
    %90 = arith.mulf %89, %88 : vector<8x128xf32>
    %91 = vector.extract_strided_slice %85 {offsets = [0, 128], sizes = [8, 128], strides = [1, 1]} : vector<8x512xf32> to vector<8x128xf32>
    %cst_72 = arith.constant 1.000000e+00 : f32
    %92 = vector.broadcast %cst_72 : f32 to vector<8x128xf32>
    %93 = arith.addf %91, %92 : vector<8x128xf32>
    %cst_73 = arith.constant 5.000000e-01 : f32
    %94 = vector.broadcast %cst_73 : f32 to vector<8x128xf32>
    %95 = arith.mulf %94, %93 : vector<8x128xf32>
    %96 = vector.extract_strided_slice %85 {offsets = [0, 256], sizes = [8, 128], strides = [1, 1]} : vector<8x512xf32> to vector<8x128xf32>
    %97 = vector.extract_strided_slice %85 {offsets = [0, 384], sizes = [8, 128], strides = [1, 1]} : vector<8x512xf32> to vector<8x128xf32>
    %cst_74 = arith.constant 1.000000e+00 : f32
    %98 = vector.broadcast %cst_74 : f32 to vector<8x128xf32>
    %99 = arith.addf %97, %98 : vector<8x128xf32>
    %cst_75 = arith.constant 5.000000e-01 : f32
    %100 = vector.broadcast %cst_75 : f32 to vector<8x128xf32>
    %101 = arith.mulf %100, %99 : vector<8x128xf32>
    %102 = arith.mulf %95, %48 : vector<8x128xf32>
    %103 = arith.mulf %90, %96 : vector<8x128xf32>
    %104 = arith.addf %102, %103 : vector<8x128xf32>
    %105 = math.tanh %104 : vector<8x128xf32>
    %106 = arith.mulf %101, %105 : vector<8x128xf32>
    %107 = arith.index_cast %49 : i32 to index
    %c0_76 = arith.constant 0 : index
    %108 = vector.load %arg18[%107, %c0_76] : memref<48x128xf32, #tpu.memory_space<vmem>>, vector<8x128xf32>
    tpu.vector_store %arg18[%107, %c0_76], %106 {strides = array<i32>} : memref<48x128xf32, #tpu.memory_space<vmem>>, vector<8x128xf32>,
    %c1_i32 = arith.constant 1 : i32
    %c8_i32_77 = arith.constant 8 : i32
    %109 = arith.muli %c1_i32, %c8_i32_77 : i32
    %110 = arith.index_cast %109 : i32 to index
    %c0_78 = arith.constant 0 : index
    %111 = vector.load %arg20[%110, %c0_78] : memref<48x512xf32, #tpu.memory_space<vmem>>, vector<8x512xf32>
    %c0_79 = arith.constant 0 : index
    %c0_80 = arith.constant 0 : index
    %112 = vector.load %arg21[%c0_79, %c0_80] : memref<128x512xf32, #tpu.memory_space<vmem>>, vector<128x512xf32>
    %cst_81 = arith.constant dense<0.000000e+00> : vector<8x512xf32>
    %113 = tpu.matmul %76, %112, %cst_81 {dimension_numbers = #tpu.dot_dimension_numbers<[1], [0], [0], [1], [0, 0, 1, 1], [], []>} : vector<8x128xf32>, vector<128x512xf32>, vector<8x512xf32> -> vector<8x512xf32>
    %114 = arith.addf %111, %113 : vector<8x512xf32>
    %115 = math.tanh %114 : vector<8x512xf32>
    %116 = vector.extract_strided_slice %115 {offsets = [0, 0], sizes = [8, 128], strides = [1, 1]} : vector<8x512xf32> to vector<8x128xf32>
    %cst_82 = arith.constant 1.000000e+00 : f32
    %117 = vector.broadcast %cst_82 : f32 to vector<8x128xf32>
    %118 = arith.addf %116, %117 : vector<8x128xf32>
    %cst_83 = arith.constant 5.000000e-01 : f32
    %119 = vector.broadcast %cst_83 : f32 to vector<8x128xf32>
    %120 = arith.mulf %119, %118 : vector<8x128xf32>
    %121 = vector.extract_strided_slice %115 {offsets = [0, 128], sizes = [8, 128], strides = [1, 1]} : vector<8x512xf32> to vector<8x128xf32>
    %cst_84 = arith.constant 1.000000e+00 : f32
    %122 = vector.broadcast %cst_84 : f32 to vector<8x128xf32>
    %123 = arith.addf %121, %122 : vector<8x128xf32>
    %cst_85 = arith.constant 5.000000e-01 : f32
    %124 = vector.broadcast %cst_85 : f32 to vector<8x128xf32>
    %125 = arith.mulf %124, %123 : vector<8x128xf32>
    %126 = vector.extract_strided_slice %115 {offsets = [0, 256], sizes = [8, 128], strides = [1, 1]} : vector<8x512xf32> to vector<8x128xf32>
    %127 = vector.extract_strided_slice %115 {offsets = [0, 384], sizes = [8, 128], strides = [1, 1]} : vector<8x512xf32> to vector<8x128xf32>
    %cst_86 = arith.constant 1.000000e+00 : f32
    %128 = vector.broadcast %cst_86 : f32 to vector<8x128xf32>
    %129 = arith.addf %127, %128 : vector<8x128xf32>
    %cst_87 = arith.constant 5.000000e-01 : f32
    %130 = vector.broadcast %cst_87 : f32 to vector<8x128xf32>
    %131 = arith.mulf %130, %129 : vector<8x128xf32>
    %132 = arith.mulf %125, %74 : vector<8x128xf32>
    %133 = arith.mulf %120, %126 : vector<8x128xf32>
    %134 = arith.addf %132, %133 : vector<8x128xf32>
    %135 = math.tanh %134 : vector<8x128xf32>
    %136 = arith.mulf %131, %135 : vector<8x128xf32>
    %c0_88 = arith.constant 0 : index
    %c0_89 = arith.constant 0 : index
    %137 = vector.load %arg22[%c0_88, %c0_89] : memref<128x512xf32, #tpu.memory_space<vmem>>, vector<128x512xf32>
    %cst_90 = arith.constant dense<0.000000e+00> : vector<8x512xf32>
    %138 = tpu.matmul %136, %137, %cst_90 {dimension_numbers = #tpu.dot_dimension_numbers<[1], [0], [0], [1], [0, 0, 1, 1], [], []>} : vector<8x128xf32>, vector<128x512xf32>, vector<8x512xf32> -> vector<8x512xf32>
    %c0_91 = arith.constant 0 : index
    %c0_92 = arith.constant 0 : index
    %139 = vector.load %arg23[%c0_91, %c0_92] : memref<128x512xf32, #tpu.memory_space<vmem>>, vector<128x512xf32>
    %cst_93 = arith.constant dense<0.000000e+00> : vector<8x512xf32>
    %140 = tpu.matmul %106, %139, %cst_93 {dimension_numbers = #tpu.dot_dimension_numbers<[1], [0], [0], [1], [0, 0, 1, 1], [], []>} : vector<8x128xf32>, vector<128x512xf32>, vector<8x512xf32> -> vector<8x512xf32>
    %141 = arith.addf %138, %140 : vector<8x512xf32>
    %c0_94 = arith.constant 0 : index
    %c0_95 = arith.constant 0 : index
    %142 = vector.load %arg9[%c0_94, %c0_95] : memref<1x512xf32, #tpu.memory_space<vmem>>, vector<1x512xf32>
    %143 = vector.broadcast %142 : vector<1x512xf32> to vector<8x512xf32>
    %144 = arith.addf %141, %143 : vector<8x512xf32>
    %145 = math.tanh %144 : vector<8x512xf32>
    %146 = vector.extract_strided_slice %145 {offsets = [0, 0], sizes = [8, 128], strides = [1, 1]} : vector<8x512xf32> to vector<8x128xf32>
    %cst_96 = arith.constant 1.000000e+00 : f32
    %147 = vector.broadcast %cst_96 : f32 to vector<8x128xf32>
    %148 = arith.addf %146, %147 : vector<8x128xf32>
    %cst_97 = arith.constant 5.000000e-01 : f32
    %149 = vector.broadcast %cst_97 : f32 to vector<8x128xf32>
    %150 = arith.mulf %149, %148 : vector<8x128xf32>
    %151 = vector.extract_strided_slice %145 {offsets = [0, 128], sizes = [8, 128], strides = [1, 1]} : vector<8x512xf32> to vector<8x128xf32>
    %cst_98 = arith.constant 1.000000e+00 : f32
    %152 = vector.broadcast %cst_98 : f32 to vector<8x128xf32>
    %153 = arith.addf %151, %152 : vector<8x128xf32>
    %cst_99 = arith.constant 5.000000e-01 : f32
    %154 = vector.broadcast %cst_99 : f32 to vector<8x128xf32>
    %155 = arith.mulf %154, %153 : vector<8x128xf32>
    %156 = vector.extract_strided_slice %145 {offsets = [0, 256], sizes = [8, 128], strides = [1, 1]} : vector<8x512xf32> to vector<8x128xf32>
    %157 = vector.extract_strided_slice %145 {offsets = [0, 384], sizes = [8, 128], strides = [1, 1]} : vector<8x512xf32> to vector<8x128xf32>
    %cst_100 = arith.constant 1.000000e+00 : f32
    %158 = vector.broadcast %cst_100 : f32 to vector<8x128xf32>
    %159 = arith.addf %157, %158 : vector<8x128xf32>
    %cst_101 = arith.constant 5.000000e-01 : f32
    %160 = vector.broadcast %cst_101 : f32 to vector<8x128xf32>
    %161 = arith.mulf %160, %159 : vector<8x128xf32>
    %162 = arith.mulf %155, %104 : vector<8x128xf32>
    %163 = arith.mulf %150, %156 : vector<8x128xf32>
    %164 = arith.addf %162, %163 : vector<8x128xf32>
    %165 = math.tanh %164 : vector<8x128xf32>
    %166 = arith.mulf %161, %165 : vector<8x128xf32>
    %167 = arith.index_cast %109 : i32 to index
    %c0_102 = arith.constant 0 : index
    %168 = vector.load %arg18[%167, %c0_102] : memref<48x128xf32, #tpu.memory_space<vmem>>, vector<8x128xf32>
    tpu.vector_store %arg18[%167, %c0_102], %166 {strides = array<i32>} : memref<48x128xf32, #tpu.memory_space<vmem>>, vector<8x128xf32>,
    %c2_i32 = arith.constant 2 : i32
    %c8_i32_103 = arith.constant 8 : i32
    %169 = arith.muli %c2_i32, %c8_i32_103 : i32
    %170 = arith.index_cast %169 : i32 to index
    %c0_104 = arith.constant 0 : index
    %171 = vector.load %arg20[%170, %c0_104] : memref<48x512xf32, #tpu.memory_space<vmem>>, vector<8x512xf32>
    %c0_105 = arith.constant 0 : index
    %c0_106 = arith.constant 0 : index
    %172 = vector.load %arg21[%c0_105, %c0_106] : memref<128x512xf32, #tpu.memory_space<vmem>>, vector<128x512xf32>
    %cst_107 = arith.constant dense<0.000000e+00> : vector<8x512xf32>
    %173 = tpu.matmul %136, %172, %cst_107 {dimension_numbers = #tpu.dot_dimension_numbers<[1], [0], [0], [1], [0, 0, 1, 1], [], []>} : vector<8x128xf32>, vector<128x512xf32>, vector<8x512xf32> -> vector<8x512xf32>
    %174 = arith.addf %171, %173 : vector<8x512xf32>
    %175 = math.tanh %174 : vector<8x512xf32>
    %176 = vector.extract_strided_slice %175 {offsets = [0, 0], sizes = [8, 128], strides = [1, 1]} : vector<8x512xf32> to vector<8x128xf32>
    %cst_108 = arith.constant 1.000000e+00 : f32
    %177 = vector.broadcast %cst_108 : f32 to vector<8x128xf32>
    %178 = arith.addf %176, %177 : vector<8x128xf32>
    %cst_109 = arith.constant 5.000000e-01 : f32
    %179 = vector.broadcast %cst_109 : f32 to vector<8x128xf32>
    %180 = arith.mulf %179, %178 : vector<8x128xf32>
    %181 = vector.extract_strided_slice %175 {offsets = [0, 128], sizes = [8, 128], strides = [1, 1]} : vector<8x512xf32> to vector<8x128xf32>
    %cst_110 = arith.constant 1.000000e+00 : f32
    %182 = vector.broadcast %cst_110 : f32 to vector<8x128xf32>
    %183 = arith.addf %181, %182 : vector<8x128xf32>
    %cst_111 = arith.constant 5.000000e-01 : f32
    %184 = vector.broadcast %cst_111 : f32 to vector<8x128xf32>
    %185 = arith.mulf %184, %183 : vector<8x128xf32>
    %186 = vector.extract_strided_slice %175 {offsets = [0, 256], sizes = [8, 128], strides = [1, 1]} : vector<8x512xf32> to vector<8x128xf32>
    %187 = vector.extract_strided_slice %175 {offsets = [0, 384], sizes = [8, 128], strides = [1, 1]} : vector<8x512xf32> to vector<8x128xf32>
    %cst_112 = arith.constant 1.000000e+00 : f32
    %188 = vector.broadcast %cst_112 : f32 to vector<8x128xf32>
    %189 = arith.addf %187, %188 : vector<8x128xf32>
    %cst_113 = arith.constant 5.000000e-01 : f32
    %190 = vector.broadcast %cst_113 : f32 to vector<8x128xf32>
    %191 = arith.mulf %190, %189 : vector<8x128xf32>
    %192 = arith.mulf %185, %134 : vector<8x128xf32>
    %193 = arith.mulf %180, %186 : vector<8x128xf32>
    %194 = arith.addf %192, %193 : vector<8x128xf32>
    %195 = math.tanh %194 : vector<8x128xf32>
    %196 = arith.mulf %191, %195 : vector<8x128xf32>
    %c0_114 = arith.constant 0 : index
    %c0_115 = arith.constant 0 : index
    %197 = vector.load %arg22[%c0_114, %c0_115] : memref<128x512xf32, #tpu.memory_space<vmem>>, vector<128x512xf32>
    %cst_116 = arith.constant dense<0.000000e+00> : vector<8x512xf32>
    %198 = tpu.matmul %196, %197, %cst_116 {dimension_numbers = #tpu.dot_dimension_numbers<[1], [0], [0], [1], [0, 0, 1, 1], [], []>} : vector<8x128xf32>, vector<128x512xf32>, vector<8x512xf32> -> vector<8x512xf32>
    %c0_117 = arith.constant 0 : index
    %c0_118 = arith.constant 0 : index
    %199 = vector.load %arg23[%c0_117, %c0_118] : memref<128x512xf32, #tpu.memory_space<vmem>>, vector<128x512xf32>
    %cst_119 = arith.constant dense<0.000000e+00> : vector<8x512xf32>
    %200 = tpu.matmul %166, %199, %cst_119 {dimension_numbers = #tpu.dot_dimension_numbers<[1], [0], [0], [1], [0, 0, 1, 1], [], []>} : vector<8x128xf32>, vector<128x512xf32>, vector<8x512xf32> -> vector<8x512xf32>
    %201 = arith.addf %198, %200 : vector<8x512xf32>
    %c0_120 = arith.constant 0 : index
    %c0_121 = arith.constant 0 : index
    %202 = vector.load %arg9[%c0_120, %c0_121] : memref<1x512xf32, #tpu.memory_space<vmem>>, vector<1x512xf32>
    %203 = vector.broadcast %202 : vector<1x512xf32> to vector<8x512xf32>
    %204 = arith.addf %201, %203 : vector<8x512xf32>
    %205 = math.tanh %204 : vector<8x512xf32>
    %206 = vector.extract_strided_slice %205 {offsets = [0, 0], sizes = [8, 128], strides = [1, 1]} : vector<8x512xf32> to vector<8x128xf32>
    %cst_122 = arith.constant 1.000000e+00 : f32
    %207 = vector.broadcast %cst_122 : f32 to vector<8x128xf32>
    %208 = arith.addf %206, %207 : vector<8x128xf32>
    %cst_123 = arith.constant 5.000000e-01 : f32
    %209 = vector.broadcast %cst_123 : f32 to vector<8x128xf32>
    %210 = arith.mulf %209, %208 : vector<8x128xf32>
    %211 = vector.extract_strided_slice %205 {offsets = [0, 128], sizes = [8, 128], strides = [1, 1]} : vector<8x512xf32> to vector<8x128xf32>
    %cst_124 = arith.constant 1.000000e+00 : f32
    %212 = vector.broadcast %cst_124 : f32 to vector<8x128xf32>
    %213 = arith.addf %211, %212 : vector<8x128xf32>
    %cst_125 = arith.constant 5.000000e-01 : f32
    %214 = vector.broadcast %cst_125 : f32 to vector<8x128xf32>
    %215 = arith.mulf %214, %213 : vector<8x128xf32>
    %216 = vector.extract_strided_slice %205 {offsets = [0, 256], sizes = [8, 128], strides = [1, 1]} : vector<8x512xf32> to vector<8x128xf32>
    %217 = vector.extract_strided_slice %205 {offsets = [0, 384], sizes = [8, 128], strides = [1, 1]} : vector<8x512xf32> to vector<8x128xf32>
    %cst_126 = arith.constant 1.000000e+00 : f32
    %218 = vector.broadcast %cst_126 : f32 to vector<8x128xf32>
    %219 = arith.addf %217, %218 : vector<8x128xf32>
    %cst_127 = arith.constant 5.000000e-01 : f32
    %220 = vector.broadcast %cst_127 : f32 to vector<8x128xf32>
    %221 = arith.mulf %220, %219 : vector<8x128xf32>
    %222 = arith.mulf %215, %164 : vector<8x128xf32>
    %223 = arith.mulf %210, %216 : vector<8x128xf32>
    %224 = arith.addf %222, %223 : vector<8x128xf32>
    %225 = math.tanh %224 : vector<8x128xf32>
    %226 = arith.mulf %221, %225 : vector<8x128xf32>
    %227 = arith.index_cast %169 : i32 to index
    %c0_128 = arith.constant 0 : index
    %228 = vector.load %arg18[%227, %c0_128] : memref<48x128xf32, #tpu.memory_space<vmem>>, vector<8x128xf32>
    tpu.vector_store %arg18[%227, %c0_128], %226 {strides = array<i32>} : memref<48x128xf32, #tpu.memory_space<vmem>>, vector<8x128xf32>,
    %c3_i32 = arith.constant 3 : i32
    %c8_i32_129 = arith.constant 8 : i32
    %229 = arith.muli %c3_i32, %c8_i32_129 : i32
    %230 = arith.index_cast %229 : i32 to index
    %c0_130 = arith.constant 0 : index
    %231 = vector.load %arg20[%230, %c0_130] : memref<48x512xf32, #tpu.memory_space<vmem>>, vector<8x512xf32>
    %c0_131 = arith.constant 0 : index
    %c0_132 = arith.constant 0 : index
    %232 = vector.load %arg21[%c0_131, %c0_132] : memref<128x512xf32, #tpu.memory_space<vmem>>, vector<128x512xf32>
    %cst_133 = arith.constant dense<0.000000e+00> : vector<8x512xf32>
    %233 = tpu.matmul %196, %232, %cst_133 {dimension_numbers = #tpu.dot_dimension_numbers<[1], [0], [0], [1], [0, 0, 1, 1], [], []>} : vector<8x128xf32>, vector<128x512xf32>, vector<8x512xf32> -> vector<8x512xf32>
    %234 = arith.addf %231, %233 : vector<8x512xf32>
    %235 = math.tanh %234 : vector<8x512xf32>
    %236 = vector.extract_strided_slice %235 {offsets = [0, 0], sizes = [8, 128], strides = [1, 1]} : vector<8x512xf32> to vector<8x128xf32>
    %cst_134 = arith.constant 1.000000e+00 : f32
    %237 = vector.broadcast %cst_134 : f32 to vector<8x128xf32>
    %238 = arith.addf %236, %237 : vector<8x128xf32>
    %cst_135 = arith.constant 5.000000e-01 : f32
    %239 = vector.broadcast %cst_135 : f32 to vector<8x128xf32>
    %240 = arith.mulf %239, %238 : vector<8x128xf32>
    %241 = vector.extract_strided_slice %235 {offsets = [0, 128], sizes = [8, 128], strides = [1, 1]} : vector<8x512xf32> to vector<8x128xf32>
    %cst_136 = arith.constant 1.000000e+00 : f32
    %242 = vector.broadcast %cst_136 : f32 to vector<8x128xf32>
    %243 = arith.addf %241, %242 : vector<8x128xf32>
    %cst_137 = arith.constant 5.000000e-01 : f32
    %244 = vector.broadcast %cst_137 : f32 to vector<8x128xf32>
    %245 = arith.mulf %244, %243 : vector<8x128xf32>
    %246 = vector.extract_strided_slice %235 {offsets = [0, 256], sizes = [8, 128], strides = [1, 1]} : vector<8x512xf32> to vector<8x128xf32>
    %247 = vector.extract_strided_slice %235 {offsets = [0, 384], sizes = [8, 128], strides = [1, 1]} : vector<8x512xf32> to vector<8x128xf32>
    %cst_138 = arith.constant 1.000000e+00 : f32
    %248 = vector.broadcast %cst_138 : f32 to vector<8x128xf32>
    %249 = arith.addf %247, %248 : vector<8x128xf32>
    %cst_139 = arith.constant 5.000000e-01 : f32
    %250 = vector.broadcast %cst_139 : f32 to vector<8x128xf32>
    %251 = arith.mulf %250, %249 : vector<8x128xf32>
    %252 = arith.mulf %245, %194 : vector<8x128xf32>
    %253 = arith.mulf %240, %246 : vector<8x128xf32>
    %254 = arith.addf %252, %253 : vector<8x128xf32>
    %255 = math.tanh %254 : vector<8x128xf32>
    %256 = arith.mulf %251, %255 : vector<8x128xf32>
    %c0_140 = arith.constant 0 : index
    %c0_141 = arith.constant 0 : index
    %257 = vector.load %arg22[%c0_140, %c0_141] : memref<128x512xf32, #tpu.memory_space<vmem>>, vector<128x512xf32>
    %cst_142 = arith.constant dense<0.000000e+00> : vector<8x512xf32>
    %258 = tpu.matmul %256, %257, %cst_142 {dimension_numbers = #tpu.dot_dimension_numbers<[1], [0], [0], [1], [0, 0, 1, 1], [], []>} : vector<8x128xf32>, vector<128x512xf32>, vector<8x512xf32> -> vector<8x512xf32>
    %c0_143 = arith.constant 0 : index
    %c0_144 = arith.constant 0 : index
    %259 = vector.load %arg23[%c0_143, %c0_144] : memref<128x512xf32, #tpu.memory_space<vmem>>, vector<128x512xf32>
    %cst_145 = arith.constant dense<0.000000e+00> : vector<8x512xf32>
    %260 = tpu.matmul %226, %259, %cst_145 {dimension_numbers = #tpu.dot_dimension_numbers<[1], [0], [0], [1], [0, 0, 1, 1], [], []>} : vector<8x128xf32>, vector<128x512xf32>, vector<8x512xf32> -> vector<8x512xf32>
    %261 = arith.addf %258, %260 : vector<8x512xf32>
    %c0_146 = arith.constant 0 : index
    %c0_147 = arith.constant 0 : index
    %262 = vector.load %arg9[%c0_146, %c0_147] : memref<1x512xf32, #tpu.memory_space<vmem>>, vector<1x512xf32>
    %263 = vector.broadcast %262 : vector<1x512xf32> to vector<8x512xf32>
    %264 = arith.addf %261, %263 : vector<8x512xf32>
    %265 = math.tanh %264 : vector<8x512xf32>
    %266 = vector.extract_strided_slice %265 {offsets = [0, 0], sizes = [8, 128], strides = [1, 1]} : vector<8x512xf32> to vector<8x128xf32>
    %cst_148 = arith.constant 1.000000e+00 : f32
    %267 = vector.broadcast %cst_148 : f32 to vector<8x128xf32>
    %268 = arith.addf %266, %267 : vector<8x128xf32>
    %cst_149 = arith.constant 5.000000e-01 : f32
    %269 = vector.broadcast %cst_149 : f32 to vector<8x128xf32>
    %270 = arith.mulf %269, %268 : vector<8x128xf32>
    %271 = vector.extract_strided_slice %265 {offsets = [0, 128], sizes = [8, 128], strides = [1, 1]} : vector<8x512xf32> to vector<8x128xf32>
    %cst_150 = arith.constant 1.000000e+00 : f32
    %272 = vector.broadcast %cst_150 : f32 to vector<8x128xf32>
    %273 = arith.addf %271, %272 : vector<8x128xf32>
    %cst_151 = arith.constant 5.000000e-01 : f32
    %274 = vector.broadcast %cst_151 : f32 to vector<8x128xf32>
    %275 = arith.mulf %274, %273 : vector<8x128xf32>
    %276 = vector.extract_strided_slice %265 {offsets = [0, 256], sizes = [8, 128], strides = [1, 1]} : vector<8x512xf32> to vector<8x128xf32>
    %277 = vector.extract_strided_slice %265 {offsets = [0, 384], sizes = [8, 128], strides = [1, 1]} : vector<8x512xf32> to vector<8x128xf32>
    %cst_152 = arith.constant 1.000000e+00 : f32
    %278 = vector.broadcast %cst_152 : f32 to vector<8x128xf32>
    %279 = arith.addf %277, %278 : vector<8x128xf32>
    %cst_153 = arith.constant 5.000000e-01 : f32
    %280 = vector.broadcast %cst_153 : f32 to vector<8x128xf32>
    %281 = arith.mulf %280, %279 : vector<8x128xf32>
    %282 = arith.mulf %275, %224 : vector<8x128xf32>
    %283 = arith.mulf %270, %276 : vector<8x128xf32>
    %284 = arith.addf %282, %283 : vector<8x128xf32>
    %285 = math.tanh %284 : vector<8x128xf32>
    %286 = arith.mulf %281, %285 : vector<8x128xf32>
    %287 = arith.index_cast %229 : i32 to index
    %c0_154 = arith.constant 0 : index
    %288 = vector.load %arg18[%287, %c0_154] : memref<48x128xf32, #tpu.memory_space<vmem>>, vector<8x128xf32>
    tpu.vector_store %arg18[%287, %c0_154], %286 {strides = array<i32>} : memref<48x128xf32, #tpu.memory_space<vmem>>, vector<8x128xf32>,
    %c4_i32 = arith.constant 4 : i32
    %c8_i32_155 = arith.constant 8 : i32
    %289 = arith.muli %c4_i32, %c8_i32_155 : i32
    %290 = arith.index_cast %289 : i32 to index
    %c0_156 = arith.constant 0 : index
    %291 = vector.load %arg20[%290, %c0_156] : memref<48x512xf32, #tpu.memory_space<vmem>>, vector<8x512xf32>
    %c0_157 = arith.constant 0 : index
    %c0_158 = arith.constant 0 : index
    %292 = vector.load %arg21[%c0_157, %c0_158] : memref<128x512xf32, #tpu.memory_space<vmem>>, vector<128x512xf32>
    %cst_159 = arith.constant dense<0.000000e+00> : vector<8x512xf32>
    %293 = tpu.matmul %256, %292, %cst_159 {dimension_numbers = #tpu.dot_dimension_numbers<[1], [0], [0], [1], [0, 0, 1, 1], [], []>} : vector<8x128xf32>, vector<128x512xf32>, vector<8x512xf32> -> vector<8x512xf32>
    %294 = arith.addf %291, %293 : vector<8x512xf32>
    %295 = math.tanh %294 : vector<8x512xf32>
    %296 = vector.extract_strided_slice %295 {offsets = [0, 0], sizes = [8, 128], strides = [1, 1]} : vector<8x512xf32> to vector<8x128xf32>
    %cst_160 = arith.constant 1.000000e+00 : f32
    %297 = vector.broadcast %cst_160 : f32 to vector<8x128xf32>
    %298 = arith.addf %296, %297 : vector<8x128xf32>
    %cst_161 = arith.constant 5.000000e-01 : f32
    %299 = vector.broadcast %cst_161 : f32 to vector<8x128xf32>
    %300 = arith.mulf %299, %298 : vector<8x128xf32>
    %301 = vector.extract_strided_slice %295 {offsets = [0, 128], sizes = [8, 128], strides = [1, 1]} : vector<8x512xf32> to vector<8x128xf32>
    %cst_162 = arith.constant 1.000000e+00 : f32
    %302 = vector.broadcast %cst_162 : f32 to vector<8x128xf32>
    %303 = arith.addf %301, %302 : vector<8x128xf32>
    %cst_163 = arith.constant 5.000000e-01 : f32
    %304 = vector.broadcast %cst_163 : f32 to vector<8x128xf32>
    %305 = arith.mulf %304, %303 : vector<8x128xf32>
    %306 = vector.extract_strided_slice %295 {offsets = [0, 256], sizes = [8, 128], strides = [1, 1]} : vector<8x512xf32> to vector<8x128xf32>
    %307 = vector.extract_strided_slice %295 {offsets = [0, 384], sizes = [8, 128], strides = [1, 1]} : vector<8x512xf32> to vector<8x128xf32>
    %cst_164 = arith.constant 1.000000e+00 : f32
    %308 = vector.broadcast %cst_164 : f32 to vector<8x128xf32>
    %309 = arith.addf %307, %308 : vector<8x128xf32>
    %cst_165 = arith.constant 5.000000e-01 : f32
    %310 = vector.broadcast %cst_165 : f32 to vector<8x128xf32>
    %311 = arith.mulf %310, %309 : vector<8x128xf32>
    %312 = arith.mulf %305, %254 : vector<8x128xf32>
    %313 = arith.mulf %300, %306 : vector<8x128xf32>
    %314 = arith.addf %312, %313 : vector<8x128xf32>
    %315 = math.tanh %314 : vector<8x128xf32>
    %316 = arith.mulf %311, %315 : vector<8x128xf32>
    %c0_166 = arith.constant 0 : index
    %c0_167 = arith.constant 0 : index
    %317 = vector.load %arg22[%c0_166, %c0_167] : memref<128x512xf32, #tpu.memory_space<vmem>>, vector<128x512xf32>
    %cst_168 = arith.constant dense<0.000000e+00> : vector<8x512xf32>
    %318 = tpu.matmul %316, %317, %cst_168 {dimension_numbers = #tpu.dot_dimension_numbers<[1], [0], [0], [1], [0, 0, 1, 1], [], []>} : vector<8x128xf32>, vector<128x512xf32>, vector<8x512xf32> -> vector<8x512xf32>
    %c0_169 = arith.constant 0 : index
    %c0_170 = arith.constant 0 : index
    %319 = vector.load %arg23[%c0_169, %c0_170] : memref<128x512xf32, #tpu.memory_space<vmem>>, vector<128x512xf32>
    %cst_171 = arith.constant dense<0.000000e+00> : vector<8x512xf32>
    %320 = tpu.matmul %286, %319, %cst_171 {dimension_numbers = #tpu.dot_dimension_numbers<[1], [0], [0], [1], [0, 0, 1, 1], [], []>} : vector<8x128xf32>, vector<128x512xf32>, vector<8x512xf32> -> vector<8x512xf32>
    %321 = arith.addf %318, %320 : vector<8x512xf32>
    %c0_172 = arith.constant 0 : index
    %c0_173 = arith.constant 0 : index
    %322 = vector.load %arg9[%c0_172, %c0_173] : memref<1x512xf32, #tpu.memory_space<vmem>>, vector<1x512xf32>
    %323 = vector.broadcast %322 : vector<1x512xf32> to vector<8x512xf32>
    %324 = arith.addf %321, %323 : vector<8x512xf32>
    %325 = math.tanh %324 : vector<8x512xf32>
    %326 = vector.extract_strided_slice %325 {offsets = [0, 0], sizes = [8, 128], strides = [1, 1]} : vector<8x512xf32> to vector<8x128xf32>
    %cst_174 = arith.constant 1.000000e+00 : f32
    %327 = vector.broadcast %cst_174 : f32 to vector<8x128xf32>
    %328 = arith.addf %326, %327 : vector<8x128xf32>
    %cst_175 = arith.constant 5.000000e-01 : f32
    %329 = vector.broadcast %cst_175 : f32 to vector<8x128xf32>
    %330 = arith.mulf %329, %328 : vector<8x128xf32>
    %331 = vector.extract_strided_slice %325 {offsets = [0, 128], sizes = [8, 128], strides = [1, 1]} : vector<8x512xf32> to vector<8x128xf32>
    %cst_176 = arith.constant 1.000000e+00 : f32
    %332 = vector.broadcast %cst_176 : f32 to vector<8x128xf32>
    %333 = arith.addf %331, %332 : vector<8x128xf32>
    %cst_177 = arith.constant 5.000000e-01 : f32
    %334 = vector.broadcast %cst_177 : f32 to vector<8x128xf32>
    %335 = arith.mulf %334, %333 : vector<8x128xf32>
    %336 = vector.extract_strided_slice %325 {offsets = [0, 256], sizes = [8, 128], strides = [1, 1]} : vector<8x512xf32> to vector<8x128xf32>
    %337 = vector.extract_strided_slice %325 {offsets = [0, 384], sizes = [8, 128], strides = [1, 1]} : vector<8x512xf32> to vector<8x128xf32>
    %cst_178 = arith.constant 1.000000e+00 : f32
    %338 = vector.broadcast %cst_178 : f32 to vector<8x128xf32>
    %339 = arith.addf %337, %338 : vector<8x128xf32>
    %cst_179 = arith.constant 5.000000e-01 : f32
    %340 = vector.broadcast %cst_179 : f32 to vector<8x128xf32>
    %341 = arith.mulf %340, %339 : vector<8x128xf32>
    %342 = arith.mulf %335, %284 : vector<8x128xf32>
    %343 = arith.mulf %330, %336 : vector<8x128xf32>
    %344 = arith.addf %342, %343 : vector<8x128xf32>
    %345 = math.tanh %344 : vector<8x128xf32>
    %346 = arith.mulf %341, %345 : vector<8x128xf32>
    %347 = arith.index_cast %289 : i32 to index
    %c0_180 = arith.constant 0 : index
    %348 = vector.load %arg18[%347, %c0_180] : memref<48x128xf32, #tpu.memory_space<vmem>>, vector<8x128xf32>
    tpu.vector_store %arg18[%347, %c0_180], %346 {strides = array<i32>} : memref<48x128xf32, #tpu.memory_space<vmem>>, vector<8x128xf32>,
    %c5_i32 = arith.constant 5 : i32
    %c8_i32_181 = arith.constant 8 : i32
    %349 = arith.muli %c5_i32, %c8_i32_181 : i32
    %350 = arith.index_cast %349 : i32 to index
    %c0_182 = arith.constant 0 : index
    %351 = vector.load %arg20[%350, %c0_182] : memref<48x512xf32, #tpu.memory_space<vmem>>, vector<8x512xf32>
    %c0_183 = arith.constant 0 : index
    %c0_184 = arith.constant 0 : index
    %352 = vector.load %arg21[%c0_183, %c0_184] : memref<128x512xf32, #tpu.memory_space<vmem>>, vector<128x512xf32>
    %cst_185 = arith.constant dense<0.000000e+00> : vector<8x512xf32>
    %353 = tpu.matmul %316, %352, %cst_185 {dimension_numbers = #tpu.dot_dimension_numbers<[1], [0], [0], [1], [0, 0, 1, 1], [], []>} : vector<8x128xf32>, vector<128x512xf32>, vector<8x512xf32> -> vector<8x512xf32>
    %354 = arith.addf %351, %353 : vector<8x512xf32>
    %355 = math.tanh %354 : vector<8x512xf32>
    %356 = vector.extract_strided_slice %355 {offsets = [0, 0], sizes = [8, 128], strides = [1, 1]} : vector<8x512xf32> to vector<8x128xf32>
    %cst_186 = arith.constant 1.000000e+00 : f32
    %357 = vector.broadcast %cst_186 : f32 to vector<8x128xf32>
    %358 = arith.addf %356, %357 : vector<8x128xf32>
    %cst_187 = arith.constant 5.000000e-01 : f32
    %359 = vector.broadcast %cst_187 : f32 to vector<8x128xf32>
    %360 = arith.mulf %359, %358 : vector<8x128xf32>
    %361 = vector.extract_strided_slice %355 {offsets = [0, 128], sizes = [8, 128], strides = [1, 1]} : vector<8x512xf32> to vector<8x128xf32>
    %cst_188 = arith.constant 1.000000e+00 : f32
    %362 = vector.broadcast %cst_188 : f32 to vector<8x128xf32>
    %363 = arith.addf %361, %362 : vector<8x128xf32>
    %cst_189 = arith.constant 5.000000e-01 : f32
    %364 = vector.broadcast %cst_189 : f32 to vector<8x128xf32>
    %365 = arith.mulf %364, %363 : vector<8x128xf32>
    %366 = vector.extract_strided_slice %355 {offsets = [0, 256], sizes = [8, 128], strides = [1, 1]} : vector<8x512xf32> to vector<8x128xf32>
    %367 = vector.extract_strided_slice %355 {offsets = [0, 384], sizes = [8, 128], strides = [1, 1]} : vector<8x512xf32> to vector<8x128xf32>
    %cst_190 = arith.constant 1.000000e+00 : f32
    %368 = vector.broadcast %cst_190 : f32 to vector<8x128xf32>
    %369 = arith.addf %367, %368 : vector<8x128xf32>
    %cst_191 = arith.constant 5.000000e-01 : f32
    %370 = vector.broadcast %cst_191 : f32 to vector<8x128xf32>
    %371 = arith.mulf %370, %369 : vector<8x128xf32>
    %372 = arith.mulf %365, %314 : vector<8x128xf32>
    %373 = arith.mulf %360, %366 : vector<8x128xf32>
    %374 = arith.addf %372, %373 : vector<8x128xf32>
    %375 = math.tanh %374 : vector<8x128xf32>
    %376 = arith.mulf %371, %375 : vector<8x128xf32>
    %c0_192 = arith.constant 0 : index
    %c0_193 = arith.constant 0 : index
    %377 = vector.load %arg22[%c0_192, %c0_193] : memref<128x512xf32, #tpu.memory_space<vmem>>, vector<128x512xf32>
    %cst_194 = arith.constant dense<0.000000e+00> : vector<8x512xf32>
    %378 = tpu.matmul %376, %377, %cst_194 {dimension_numbers = #tpu.dot_dimension_numbers<[1], [0], [0], [1], [0, 0, 1, 1], [], []>} : vector<8x128xf32>, vector<128x512xf32>, vector<8x512xf32> -> vector<8x512xf32>
    %c0_195 = arith.constant 0 : index
    %c0_196 = arith.constant 0 : index
    %379 = vector.load %arg23[%c0_195, %c0_196] : memref<128x512xf32, #tpu.memory_space<vmem>>, vector<128x512xf32>
    %cst_197 = arith.constant dense<0.000000e+00> : vector<8x512xf32>
    %380 = tpu.matmul %346, %379, %cst_197 {dimension_numbers = #tpu.dot_dimension_numbers<[1], [0], [0], [1], [0, 0, 1, 1], [], []>} : vector<8x128xf32>, vector<128x512xf32>, vector<8x512xf32> -> vector<8x512xf32>
    %381 = arith.addf %378, %380 : vector<8x512xf32>
    %c0_198 = arith.constant 0 : index
    %c0_199 = arith.constant 0 : index
    %382 = vector.load %arg9[%c0_198, %c0_199] : memref<1x512xf32, #tpu.memory_space<vmem>>, vector<1x512xf32>
    %383 = vector.broadcast %382 : vector<1x512xf32> to vector<8x512xf32>
    %384 = arith.addf %381, %383 : vector<8x512xf32>
    %385 = math.tanh %384 : vector<8x512xf32>
    %386 = vector.extract_strided_slice %385 {offsets = [0, 0], sizes = [8, 128], strides = [1, 1]} : vector<8x512xf32> to vector<8x128xf32>
    %cst_200 = arith.constant 1.000000e+00 : f32
    %387 = vector.broadcast %cst_200 : f32 to vector<8x128xf32>
    %388 = arith.addf %386, %387 : vector<8x128xf32>
    %cst_201 = arith.constant 5.000000e-01 : f32
    %389 = vector.broadcast %cst_201 : f32 to vector<8x128xf32>
    %390 = arith.mulf %389, %388 : vector<8x128xf32>
    %391 = vector.extract_strided_slice %385 {offsets = [0, 128], sizes = [8, 128], strides = [1, 1]} : vector<8x512xf32> to vector<8x128xf32>
    %cst_202 = arith.constant 1.000000e+00 : f32
    %392 = vector.broadcast %cst_202 : f32 to vector<8x128xf32>
    %393 = arith.addf %391, %392 : vector<8x128xf32>
    %cst_203 = arith.constant 5.000000e-01 : f32
    %394 = vector.broadcast %cst_203 : f32 to vector<8x128xf32>
    %395 = arith.mulf %394, %393 : vector<8x128xf32>
    %396 = vector.extract_strided_slice %385 {offsets = [0, 256], sizes = [8, 128], strides = [1, 1]} : vector<8x512xf32> to vector<8x128xf32>
    %397 = vector.extract_strided_slice %385 {offsets = [0, 384], sizes = [8, 128], strides = [1, 1]} : vector<8x512xf32> to vector<8x128xf32>
    %cst_204 = arith.constant 1.000000e+00 : f32
    %398 = vector.broadcast %cst_204 : f32 to vector<8x128xf32>
    %399 = arith.addf %397, %398 : vector<8x128xf32>
    %cst_205 = arith.constant 5.000000e-01 : f32
    %400 = vector.broadcast %cst_205 : f32 to vector<8x128xf32>
    %401 = arith.mulf %400, %399 : vector<8x128xf32>
    %402 = arith.mulf %395, %344 : vector<8x128xf32>
    %403 = arith.mulf %390, %396 : vector<8x128xf32>
    %404 = arith.addf %402, %403 : vector<8x128xf32>
    %405 = math.tanh %404 : vector<8x128xf32>
    %406 = arith.mulf %401, %405 : vector<8x128xf32>
    %407 = arith.index_cast %349 : i32 to index
    %c0_206 = arith.constant 0 : index
    %408 = vector.load %arg18[%407, %c0_206] : memref<48x128xf32, #tpu.memory_space<vmem>>, vector<8x128xf32>
    tpu.vector_store %arg18[%407, %c0_206], %406 {strides = array<i32>} : memref<48x128xf32, #tpu.memory_space<vmem>>, vector<8x128xf32>,
    %c6_i32 = arith.constant 6 : i32
    %409 = tpu.concatenate %376, %406 in 1 : vector<8x128xf32>, vector<8x128xf32> -> vector<8x256xf32>
    %cst_207 = arith.constant 0.707106769 : f32
    %410 = vector.broadcast %cst_207 : f32 to vector<8x256xf32>
    %411 = arith.mulf %409, %410 : vector<8x256xf32>
    %c0_208 = arith.constant 0 : index
    %c0_209 = arith.constant 0 : index
    %412 = vector.load %arg18[%c0_208, %c0_209] : memref<48x128xf32, #tpu.memory_space<vmem>>, vector<48x128xf32>
    %c0_210 = arith.constant 0 : index
    %c0_211 = arith.constant 0 : index
    %413 = vector.load %arg10[%c0_210, %c0_211] : memref<128x256xbf16, #tpu.memory_space<vmem>>, vector<128x256xbf16>
    %414 = arith.extf %413 : vector<128x256xbf16> to vector<128x256xf32>
    %cst_212 = arith.constant dense<0.000000e+00> : vector<48x256xf32>
    %415 = tpu.matmul %412, %414, %cst_212 {dimension_numbers = #tpu.dot_dimension_numbers<[1], [0], [0], [1], [0, 0, 1, 1], [], []>} : vector<48x128xf32>, vector<128x256xf32>, vector<48x256xf32> -> vector<48x256xf32>
    %c0_213 = arith.constant 0 : index
    %c0_214 = arith.constant 0 : index
    %416 = vector.load %arg11[%c0_213, %c0_214] : memref<1x256xf32, #tpu.memory_space<vmem>>, vector<1x256xf32>
    %417 = vector.broadcast %416 : vector<1x256xf32> to vector<48x256xf32>
    %418 = arith.addf %415, %417 : vector<48x256xf32>
    %419 = math.tanh %418 : vector<48x256xf32>
    %420 = vector.shape_cast %419 : vector<48x256xf32> to vector<6x8x256xf32>
    %421 = vector.shape_cast %411 : vector<8x256xf32> to vector<1x8x256xf32>
    %422 = vector.broadcast %421 : vector<1x8x256xf32> to vector<6x8x256xf32>
    %423 = arith.mulf %420, %422 : vector<6x8x256xf32>
    %cst_215 = arith.constant dense<0.000000e+00> : vector<6x8xf32>
    %424 = vector.multi_reduction <add>, %423, %cst_215 [2] : vector<6x8x256xf32> to vector<6x8xf32>
    %425 = vector.shape_cast %424 : vector<6x8xf32> to vector<6x8x1xf32>
    %cst_216 = arith.constant dense<0xFF800000> : vector<8x1xf32>
    %426 = vector.multi_reduction <maximumf>, %425, %cst_216 [0] : vector<6x8x1xf32> to vector<8x1xf32>
    %427 = vector.shape_cast %426 : vector<8x1xf32> to vector<1x8x1xf32>
    %428 = vector.broadcast %427 : vector<1x8x1xf32> to vector<6x8x1xf32>
    %429 = arith.subf %425, %428 : vector<6x8x1xf32>
    %430 = math.exp %429 : vector<6x8x1xf32>
    %cst_217 = arith.constant dense<0.000000e+00> : vector<8x1xf32>
    %431 = vector.multi_reduction <add>, %430, %cst_217 [0] : vector<6x8x1xf32> to vector<8x1xf32>
    %432 = vector.shape_cast %431 : vector<8x1xf32> to vector<1x8x1xf32>
    %433 = vector.broadcast %432 : vector<1x8x1xf32> to vector<6x8x1xf32>
    %434 = arith.divf %430, %433 : vector<6x8x1xf32>
    %435 = vector.shape_cast %412 : vector<48x128xf32> to vector<6x8x128xf32>
    %436 = vector.broadcast %434 : vector<6x8x1xf32> to vector<6x8x128xf32>
    %437 = arith.mulf %435, %436 : vector<6x8x128xf32>
    %438 = vector.shape_cast %437 : vector<6x8x128xf32> to vector<48x128xf32>
    %c0_218 = arith.constant 0 : index
    %c0_219 = arith.constant 0 : index
    %439 = vector.load %arg18[%c0_218, %c0_219] : memref<48x128xf32, #tpu.memory_space<vmem>>, vector<48x128xf32>
    tpu.vector_store %arg18[%c0_218, %c0_219], %438 {strides = array<i32>} : memref<48x128xf32, #tpu.memory_space<vmem>>, vector<48x128xf32>,
    return
  }
}

</mosaic_0001>

<llo_original>
// kernel: tpu_custom_call.1
$region0: #{tpu_custom_call.1}
  #allocation0 [shape = 'u32[]', space=smem, size = 0x4, offset = 0x4, fixed_abs, tag = 'smem constant byte address 0x4 - core index']
  #allocation1 [shape = 'u32[144,128]{1,0:T(1,128)}', space=vmem, size = 0x12000, scoped, tag = 'internal scratch']
  #allocation2 [shape = 'f32[48,512]{1,0:T(8,128)}', space=vmem, size = 0x18000, scoped, tag = 'scratch operand']
  #allocation3 [shape = 'f32[128,512]{1,0:T(8,128)}', space=vmem, size = 0x40000, scoped, tag = 'scratch operand']
  #allocation4 [shape = 'f32[128,512]{1,0:T(8,128)}', space=vmem, size = 0x40000, scoped, tag = 'scratch operand']
  #allocation5 [shape = 'f32[128,512]{1,0:T(8,128)}', space=vmem, size = 0x40000, scoped, tag = 'scratch operand']
  %s0 = inlined_call_operand.vmem [shape: f32[48,12], index: 0, kind: input, shape index: {}]
  %s1 = inlined_call_operand.vmem [shape: f32[8,8], index: 1, kind: input, shape index: {}]
  %s2 = inlined_call_operand.vmem [shape: f32[2,8,128], index: 2, kind: input, shape index: {}]
  %s3 = inlined_call_operand.vmem [shape: f32[2,8,128], index: 3, kind: input, shape index: {}]
  %s4 = inlined_call_operand.vmem [shape: bf16[12,512], index: 4, kind: input, shape index: {}]
  %s5 = inlined_call_operand.hbm [shape: bf16[128,512], index: 5, kind: input, shape index: {}]
  %s6 = inlined_call_operand.vmem [shape: f32[1,512], index: 6, kind: input, shape index: {}]
  %s7 = inlined_call_operand.hbm [shape: bf16[128,512], index: 7, kind: input, shape index: {}]
  %s8 = inlined_call_operand.hbm [shape: bf16[128,512], index: 8, kind: input, shape index: {}]
  %s9 = inlined_call_operand.hbm [shape: f32[1,512], index: 9, kind: input, shape index: {}]
  %s10 = inlined_call_operand.vmem [shape: bf16[128,256], index: 10, kind: input, shape index: {}]
  %s11 = inlined_call_operand.hbm [shape: f32[1,256], index: 11, kind: input, shape index: {}]
  %s12 = inlined_call_operand.vmem [shape: f32[8,128], index: 12, kind: input, shape index: {}]
  %s13 = inlined_call_operand.vmem [shape: f32[1,128], index: 13, kind: input, shape index: {}]
  %s14 = inlined_call_operand.hbm [shape: f32[128,128], index: 14, kind: input, shape index: {}]
  %s15 = inlined_call_operand.vmem [shape: f32[1,128], index: 15, kind: input, shape index: {}]
  %s16 = inlined_call_operand.vmem [shape: f32[128,4], index: 16, kind: input, shape index: {}]
  %s17 = inlined_call_operand.vmem [shape: f32[1,4], index: 17, kind: input, shape index: {}]
  %s18 = inlined_call_operand.hbm [shape: f32[48,128], index: 18, kind: output, shape index: {0}]
  %s19 = inlined_call_operand.vmem [shape: f32[8,4], index: 19, kind: output, shape index: {1}]
  %20 = xla_tuple %s18, %s19
  %s21 = sld [smem:[#allocation0]]
  $region114: #{tpu_custom_call.1} parent=0
    _
  %s23 = ssub.s32 1, %s21
  %s24 = scalar_select 0, %s23, %s21
  $region1: #{tpu_custom_call.1} parent=0
    #allocation6 [shape = 'u8[131072]{0}', space=vmem, size = 0x20000, scoped, tag = 'input window, operand 5, single buffered']
    #allocation7 [shape = 's32[1]{0}', space=sflag, size = 0x4, scoped, tag = 'scoped memory for tpu_custom_call.1']
    #allocation8 [shape = 's32[1]{0}', space=sflag, size = 0x4, scoped, tag = 'scoped memory for tpu_custom_call.1']
    #allocation9 [shape = 'u8[131072]{0}', space=vmem, size = 0x20000, scoped, tag = 'input window, operand 7, single buffered']
    #allocation10 [shape = 's32[1]{0}', space=sflag, size = 0x4, scoped, tag = 'scoped memory for tpu_custom_call.1']
    #allocation11 [shape = 'u8[131072]{0}', space=vmem, size = 0x20000, scoped, tag = 'input window, operand 8, single buffered']
    #allocation12 [shape = 'u8[2048]{0}', space=vmem, size = 0x800, scoped, tag = 'input window, operand 9, single buffered']
    #allocation13 [shape = 's32[1]{0}', space=sflag, size = 0x4, scoped, tag = 'scoped memory for tpu_custom_call.1']
    #allocation14 [shape = 'u8[1024]{0}', space=vmem, size = 0x400, scoped, tag = 'input window, operand 11, single buffered']
    #allocation15 [shape = 'u8[65536]{0}', space=vmem, size = 0x10000, scoped, tag = 'input window, operand 14, single buffered']
    #allocation16 [shape = 's32[1]{0}', space=sflag, size = 0x4, scoped, tag = 'scoped memory for tpu_custom_call.1']
    #allocation17 [shape = 'u8[24576]{0}', space=vmem, size = 0x6000, scoped, tag = 'output window, operand 0, single buffered']
    %25 = vsyncpa [#allocation7], 0
    %26 = vsyncpa [#allocation10], 0
    %27 = vsyncpa [#allocation13], 0
    %28 = vsyncpa [#allocation16], 0
    %29 = vsyncpa [#allocation8], 0
    // Predicated region
    $region2: #{tpu_custom_call.1} parent=1 // pred_check
      _
    $region3: #{tpu_custom_call.1} parent=1 // pred_check_branch
      %31 = sbr.rel (0) target = $region5
    $region4: #{tpu_custom_call.1} parent=1 // pred_region
      _
    $region5: #{tpu_custom_call.1} parent=1 // pred_fallthru
      _
    // Predicated region
    $region6: #{tpu_custom_call.1} parent=1 // pred_check
      _
    $region7: #{tpu_custom_call.1} parent=1 // pred_check_branch
      %33 = sbr.rel (0) target = $region9
    $region8: #{tpu_custom_call.1} parent=1 // pred_region
      _
    $region9: #{tpu_custom_call.1} parent=1 // pred_fallthru
      _
    // Predicated region
    $region10: #{tpu_custom_call.1} parent=1 // pred_check
      _
    $region11: #{tpu_custom_call.1} parent=1 // pred_check_branch
      %35 = sbr.rel (0) target = $region13
    $region12: #{tpu_custom_call.1} parent=1 // pred_region
      _
    $region13: #{tpu_custom_call.1} parent=1 // pred_fallthru
      _
    // Predicated region
    $region14: #{tpu_custom_call.1} parent=1 // pred_check
      _
    $region15: #{tpu_custom_call.1} parent=1 // pred_check_branch
      %37 = sbr.rel (0) target = $region17
    $region16: #{tpu_custom_call.1} parent=1 // pred_region
      _
    $region17: #{tpu_custom_call.1} parent=1 // pred_fallthru
      _
    // Predicated region
    $region18: #{tpu_custom_call.1} parent=1 // pred_check
      _
    $region19: #{tpu_custom_call.1} parent=1 // pred_check_branch
      %39 = sbr.rel (0) target = $region21
    $region20: #{tpu_custom_call.1} parent=1 // pred_region
      _
    $region21: #{tpu_custom_call.1} parent=1 // pred_fallthru
      _
    // Predicated region
    $region22: #{tpu_custom_call.1} parent=1 // pred_check
      _
    $region23: #{tpu_custom_call.1} parent=1 // pred_check_branch
      %41 = sbr.rel (0) target = $region25
    $region24: #{tpu_custom_call.1} parent=1 // pred_region
      %s43 = ssub.s32 4096, 4096
      %44 = vsyncadd [#allocation7], %s43
      %s45 = sshll.u32 [#allocation6], 4
      %s46 = int_to_ptr.vmem [resolvable:$true] %s45
      %51 = dma.hbm_to_vmem [thread:$0]  %s5, 4096, %s46, [#allocation7], 256, 256, 16
    $region25: #{tpu_custom_call.1} parent=1 // pred_fallthru
      _
    // Predicated region
    $region26: #{tpu_custom_call.1} parent=1 // pred_check
      _
    $region27: #{tpu_custom_call.1} parent=1 // pred_check_branch
      %53 = sbr.rel (0) target = $region29
    $region28: #{tpu_custom_call.1} parent=1 // pred_region
      _
    $region29: #{tpu_custom_call.1} parent=1 // pred_fallthru
      _
    // Predicated region
    $region30: #{tpu_custom_call.1} parent=1 // pred_check
      _
    $region31: #{tpu_custom_call.1} parent=1 // pred_check_branch
      %55 = sbr.rel (0) target = $region33
    $region32: #{tpu_custom_call.1} parent=1 // pred_region
      %s57 = ssub.s32 4096, 4096
      %58 = vsyncadd [#allocation10], %s57
      %s59 = sshll.u32 [#allocation9], 4
      %s60 = int_to_ptr.vmem [resolvable:$true] %s59
      %65 = dma.hbm_to_vmem [thread:$0]  %s7, 4096, %s60, [#allocation10], 256, 256, 16
    $region33: #{tpu_custom_call.1} parent=1 // pred_fallthru
      _
    // Predicated region
    $region34: #{tpu_custom_call.1} parent=1 // pred_check
      _
    $region35: #{tpu_custom_call.1} parent=1 // pred_check_branch
      %67 = sbr.rel (0) target = $region37
    $region36: #{tpu_custom_call.1} parent=1 // pred_region
      %s69 = ssub.s32 4096, 4096
      %70 = vsyncadd [#allocation10], %s69
      %s71 = sshll.u32 [#allocation11], 4
      %s72 = int_to_ptr.vmem [resolvable:$true] %s71
      %77 = dma.hbm_to_vmem [thread:$0]  %s8, 4096, %s72, [#allocation10], 256, 256, 16
    $region37: #{tpu_custom_call.1} parent=1 // pred_fallthru
      _
    // Predicated region
    $region38: #{tpu_custom_call.1} parent=1 // pred_check
      _
    $region39: #{tpu_custom_call.1} parent=1 // pred_check_branch
      %79 = sbr.rel (0) target = $region41
    $region40: #{tpu_custom_call.1} parent=1 // pred_region
      %s81 = ssub.s32 64, 64
      %82 = vsyncadd [#allocation13], %s81
      %s84 = sshll.u32 [#allocation12], 4
      %s85 = int_to_ptr.vmem [resolvable:$true] %s84
      %87 = dma.hbm_to_vmem [thread:$0]  %s9, 64, %s85, [#allocation13]
    $region41: #{tpu_custom_call.1} parent=1 // pred_fallthru
      _
    // Predicated region
    $region42: #{tpu_custom_call.1} parent=1 // pred_check
      _
    $region43: #{tpu_custom_call.1} parent=1 // pred_check_branch
      %89 = sbr.rel (0) target = $region45
    $region44: #{tpu_custom_call.1} parent=1 // pred_region
      _
    $region45: #{tpu_custom_call.1} parent=1 // pred_fallthru
      _
    // Predicated region
    $region46: #{tpu_custom_call.1} parent=1 // pred_check
      _
    $region47: #{tpu_custom_call.1} parent=1 // pred_check_branch
      %91 = sbr.rel (0) target = $region49
    $region48: #{tpu_custom_call.1} parent=1 // pred_region
      %s93 = ssub.s32 32, 32
      %94 = vsyncadd [#allocation13], %s93
      %s96 = sshll.u32 [#allocation14], 4
      %s97 = int_to_ptr.vmem [resolvable:$true] %s96
      %99 = dma.hbm_to_vmem [thread:$0]  %s11, 32, %s97, [#allocation13]
    $region49: #{tpu_custom_call.1} parent=1 // pred_fallthru
      _
    // Predicated region
    $region50: #{tpu_custom_call.1} parent=1 // pred_check
      _
    $region51: #{tpu_custom_call.1} parent=1 // pred_check_branch
      %101 = sbr.rel (0) target = $region53
    $region52: #{tpu_custom_call.1} parent=1 // pred_region
      _
    $region53: #{tpu_custom_call.1} parent=1 // pred_fallthru
      _
    // Predicated region
    $region54: #{tpu_custom_call.1} parent=1 // pred_check
      _
    $region55: #{tpu_custom_call.1} parent=1 // pred_check_branch
      %103 = sbr.rel (0) target = $region57
    $region56: #{tpu_custom_call.1} parent=1 // pred_region
      _
    $region57: #{tpu_custom_call.1} parent=1 // pred_fallthru
      _
    // Predicated region
    $region58: #{tpu_custom_call.1} parent=1 // pred_check
      _
    $region59: #{tpu_custom_call.1} parent=1 // pred_check_branch
      %105 = sbr.rel (0) target = $region61
    $region60: #{tpu_custom_call.1} parent=1 // pred_region
      %s107 = ssub.s32 2048, 2048
      %108 = vsyncadd [#allocation16], %s107
      %s109 = sshll.u32 [#allocation15], 4
      %s110 = int_to_ptr.vmem [resolvable:$true] %s109
      %115 = dma.hbm_to_vmem [thread:$0]  %s14, 2048, %s110, [#allocation16], 128, 128, 8
    $region61: #{tpu_custom_call.1} parent=1 // pred_fallthru
      _
    // Predicated region
    $region62: #{tpu_custom_call.1} parent=1 // pred_check
      _
    $region63: #{tpu_custom_call.1} parent=1 // pred_check_branch
      %117 = sbr.rel (0) target = $region65
    $region64: #{tpu_custom_call.1} parent=1 // pred_region
      _
    $region65: #{tpu_custom_call.1} parent=1 // pred_fallthru
      _
    // Predicated region
    $region66: #{tpu_custom_call.1} parent=1 // pred_check
      _
    $region67: #{tpu_custom_call.1} parent=1 // pred_check_branch
      %119 = sbr.rel (0) target = $region69
    $region68: #{tpu_custom_call.1} parent=1 // pred_region
      _
    $region69: #{tpu_custom_call.1} parent=1 // pred_fallthru
      _
    // Predicated region
    $region70: #{tpu_custom_call.1} parent=1 // pred_check
      _
    $region71: #{tpu_custom_call.1} parent=1 // pred_check_branch
      %121 = sbr.rel (0) target = $region73
    $region72: #{tpu_custom_call.1} parent=1 // pred_region
      _
    $region73: #{tpu_custom_call.1} parent=1 // pred_fallthru
      _
    // Predicated region
    $region74: #{tpu_custom_call.1} parent=1 // pred_check
      _
    $region75: #{tpu_custom_call.1} parent=1 // pred_check_branch
      %123 = sbr.rel (0) target = $region77
    $region76: #{tpu_custom_call.1} parent=1 // pred_region
      %124 = dma.done [#allocation7], 4096
    $region77: #{tpu_custom_call.1} parent=1 // pred_fallthru
      _
    // Predicated region
    $region78: #{tpu_custom_call.1} parent=1 // pred_check
      _
    $region79: #{tpu_custom_call.1} parent=1 // pred_check_branch
      %126 = sbr.rel (0) target = $region81
    $region80: #{tpu_custom_call.1} parent=1 // pred_region
      %127 = dma.done [#allocation10], 4096
    $region81: #{tpu_custom_call.1} parent=1 // pred_fallthru
      _
    // Predicated region
    $region82: #{tpu_custom_call.1} parent=1 // pred_check
      _
    $region83: #{tpu_custom_call.1} parent=1 // pred_check_branch
      %129 = sbr.rel (0) target = $region85
    $region84: #{tpu_custom_call.1} parent=1 // pred_region
      %130 = dma.done [#allocation10], 4096
    $region85: #{tpu_custom_call.1} parent=1 // pred_fallthru
      _
    // Predicated region
    $region86: #{tpu_custom_call.1} parent=1 // pred_check
      _
    $region87: #{tpu_custom_call.1} parent=1 // pred_check_branch
      %132 = sbr.rel (0) target = $region89
    $region88: #{tpu_custom_call.1} parent=1 // pred_region
      %133 = dma.done [#allocation13], 64
    $region89: #{tpu_custom_call.1} parent=1 // pred_fallthru
      _
    // Predicated region
    $region90: #{tpu_custom_call.1} parent=1 // pred_check
      _
    $region91: #{tpu_custom_call.1} parent=1 // pred_check_branch
      %135 = sbr.rel (0) target = $region93
    $region92: #{tpu_custom_call.1} parent=1 // pred_region
      %136 = dma.done [#allocation13], 32
    $region93: #{tpu_custom_call.1} parent=1 // pred_fallthru
      _
    // Predicated region
    $region94: #{tpu_custom_call.1} parent=1 // pred_check
      _
    $region95: #{tpu_custom_call.1} parent=1 // pred_check_branch
      %138 = sbr.rel (0) target = $region97
    $region96: #{tpu_custom_call.1} parent=1 // pred_region
      %139 = dma.done [#allocation16], 2048
    $region97: #{tpu_custom_call.1} parent=1 // pred_fallthru
      _
    %v140 = vld [vmem:[%s1] sm:$0xff]
    %v141 = vld [vmem:[%s12] sm:$0xff]
    %v142 = vld [vmem:[%s13] sm:$0x1]
    %v144 = vlaneseq
    %v145 = vshrl.u32 %v144, 7
    %v146 = vsub.s32 0, %v145
    %v147 = vrot.slane %v142, %v146
    %vm149 = vcmask 64512
    %v151 = vsel %vm149, %v140, 0
    %153 = vmatprep.subr.mxu0 0.0
    %154 = vmatpush1.msra.mxu0 0.0
    %155 = vmatprep.subr.mxu0 0.0
    %156 = vmatpush1.msra.mxu0 0.0
    %157 = vmatprep.subr.mxu0 0.0
    %158 = vmatpush1.msra.mxu0 0.0
    %159 = vmatprep.subr.mxu0 0.0
    %160 = vmatpush1.msra.mxu0 0.0
    %161 = vmatprep.subr.mxu0 0.0
    %162 = vmatpush1.msra.mxu0 0.0
    %163 = vmatprep.subr.mxu0 0.0
    %164 = vmatpush1.msra.mxu0 0.0
    %165 = vmatprep.subr.mxu0 0.0
    %166 = vmatpush1.msra.mxu0 0.0
    %167 = vmatprep.subr.mxu0 0.0
    %168 = vmatpush1.msra.mxu0 0.0
    %169 = vmatprep.subr.mxu0 0.0
    %170 = vmatpush1.msra.mxu0 0.0
    %171 = vmatprep.subr.mxu0 0.0
    %172 = vmatpush1.msra.mxu0 0.0
    %173 = vmatprep.subr.mxu0 0.0
    %174 = vmatpush1.msra.mxu0 0.0
    %175 = vmatprep.subr.mxu0 0.0
    %176 = vmatpush1.msra.mxu0 0.0
    %177 = vmatprep.subr.mxu0 0.0
    %178 = vmatpush1.msra.mxu0 0.0
    %179 = vmatprep.subr.mxu0 0.0
    %180 = vmatpush1.msra.mxu0 0.0
    %181 = vmatprep.subr.mxu0 0.0
    %182 = vmatpush1.msra.mxu0 0.0
    %183 = vmatprep.subr.mxu0 0.0
    %184 = vmatpush1.msra.mxu0 %v141
    %185 = vmatprep.subr.mxu0 0.0
    %186 = vmatpush2.msra.mxu0 0.0
    %187 = vmatprep.subr.mxu0 0.0
    %188 = vmatpush2.msra.mxu0 0.0
    %189 = vmatprep.subr.mxu0 0.0
    %190 = vmatpush2.msra.mxu0 0.0
    %191 = vmatprep.subr.mxu0 0.0
    %192 = vmatpush2.msra.mxu0 0.0
    %193 = vmatprep.subr.mxu0 0.0
    %194 = vmatpush2.msra.mxu0 0.0
    %195 = vmatprep.subr.mxu0 0.0
    %196 = vmatpush2.msra.mxu0 0.0
    %197 = vmatprep.subr.mxu0 0.0
    %198 = vmatpush2.msra.mxu0 0.0
    %199 = vmatprep.subr.mxu0 0.0
    %200 = vmatpush2.msra.mxu0 0.0
    %201 = vmatprep.subr.mxu0 0.0
    %202 = vmatpush2.msra.mxu0 0.0
    %203 = vmatprep.subr.mxu0 0.0
    %204 = vmatpush2.msra.mxu0 0.0
    %205 = vmatprep.subr.mxu0 0.0
    %206 = vmatpush2.msra.mxu0 0.0
    %207 = vmatprep.subr.mxu0 0.0
    %208 = vmatpush2.msra.mxu0 0.0
    %209 = vmatprep.subr.mxu0 0.0
    %210 = vmatpush2.msra.mxu0 0.0
    %211 = vmatprep.subr.mxu0 0.0
    %212 = vmatpush2.msra.mxu0 0.0
    %213 = vmatprep.subr.mxu0 0.0
    %214 = vmatpush2.msra.mxu0 0.0
    %215 = vmatprep.subr.mxu0 0.0
    %216 = vmatpush2.msra.mxu0 0.0
    %217 = vmatprep.mubr.f32.mxu0 0.0
    %218 = vmatmul.mubr.f32.gmra.mxu0 %v151
    %v219 = vpop.f32.mrf.mxu0
    %v220 = vadd.f32 %v147, %v219
    %v221 = vpop.f32.mrf.mxu0
    %222 = vdwg.mxu0
    %v223 = vmax.f32 %v220, 0.0
    %v224 = vld [vmem:[#allocation15] sm:$0xff]
    %v225 = vld [vmem:[#allocation15 + $0x8] sm:$0xff]
    %v226 = vld [vmem:[#allocation15 + $0x10] sm:$0xff]
    %v227 = vld [vmem:[#allocation15 + $0x18] sm:$0xff]
    %v228 = vld [vmem:[#allocation15 + $0x20] sm:$0xff]
    %v229 = vld [vmem:[#allocation15 + $0x28] sm:$0xff]
    %v230 = vld [vmem:[#allocation15 + $0x30] sm:$0xff]
    %v231 = vld [vmem:[#allocation15 + $0x38] sm:$0xff]
    %v232 = vld [vmem:[#allocation15 + $0x40] sm:$0xff]
    %v233 = vld [vmem:[#allocation15 + $0x48] sm:$0xff]
    %v234 = vld [vmem:[#allocation15 + $0x50] sm:$0xff]
    %v235 = vld [vmem:[#allocation15 + $0x58] sm:$0xff]
    %v236 = vld [vmem:[#allocation15 + $0x60] sm:$0xff]
    %v237 = vld [vmem:[#allocation15 + $0x68] sm:$0xff]
    %v238 = vld [vmem:[#allocation15 + $0x70] sm:$0xff]
    %v239 = vld [vmem:[#allocation15 + $0x78] sm:$0xff]
    %v240 = vld [vmem:[%s15] sm:$0x1]
    %v242 = vlaneseq
    %v243 = vshrl.u32 %v242, 7
    %v244 = vsub.s32 0, %v243
    %v245 = vrot.slane %v240, %v244
    %247 = vmatprep.subr.mxu0 0.0
    %248 = vmatpush1.msra.mxu0 %v239
    %249 = vmatprep.subr.mxu0 0.0
    %250 = vmatpush1.msra.mxu0 %v238
    %251 = vmatprep.subr.mxu0 0.0
    %252 = vmatpush1.msra.mxu0 %v237
    %253 = vmatprep.subr.mxu0 0.0
    %254 = vmatpush1.msra.mxu0 %v236
    %255 = vmatprep.subr.mxu0 0.0
    %256 = vmatpush1.msra.mxu0 %v235
    %257 = vmatprep.subr.mxu0 0.0
    %258 = vmatpush1.msra.mxu0 %v234
    %259 = vmatprep.subr.mxu0 0.0
    %260 = vmatpush1.msra.mxu0 %v233
    %261 = vmatprep.subr.mxu0 0.0
    %262 = vmatpush1.msra.mxu0 %v232
    %263 = vmatprep.subr.mxu0 0.0
    %264 = vmatpush1.msra.mxu0 %v231
    %265 = vmatprep.subr.mxu0 0.0
    %266 = vmatpush1.msra.mxu0 %v230
    %267 = vmatprep.subr.mxu0 0.0
    %268 = vmatpush1.msra.mxu0 %v229
    %269 = vmatprep.subr.mxu0 0.0
    %270 = vmatpush1.msra.mxu0 %v228
    %271 = vmatprep.subr.mxu0 0.0
    %272 = vmatpush1.msra.mxu0 %v227
    %273 = vmatprep.subr.mxu0 0.0
    %274 = vmatpush1.msra.mxu0 %v226
    %275 = vmatprep.subr.mxu0 0.0
    %276 = vmatpush1.msra.mxu0 %v225
    %277 = vmatprep.subr.mxu0 0.0
    %278 = vmatpush1.msra.mxu0 %v224
    %279 = vmatprep.subr.mxu0 0.0
    %280 = vmatpush2.msra.mxu0 0.0
    %281 = vmatprep.subr.mxu0 0.0
    %282 = vmatpush2.msra.mxu0 0.0
    %283 = vmatprep.subr.mxu0 0.0
    %284 = vmatpush2.msra.mxu0 0.0
    %285 = vmatprep.subr.mxu0 0.0
    %286 = vmatpush2.msra.mxu0 0.0
    %287 = vmatprep.subr.mxu0 0.0
    %288 = vmatpush2.msra.mxu0 0.0
    %289 = vmatprep.subr.mxu0 0.0
    %290 = vmatpush2.msra.mxu0 0.0
    %291 = vmatprep.subr.mxu0 0.0
    %292 = vmatpush2.msra.mxu0 0.0
    %293 = vmatprep.subr.mxu0 0.0
    %294 = vmatpush2.msra.mxu0 0.0
    %295 = vmatprep.subr.mxu0 0.0
    %296 = vmatpush2.msra.mxu0 0.0
    %297 = vmatprep.subr.mxu0 0.0
    %298 = vmatpush2.msra.mxu0 0.0
    %299 = vmatprep.subr.mxu0 0.0
    %300 = vmatpush2.msra.mxu0 0.0
    %301 = vmatprep.subr.mxu0 0.0
    %302 = vmatpush2.msra.mxu0 0.0
    %303 = vmatprep.subr.mxu0 0.0
    %304 = vmatpush2.msra.mxu0 0.0
    %305 = vmatprep.subr.mxu0 0.0
    %306 = vmatpush2.msra.mxu0 0.0
    %307 = vmatprep.subr.mxu0 0.0
    %308 = vmatpush2.msra.mxu0 0.0
    %309 = vmatprep.subr.mxu0 0.0
    %310 = vmatpush2.msra.mxu0 0.0
    %311 = vmatprep.mubr.f32.mxu0 0.0
    %312 = vmatmul.mubr.f32.gmra.mxu0 %v223
    %v313 = vpop.f32.mrf.mxu0
    %v314 = vadd.f32 %v245, %v313
    %v315 = vpop.f32.mrf.mxu0
    %316 = vdwg.mxu0
    %v317 = vmax.f32 %v314, 0.0
    %v318 = vld [vmem:[%s16] sm:$0xff]
    %v319 = vld [vmem:[%s16 + $0x8] sm:$0xff]
    %v320 = vld [vmem:[%s16 + $0x10] sm:$0xff]
    %v321 = vld [vmem:[%s16 + $0x18] sm:$0xff]
    %v322 = vld [vmem:[%s16 + $0x20] sm:$0xff]
    %v323 = vld [vmem:[%s16 + $0x28] sm:$0xff]
    %v324 = vld [vmem:[%s16 + $0x30] sm:$0xff]
    %v325 = vld [vmem:[%s16 + $0x38] sm:$0xff]
    %v326 = vld [vmem:[%s16 + $0x40] sm:$0xff]
    %v327 = vld [vmem:[%s16 + $0x48] sm:$0xff]
    %v328 = vld [vmem:[%s16 + $0x50] sm:$0xff]
    %v329 = vld [vmem:[%s16 + $0x58] sm:$0xff]
    %v330 = vld [vmem:[%s16 + $0x60] sm:$0xff]
    %v331 = vld [vmem:[%s16 + $0x68] sm:$0xff]
    %v332 = vld [vmem:[%s16 + $0x70] sm:$0xff]
    %v333 = vld [vmem:[%s16 + $0x78] sm:$0xff]
    %v334 = vld [vmem:[%s17] sm:$0x1]
    %v336 = vlaneseq
    %v337 = vshrl.u32 %v336, 7
    %v338 = vsub.s32 0, %v337
    %v339 = vrot.slane %v334, %v338
    %341 = vmatprep.subr.mxu0 0.0
    %342 = vmatpush1.msra.mxu0 %v333
    %343 = vmatprep.subr.mxu0 0.0
    %344 = vmatpush1.msra.mxu0 %v332
    %345 = vmatprep.subr.mxu0 0.0
    %346 = vmatpush1.msra.mxu0 %v331
    %347 = vmatprep.subr.mxu0 0.0
    %348 = vmatpush1.msra.mxu0 %v330
    %349 = vmatprep.subr.mxu0 0.0
    %350 = vmatpush1.msra.mxu0 %v329
    %351 = vmatprep.subr.mxu0 0.0
    %352 = vmatpush1.msra.mxu0 %v328
    %353 = vmatprep.subr.mxu0 0.0
    %354 = vmatpush1.msra.mxu0 %v327
    %355 = vmatprep.subr.mxu0 0.0
    %356 = vmatpush1.msra.mxu0 %v326
    %357 = vmatprep.subr.mxu0 0.0
    %358 = vmatpush1.msra.mxu0 %v325
    %359 = vmatprep.subr.mxu0 0.0
    %360 = vmatpush1.msra.mxu0 %v324
    %361 = vmatprep.subr.mxu0 0.0
    %362 = vmatpush1.msra.mxu0 %v323
    %363 = vmatprep.subr.mxu0 0.0
    %364 = vmatpush1.msra.mxu0 %v322
    %365 = vmatprep.subr.mxu0 0.0
    %366 = vmatpush1.msra.mxu0 %v321
    %367 = vmatprep.subr.mxu0 0.0
    %368 = vmatpush1.msra.mxu0 %v320
    %369 = vmatprep.subr.mxu0 0.0
    %370 = vmatpush1.msra.mxu0 %v319
    %371 = vmatprep.subr.mxu0 0.0
    %372 = vmatpush1.msra.mxu0 %v318
    %373 = vmatprep.subr.mxu0 0.0
    %374 = vmatpush2.msra.mxu0 0.0
    %375 = vmatprep.subr.mxu0 0.0
    %376 = vmatpush2.msra.mxu0 0.0
    %377 = vmatprep.subr.mxu0 0.0
    %378 = vmatpush2.msra.mxu0 0.0
    %379 = vmatprep.subr.mxu0 0.0
    %380 = vmatpush2.msra.mxu0 0.0
    %381 = vmatprep.subr.mxu0 0.0
    %382 = vmatpush2.msra.mxu0 0.0
    %383 = vmatprep.subr.mxu0 0.0
    %384 = vmatpush2.msra.mxu0 0.0
    %385 = vmatprep.subr.mxu0 0.0
    %386 = vmatpush2.msra.mxu0 0.0
    %387 = vmatprep.subr.mxu0 0.0
    %388 = vmatpush2.msra.mxu0 0.0
    %389 = vmatprep.subr.mxu0 0.0
    %390 = vmatpush2.msra.mxu0 0.0
    %391 = vmatprep.subr.mxu0 0.0
    %392 = vmatpush2.msra.mxu0 0.0
    %393 = vmatprep.subr.mxu0 0.0
    %394 = vmatpush2.msra.mxu0 0.0
    %395 = vmatprep.subr.mxu0 0.0
    %396 = vmatpush2.msra.mxu0 0.0
    %397 = vmatprep.subr.mxu0 0.0
    %398 = vmatpush2.msra.mxu0 0.0
    %399 = vmatprep.subr.mxu0 0.0
    %400 = vmatpush2.msra.mxu0 0.0
    %401 = vmatprep.subr.mxu0 0.0
    %402 = vmatpush2.msra.mxu0 0.0
    %403 = vmatprep.subr.mxu0 0.0
    %404 = vmatpush2.msra.mxu0 0.0
    %405 = vmatprep.mubr.f32.mxu0 0.0
    %406 = vmatmul.mubr.f32.gmra.mxu0 %v317
    %v407 = vpop.f32.mrf.mxu0
    %v408 = vadd.f32 %v339, %v407
    %v409 = vpop.f32.mrf.mxu0
    %410 = vdwg.mxu0
    %v411 = vtanh.pop %v408
    %v412 = vmul.f32 %v411, 2.0
    %vm413 = vcmask 31744
    %414 = vst.msk [vmem:[%s19] sm:$0xff] %vm413, %v412
    %v415 = vld [vmem:[#allocation6] sm:$0xff]
    %v416 = vld [vmem:[#allocation6 + $0x8] sm:$0xff]
    %v417 = vld [vmem:[#allocation6 + $0x10] sm:$0xff]
    %v418 = vld [vmem:[#allocation6 + $0x18] sm:$0xff]
    %v419 = vld [vmem:[#allocation6 + $0x20] sm:$0xff]
    %v420 = vld [vmem:[#allocation6 + $0x28] sm:$0xff]
    %v421 = vld [vmem:[#allocation6 + $0x30] sm:$0xff]
    %v422 = vld [vmem:[#allocation6 + $0x38] sm:$0xff]
    %v423 = vld [vmem:[#allocation6 + $0x40] sm:$0xff]
    %v424 = vld [vmem:[#allocation6 + $0x48] sm:$0xff]
    %v425 = vld [vmem:[#allocation6 + $0x50] sm:$0xff]
    %v426 = vld [vmem:[#allocation6 + $0x58] sm:$0xff]
    %v427 = vld [vmem:[#allocation6 + $0x60] sm:$0xff]
    %v428 = vld [vmem:[#allocation6 + $0x68] sm:$0xff]
    %v429 = vld [vmem:[#allocation6 + $0x70] sm:$0xff]
    %v430 = vld [vmem:[#allocation6 + $0x78] sm:$0xff]
    %v431 = vld [vmem:[#allocation6 + $0x80] sm:$0xff]
    %v432 = vld [vmem:[#allocation6 + $0x88] sm:$0xff]
    %v433 = vld [vmem:[#allocation6 + $0x90] sm:$0xff]
    %v434 = vld [vmem:[#allocation6 + $0x98] sm:$0xff]
    %v435 = vld [vmem:[#allocation6 + $0xa0] sm:$0xff]
    %v436 = vld [vmem:[#allocation6 + $0xa8] sm:$0xff]
    %v437 = vld [vmem:[#allocation6 + $0xb0] sm:$0xff]
    %v438 = vld [vmem:[#allocation6 + $0xb8] sm:$0xff]
    %v439 = vld [vmem:[#allocation6 + $0xc0] sm:$0xff]
    %v440 = vld [vmem:[#allocation6 + $0xc8] sm:$0xff]
    %v441 = vld [vmem:[#allocation6 + $0xd0] sm:$0xff]
    %v442 = vld [vmem:[#allocation6 + $0xd8] sm:$0xff]
    %v443 = vld [vmem:[#allocation6 + $0xe0] sm:$0xff]
    %v444 = vld [vmem:[#allocation6 + $0xe8] sm:$0xff]
    %v445 = vld [vmem:[#allocation6 + $0xf0] sm:$0xff]
    %v446 = vld [vmem:[#allocation6 + $0xf8] sm:$0xff]
    %v447 = vunpack.c.l.bf16 %v415
    %v448 = vunpack.c.h.bf16 %v415
    %v449 = vunpack.c.l.bf16 %v416
    %v450 = vunpack.c.h.bf16 %v416
    %v451 = vunpack.c.l.bf16 %v417
    %v452 = vunpack.c.h.bf16 %v417
    %v453 = vunpack.c.l.bf16 %v418
    %v454 = vunpack.c.h.bf16 %v418
    %v455 = vunpack.c.l.bf16 %v419
    %v456 = vunpack.c.h.bf16 %v419
    %v457 = vunpack.c.l.bf16 %v420
    %v458 = vunpack.c.h.bf16 %v420
    %v459 = vunpack.c.l.bf16 %v421
    %v460 = vunpack.c.h.bf16 %v421
    %v461 = vunpack.c.l.bf16 %v422
    %v462 = vunpack.c.h.bf16 %v422
    %v463 = vunpack.c.l.bf16 %v423
    %v464 = vunpack.c.h.bf16 %v423
    %v465 = vunpack.c.l.bf16 %v424
    %v466 = vunpack.c.h.bf16 %v424
    %v467 = vunpack.c.l.bf16 %v425
    %v468 = vunpack.c.h.bf16 %v425
    %v469 = vunpack.c.l.bf16 %v426
    %v470 = vunpack.c.h.bf16 %v426
    %v471 = vunpack.c.l.bf16 %v427
    %v472 = vunpack.c.h.bf16 %v427
    %v473 = vunpack.c.l.bf16 %v428
    %v474 = vunpack.c.h.bf16 %v428
    %v475 = vunpack.c.l.bf16 %v429
    %v476 = vunpack.c.h.bf16 %v429
    %v477 = vunpack.c.l.bf16 %v430
    %v478 = vunpack.c.h.bf16 %v430
    %v479 = vunpack.c.l.bf16 %v431
    %v480 = vunpack.c.h.bf16 %v431
    %v481 = vunpack.c.l.bf16 %v432
    %v482 = vunpack.c.h.bf16 %v432
    %v483 = vunpack.c.l.bf16 %v433
    %v484 = vunpack.c.h.bf16 %v433
    %v485 = vunpack.c.l.bf16 %v434
    %v486 = vunpack.c.h.bf16 %v434
    %v487 = vunpack.c.l.bf16 %v435
    %v488 = vunpack.c.h.bf16 %v435
    %v489 = vunpack.c.l.bf16 %v436
    %v490 = vunpack.c.h.bf16 %v436
    %v491 = vunpack.c.l.bf16 %v437
    %v492 = vunpack.c.h.bf16 %v437
    %v493 = vunpack.c.l.bf16 %v438
    %v494 = vunpack.c.h.bf16 %v438
    %v495 = vunpack.c.l.bf16 %v439
    %v496 = vunpack.c.h.bf16 %v439
    %v497 = vunpack.c.l.bf16 %v440
    %v498 = vunpack.c.h.bf16 %v440
    %v499 = vunpack.c.l.bf16 %v441
    %v500 = vunpack.c.h.bf16 %v441
    %v501 = vunpack.c.l.bf16 %v442
    %v502 = vunpack.c.h.bf16 %v442
    %v503 = vunpack.c.l.bf16 %v443
    %v504 = vunpack.c.h.bf16 %v443
    %v505 = vunpack.c.l.bf16 %v444
    %v506 = vunpack.c.h.bf16 %v444
    %v507 = vunpack.c.l.bf16 %v445
    %v508 = vunpack.c.h.bf16 %v445
    %v509 = vunpack.c.l.bf16 %v446
    %v510 = vunpack.c.h.bf16 %v446
    %511 = vst [vmem:[#allocation3] sm:$0xff] %v447
    %512 = vst [vmem:[#allocation3 + $0x8] sm:$0xff] %v448
    %513 = vst [vmem:[#allocation3 + $0x10] sm:$0xff] %v449
    %514 = vst [vmem:[#allocation3 + $0x18] sm:$0xff] %v450
    %515 = vst [vmem:[#allocation3 + $0x20] sm:$0xff] %v451
    %516 = vst [vmem:[#allocation3 + $0x28] sm:$0xff] %v452
    %517 = vst [vmem:[#allocation3 + $0x30] sm:$0xff] %v453
    %518 = vst [vmem:[#allocation3 + $0x38] sm:$0xff] %v454
    %519 = vst [vmem:[#allocation3 + $0x40] sm:$0xff] %v455
    %520 = vst [vmem:[#allocation3 + $0x48] sm:$0xff] %v456
    %521 = vst [vmem:[#allocation3 + $0x50] sm:$0xff] %v457
    %522 = vst [vmem:[#allocation3 + $0x58] sm:$0xff] %v458
    %523 = vst [vmem:[#allocation3 + $0x60] sm:$0xff] %v459
    %524 = vst [vmem:[#allocation3 + $0x68] sm:$0xff] %v460
    %525 = vst [vmem:[#allocation3 + $0x70] sm:$0xff] %v461
    %526 = vst [vmem:[#allocation3 + $0x78] sm:$0xff] %v462
    %527 = vst [vmem:[#allocation3 + $0x80] sm:$0xff] %v463
    %528 = vst [vmem:[#allocation3 + $0x88] sm:$0xff] %v464
    %529 = vst [vmem:[#allocation3 + $0x90] sm:$0xff] %v465
    %530 = vst [vmem:[#allocation3 + $0x98] sm:$0xff] %v466
    %531 = vst [vmem:[#allocation3 + $0xa0] sm:$0xff] %v467
    %532 = vst [vmem:[#allocation3 + $0xa8] sm:$0xff] %v468
    %533 = vst [vmem:[#allocation3 + $0xb0] sm:$0xff] %v469
    %534 = vst [vmem:[#allocation3 + $0xb8] sm:$0xff] %v470
    %535 = vst [vmem:[#allocation3 + $0xc0] sm:$0xff] %v471
    %536 = vst [vmem:[#allocation3 + $0xc8] sm:$0xff] %v472
    %537 = vst [vmem:[#allocation3 + $0xd0] sm:$0xff] %v473
    %538 = vst [vmem:[#allocation3 + $0xd8] sm:$0xff] %v474
    %539 = vst [vmem:[#allocation3 + $0xe0] sm:$0xff] %v475
    %540 = vst [vmem:[#allocation3 + $0xe8] sm:$0xff] %v476
    %541 = vst [vmem:[#allocation3 + $0xf0] sm:$0xff] %v477
    %542 = vst [vmem:[#allocation3 + $0xf8] sm:$0xff] %v478
    %543 = vst [vmem:[#allocation3 + $0x100] sm:$0xff] %v479
    %544 = vst [vmem:[#allocation3 + $0x108] sm:$0xff] %v480
    %545 = vst [vmem:[#allocation3 + $0x110] sm:$0xff] %v481
    %546 = vst [vmem:[#allocation3 + $0x118] sm:$0xff] %v482
    %547 = vst [vmem:[#allocation3 + $0x120] sm:$0xff] %v483
    %548 = vst [vmem:[#allocation3 + $0x128] sm:$0xff] %v484
    %549 = vst [vmem:[#allocation3 + $0x130] sm:$0xff] %v485
    %550 = vst [vmem:[#allocation3 + $0x138] sm:$0xff] %v486
    %551 = vst [vmem:[#allocation3 + $0x140] sm:$0xff] %v487
    %552 = vst [vmem:[#allocation3 + $0x148] sm:$0xff] %v488
    %553 = vst [vmem:[#allocation3 + $0x150] sm:$0xff] %v489
    %554 = vst [vmem:[#allocation3 + $0x158] sm:$0xff] %v490
    %555 = vst [vmem:[#allocation3 + $0x160] sm:$0xff] %v491
    %556 = vst [vmem:[#allocation3 + $0x168] sm:$0xff] %v492
    %557 = vst [vmem:[#allocation3 + $0x170] sm:$0xff] %v493
    %558 = vst [vmem:[#allocation3 + $0x178] sm:$0xff] %v494
    %559 = vst [vmem:[#allocation3 + $0x180] sm:$0xff] %v495
    %560 = vst [vmem:[#allocation3 + $0x188] sm:$0xff] %v496
    %561 = vst [vmem:[#allocation3 + $0x190] sm:$0xff] %v497
    %562 = vst [vmem:[#allocation3 + $0x198] sm:$0xff] %v498
    %563 = vst [vmem:[#allocation3 + $0x1a0] sm:$0xff] %v499
    %564 = vst [vmem:[#allocation3 + $0x1a8] sm:$0xff] %v500
    %565 = vst [vmem:[#allocation3 + $0x1b0] sm:$0xff] %v501
    %566 = vst [vmem:[#allocation3 + $0x1b8] sm:$0xff] %v502
    %567 = vst [vmem:[#allocation3 + $0x1c0] sm:$0xff] %v503
    %568 = vst [vmem:[#allocation3 + $0x1c8] sm:$0xff] %v504
    %569 = vst [vmem:[#allocation3 + $0x1d0] sm:$0xff] %v505
    %570 = vst [vmem:[#allocation3 + $0x1d8] sm:$0xff] %v506
    %571 = vst [vmem:[#allocation3 + $0x1e0] sm:$0xff] %v507
    %572 = vst [vmem:[#allocation3 + $0x1e8] sm:$0xff] %v508
    %573 = vst [vmem:[#allocation3 + $0x1f0] sm:$0xff] %v509
    %574 = vst [vmem:[#allocation3 + $0x1f8] sm:$0xff] %v510
    %v575 = vld [vmem:[#allocation9] sm:$0xff]
    %v576 = vld [vmem:[#allocation9 + $0x8] sm:$0xff]
    %v577 = vld [vmem:[#allocation9 + $0x10] sm:$0xff]
    %v578 = vld [vmem:[#allocation9 + $0x18] sm:$0xff]
    %v579 = vld [vmem:[#allocation9 + $0x20] sm:$0xff]
    %v580 = vld [vmem:[#allocation9 + $0x28] sm:$0xff]
    %v581 = vld [vmem:[#allocation9 + $0x30] sm:$0xff]
    %v582 = vld [vmem:[#allocation9 + $0x38] sm:$0xff]
    %v583 = vld [vmem:[#allocation9 + $0x40] sm:$0xff]
    %v584 = vld [vmem:[#allocation9 + $0x48] sm:$0xff]
    %v585 = vld [vmem:[#allocation9 + $0x50] sm:$0xff]
    %v586 = vld [vmem:[#allocation9 + $0x58] sm:$0xff]
    %v587 = vld [vmem:[#allocation9 + $0x60] sm:$0xff]
    %v588 = vld [vmem:[#allocation9 + $0x68] sm:$0xff]
    %v589 = vld [vmem:[#allocation9 + $0x70] sm:$0xff]
    %v590 = vld [vmem:[#allocation9 + $0x78] sm:$0xff]
    %v591 = vld [vmem:[#allocation9 + $0x80] sm:$0xff]
    %v592 = vld [vmem:[#allocation9 + $0x88] sm:$0xff]
    %v593 = vld [vmem:[#allocation9 + $0x90] sm:$0xff]
    %v594 = vld [vmem:[#allocation9 + $0x98] sm:$0xff]
    %v595 = vld [vmem:[#allocation9 + $0xa0] sm:$0xff]
    %v596 = vld [vmem:[#allocation9 + $0xa8] sm:$0xff]
    %v597 = vld [vmem:[#allocation9 + $0xb0] sm:$0xff]
    %v598 = vld [vmem:[#allocation9 + $0xb8] sm:$0xff]
    %v599 = vld [vmem:[#allocation9 + $0xc0] sm:$0xff]
    %v600 = vld [vmem:[#allocation9 + $0xc8] sm:$0xff]
    %v601 = vld [vmem:[#allocation9 + $0xd0] sm:$0xff]
    %v602 = vld [vmem:[#allocation9 + $0xd8] sm:$0xff]
    %v603 = vld [vmem:[#allocation9 + $0xe0] sm:$0xff]
    %v604 = vld [vmem:[#allocation9 + $0xe8] sm:$0xff]
    %v605 = vld [vmem:[#allocation9 + $0xf0] sm:$0xff]
    %v606 = vld [vmem:[#allocation9 + $0xf8] sm:$0xff]
    %v607 = vunpack.c.l.bf16 %v575
    %v608 = vunpack.c.h.bf16 %v575
    %v609 = vunpack.c.l.bf16 %v576
    %v610 = vunpack.c.h.bf16 %v576
    %v611 = vunpack.c.l.bf16 %v577
    %v612 = vunpack.c.h.bf16 %v577
    %v613 = vunpack.c.l.bf16 %v578
    %v614 = vunpack.c.h.bf16 %v578
    %v615 = vunpack.c.l.bf16 %v579
    %v616 = vunpack.c.h.bf16 %v579
    %v617 = vunpack.c.l.bf16 %v580
    %v618 = vunpack.c.h.bf16 %v580
    %v619 = vunpack.c.l.bf16 %v581
    %v620 = vunpack.c.h.bf16 %v581
    %v621 = vunpack.c.l.bf16 %v582
    %v622 = vunpack.c.h.bf16 %v582
    %v623 = vunpack.c.l.bf16 %v583
    %v624 = vunpack.c.h.bf16 %v583
    %v625 = vunpack.c.l.bf16 %v584
    %v626 = vunpack.c.h.bf16 %v584
    %v627 = vunpack.c.l.bf16 %v585
    %v628 = vunpack.c.h.bf16 %v585
    %v629 = vunpack.c.l.bf16 %v586
    %v630 = vunpack.c.h.bf16 %v586
    %v631 = vunpack.c.l.bf16 %v587
    %v632 = vunpack.c.h.bf16 %v587
    %v633 = vunpack.c.l.bf16 %v588
    %v634 = vunpack.c.h.bf16 %v588
    %v635 = vunpack.c.l.bf16 %v589
    %v636 = vunpack.c.h.bf16 %v589
    %v637 = vunpack.c.l.bf16 %v590
    %v638 = vunpack.c.h.bf16 %v590
    %v639 = vunpack.c.l.bf16 %v591
    %v640 = vunpack.c.h.bf16 %v591
    %v641 = vunpack.c.l.bf16 %v592
    %v642 = vunpack.c.h.bf16 %v592
    %v643 = vunpack.c.l.bf16 %v593
    %v644 = vunpack.c.h.bf16 %v593
    %v645 = vunpack.c.l.bf16 %v594
    %v646 = vunpack.c.h.bf16 %v594
    %v647 = vunpack.c.l.bf16 %v595
    %v648 = vunpack.c.h.bf16 %v595
    %v649 = vunpack.c.l.bf16 %v596
    %v650 = vunpack.c.h.bf16 %v596
    %v651 = vunpack.c.l.bf16 %v597
    %v652 = vunpack.c.h.bf16 %v597
    %v653 = vunpack.c.l.bf16 %v598
    %v654 = vunpack.c.h.bf16 %v598
    %v655 = vunpack.c.l.bf16 %v599
    %v656 = vunpack.c.h.bf16 %v599
    %v657 = vunpack.c.l.bf16 %v600
    %v658 = vunpack.c.h.bf16 %v600
    %v659 = vunpack.c.l.bf16 %v601
    %v660 = vunpack.c.h.bf16 %v601
    %v661 = vunpack.c.l.bf16 %v602
    %v662 = vunpack.c.h.bf16 %v602
    %v663 = vunpack.c.l.bf16 %v603
    %v664 = vunpack.c.h.bf16 %v603
    %v665 = vunpack.c.l.bf16 %v604
    %v666 = vunpack.c.h.bf16 %v604
    %v667 = vunpack.c.l.bf16 %v605
    %v668 = vunpack.c.h.bf16 %v605
    %v669 = vunpack.c.l.bf16 %v606
    %v670 = vunpack.c.h.bf16 %v606
    %671 = vst [vmem:[#allocation4] sm:$0xff] %v607
    %672 = vst [vmem:[#allocation4 + $0x8] sm:$0xff] %v608
    %673 = vst [vmem:[#allocation4 + $0x10] sm:$0xff] %v609
    %674 = vst [vmem:[#allocation4 + $0x18] sm:$0xff] %v610
    %675 = vst [vmem:[#allocation4 + $0x20] sm:$0xff] %v611
    %676 = vst [vmem:[#allocation4 + $0x28] sm:$0xff] %v612
    %677 = vst [vmem:[#allocation4 + $0x30] sm:$0xff] %v613
    %678 = vst [vmem:[#allocation4 + $0x38] sm:$0xff] %v614
    %679 = vst [vmem:[#allocation4 + $0x40] sm:$0xff] %v615
    %680 = vst [vmem:[#allocation4 + $0x48] sm:$0xff] %v616
    %681 = vst [vmem:[#allocation4 + $0x50] sm:$0xff] %v617
    %682 = vst [vmem:[#allocation4 + $0x58] sm:$0xff] %v618
    %683 = vst [vmem:[#allocation4 + $0x60] sm:$0xff] %v619
    %684 = vst [vmem:[#allocation4 + $0x68] sm:$0xff] %v620
    %685 = vst [vmem:[#allocation4 + $0x70] sm:$0xff] %v621
    %686 = vst [vmem:[#allocation4 + $0x78] sm:$0xff] %v622
    %687 = vst [vmem:[#allocation4 + $0x80] sm:$0xff] %v623
    %688 = vst [vmem:[#allocation4 + $0x88] sm:$0xff] %v624
    %689 = vst [vmem:[#allocation4 + $0x90] sm:$0xff] %v625
    %690 = vst [vmem:[#allocation4 + $0x98] sm:$0xff] %v626
    %691 = vst [vmem:[#allocation4 + $0xa0] sm:$0xff] %v627
    %692 = vst [vmem:[#allocation4 + $0xa8] sm:$0xff] %v628
    %693 = vst [vmem:[#allocation4 + $0xb0] sm:$0xff] %v629
    %694 = vst [vmem:[#allocation4 + $0xb8] sm:$0xff] %v630
    %695 = vst [vmem:[#allocation4 + $0xc0] sm:$0xff] %v631
    %696 = vst [vmem:[#allocation4 + $0xc8] sm:$0xff] %v632
    %697 = vst [vmem:[#allocation4 + $0xd0] sm:$0xff] %v633
    %698 = vst [vmem:[#allocation4 + $0xd8] sm:$0xff] %v634
    %699 = vst [vmem:[#allocation4 + $0xe0] sm:$0xff] %v635
    %700 = vst [vmem:[#allocation4 + $0xe8] sm:$0xff] %v636
    %701 = vst [vmem:[#allocation4 + $0xf0] sm:$0xff] %v637
    %702 = vst [vmem:[#allocation4 + $0xf8] sm:$0xff] %v638
    %703 = vst [vmem:[#allocation4 + $0x100] sm:$0xff] %v639
    %704 = vst [vmem:[#allocation4 + $0x108] sm:$0xff] %v640
    %705 = vst [vmem:[#allocation4 + $0x110] sm:$0xff] %v641
    %706 = vst [vmem:[#allocation4 + $0x118] sm:$0xff] %v642
    %707 = vst [vmem:[#allocation4 + $0x120] sm:$0xff] %v643
    %708 = vst [vmem:[#allocation4 + $0x128] sm:$0xff] %v644
    %709 = vst [vmem:[#allocation4 + $0x130] sm:$0xff] %v645
    %710 = vst [vmem:[#allocation4 + $0x138] sm:$0xff] %v646
    %711 = vst [vmem:[#allocation4 + $0x140] sm:$0xff] %v647
    %712 = vst [vmem:[#allocation4 + $0x148] sm:$0xff] %v648
    %713 = vst [vmem:[#allocation4 + $0x150] sm:$0xff] %v649
    %714 = vst [vmem:[#allocation4 + $0x158] sm:$0xff] %v650
    %715 = vst [vmem:[#allocation4 + $0x160] sm:$0xff] %v651
    %716 = vst [vmem:[#allocation4 + $0x168] sm:$0xff] %v652
    %717 = vst [vmem:[#allocation4 + $0x170] sm:$0xff] %v653
    %718 = vst [vmem:[#allocation4 + $0x178] sm:$0xff] %v654
    %719 = vst [vmem:[#allocation4 + $0x180] sm:$0xff] %v655
    %720 = vst [vmem:[#allocation4 + $0x188] sm:$0xff] %v656
    %721 = vst [vmem:[#allocation4 + $0x190] sm:$0xff] %v657
    %722 = vst [vmem:[#allocation4 + $0x198] sm:$0xff] %v658
    %723 = vst [vmem:[#allocation4 + $0x1a0] sm:$0xff] %v659
    %724 = vst [vmem:[#allocation4 + $0x1a8] sm:$0xff] %v660
    %725 = vst [vmem:[#allocation4 + $0x1b0] sm:$0xff] %v661
    %726 = vst [vmem:[#allocation4 + $0x1b8] sm:$0xff] %v662
    %727 = vst [vmem:[#allocation4 + $0x1c0] sm:$0xff] %v663
    %728 = vst [vmem:[#allocation4 + $0x1c8] sm:$0xff] %v664
    %729 = vst [vmem:[#allocation4 + $0x1d0] sm:$0xff] %v665
    %730 = vst [vmem:[#allocation4 + $0x1d8] sm:$0xff] %v666
    %731 = vst [vmem:[#allocation4 + $0x1e0] sm:$0xff] %v667
    %732 = vst [vmem:[#allocation4 + $0x1e8] sm:$0xff] %v668
    %733 = vst [vmem:[#allocation4 + $0x1f0] sm:$0xff] %v669
    %734 = vst [vmem:[#allocation4 + $0x1f8] sm:$0xff] %v670
    %v735 = vld [vmem:[#allocation11] sm:$0xff]
    %v736 = vld [vmem:[#allocation11 + $0x8] sm:$0xff]
    %v737 = vld [vmem:[#allocation11 + $0x10] sm:$0xff]
    %v738 = vld [vmem:[#allocation11 + $0x18] sm:$0xff]
    %v739 = vld [vmem:[#allocation11 + $0x20] sm:$0xff]
    %v740 = vld [vmem:[#allocation11 + $0x28] sm:$0xff]
    %v741 = vld [vmem:[#allocation11 + $0x30] sm:$0xff]
    %v742 = vld [vmem:[#allocation11 + $0x38] sm:$0xff]
    %v743 = vld [vmem:[#allocation11 + $0x40] sm:$0xff]
    %v744 = vld [vmem:[#allocation11 + $0x48] sm:$0xff]
    %v745 = vld [vmem:[#allocation11 + $0x50] sm:$0xff]
    %v746 = vld [vmem:[#allocation11 + $0x58] sm:$0xff]
    %v747 = vld [vmem:[#allocation11 + $0x60] sm:$0xff]
    %v748 = vld [vmem:[#allocation11 + $0x68] sm:$0xff]
    %v749 = vld [vmem:[#allocation11 + $0x70] sm:$0xff]
    %v750 = vld [vmem:[#allocation11 + $0x78] sm:$0xff]
    %v751 = vld [vmem:[#allocation11 + $0x80] sm:$0xff]
    %v752 = vld [vmem:[#allocation11 + $0x88] sm:$0xff]
    %v753 = vld [vmem:[#allocation11 + $0x90] sm:$0xff]
    %v754 = vld [vmem:[#allocation11 + $0x98] sm:$0xff]
    %v755 = vld [vmem:[#allocation11 + $0xa0] sm:$0xff]
    %v756 = vld [vmem:[#allocation11 + $0xa8] sm:$0xff]
    %v757 = vld [vmem:[#allocation11 + $0xb0] sm:$0xff]
    %v758 = vld [vmem:[#allocation11 + $0xb8] sm:$0xff]
    %v759 = vld [vmem:[#allocation11 + $0xc0] sm:$0xff]
    %v760 = vld [vmem:[#allocation11 + $0xc8] sm:$0xff]
    %v761 = vld [vmem:[#allocation11 + $0xd0] sm:$0xff]
    %v762 = vld [vmem:[#allocation11 + $0xd8] sm:$0xff]
    %v763 = vld [vmem:[#allocation11 + $0xe0] sm:$0xff]
    %v764 = vld [vmem:[#allocation11 + $0xe8] sm:$0xff]
    %v765 = vld [vmem:[#allocation11 + $0xf0] sm:$0xff]
    %v766 = vld [vmem:[#allocation11 + $0xf8] sm:$0xff]
    %v767 = vunpack.c.l.bf16 %v735
    %v768 = vunpack.c.h.bf16 %v735
    %v769 = vunpack.c.l.bf16 %v736
    %v770 = vunpack.c.h.bf16 %v736
    %v771 = vunpack.c.l.bf16 %v737
    %v772 = vunpack.c.h.bf16 %v737
    %v773 = vunpack.c.l.bf16 %v738
    %v774 = vunpack.c.h.bf16 %v738
    %v775 = vunpack.c.l.bf16 %v739
    %v776 = vunpack.c.h.bf16 %v739
    %v777 = vunpack.c.l.bf16 %v740
    %v778 = vunpack.c.h.bf16 %v740
    %v779 = vunpack.c.l.bf16 %v741
    %v780 = vunpack.c.h.bf16 %v741
    %v781 = vunpack.c.l.bf16 %v742
    %v782 = vunpack.c.h.bf16 %v742
    %v783 = vunpack.c.l.bf16 %v743
    %v784 = vunpack.c.h.bf16 %v743
    %v785 = vunpack.c.l.bf16 %v744
    %v786 = vunpack.c.h.bf16 %v744
    %v787 = vunpack.c.l.bf16 %v745
    %v788 = vunpack.c.h.bf16 %v745
    %v789 = vunpack.c.l.bf16 %v746
    %v790 = vunpack.c.h.bf16 %v746
    %v791 = vunpack.c.l.bf16 %v747
    %v792 = vunpack.c.h.bf16 %v747
    %v793 = vunpack.c.l.bf16 %v748
    %v794 = vunpack.c.h.bf16 %v748
    %v795 = vunpack.c.l.bf16 %v749
    %v796 = vunpack.c.h.bf16 %v749
    %v797 = vunpack.c.l.bf16 %v750
    %v798 = vunpack.c.h.bf16 %v750
    %v799 = vunpack.c.l.bf16 %v751
    %v800 = vunpack.c.h.bf16 %v751
    %v801 = vunpack.c.l.bf16 %v752
    %v802 = vunpack.c.h.bf16 %v752
    %v803 = vunpack.c.l.bf16 %v753
    %v804 = vunpack.c.h.bf16 %v753
    %v805 = vunpack.c.l.bf16 %v754
    %v806 = vunpack.c.h.bf16 %v754
    %v807 = vunpack.c.l.bf16 %v755
    %v808 = vunpack.c.h.bf16 %v755
    %v809 = vunpack.c.l.bf16 %v756
    %v810 = vunpack.c.h.bf16 %v756
    %v811 = vunpack.c.l.bf16 %v757
    %v812 = vunpack.c.h.bf16 %v757
    %v813 = vunpack.c.l.bf16 %v758
    %v814 = vunpack.c.h.bf16 %v758
    %v815 = vunpack.c.l.bf16 %v759
    %v816 = vunpack.c.h.bf16 %v759
    %v817 = vunpack.c.l.bf16 %v760
    %v818 = vunpack.c.h.bf16 %v760
    %v819 = vunpack.c.l.bf16 %v761
    %v820 = vunpack.c.h.bf16 %v761
    %v821 = vunpack.c.l.bf16 %v762
    %v822 = vunpack.c.h.bf16 %v762
    %v823 = vunpack.c.l.bf16 %v763
    %v824 = vunpack.c.h.bf16 %v763
    %v825 = vunpack.c.l.bf16 %v764
    %v826 = vunpack.c.h.bf16 %v764
    %v827 = vunpack.c.l.bf16 %v765
    %v828 = vunpack.c.h.bf16 %v765
    %v829 = vunpack.c.l.bf16 %v766
    %v830 = vunpack.c.h.bf16 %v766
    %831 = vst [vmem:[#allocation5] sm:$0xff] %v767
    %832 = vst [vmem:[#allocation5 + $0x8] sm:$0xff] %v768
    %833 = vst [vmem:[#allocation5 + $0x10] sm:$0xff] %v769
    %834 = vst [vmem:[#allocation5 + $0x18] sm:$0xff] %v770
    %835 = vst [vmem:[#allocation5 + $0x20] sm:$0xff] %v771
    %836 = vst [vmem:[#allocation5 + $0x28] sm:$0xff] %v772
    %837 = vst [vmem:[#allocation5 + $0x30] sm:$0xff] %v773
    %838 = vst [vmem:[#allocation5 + $0x38] sm:$0xff] %v774
    %839 = vst [vmem:[#allocation5 + $0x40] sm:$0xff] %v775
    %840 = vst [vmem:[#allocation5 + $0x48] sm:$0xff] %v776
    %841 = vst [vmem:[#allocation5 + $0x50] sm:$0xff] %v777
    %842 = vst [vmem:[#allocation5 + $0x58] sm:$0xff] %v778
    %843 = vst [vmem:[#allocation5 + $0x60] sm:$0xff] %v779
    %844 = vst [vmem:[#allocation5 + $0x68] sm:$0xff] %v780
    %845 = vst [vmem:[#allocation5 + $0x70] sm:$0xff] %v781
    %846 = vst [vmem:[#allocation5 + $0x78] sm:$0xff] %v782
    %847 = vst [vmem:[#allocation5 + $0x80] sm:$0xff] %v783
    %848 = vst [vmem:[#allocation5 + $0x88] sm:$0xff] %v784
    %849 = vst [vmem:[#allocation5 + $0x90] sm:$0xff] %v785
    %850 = vst [vmem:[#allocation5 + $0x98] sm:$0xff] %v786
    %851 = vst [vmem:[#allocation5 + $0xa0] sm:$0xff] %v787
    %852 = vst [vmem:[#allocation5 + $0xa8] sm:$0xff] %v788
    %853 = vst [vmem:[#allocation5 + $0xb0] sm:$0xff] %v789
    %854 = vst [vmem:[#allocation5 + $0xb8] sm:$0xff] %v790
    %855 = vst [vmem:[#allocation5 + $0xc0] sm:$0xff] %v791
    %856 = vst [vmem:[#allocation5 + $0xc8] sm:$0xff] %v792
    %857 = vst [vmem:[#allocation5 + $0xd0] sm:$0xff] %v793
    %858 = vst [vmem:[#allocation5 + $0xd8] sm:$0xff] %v794
    %859 = vst [vmem:[#allocation5 + $0xe0] sm:$0xff] %v795
    %860 = vst [vmem:[#allocation5 + $0xe8] sm:$0xff] %v796
    %861 = vst [vmem:[#allocation5 + $0xf0] sm:$0xff] %v797
    %862 = vst [vmem:[#allocation5 + $0xf8] sm:$0xff] %v798
    %863 = vst [vmem:[#allocation5 + $0x100] sm:$0xff] %v799
    %864 = vst [vmem:[#allocation5 + $0x108] sm:$0xff] %v800
    %865 = vst [vmem:[#allocation5 + $0x110] sm:$0xff] %v801
    %866 = vst [vmem:[#allocation5 + $0x118] sm:$0xff] %v802
    %867 = vst [vmem:[#allocation5 + $0x120] sm:$0xff] %v803
    %868 = vst [vmem:[#allocation5 + $0x128] sm:$0xff] %v804
    %869 = vst [vmem:[#allocation5 + $0x130] sm:$0xff] %v805
    %870 = vst [vmem:[#allocation5 + $0x138] sm:$0xff] %v806
    %871 = vst [vmem:[#allocation5 + $0x140] sm:$0xff] %v807
    %872 = vst [vmem:[#allocation5 + $0x148] sm:$0xff] %v808
    %873 = vst [vmem:[#allocation5 + $0x150] sm:$0xff] %v809
    %874 = vst [vmem:[#allocation5 + $0x158] sm:$0xff] %v810
    %875 = vst [vmem:[#allocation5 + $0x160] sm:$0xff] %v811
    %876 = vst [vmem:[#allocation5 + $0x168] sm:$0xff] %v812
    %877 = vst [vmem:[#allocation5 + $0x170] sm:$0xff] %v813
    %878 = vst [vmem:[#allocation5 + $0x178] sm:$0xff] %v814
    %879 = vst [vmem:[#allocation5 + $0x180] sm:$0xff] %v815
    %880 = vst [vmem:[#allocation5 + $0x188] sm:$0xff] %v816
    %881 = vst [vmem:[#allocation5 + $0x190] sm:$0xff] %v817
    %882 = vst [vmem:[#allocation5 + $0x198] sm:$0xff] %v818
    %883 = vst [vmem:[#allocation5 + $0x1a0] sm:$0xff] %v819
    %884 = vst [vmem:[#allocation5 + $0x1a8] sm:$0xff] %v820
    %885 = vst [vmem:[#allocation5 + $0x1b0] sm:$0xff] %v821
    %886 = vst [vmem:[#allocation5 + $0x1b8] sm:$0xff] %v822
    %887 = vst [vmem:[#allocation5 + $0x1c0] sm:$0xff] %v823
    %888 = vst [vmem:[#allocation5 + $0x1c8] sm:$0xff] %v824
    %889 = vst [vmem:[#allocation5 + $0x1d0] sm:$0xff] %v825
    %890 = vst [vmem:[#allocation5 + $0x1d8] sm:$0xff] %v826
    %891 = vst [vmem:[#allocation5 + $0x1e0] sm:$0xff] %v827
    %892 = vst [vmem:[#allocation5 + $0x1e8] sm:$0xff] %v828
    %893 = vst [vmem:[#allocation5 + $0x1f0] sm:$0xff] %v829
    %894 = vst [vmem:[#allocation5 + $0x1f8] sm:$0xff] %v830
    %v895 = vld [vmem:[%s0] sm:$0xff]
    %v896 = vld [vmem:[%s0 + $0x8] sm:$0xff]
    %v897 = vld [vmem:[%s0 + $0x10] sm:$0xff]
    %v898 = vld [vmem:[%s0 + $0x18] sm:$0xff]
    %v899 = vld [vmem:[%s0 + $0x20] sm:$0xff]
    %v900 = vld [vmem:[%s0 + $0x28] sm:$0xff]
    %v901 = vld [vmem:[%s4] sm:$0xff]
    %v902 = vld [vmem:[%s4 + $0x8] sm:$0xff]
    %v903 = vld [vmem:[%s4 + $0x10] sm:$0x33]
    %v904 = vld [vmem:[%s4 + $0x18] sm:$0x33]
    %v905 = vunpack.c.l.bf16 %v901
    %v906 = vunpack.c.h.bf16 %v901
    %v907 = vunpack.c.l.bf16 %v902
    %v908 = vunpack.c.h.bf16 %v902
    %v909 = vunpack.c.l.bf16 %v903
    %v910 = vunpack.c.h.bf16 %v903
    %v911 = vunpack.c.l.bf16 %v904
    %v912 = vunpack.c.h.bf16 %v904
    %v913 = vld [vmem:[%s6] sm:$0xf]
    %v915 = vlaneseq
    %v916 = vshrl.u32 %v915, 7
    %v917 = vsub.s32 0, %v916
    %v918 = vrot.slane %v913, %v917
    %v919 = vlaneseq
    %v920 = vshrl.u32 %v919, 7
    %v921 = vsub.s32 1, %v920
    %v922 = vrot.slane %v913, %v921
    %v923 = vlaneseq
    %v924 = vshrl.u32 %v923, 7
    %v925 = vsub.s32 2, %v924
    %v926 = vrot.slane %v913, %v925
    %v927 = vlaneseq
    %v928 = vshrl.u32 %v927, 7
    %v929 = vsub.s32 3, %v928
    %v930 = vrot.slane %v913, %v929
    %vm935 = vcmask 97280
    %v937 = vsel %vm935, %v895, 0
    %v940 = vsel %vm935, %v896, 0
    %v943 = vsel %vm935, %v897, 0
    %v946 = vsel %vm935, %v898, 0
    %v949 = vsel %vm935, %v899, 0
    %v952 = vsel %vm935, %v900, 0
    %vm954 = vcmask 1043456
    %v956 = vsel %vm954, %v909, 0
    %v959 = vsel %vm954, %v910, 0
    %v962 = vsel %vm954, %v911, 0
    %v965 = vsel %vm954, %v912, 0
    %967 = vmatprep.subr.mxu0 0.0
    %968 = vmatpush1.msra.mxu0 0.0
    %969 = vmatprep.subr.mxu0 0.0
    %970 = vmatpush1.msra.mxu0 0.0
    %971 = vmatprep.subr.mxu0 0.0
    %972 = vmatpush1.msra.mxu0 0.0
    %973 = vmatprep.subr.mxu0 0.0
    %974 = vmatpush1.msra.mxu0 0.0
    %975 = vmatprep.subr.mxu0 0.0
    %976 = vmatpush1.msra.mxu0 0.0
    %977 = vmatprep.subr.mxu0 0.0
    %978 = vmatpush1.msra.mxu0 0.0
    %979 = vmatprep.subr.mxu0 0.0
    %980 = vmatpush1.msra.mxu0 0.0
    %981 = vmatprep.subr.mxu0 0.0
    %982 = vmatpush1.msra.mxu0 0.0
    %983 = vmatprep.subr.mxu0 0.0
    %984 = vmatpush1.msra.mxu0 0.0
    %985 = vmatprep.subr.mxu0 0.0
    %986 = vmatpush1.msra.mxu0 0.0
    %987 = vmatprep.subr.mxu0 0.0
    %988 = vmatpush1.msra.mxu0 0.0
    %989 = vmatprep.subr.mxu0 0.0
    %990 = vmatpush1.msra.mxu0 0.0
    %991 = vmatprep.subr.mxu0 0.0
    %992 = vmatpush1.msra.mxu0 0.0
    %993 = vmatprep.subr.mxu0 0.0
    %994 = vmatpush1.msra.mxu0 0.0
    %995 = vmatprep.subr.mxu0 %v959
    %996 = vmatpush1.msra.mxu0 %v956
    %997 = vmatprep.subr.mxu0 %v906
    %998 = vmatpush1.msra.mxu0 %v905
    %999 = vmatprep.subr.mxu0 0.0
    %1000 = vmatpush2.msra.mxu0 0.0
    %1001 = vmatprep.subr.mxu0 0.0
    %1002 = vmatpush2.msra.mxu0 0.0
    %1003 = vmatprep.subr.mxu0 0.0
    %1004 = vmatpush2.msra.mxu0 0.0
    %1005 = vmatprep.subr.mxu0 0.0
    %1006 = vmatpush2.msra.mxu0 0.0
    %1007 = vmatprep.subr.mxu0 0.0
    %1008 = vmatpush2.msra.mxu0 0.0
    %1009 = vmatprep.subr.mxu0 0.0
    %1010 = vmatpush2.msra.mxu0 0.0
    %1011 = vmatprep.subr.mxu0 0.0
    %1012 = vmatpush2.msra.mxu0 0.0
    %1013 = vmatprep.subr.mxu0 0.0
    %1014 = vmatpush2.msra.mxu0 0.0
    %1015 = vmatprep.subr.mxu0 0.0
    %1016 = vmatpush2.msra.mxu0 0.0
    %1017 = vmatprep.subr.mxu0 0.0
    %1018 = vmatpush2.msra.mxu0 0.0
    %1019 = vmatprep.subr.mxu0 0.0
    %1020 = vmatpush2.msra.mxu0 0.0
    %1021 = vmatprep.subr.mxu0 0.0
    %1022 = vmatpush2.msra.mxu0 0.0
    %1023 = vmatprep.subr.mxu0 0.0
    %1024 = vmatpush2.msra.mxu0 0.0
    %1025 = vmatprep.subr.mxu0 0.0
    %1026 = vmatpush2.msra.mxu0 0.0
    %1027 = vmatprep.subr.mxu0 0.0
    %1028 = vmatpush2.msra.mxu0 0.0
    %1029 = vmatprep.subr.mxu0 0.0
    %1030 = vmatpush2.msra.mxu0 0.0
    %1031 = vmatprep.mubr.f32.mxu0 0.0
    %1032 = vmatmul.mubr.f32.gmra.mxu0 %v937
    %v1033 = vpop.f32.mrf.mxu0
    %v1034 = vadd.f32 %v918, %v1033
    %v1035 = vpop.f32.mrf.mxu0
    %v1036 = vadd.f32 %v922, %v1035
    %1037 = vmatprep.mubr.f32.mxu0 0.0
    %1038 = vmatmul.mubr.f32.gmra.mxu0 %v940
    %v1039 = vpop.f32.mrf.mxu0
    %v1040 = vadd.f32 %v918, %v1039
    %v1041 = vpop.f32.mrf.mxu0
    %v1042 = vadd.f32 %v922, %v1041
    %1043 = vmatprep.mubr.f32.mxu0 0.0
    %1044 = vmatmul.mubr.f32.gmra.mxu0 %v943
    %v1045 = vpop.f32.mrf.mxu0
    %v1046 = vadd.f32 %v918, %v1045
    %v1047 = vpop.f32.mrf.mxu0
    %v1048 = vadd.f32 %v922, %v1047
    %1049 = vmatprep.mubr.f32.mxu0 0.0
    %1050 = vmatmul.mubr.f32.gmra.mxu0 %v946
    %v1051 = vpop.f32.mrf.mxu0
    %v1052 = vadd.f32 %v918, %v1051
    %v1053 = vpop.f32.mrf.mxu0
    %v1054 = vadd.f32 %v922, %v1053
    %1055 = vmatprep.mubr.f32.mxu0 0.0
    %1056 = vmatmul.mubr.f32.gmra.mxu0 %v949
    %v1057 = vpop.f32.mrf.mxu0
    %v1058 = vadd.f32 %v918, %v1057
    %v1059 = vpop.f32.mrf.mxu0
    %v1060 = vadd.f32 %v922, %v1059
    %1061 = vmatprep.mubr.f32.mxu0 0.0
    %1062 = vmatmul.mubr.f32.gmra.mxu0 %v952
    %v1063 = vpop.f32.mrf.mxu0
    %v1064 = vadd.f32 %v918, %v1063
    %v1065 = vpop.f32.mrf.mxu0
    %v1066 = vadd.f32 %v922, %v1065
    %1067 = vdwg.mxu0
    %1068 = vmatprep.subr.mxu0 0.0
    %1069 = vmatpush1.msra.mxu0 0.0
    %1070 = vmatprep.subr.mxu0 0.0
    %1071 = vmatpush1.msra.mxu0 0.0
    %1072 = vmatprep.subr.mxu0 0.0
    %1073 = vmatpush1.msra.mxu0 0.0
    %1074 = vmatprep.subr.mxu0 0.0
    %1075 = vmatpush1.msra.mxu0 0.0
    %1076 = vmatprep.subr.mxu0 0.0
    %1077 = vmatpush1.msra.mxu0 0.0
    %1078 = vmatprep.subr.mxu0 0.0
    %1079 = vmatpush1.msra.mxu0 0.0
    %1080 = vmatprep.subr.mxu0 0.0
    %1081 = vmatpush1.msra.mxu0 0.0
    %1082 = vmatprep.subr.mxu0 0.0
    %1083 = vmatpush1.msra.mxu0 0.0
    %1084 = vmatprep.subr.mxu0 0.0
    %1085 = vmatpush1.msra.mxu0 0.0
    %1086 = vmatprep.subr.mxu0 0.0
    %1087 = vmatpush1.msra.mxu0 0.0
    %1088 = vmatprep.subr.mxu0 0.0
    %1089 = vmatpush1.msra.mxu0 0.0
    %1090 = vmatprep.subr.mxu0 0.0
    %1091 = vmatpush1.msra.mxu0 0.0
    %1092 = vmatprep.subr.mxu0 0.0
    %1093 = vmatpush1.msra.mxu0 0.0
    %1094 = vmatprep.subr.mxu0 0.0
    %1095 = vmatpush1.msra.mxu0 0.0
    %1096 = vmatprep.subr.mxu0 %v965
    %1097 = vmatpush1.msra.mxu0 %v962
    %1098 = vmatprep.subr.mxu0 %v908
    %1099 = vmatpush1.msra.mxu0 %v907
    %1100 = vmatprep.subr.mxu0 0.0
    %1101 = vmatpush2.msra.mxu0 0.0
    %1102 = vmatprep.subr.mxu0 0.0
    %1103 = vmatpush2.msra.mxu0 0.0
    %1104 = vmatprep.subr.mxu0 0.0
    %1105 = vmatpush2.msra.mxu0 0.0
    %1106 = vmatprep.subr.mxu0 0.0
    %1107 = vmatpush2.msra.mxu0 0.0
    %1108 = vmatprep.subr.mxu0 0.0
    %1109 = vmatpush2.msra.mxu0 0.0
    %1110 = vmatprep.subr.mxu0 0.0
    %1111 = vmatpush2.msra.mxu0 0.0
    %1112 = vmatprep.subr.mxu0 0.0
    %1113 = vmatpush2.msra.mxu0 0.0
    %1114 = vmatprep.subr.mxu0 0.0
    %1115 = vmatpush2.msra.mxu0 0.0
    %1116 = vmatprep.subr.mxu0 0.0
    %1117 = vmatpush2.msra.mxu0 0.0
    %1118 = vmatprep.subr.mxu0 0.0
    %1119 = vmatpush2.msra.mxu0 0.0
    %1120 = vmatprep.subr.mxu0 0.0
    %1121 = vmatpush2.msra.mxu0 0.0
    %1122 = vmatprep.subr.mxu0 0.0
    %1123 = vmatpush2.msra.mxu0 0.0
    %1124 = vmatprep.subr.mxu0 0.0
    %1125 = vmatpush2.msra.mxu0 0.0
    %1126 = vmatprep.subr.mxu0 0.0
    %1127 = vmatpush2.msra.mxu0 0.0
    %1128 = vmatprep.subr.mxu0 0.0
    %1129 = vmatpush2.msra.mxu0 0.0
    %1130 = vmatprep.subr.mxu0 0.0
    %1131 = vmatpush2.msra.mxu0 0.0
    %1132 = vmatprep.mubr.f32.mxu0 0.0
    %1133 = vmatmul.mubr.f32.gmra.mxu0 %v937
    %v1134 = vpop.f32.mrf.mxu0
    %v1135 = vadd.f32 %v926, %v1134
    %v1136 = vpop.f32.mrf.mxu0
    %v1137 = vadd.f32 %v930, %v1136
    %1138 = vmatprep.mubr.f32.mxu0 0.0
    %1139 = vmatmul.mubr.f32.gmra.mxu0 %v940
    %v1140 = vpop.f32.mrf.mxu0
    %v1141 = vadd.f32 %v926, %v1140
    %v1142 = vpop.f32.mrf.mxu0
    %v1143 = vadd.f32 %v930, %v1142
    %1144 = vmatprep.mubr.f32.mxu0 0.0
    %1145 = vmatmul.mubr.f32.gmra.mxu0 %v943
    %v1146 = vpop.f32.mrf.mxu0
    %v1147 = vadd.f32 %v926, %v1146
    %v1148 = vpop.f32.mrf.mxu0
    %v1149 = vadd.f32 %v930, %v1148
    %1150 = vmatprep.mubr.f32.mxu0 0.0
    %1151 = vmatmul.mubr.f32.gmra.mxu0 %v946
    %v1152 = vpop.f32.mrf.mxu0
    %v1153 = vadd.f32 %v926, %v1152
    %v1154 = vpop.f32.mrf.mxu0
    %v1155 = vadd.f32 %v930, %v1154
    %1156 = vmatprep.mubr.f32.mxu0 0.0
    %1157 = vmatmul.mubr.f32.gmra.mxu0 %v949
    %v1158 = vpop.f32.mrf.mxu0
    %v1159 = vadd.f32 %v926, %v1158
    %v1160 = vpop.f32.mrf.mxu0
    %v1161 = vadd.f32 %v930, %v1160
    %1162 = vmatprep.mubr.f32.mxu0 0.0
    %1163 = vmatmul.mubr.f32.gmra.mxu0 %v952
    %v1164 = vpop.f32.mrf.mxu0
    %v1165 = vadd.f32 %v926, %v1164
    %v1166 = vpop.f32.mrf.mxu0
    %v1167 = vadd.f32 %v930, %v1166
    %1168 = vdwg.mxu0
    %1169 = vst [vmem:[#allocation2] sm:$0xff] %v1034
    %1170 = vst [vmem:[#allocation2 + $0x8] sm:$0xff] %v1036
    %1171 = vst [vmem:[#allocation2 + $0x10] sm:$0xff] %v1135
    %1172 = vst [vmem:[#allocation2 + $0x18] sm:$0xff] %v1137
    %1173 = vst [vmem:[#allocation2 + $0x20] sm:$0xff] %v1040
    %1174 = vst [vmem:[#allocation2 + $0x28] sm:$0xff] %v1042
    %1175 = vst [vmem:[#allocation2 + $0x30] sm:$0xff] %v1141
    %1176 = vst [vmem:[#allocation2 + $0x38] sm:$0xff] %v1143
    %1177 = vst [vmem:[#allocation2 + $0x40] sm:$0xff] %v1046
    %1178 = vst [vmem:[#allocation2 + $0x48] sm:$0xff] %v1048
    %1179 = vst [vmem:[#allocation2 + $0x50] sm:$0xff] %v1147
    %1180 = vst [vmem:[#allocation2 + $0x58] sm:$0xff] %v1149
    %1181 = vst [vmem:[#allocation2 + $0x60] sm:$0xff] %v1052
    %1182 = vst [vmem:[#allocation2 + $0x68] sm:$0xff] %v1054
    %1183 = vst [vmem:[#allocation2 + $0x70] sm:$0xff] %v1153
    %1184 = vst [vmem:[#allocation2 + $0x78] sm:$0xff] %v1155
    %1185 = vst [vmem:[#allocation2 + $0x80] sm:$0xff] %v1058
    %1186 = vst [vmem:[#allocation2 + $0x88] sm:$0xff] %v1060
    %1187 = vst [vmem:[#allocation2 + $0x90] sm:$0xff] %v1159
    %1188 = vst [vmem:[#allocation2 + $0x98] sm:$0xff] %v1161
    %1189 = vst [vmem:[#allocation2 + $0xa0] sm:$0xff] %v1064
    %1190 = vst [vmem:[#allocation2 + $0xa8] sm:$0xff] %v1066
    %1191 = vst [vmem:[#allocation2 + $0xb0] sm:$0xff] %v1165
    %1192 = vst [vmem:[#allocation2 + $0xb8] sm:$0xff] %v1167
    %v1193 = vld [vmem:[%s2] sm:$0xff]
    %v1194 = vld [vmem:[%s3] sm:$0xff]
    %s1195 = scalar_lea.vmem %s2, 8
    %v1196 = vld [vmem:[%s1195] sm:$0xff]
    %s1197 = scalar_lea.vmem %s3, 8
    %v1198 = vld [vmem:[%s1197] sm:$0xff]
    %v1199 = vld [vmem:[#allocation2] sm:$0xff]
    %v1200 = vld [vmem:[#allocation2 + $0x8] sm:$0xff]
    %v1201 = vld [vmem:[#allocation2 + $0x10] sm:$0xff]
    %v1202 = vld [vmem:[#allocation2 + $0x18] sm:$0xff]
    %v1203 = vld [vmem:[#allocation3] sm:$0xff]
    %v1204 = vld [vmem:[#allocation3 + $0x8] sm:$0xff]
    %v1205 = vld [vmem:[#allocation3 + $0x10] sm:$0xff]
    %v1206 = vld [vmem:[#allocation3 + $0x18] sm:$0xff]
    %v1207 = vld [vmem:[#allocation3 + $0x20] sm:$0xff]
    %v1208 = vld [vmem:[#allocation3 + $0x28] sm:$0xff]
    %v1209 = vld [vmem:[#allocation3 + $0x30] sm:$0xff]
    %v1210 = vld [vmem:[#allocation3 + $0x38] sm:$0xff]
    %v1211 = vld [vmem:[#allocation3 + $0x40] sm:$0xff]
    %v1212 = vld [vmem:[#allocation3 + $0x48] sm:$0xff]
    %v1213 = vld [vmem:[#allocation3 + $0x50] sm:$0xff]
    %v1214 = vld [vmem:[#allocation3 + $0x58] sm:$0xff]
    %v1215 = vld [vmem:[#allocation3 + $0x60] sm:$0xff]
    %v1216 = vld [vmem:[#allocation3 + $0x68] sm:$0xff]
    %v1217 = vld [vmem:[#allocation3 + $0x70] sm:$0xff]
    %v1218 = vld [vmem:[#allocation3 + $0x78] sm:$0xff]
    %v1219 = vld [vmem:[#allocation3 + $0x80] sm:$0xff]
    %v1220 = vld [vmem:[#allocation3 + $0x88] sm:$0xff]
    %v1221 = vld [vmem:[#allocation3 + $0x90] sm:$0xff]
    %v1222 = vld [vmem:[#allocation3 + $0x98] sm:$0xff]
    %v1223 = vld [vmem:[#allocation3 + $0xa0] sm:$0xff]
    %v1224 = vld [vmem:[#allocation3 + $0xa8] sm:$0xff]
    %v1225 = vld [vmem:[#allocation3 + $0xb0] sm:$0xff]
    %v1226 = vld [vmem:[#allocation3 + $0xb8] sm:$0xff]
    %v1227 = vld [vmem:[#allocation3 + $0xc0] sm:$0xff]
    %v1228 = vld [vmem:[#allocation3 + $0xc8] sm:$0xff]
    %v1229 = vld [vmem:[#allocation3 + $0xd0] sm:$0xff]
    %v1230 = vld [vmem:[#allocation3 + $0xd8] sm:$0xff]
    %v1231 = vld [vmem:[#allocation3 + $0xe0] sm:$0xff]
    %v1232 = vld [vmem:[#allocation3 + $0xe8] sm:$0xff]
    %v1233 = vld [vmem:[#allocation3 + $0xf0] sm:$0xff]
    %v1234 = vld [vmem:[#allocation3 + $0xf8] sm:$0xff]
    %v1235 = vld [vmem:[#allocation3 + $0x100] sm:$0xff]
    %v1236 = vld [vmem:[#allocation3 + $0x108] sm:$0xff]
    %v1237 = vld [vmem:[#allocation3 + $0x110] sm:$0xff]
    %v1238 = vld [vmem:[#allocation3 + $0x118] sm:$0xff]
    %v1239 = vld [vmem:[#allocation3 + $0x120] sm:$0xff]
    %v1240 = vld [vmem:[#allocation3 + $0x128] sm:$0xff]
    %v1241 = vld [vmem:[#allocation3 + $0x130] sm:$0xff]
    %v1242 = vld [vmem:[#allocation3 + $0x138] sm:$0xff]
    %v1243 = vld [vmem:[#allocation3 + $0x140] sm:$0xff]
    %v1244 = vld [vmem:[#allocation3 + $0x148] sm:$0xff]
    %v1245 = vld [vmem:[#allocation3 + $0x150] sm:$0xff]
    %v1246 = vld [vmem:[#allocation3 + $0x158] sm:$0xff]
    %v1247 = vld [vmem:[#allocation3 + $0x160] sm:$0xff]
    %v1248 = vld [vmem:[#allocation3 + $0x168] sm:$0xff]
    %v1249 = vld [vmem:[#allocation3 + $0x170] sm:$0xff]
    %v1250 = vld [vmem:[#allocation3 + $0x178] sm:$0xff]
    %v1251 = vld [vmem:[#allocation3 + $0x180] sm:$0xff]
    %v1252 = vld [vmem:[#allocation3 + $0x188] sm:$0xff]
    %v1253 = vld [vmem:[#allocation3 + $0x190] sm:$0xff]
    %v1254 = vld [vmem:[#allocation3 + $0x198] sm:$0xff]
    %v1255 = vld [vmem:[#allocation3 + $0x1a0] sm:$0xff]
    %v1256 = vld [vmem:[#allocation3 + $0x1a8] sm:$0xff]
    %v1257 = vld [vmem:[#allocation3 + $0x1b0] sm:$0xff]
    %v1258 = vld [vmem:[#allocation3 + $0x1b8] sm:$0xff]
    %v1259 = vld [vmem:[#allocation3 + $0x1c0] sm:$0xff]
    %v1260 = vld [vmem:[#allocation3 + $0x1c8] sm:$0xff]
    %v1261 = vld [vmem:[#allocation3 + $0x1d0] sm:$0xff]
    %v1262 = vld [vmem:[#allocation3 + $0x1d8] sm:$0xff]
    %v1263 = vld [vmem:[#allocation3 + $0x1e0] sm:$0xff]
    %v1264 = vld [vmem:[#allocation3 + $0x1e8] sm:$0xff]
    %v1265 = vld [vmem:[#allocation3 + $0x1f0] sm:$0xff]
    %v1266 = vld [vmem:[#allocation3 + $0x1f8] sm:$0xff]
    %1267 = vmatprep.subr.mxu0 %v1264
    %1268 = vmatpush1.msra.mxu0 %v1263
    %1269 = vmatprep.subr.mxu0 %v1260
    %1270 = vmatpush1.msra.mxu0 %v1259
    %1271 = vmatprep.subr.mxu0 %v1256
    %1272 = vmatpush1.msra.mxu0 %v1255
    %1273 = vmatprep.subr.mxu0 %v1252
    %1274 = vmatpush1.msra.mxu0 %v1251
    %1275 = vmatprep.subr.mxu0 %v1248
    %1276 = vmatpush1.msra.mxu0 %v1247
    %1277 = vmatprep.subr.mxu0 %v1244
    %1278 = vmatpush1.msra.mxu0 %v1243
    %1279 = vmatprep.subr.mxu0 %v1240
    %1280 = vmatpush1.msra.mxu0 %v1239
    %1281 = vmatprep.subr.mxu0 %v1236
    %1282 = vmatpush1.msra.mxu0 %v1235
    %1283 = vmatprep.subr.mxu0 %v1232
    %1284 = vmatpush1.msra.mxu0 %v1231
    %1285 = vmatprep.subr.mxu0 %v1228
    %1286 = vmatpush1.msra.mxu0 %v1227
    %1287 = vmatprep.subr.mxu0 %v1224
    %1288 = vmatpush1.msra.mxu0 %v1223
    %1289 = vmatprep.subr.mxu0 %v1220
    %1290 = vmatpush1.msra.mxu0 %v1219
    %1291 = vmatprep.subr.mxu0 %v1216
    %1292 = vmatpush1.msra.mxu0 %v1215
    %1293 = vmatprep.subr.mxu0 %v1212
    %1294 = vmatpush1.msra.mxu0 %v1211
    %1295 = vmatprep.subr.mxu0 %v1208
    %1296 = vmatpush1.msra.mxu0 %v1207
    %1297 = vmatprep.subr.mxu0 %v1204
    %1298 = vmatpush1.msra.mxu0 %v1203
    %1299 = vmatprep.subr.mxu0 0.0
    %1300 = vmatpush2.msra.mxu0 0.0
    %1301 = vmatprep.subr.mxu0 0.0
    %1302 = vmatpush2.msra.mxu0 0.0
    %1303 = vmatprep.subr.mxu0 0.0
    %1304 = vmatpush2.msra.mxu0 0.0
    %1305 = vmatprep.subr.mxu0 0.0
    %1306 = vmatpush2.msra.mxu0 0.0
    %1307 = vmatprep.subr.mxu0 0.0
    %1308 = vmatpush2.msra.mxu0 0.0
    %1309 = vmatprep.subr.mxu0 0.0
    %1310 = vmatpush2.msra.mxu0 0.0
    %1311 = vmatprep.subr.mxu0 0.0
    %1312 = vmatpush2.msra.mxu0 0.0
    %1313 = vmatprep.subr.mxu0 0.0
    %1314 = vmatpush2.msra.mxu0 0.0
    %1315 = vmatprep.subr.mxu0 0.0
    %1316 = vmatpush2.msra.mxu0 0.0
    %1317 = vmatprep.subr.mxu0 0.0
    %1318 = vmatpush2.msra.mxu0 0.0
    %1319 = vmatprep.subr.mxu0 0.0
    %1320 = vmatpush2.msra.mxu0 0.0
    %1321 = vmatprep.subr.mxu0 0.0
    %1322 = vmatpush2.msra.mxu0 0.0
    %1323 = vmatprep.subr.mxu0 0.0
    %1324 = vmatpush2.msra.mxu0 0.0
    %1325 = vmatprep.subr.mxu0 0.0
    %1326 = vmatpush2.msra.mxu0 0.0
    %1327 = vmatprep.subr.mxu0 0.0
    %1328 = vmatpush2.msra.mxu0 0.0
    %1329 = vmatprep.subr.mxu0 0.0
    %1330 = vmatpush2.msra.mxu0 0.0
    %1331 = vmatprep.mubr.f32.mxu0 0.0
    %1332 = vmatmul.mubr.f32.gmra.mxu0 %v1193
    %v1333 = vpop.f32.mrf.mxu0
    %v1334 = vadd.f32 0.0, %v1333
    %v1335 = vpop.f32.mrf.mxu0
    %v1336 = vadd.f32 0.0, %v1335
    %1337 = vdwg.mxu0
    %1338 = vmatprep.subr.mxu0 %v1266
    %1339 = vmatpush1.msra.mxu0 %v1265
    %1340 = vmatprep.subr.mxu0 %v1262
    %1341 = vmatpush1.msra.mxu0 %v1261
    %1342 = vmatprep.subr.mxu0 %v1258
    %1343 = vmatpush1.msra.mxu0 %v1257
    %1344 = vmatprep.subr.mxu0 %v1254
    %1345 = vmatpush1.msra.mxu0 %v1253
    %1346 = vmatprep.subr.mxu0 %v1250
    %1347 = vmatpush1.msra.mxu0 %v1249
    %1348 = vmatprep.subr.mxu0 %v1246
    %1349 = vmatpush1.msra.mxu0 %v1245
    %1350 = vmatprep.subr.mxu0 %v1242
    %1351 = vmatpush1.msra.mxu0 %v1241
    %1352 = vmatprep.subr.mxu0 %v1238
    %1353 = vmatpush1.msra.mxu0 %v1237
    %1354 = vmatprep.subr.mxu0 %v1234
    %1355 = vmatpush1.msra.mxu0 %v1233
    %1356 = vmatprep.subr.mxu0 %v1230
    %1357 = vmatpush1.msra.mxu0 %v1229
    %1358 = vmatprep.subr.mxu0 %v1226
    %1359 = vmatpush1.msra.mxu0 %v1225
    %1360 = vmatprep.subr.mxu0 %v1222
    %1361 = vmatpush1.msra.mxu0 %v1221
    %1362 = vmatprep.subr.mxu0 %v1218
    %1363 = vmatpush1.msra.mxu0 %v1217
    %1364 = vmatprep.subr.mxu0 %v1214
    %1365 = vmatpush1.msra.mxu0 %v1213
    %1366 = vmatprep.subr.mxu0 %v1210
    %1367 = vmatpush1.msra.mxu0 %v1209
    %1368 = vmatprep.subr.mxu0 %v1206
    %1369 = vmatpush1.msra.mxu0 %v1205
    %1370 = vmatprep.subr.mxu0 0.0
    %1371 = vmatpush2.msra.mxu0 0.0
    %1372 = vmatprep.subr.mxu0 0.0
    %1373 = vmatpush2.msra.mxu0 0.0
    %1374 = vmatprep.subr.mxu0 0.0
    %1375 = vmatpush2.msra.mxu0 0.0
    %1376 = vmatprep.subr.mxu0 0.0
    %1377 = vmatpush2.msra.mxu0 0.0
    %1378 = vmatprep.subr.mxu0 0.0
    %1379 = vmatpush2.msra.mxu0 0.0
    %1380 = vmatprep.subr.mxu0 0.0
    %1381 = vmatpush2.msra.mxu0 0.0
    %1382 = vmatprep.subr.mxu0 0.0
    %1383 = vmatpush2.msra.mxu0 0.0
    %1384 = vmatprep.subr.mxu0 0.0
    %1385 = vmatpush2.msra.mxu0 0.0
    %1386 = vmatprep.subr.mxu0 0.0
    %1387 = vmatpush2.msra.mxu0 0.0
    %1388 = vmatprep.subr.mxu0 0.0
    %1389 = vmatpush2.msra.mxu0 0.0
    %1390 = vmatprep.subr.mxu0 0.0
    %1391 = vmatpush2.msra.mxu0 0.0
    %1392 = vmatprep.subr.mxu0 0.0
    %1393 = vmatpush2.msra.mxu0 0.0
    %1394 = vmatprep.subr.mxu0 0.0
    %1395 = vmatpush2.msra.mxu0 0.0
    %1396 = vmatprep.subr.mxu0 0.0
    %1397 = vmatpush2.msra.mxu0 0.0
    %1398 = vmatprep.subr.mxu0 0.0
    %1399 = vmatpush2.msra.mxu0 0.0
    %1400 = vmatprep.subr.mxu0 0.0
    %1401 = vmatpush2.msra.mxu0 0.0
    %1402 = vmatprep.mubr.f32.mxu0 0.0
    %1403 = vmatmul.mubr.f32.gmra.mxu0 %v1193
    %v1404 = vpop.f32.mrf.mxu0
    %v1405 = vadd.f32 0.0, %v1404
    %v1406 = vpop.f32.mrf.mxu0
    %v1407 = vadd.f32 0.0, %v1406
    %1408 = vdwg.mxu0
    %v1409 = vadd.f32 %v1199, %v1334
    %v1410 = vadd.f32 %v1200, %v1336
    %v1411 = vadd.f32 %v1201, %v1405
    %v1412 = vadd.f32 %v1202, %v1407
    %v1413 = vtanh.pop %v1409
    %v1414 = vtanh.pop %v1410
    %v1415 = vtanh.pop %v1411
    %v1416 = vtanh.pop %v1412
    %v1417 = vadd.f32 %v1413, 1.0
    %v1418 = vmul.f32 %v1417, 0.5
    %v1419 = vadd.f32 %v1414, 1.0
    %v1420 = vmul.f32 %v1419, 0.5
    %v1421 = vadd.f32 %v1416, 1.0
    %v1422 = vmul.f32 %v1421, 0.5
    %v1423 = vmul.f32 %v1420, %v1194
    %v1424 = vmul.f32 %v1418, %v1415
    %v1425 = vadd.f32 %v1423, %v1424
    %v1426 = vtanh.pop %v1425
    %v1427 = vmul.f32 %v1422, %v1426
    %v1428 = vld [vmem:[#allocation4] sm:$0xff]
    %v1429 = vld [vmem:[#allocation4 + $0x8] sm:$0xff]
    %v1430 = vld [vmem:[#allocation4 + $0x10] sm:$0xff]
    %v1431 = vld [vmem:[#allocation4 + $0x18] sm:$0xff]
    %v1432 = vld [vmem:[#allocation4 + $0x20] sm:$0xff]
    %v1433 = vld [vmem:[#allocation4 + $0x28] sm:$0xff]
    %v1434 = vld [vmem:[#allocation4 + $0x30] sm:$0xff]
    %v1435 = vld [vmem:[#allocation4 + $0x38] sm:$0xff]
    %v1436 = vld [vmem:[#allocation4 + $0x40] sm:$0xff]
    %v1437 = vld [vmem:[#allocation4 + $0x48] sm:$0xff]
    %v1438 = vld [vmem:[#allocation4 + $0x50] sm:$0xff]
    %v1439 = vld [vmem:[#allocation4 + $0x58] sm:$0xff]
    %v1440 = vld [vmem:[#allocation4 + $0x60] sm:$0xff]
    %v1441 = vld [vmem:[#allocation4 + $0x68] sm:$0xff]
    %v1442 = vld [vmem:[#allocation4 + $0x70] sm:$0xff]
    %v1443 = vld [vmem:[#allocation4 + $0x78] sm:$0xff]
    %v1444 = vld [vmem:[#allocation4 + $0x80] sm:$0xff]
    %v1445 = vld [vmem:[#allocation4 + $0x88] sm:$0xff]
    %v1446 = vld [vmem:[#allocation4 + $0x90] sm:$0xff]
    %v1447 = vld [vmem:[#allocation4 + $0x98] sm:$0xff]
    %v1448 = vld [vmem:[#allocation4 + $0xa0] sm:$0xff]
    %v1449 = vld [vmem:[#allocation4 + $0xa8] sm:$0xff]
    %v1450 = vld [vmem:[#allocation4 + $0xb0] sm:$0xff]
    %v1451 = vld [vmem:[#allocation4 + $0xb8] sm:$0xff]
    %v1452 = vld [vmem:[#allocation4 + $0xc0] sm:$0xff]
    %v1453 = vld [vmem:[#allocation4 + $0xc8] sm:$0xff]
    %v1454 = vld [vmem:[#allocation4 + $0xd0] sm:$0xff]
    %v1455 = vld [vmem:[#allocation4 + $0xd8] sm:$0xff]
    %v1456 = vld [vmem:[#allocation4 + $0xe0] sm:$0xff]
    %v1457 = vld [vmem:[#allocation4 + $0xe8] sm:$0xff]
    %v1458 = vld [vmem:[#allocation4 + $0xf0] sm:$0xff]
    %v1459 = vld [vmem:[#allocation4 + $0xf8] sm:$0xff]
    %v1460 = vld [vmem:[#allocation4 + $0x100] sm:$0xff]
    %v1461 = vld [vmem:[#allocation4 + $0x108] sm:$0xff]
    %v1462 = vld [vmem:[#allocation4 + $0x110] sm:$0xff]
    %v1463 = vld [vmem:[#allocation4 + $0x118] sm:$0xff]
    %v1464 = vld [vmem:[#allocation4 + $0x120] sm:$0xff]
    %v1465 = vld [vmem:[#allocation4 + $0x128] sm:$0xff]
    %v1466 = vld [vmem:[#allocation4 + $0x130] sm:$0xff]
    %v1467 = vld [vmem:[#allocation4 + $0x138] sm:$0xff]
    %v1468 = vld [vmem:[#allocation4 + $0x140] sm:$0xff]
    %v1469 = vld [vmem:[#allocation4 + $0x148] sm:$0xff]
    %v1470 = vld [vmem:[#allocation4 + $0x150] sm:$0xff]
    %v1471 = vld [vmem:[#allocation4 + $0x158] sm:$0xff]
    %v1472 = vld [vmem:[#allocation4 + $0x160] sm:$0xff]
    %v1473 = vld [vmem:[#allocation4 + $0x168] sm:$0xff]
    %v1474 = vld [vmem:[#allocation4 + $0x170] sm:$0xff]
    %v1475 = vld [vmem:[#allocation4 + $0x178] sm:$0xff]
    %v1476 = vld [vmem:[#allocation4 + $0x180] sm:$0xff]
    %v1477 = vld [vmem:[#allocation4 + $0x188] sm:$0xff]
    %v1478 = vld [vmem:[#allocation4 + $0x190] sm:$0xff]
    %v1479 = vld [vmem:[#allocation4 + $0x198] sm:$0xff]
    %v1480 = vld [vmem:[#allocation4 + $0x1a0] sm:$0xff]
    %v1481 = vld [vmem:[#allocation4 + $0x1a8] sm:$0xff]
    %v1482 = vld [vmem:[#allocation4 + $0x1b0] sm:$0xff]
    %v1483 = vld [vmem:[#allocation4 + $0x1b8] sm:$0xff]
    %v1484 = vld [vmem:[#allocation4 + $0x1c0] sm:$0xff]
    %v1485 = vld [vmem:[#allocation4 + $0x1c8] sm:$0xff]
    %v1486 = vld [vmem:[#allocation4 + $0x1d0] sm:$0xff]
    %v1487 = vld [vmem:[#allocation4 + $0x1d8] sm:$0xff]
    %v1488 = vld [vmem:[#allocation4 + $0x1e0] sm:$0xff]
    %v1489 = vld [vmem:[#allocation4 + $0x1e8] sm:$0xff]
    %v1490 = vld [vmem:[#allocation4 + $0x1f0] sm:$0xff]
    %v1491 = vld [vmem:[#allocation4 + $0x1f8] sm:$0xff]
    %v1492 = vld [vmem:[#allocation5] sm:$0xff]
    %v1493 = vld [vmem:[#allocation5 + $0x8] sm:$0xff]
    %v1494 = vld [vmem:[#allocation5 + $0x10] sm:$0xff]
    %v1495 = vld [vmem:[#allocation5 + $0x18] sm:$0xff]
    %v1496 = vld [vmem:[#allocation5 + $0x20] sm:$0xff]
    %v1497 = vld [vmem:[#allocation5 + $0x28] sm:$0xff]
    %v1498 = vld [vmem:[#allocation5 + $0x30] sm:$0xff]
    %v1499 = vld [vmem:[#allocation5 + $0x38] sm:$0xff]
    %v1500 = vld [vmem:[#allocation5 + $0x40] sm:$0xff]
    %v1501 = vld [vmem:[#allocation5 + $0x48] sm:$0xff]
    %v1502 = vld [vmem:[#allocation5 + $0x50] sm:$0xff]
    %v1503 = vld [vmem:[#allocation5 + $0x58] sm:$0xff]
    %v1504 = vld [vmem:[#allocation5 + $0x60] sm:$0xff]
    %v1505 = vld [vmem:[#allocation5 + $0x68] sm:$0xff]
    %v1506 = vld [vmem:[#allocation5 + $0x70] sm:$0xff]
    %v1507 = vld [vmem:[#allocation5 + $0x78] sm:$0xff]
    %v1508 = vld [vmem:[#allocation5 + $0x80] sm:$0xff]
    %v1509 = vld [vmem:[#allocation5 + $0x88] sm:$0xff]
    %v1510 = vld [vmem:[#allocation5 + $0x90] sm:$0xff]
    %v1511 = vld [vmem:[#allocation5 + $0x98] sm:$0xff]
    %v1512 = vld [vmem:[#allocation5 + $0xa0] sm:$0xff]
    %v1513 = vld [vmem:[#allocation5 + $0xa8] sm:$0xff]
    %v1514 = vld [vmem:[#allocation5 + $0xb0] sm:$0xff]
    %v1515 = vld [vmem:[#allocation5 + $0xb8] sm:$0xff]
    %v1516 = vld [vmem:[#allocation5 + $0xc0] sm:$0xff]
    %v1517 = vld [vmem:[#allocation5 + $0xc8] sm:$0xff]
    %v1518 = vld [vmem:[#allocation5 + $0xd0] sm:$0xff]
    %v1519 = vld [vmem:[#allocation5 + $0xd8] sm:$0xff]
    %v1520 = vld [vmem:[#allocation5 + $0xe0] sm:$0xff]
    %v1521 = vld [vmem:[#allocation5 + $0xe8] sm:$0xff]
    %v1522 = vld [vmem:[#allocation5 + $0xf0] sm:$0xff]
    %v1523 = vld [vmem:[#allocation5 + $0xf8] sm:$0xff]
    %v1524 = vld [vmem:[#allocation5 + $0x100] sm:$0xff]
    %v1525 = vld [vmem:[#allocation5 + $0x108] sm:$0xff]
    %v1526 = vld [vmem:[#allocation5 + $0x110] sm:$0xff]
    %v1527 = vld [vmem:[#allocation5 + $0x118] sm:$0xff]
    %v1528 = vld [vmem:[#allocation5 + $0x120] sm:$0xff]
    %v1529 = vld [vmem:[#allocation5 + $0x128] sm:$0xff]
    %v1530 = vld [vmem:[#allocation5 + $0x130] sm:$0xff]
    %v1531 = vld [vmem:[#allocation5 + $0x138] sm:$0xff]
    %v1532 = vld [vmem:[#allocation5 + $0x140] sm:$0xff]
    %v1533 = vld [vmem:[#allocation5 + $0x148] sm:$0xff]
    %v1534 = vld [vmem:[#allocation5 + $0x150] sm:$0xff]
    %v1535 = vld [vmem:[#allocation5 + $0x158] sm:$0xff]
    %v1536 = vld [vmem:[#allocation5 + $0x160] sm:$0xff]
    %v1537 = vld [vmem:[#allocation5 + $0x168] sm:$0xff]
    %v1538 = vld [vmem:[#allocation5 + $0x170] sm:$0xff]
    %v1539 = vld [vmem:[#allocation5 + $0x178] sm:$0xff]
    %v1540 = vld [vmem:[#allocation5 + $0x180] sm:$0xff]
    %v1541 = vld [vmem:[#allocation5 + $0x188] sm:$0xff]
    %v1542 = vld [vmem:[#allocation5 + $0x190] sm:$0xff]
    %v1543 = vld [vmem:[#allocation5 + $0x198] sm:$0xff]
    %v1544 = vld [vmem:[#allocation5 + $0x1a0] sm:$0xff]
    %v1545 = vld [vmem:[#allocation5 + $0x1a8] sm:$0xff]
    %v1546 = vld [vmem:[#allocation5 + $0x1b0] sm:$0xff]
    %v1547 = vld [vmem:[#allocation5 + $0x1b8] sm:$0xff]
    %v1548 = vld [vmem:[#allocation5 + $0x1c0] sm:$0xff]
    %v1549 = vld [vmem:[#allocation5 + $0x1c8] sm:$0xff]
    %v1550 = vld [vmem:[#allocation5 + $0x1d0] sm:$0xff]
    %v1551 = vld [vmem:[#allocation5 + $0x1d8] sm:$0xff]
    %v1552 = vld [vmem:[#allocation5 + $0x1e0] sm:$0xff]
    %v1553 = vld [vmem:[#allocation5 + $0x1e8] sm:$0xff]
    %v1554 = vld [vmem:[#allocation5 + $0x1f0] sm:$0xff]
    %v1555 = vld [vmem:[#allocation5 + $0x1f8] sm:$0xff]
    %1556 = vmatprep.subr.mxu0 %v1553
    %1557 = vmatpush1.msra.mxu0 %v1552
    %1558 = vmatprep.subr.mxu0 %v1549
    %1559 = vmatpush1.msra.mxu0 %v1548
    %1560 = vmatprep.subr.mxu0 %v1545
    %1561 = vmatpush1.msra.mxu0 %v1544
    %1562 = vmatprep.subr.mxu0 %v1541
    %1563 = vmatpush1.msra.mxu0 %v1540
    %1564 = vmatprep.subr.mxu0 %v1537
    %1565 = vmatpush1.msra.mxu0 %v1536
    %1566 = vmatprep.subr.mxu0 %v1533
    %1567 = vmatpush1.msra.mxu0 %v1532
    %1568 = vmatprep.subr.mxu0 %v1529
    %1569 = vmatpush1.msra.mxu0 %v1528
    %1570 = vmatprep.subr.mxu0 %v1525
    %1571 = vmatpush1.msra.mxu0 %v1524
    %1572 = vmatprep.subr.mxu0 %v1521
    %1573 = vmatpush1.msra.mxu0 %v1520
    %1574 = vmatprep.subr.mxu0 %v1517
    %1575 = vmatpush1.msra.mxu0 %v1516
    %1576 = vmatprep.subr.mxu0 %v1513
    %1577 = vmatpush1.msra.mxu0 %v1512
    %1578 = vmatprep.subr.mxu0 %v1509
    %1579 = vmatpush1.msra.mxu0 %v1508
    %1580 = vmatprep.subr.mxu0 %v1505
    %1581 = vmatpush1.msra.mxu0 %v1504
    %1582 = vmatprep.subr.mxu0 %v1501
    %1583 = vmatpush1.msra.mxu0 %v1500
    %1584 = vmatprep.subr.mxu0 %v1497
    %1585 = vmatpush1.msra.mxu0 %v1496
    %1586 = vmatprep.subr.mxu0 %v1493
    %1587 = vmatpush1.msra.mxu0 %v1492
    %1588 = vmatprep.subr.mxu0 0.0
    %1589 = vmatpush2.msra.mxu0 0.0
    %1590 = vmatprep.subr.mxu0 0.0
    %1591 = vmatpush2.msra.mxu0 0.0
    %1592 = vmatprep.subr.mxu0 0.0
    %1593 = vmatpush2.msra.mxu0 0.0
    %1594 = vmatprep.subr.mxu0 0.0
    %1595 = vmatpush2.msra.mxu0 0.0
    %1596 = vmatprep.subr.mxu0 0.0
    %1597 = vmatpush2.msra.mxu0 0.0
    %1598 = vmatprep.subr.mxu0 0.0
    %1599 = vmatpush2.msra.mxu0 0.0
    %1600 = vmatprep.subr.mxu0 0.0
    %1601 = vmatpush2.msra.mxu0 0.0
    %1602 = vmatprep.subr.mxu0 0.0
    %1603 = vmatpush2.msra.mxu0 0.0
    %1604 = vmatprep.subr.mxu0 0.0
    %1605 = vmatpush2.msra.mxu0 0.0
    %1606 = vmatprep.subr.mxu0 0.0
    %1607 = vmatpush2.msra.mxu0 0.0
    %1608 = vmatprep.subr.mxu0 0.0
    %1609 = vmatpush2.msra.mxu0 0.0
    %1610 = vmatprep.subr.mxu0 0.0
    %1611 = vmatpush2.msra.mxu0 0.0
    %1612 = vmatprep.subr.mxu0 0.0
    %1613 = vmatpush2.msra.mxu0 0.0
    %1614 = vmatprep.subr.mxu0 0.0
    %1615 = vmatpush2.msra.mxu0 0.0
    %1616 = vmatprep.subr.mxu0 0.0
    %1617 = vmatpush2.msra.mxu0 0.0
    %1618 = vmatprep.subr.mxu0 0.0
    %1619 = vmatpush2.msra.mxu0 0.0
    %1620 = vmatprep.mubr.f32.mxu0 0.0
    %1621 = vmatmul.mubr.f32.gmra.mxu0 %v1196
    %v1622 = vpop.f32.mrf.mxu0
    %v1623 = vadd.f32 0.0, %v1622
    %v1624 = vpop.f32.mrf.mxu0
    %v1625 = vadd.f32 0.0, %v1624
    %1626 = vdwg.mxu0
    %1627 = vmatprep.subr.mxu0 %v1555
    %1628 = vmatpush1.msra.mxu0 %v1554
    %1629 = vmatprep.subr.mxu0 %v1551
    %1630 = vmatpush1.msra.mxu0 %v1550
    %1631 = vmatprep.subr.mxu0 %v1547
    %1632 = vmatpush1.msra.mxu0 %v1546
    %1633 = vmatprep.subr.mxu0 %v1543
    %1634 = vmatpush1.msra.mxu0 %v1542
    %1635 = vmatprep.subr.mxu0 %v1539
    %1636 = vmatpush1.msra.mxu0 %v1538
    %1637 = vmatprep.subr.mxu0 %v1535
    %1638 = vmatpush1.msra.mxu0 %v1534
    %1639 = vmatprep.subr.mxu0 %v1531
    %1640 = vmatpush1.msra.mxu0 %v1530
    %1641 = vmatprep.subr.mxu0 %v1527
    %1642 = vmatpush1.msra.mxu0 %v1526
    %1643 = vmatprep.subr.mxu0 %v1523
    %1644 = vmatpush1.msra.mxu0 %v1522
    %1645 = vmatprep.subr.mxu0 %v1519
    %1646 = vmatpush1.msra.mxu0 %v1518
    %1647 = vmatprep.subr.mxu0 %v1515
    %1648 = vmatpush1.msra.mxu0 %v1514
    %1649 = vmatprep.subr.mxu0 %v1511
    %1650 = vmatpush1.msra.mxu0 %v1510
    %1651 = vmatprep.subr.mxu0 %v1507
    %1652 = vmatpush1.msra.mxu0 %v1506
    %1653 = vmatprep.subr.mxu0 %v1503
    %1654 = vmatpush1.msra.mxu0 %v1502
    %1655 = vmatprep.subr.mxu0 %v1499
    %1656 = vmatpush1.msra.mxu0 %v1498
    %1657 = vmatprep.subr.mxu0 %v1495
    %1658 = vmatpush1.msra.mxu0 %v1494
    %1659 = vmatprep.subr.mxu0 0.0
    %1660 = vmatpush2.msra.mxu0 0.0
    %1661 = vmatprep.subr.mxu0 0.0
    %1662 = vmatpush2.msra.mxu0 0.0
    %1663 = vmatprep.subr.mxu0 0.0
    %1664 = vmatpush2.msra.mxu0 0.0
    %1665 = vmatprep.subr.mxu0 0.0
    %1666 = vmatpush2.msra.mxu0 0.0
    %1667 = vmatprep.subr.mxu0 0.0
    %1668 = vmatpush2.msra.mxu0 0.0
    %1669 = vmatprep.subr.mxu0 0.0
    %1670 = vmatpush2.msra.mxu0 0.0
    %1671 = vmatprep.subr.mxu0 0.0
    %1672 = vmatpush2.msra.mxu0 0.0
    %1673 = vmatprep.subr.mxu0 0.0
    %1674 = vmatpush2.msra.mxu0 0.0
    %1675 = vmatprep.subr.mxu0 0.0
    %1676 = vmatpush2.msra.mxu0 0.0
    %1677 = vmatprep.subr.mxu0 0.0
    %1678 = vmatpush2.msra.mxu0 0.0
    %1679 = vmatprep.subr.mxu0 0.0
    %1680 = vmatpush2.msra.mxu0 0.0
    %1681 = vmatprep.subr.mxu0 0.0
    %1682 = vmatpush2.msra.mxu0 0.0
    %1683 = vmatprep.subr.mxu0 0.0
    %1684 = vmatpush2.msra.mxu0 0.0
    %1685 = vmatprep.subr.mxu0 0.0
    %1686 = vmatpush2.msra.mxu0 0.0
    %1687 = vmatprep.subr.mxu0 0.0
    %1688 = vmatpush2.msra.mxu0 0.0
    %1689 = vmatprep.subr.mxu0 0.0
    %1690 = vmatpush2.msra.mxu0 0.0
    %1691 = vmatprep.mubr.f32.mxu0 0.0
    %1692 = vmatmul.mubr.f32.gmra.mxu0 %v1196
    %v1693 = vpop.f32.mrf.mxu0
    %v1694 = vadd.f32 0.0, %v1693
    %v1695 = vpop.f32.mrf.mxu0
    %v1696 = vadd.f32 0.0, %v1695
    %1697 = vdwg.mxu0
    %1698 = vmatprep.subr.mxu0 %v1489
    %1699 = vmatpush1.msra.mxu0 %v1488
    %1700 = vmatprep.subr.mxu0 %v1485
    %1701 = vmatpush1.msra.mxu0 %v1484
    %1702 = vmatprep.subr.mxu0 %v1481
    %1703 = vmatpush1.msra.mxu0 %v1480
    %1704 = vmatprep.subr.mxu0 %v1477
    %1705 = vmatpush1.msra.mxu0 %v1476
    %1706 = vmatprep.subr.mxu0 %v1473
    %1707 = vmatpush1.msra.mxu0 %v1472
    %1708 = vmatprep.subr.mxu0 %v1469
    %1709 = vmatpush1.msra.mxu0 %v1468
    %1710 = vmatprep.subr.mxu0 %v1465
    %1711 = vmatpush1.msra.mxu0 %v1464
    %1712 = vmatprep.subr.mxu0 %v1461
    %1713 = vmatpush1.msra.mxu0 %v1460
    %1714 = vmatprep.subr.mxu0 %v1457
    %1715 = vmatpush1.msra.mxu0 %v1456
    %1716 = vmatprep.subr.mxu0 %v1453
    %1717 = vmatpush1.msra.mxu0 %v1452
    %1718 = vmatprep.subr.mxu0 %v1449
    %1719 = vmatpush1.msra.mxu0 %v1448
    %1720 = vmatprep.subr.mxu0 %v1445
    %1721 = vmatpush1.msra.mxu0 %v1444
    %1722 = vmatprep.subr.mxu0 %v1441
    %1723 = vmatpush1.msra.mxu0 %v1440
    %1724 = vmatprep.subr.mxu0 %v1437
    %1725 = vmatpush1.msra.mxu0 %v1436
    %1726 = vmatprep.subr.mxu0 %v1433
    %1727 = vmatpush1.msra.mxu0 %v1432
    %1728 = vmatprep.subr.mxu0 %v1429
    %1729 = vmatpush1.msra.mxu0 %v1428
    %1730 = vmatprep.subr.mxu0 0.0
    %1731 = vmatpush2.msra.mxu0 0.0
    %1732 = vmatprep.subr.mxu0 0.0
    %1733 = vmatpush2.msra.mxu0 0.0
    %1734 = vmatprep.subr.mxu0 0.0
    %1735 = vmatpush2.msra.mxu0 0.0
    %1736 = vmatprep.subr.mxu0 0.0
    %1737 = vmatpush2.msra.mxu0 0.0
    %1738 = vmatprep.subr.mxu0 0.0
    %1739 = vmatpush2.msra.mxu0 0.0
    %1740 = vmatprep.subr.mxu0 0.0
    %1741 = vmatpush2.msra.mxu0 0.0
    %1742 = vmatprep.subr.mxu0 0.0
    %1743 = vmatpush2.msra.mxu0 0.0
    %1744 = vmatprep.subr.mxu0 0.0
    %1745 = vmatpush2.msra.mxu0 0.0
    %1746 = vmatprep.subr.mxu0 0.0
    %1747 = vmatpush2.msra.mxu0 0.0
    %1748 = vmatprep.subr.mxu0 0.0
    %1749 = vmatpush2.msra.mxu0 0.0
    %1750 = vmatprep.subr.mxu0 0.0
    %1751 = vmatpush2.msra.mxu0 0.0
    %1752 = vmatprep.subr.mxu0 0.0
    %1753 = vmatpush2.msra.mxu0 0.0
    %1754 = vmatprep.subr.mxu0 0.0
    %1755 = vmatpush2.msra.mxu0 0.0
    %1756 = vmatprep.subr.mxu0 0.0
    %1757 = vmatpush2.msra.mxu0 0.0
    %1758 = vmatprep.subr.mxu0 0.0
    %1759 = vmatpush2.msra.mxu0 0.0
    %1760 = vmatprep.subr.mxu0 0.0
    %1761 = vmatpush2.msra.mxu0 0.0
    %1762 = vmatprep.mubr.f32.mxu0 0.0
    %1763 = vmatmul.mubr.f32.gmra.mxu0 %v1427
    %v1764 = vpop.f32.mrf.mxu0
    %v1765 = vadd.f32 %v1623, %v1764
    %v1766 = vpop.f32.mrf.mxu0
    %v1767 = vadd.f32 %v1625, %v1766
    %1768 = vdwg.mxu0
    %1769 = vmatprep.subr.mxu0 %v1491
    %1770 = vmatpush1.msra.mxu0 %v1490
    %1771 = vmatprep.subr.mxu0 %v1487
    %1772 = vmatpush1.msra.mxu0 %v1486
    %1773 = vmatprep.subr.mxu0 %v1483
    %1774 = vmatpush1.msra.mxu0 %v1482
    %1775 = vmatprep.subr.mxu0 %v1479
    %1776 = vmatpush1.msra.mxu0 %v1478
    %1777 = vmatprep.subr.mxu0 %v1475
    %1778 = vmatpush1.msra.mxu0 %v1474
    %1779 = vmatprep.subr.mxu0 %v1471
    %1780 = vmatpush1.msra.mxu0 %v1470
    %1781 = vmatprep.subr.mxu0 %v1467
    %1782 = vmatpush1.msra.mxu0 %v1466
    %1783 = vmatprep.subr.mxu0 %v1463
    %1784 = vmatpush1.msra.mxu0 %v1462
    %1785 = vmatprep.subr.mxu0 %v1459
    %1786 = vmatpush1.msra.mxu0 %v1458
    %1787 = vmatprep.subr.mxu0 %v1455
    %1788 = vmatpush1.msra.mxu0 %v1454
    %1789 = vmatprep.subr.mxu0 %v1451
    %1790 = vmatpush1.msra.mxu0 %v1450
    %1791 = vmatprep.subr.mxu0 %v1447
    %1792 = vmatpush1.msra.mxu0 %v1446
    %1793 = vmatprep.subr.mxu0 %v1443
    %1794 = vmatpush1.msra.mxu0 %v1442
    %1795 = vmatprep.subr.mxu0 %v1439
    %1796 = vmatpush1.msra.mxu0 %v1438
    %1797 = vmatprep.subr.mxu0 %v1435
    %1798 = vmatpush1.msra.mxu0 %v1434
    %1799 = vmatprep.subr.mxu0 %v1431
    %1800 = vmatpush1.msra.mxu0 %v1430
    %1801 = vmatprep.subr.mxu0 0.0
    %1802 = vmatpush2.msra.mxu0 0.0
    %1803 = vmatprep.subr.mxu0 0.0
    %1804 = vmatpush2.msra.mxu0 0.0
    %1805 = vmatprep.subr.mxu0 0.0
    %1806 = vmatpush2.msra.mxu0 0.0
    %1807 = vmatprep.subr.mxu0 0.0
    %1808 = vmatpush2.msra.mxu0 0.0
    %1809 = vmatprep.subr.mxu0 0.0
    %1810 = vmatpush2.msra.mxu0 0.0
    %1811 = vmatprep.subr.mxu0 0.0
    %1812 = vmatpush2.msra.mxu0 0.0
    %1813 = vmatprep.subr.mxu0 0.0
    %1814 = vmatpush2.msra.mxu0 0.0
    %1815 = vmatprep.subr.mxu0 0.0
    %1816 = vmatpush2.msra.mxu0 0.0
    %1817 = vmatprep.subr.mxu0 0.0
    %1818 = vmatpush2.msra.mxu0 0.0
    %1819 = vmatprep.subr.mxu0 0.0
    %1820 = vmatpush2.msra.mxu0 0.0
    %1821 = vmatprep.subr.mxu0 0.0
    %1822 = vmatpush2.msra.mxu0 0.0
    %1823 = vmatprep.subr.mxu0 0.0
    %1824 = vmatpush2.msra.mxu0 0.0
    %1825 = vmatprep.subr.mxu0 0.0
    %1826 = vmatpush2.msra.mxu0 0.0
    %1827 = vmatprep.subr.mxu0 0.0
    %1828 = vmatpush2.msra.mxu0 0.0
    %1829 = vmatprep.subr.mxu0 0.0
    %1830 = vmatpush2.msra.mxu0 0.0
    %1831 = vmatprep.subr.mxu0 0.0
    %1832 = vmatpush2.msra.mxu0 0.0
    %1833 = vmatprep.mubr.f32.mxu0 0.0
    %1834 = vmatmul.mubr.f32.gmra.mxu0 %v1427
    %v1835 = vpop.f32.mrf.mxu0
    %v1836 = vadd.f32 %v1694, %v1835
    %v1837 = vpop.f32.mrf.mxu0
    %v1838 = vadd.f32 %v1696, %v1837
    %1839 = vdwg.mxu0
    %v1840 = vld [vmem:[#allocation12] sm:$0xf]
    %v1842 = vlaneseq
    %v1843 = vshrl.u32 %v1842, 7
    %v1844 = vsub.s32 0, %v1843
    %v1845 = vrot.slane %v1840, %v1844
    %v1846 = vlaneseq
    %v1847 = vshrl.u32 %v1846, 7
    %v1848 = vsub.s32 1, %v1847
    %v1849 = vrot.slane %v1840, %v1848
    %v1850 = vlaneseq
    %v1851 = vshrl.u32 %v1850, 7
    %v1852 = vsub.s32 2, %v1851
    %v1853 = vrot.slane %v1840, %v1852
    %v1854 = vlaneseq
    %v1855 = vshrl.u32 %v1854, 7
    %v1856 = vsub.s32 3, %v1855
    %v1857 = vrot.slane %v1840, %v1856
    %v1862 = vadd.f32 %v1765, %v1845
    %v1863 = vadd.f32 %v1767, %v1849
    %v1864 = vadd.f32 %v1836, %v1853
    %v1865 = vadd.f32 %v1838, %v1857
    %v1866 = vtanh.pop %v1862
    %v1867 = vtanh.pop %v1863
    %v1868 = vtanh.pop %v1864
    %v1869 = vtanh.pop %v1865
    %v1870 = vadd.f32 %v1866, 1.0
    %v1871 = vmul.f32 %v1870, 0.5
    %v1872 = vadd.f32 %v1867, 1.0
    %v1873 = vmul.f32 %v1872, 0.5
    %v1874 = vadd.f32 %v1869, 1.0
    %v1875 = vmul.f32 %v1874, 0.5
    %v1876 = vmul.f32 %v1873, %v1198
    %v1877 = vmul.f32 %v1871, %v1868
    %v1878 = vadd.f32 %v1876, %v1877
    %v1879 = vtanh.pop %v1878
    %v1880 = vmul.f32 %v1875, %v1879
    %1881 = vst [vmem:[#allocation17] sm:$0xff] %v1880
    %v1882 = vld [vmem:[#allocation2 + $0x20] sm:$0xff]
    %v1883 = vld [vmem:[#allocation2 + $0x28] sm:$0xff]
    %v1884 = vld [vmem:[#allocation2 + $0x30] sm:$0xff]
    %v1885 = vld [vmem:[#allocation2 + $0x38] sm:$0xff]
    %v1886 = vld [vmem:[#allocation3] sm:$0xff]
    %v1887 = vld [vmem:[#allocation3 + $0x8] sm:$0xff]
    %v1888 = vld [vmem:[#allocation3 + $0x10] sm:$0xff]
    %v1889 = vld [vmem:[#allocation3 + $0x18] sm:$0xff]
    %v1890 = vld [vmem:[#allocation3 + $0x20] sm:$0xff]
    %v1891 = vld [vmem:[#allocation3 + $0x28] sm:$0xff]
    %v1892 = vld [vmem:[#allocation3 + $0x30] sm:$0xff]
    %v1893 = vld [vmem:[#allocation3 + $0x38] sm:$0xff]
    %v1894 = vld [vmem:[#allocation3 + $0x40] sm:$0xff]
    %v1895 = vld [vmem:[#allocation3 + $0x48] sm:$0xff]
    %v1896 = vld [vmem:[#allocation3 + $0x50] sm:$0xff]
    %v1897 = vld [vmem:[#allocation3 + $0x58] sm:$0xff]
    %v1898 = vld [vmem:[#allocation3 + $0x60] sm:$0xff]
    %v1899 = vld [vmem:[#allocation3 + $0x68] sm:$0xff]
    %v1900 = vld [vmem:[#allocation3 + $0x70] sm:$0xff]
    %v1901 = vld [vmem:[#allocation3 + $0x78] sm:$0xff]
    %v1902 = vld [vmem:[#allocation3 + $0x80] sm:$0xff]
    %v1903 = vld [vmem:[#allocation3 + $0x88] sm:$0xff]
    %v1904 = vld [vmem:[#allocation3 + $0x90] sm:$0xff]
    %v1905 = vld [vmem:[#allocation3 + $0x98] sm:$0xff]
    %v1906 = vld [vmem:[#allocation3 + $0xa0] sm:$0xff]
    %v1907 = vld [vmem:[#allocation3 + $0xa8] sm:$0xff]
    %v1908 = vld [vmem:[#allocation3 + $0xb0] sm:$0xff]
    %v1909 = vld [vmem:[#allocation3 + $0xb8] sm:$0xff]
    %v1910 = vld [vmem:[#allocation3 + $0xc0] sm:$0xff]
    %v1911 = vld [vmem:[#allocation3 + $0xc8] sm:$0xff]
    %v1912 = vld [vmem:[#allocation3 + $0xd0] sm:$0xff]
    %v1913 = vld [vmem:[#allocation3 + $0xd8] sm:$0xff]
    %v1914 = vld [vmem:[#allocation3 + $0xe0] sm:$0xff]
    %v1915 = vld [vmem:[#allocation3 + $0xe8] sm:$0xff]
    %v1916 = vld [vmem:[#allocation3 + $0xf0] sm:$0xff]
    %v1917 = vld [vmem:[#allocation3 + $0xf8] sm:$0xff]
    %v1918 = vld [vmem:[#allocation3 + $0x100] sm:$0xff]
    %v1919 = vld [vmem:[#allocation3 + $0x108] sm:$0xff]
    %v1920 = vld [vmem:[#allocation3 + $0x110] sm:$0xff]
    %v1921 = vld [vmem:[#allocation3 + $0x118] sm:$0xff]
    %v1922 = vld [vmem:[#allocation3 + $0x120] sm:$0xff]
    %v1923 = vld [vmem:[#allocation3 + $0x128] sm:$0xff]
    %v1924 = vld [vmem:[#allocation3 + $0x130] sm:$0xff]
    %v1925 = vld [vmem:[#allocation3 + $0x138] sm:$0xff]
    %v1926 = vld [vmem:[#allocation3 + $0x140] sm:$0xff]
    %v1927 = vld [vmem:[#allocation3 + $0x148] sm:$0xff]
    %v1928 = vld [vmem:[#allocation3 + $0x150] sm:$0xff]
    %v1929 = vld [vmem:[#allocation3 + $0x158] sm:$0xff]
    %v1930 = vld [vmem:[#allocation3 + $0x160] sm:$0xff]
    %v1931 = vld [vmem:[#allocation3 + $0x168] sm:$0xff]
    %v1932 = vld [vmem:[#allocation3 + $0x170] sm:$0xff]
    %v1933 = vld [vmem:[#allocation3 + $0x178] sm:$0xff]
    %v1934 = vld [vmem:[#allocation3 + $0x180] sm:$0xff]
    %v1935 = vld [vmem:[#allocation3 + $0x188] sm:$0xff]
    %v1936 = vld [vmem:[#allocation3 + $0x190] sm:$0xff]
    %v1937 = vld [vmem:[#allocation3 + $0x198] sm:$0xff]
    %v1938 = vld [vmem:[#allocation3 + $0x1a0] sm:$0xff]
    %v1939 = vld [vmem:[#allocation3 + $0x1a8] sm:$0xff]
    %v1940 = vld [vmem:[#allocation3 + $0x1b0] sm:$0xff]
    %v1941 = vld [vmem:[#allocation3 + $0x1b8] sm:$0xff]
    %v1942 = vld [vmem:[#allocation3 + $0x1c0] sm:$0xff]
    %v1943 = vld [vmem:[#allocation3 + $0x1c8] sm:$0xff]
    %v1944 = vld [vmem:[#allocation3 + $0x1d0] sm:$0xff]
    %v1945 = vld [vmem:[#allocation3 + $0x1d8] sm:$0xff]
    %v1946 = vld [vmem:[#allocation3 + $0x1e0] sm:$0xff]
    %v1947 = vld [vmem:[#allocation3 + $0x1e8] sm:$0xff]
    %v1948 = vld [vmem:[#allocation3 + $0x1f0] sm:$0xff]
    %v1949 = vld [vmem:[#allocation3 + $0x1f8] sm:$0xff]
    %1950 = vmatprep.subr.mxu0 %v1947
    %1951 = vmatpush1.msra.mxu0 %v1946
    %1952 = vmatprep.subr.mxu0 %v1943
    %1953 = vmatpush1.msra.mxu0 %v1942
    %1954 = vmatprep.subr.mxu0 %v1939
    %1955 = vmatpush1.msra.mxu0 %v1938
    %1956 = vmatprep.subr.mxu0 %v1935
    %1957 = vmatpush1.msra.mxu0 %v1934
    %1958 = vmatprep.subr.mxu0 %v1931
    %1959 = vmatpush1.msra.mxu0 %v1930
    %1960 = vmatprep.subr.mxu0 %v1927
    %1961 = vmatpush1.msra.mxu0 %v1926
    %1962 = vmatprep.subr.mxu0 %v1923
    %1963 = vmatpush1.msra.mxu0 %v1922
    %1964 = vmatprep.subr.mxu0 %v1919
    %1965 = vmatpush1.msra.mxu0 %v1918
    %1966 = vmatprep.subr.mxu0 %v1915
    %1967 = vmatpush1.msra.mxu0 %v1914
    %1968 = vmatprep.subr.mxu0 %v1911
    %1969 = vmatpush1.msra.mxu0 %v1910
    %1970 = vmatprep.subr.mxu0 %v1907
    %1971 = vmatpush1.msra.mxu0 %v1906
    %1972 = vmatprep.subr.mxu0 %v1903
    %1973 = vmatpush1.msra.mxu0 %v1902
    %1974 = vmatprep.subr.mxu0 %v1899
    %1975 = vmatpush1.msra.mxu0 %v1898
    %1976 = vmatprep.subr.mxu0 %v1895
    %1977 = vmatpush1.msra.mxu0 %v1894
    %1978 = vmatprep.subr.mxu0 %v1891
    %1979 = vmatpush1.msra.mxu0 %v1890
    %1980 = vmatprep.subr.mxu0 %v1887
    %1981 = vmatpush1.msra.mxu0 %v1886
    %1982 = vmatprep.subr.mxu0 0.0
    %1983 = vmatpush2.msra.mxu0 0.0
    %1984 = vmatprep.subr.mxu0 0.0
    %1985 = vmatpush2.msra.mxu0 0.0
    %1986 = vmatprep.subr.mxu0 0.0
    %1987 = vmatpush2.msra.mxu0 0.0
    %1988 = vmatprep.subr.mxu0 0.0
    %1989 = vmatpush2.msra.mxu0 0.0
    %1990 = vmatprep.subr.mxu0 0.0
    %1991 = vmatpush2.msra.mxu0 0.0
    %1992 = vmatprep.subr.mxu0 0.0
    %1993 = vmatpush2.msra.mxu0 0.0
    %1994 = vmatprep.subr.mxu0 0.0
    %1995 = vmatpush2.msra.mxu0 0.0
    %1996 = vmatprep.subr.mxu0 0.0
    %1997 = vmatpush2.msra.mxu0 0.0
    %1998 = vmatprep.subr.mxu0 0.0
    %1999 = vmatpush2.msra.mxu0 0.0
    %2000 = vmatprep.subr.mxu0 0.0
    %2001 = vmatpush2.msra.mxu0 0.0
    %2002 = vmatprep.subr.mxu0 0.0
    %2003 = vmatpush2.msra.mxu0 0.0
    %2004 = vmatprep.subr.mxu0 0.0
    %2005 = vmatpush2.msra.mxu0 0.0
    %2006 = vmatprep.subr.mxu0 0.0
    %2007 = vmatpush2.msra.mxu0 0.0
    %2008 = vmatprep.subr.mxu0 0.0
    %2009 = vmatpush2.msra.mxu0 0.0
    %2010 = vmatprep.subr.mxu0 0.0
    %2011 = vmatpush2.msra.mxu0 0.0
    %2012 = vmatprep.subr.mxu0 0.0
    %2013 = vmatpush2.msra.mxu0 0.0
    %2014 = vmatprep.mubr.f32.mxu0 0.0
    %2015 = vmatmul.mubr.f32.gmra.mxu0 %v1427
    %v2016 = vpop.f32.mrf.mxu0
    %v2017 = vadd.f32 0.0, %v2016
    %v2018 = vpop.f32.mrf.mxu0
    %v2019 = vadd.f32 0.0, %v2018
    %2020 = vdwg.mxu0
    %2021 = vmatprep.subr.mxu0 %v1949
    %2022 = vmatpush1.msra.mxu0 %v1948
    %2023 = vmatprep.subr.mxu0 %v1945
    %2024 = vmatpush1.msra.mxu0 %v1944
    %2025 = vmatprep.subr.mxu0 %v1941
    %2026 = vmatpush1.msra.mxu0 %v1940
    %2027 = vmatprep.subr.mxu0 %v1937
    %2028 = vmatpush1.msra.mxu0 %v1936
    %2029 = vmatprep.subr.mxu0 %v1933
    %2030 = vmatpush1.msra.mxu0 %v1932
    %2031 = vmatprep.subr.mxu0 %v1929
    %2032 = vmatpush1.msra.mxu0 %v1928
    %2033 = vmatprep.subr.mxu0 %v1925
    %2034 = vmatpush1.msra.mxu0 %v1924
    %2035 = vmatprep.subr.mxu0 %v1921
    %2036 = vmatpush1.msra.mxu0 %v1920
    %2037 = vmatprep.subr.mxu0 %v1917
    %2038 = vmatpush1.msra.mxu0 %v1916
    %2039 = vmatprep.subr.mxu0 %v1913
    %2040 = vmatpush1.msra.mxu0 %v1912
    %2041 = vmatprep.subr.mxu0 %v1909
    %2042 = vmatpush1.msra.mxu0 %v1908
    %2043 = vmatprep.subr.mxu0 %v1905
    %2044 = vmatpush1.msra.mxu0 %v1904
    %2045 = vmatprep.subr.mxu0 %v1901
    %2046 = vmatpush1.msra.mxu0 %v1900
    %2047 = vmatprep.subr.mxu0 %v1897
    %2048 = vmatpush1.msra.mxu0 %v1896
    %2049 = vmatprep.subr.mxu0 %v1893
    %2050 = vmatpush1.msra.mxu0 %v1892
    %2051 = vmatprep.subr.mxu0 %v1889
    %2052 = vmatpush1.msra.mxu0 %v1888
    %2053 = vmatprep.subr.mxu0 0.0
    %2054 = vmatpush2.msra.mxu0 0.0
    %2055 = vmatprep.subr.mxu0 0.0
    %2056 = vmatpush2.msra.mxu0 0.0
    %2057 = vmatprep.subr.mxu0 0.0
    %2058 = vmatpush2.msra.mxu0 0.0
    %2059 = vmatprep.subr.mxu0 0.0
    %2060 = vmatpush2.msra.mxu0 0.0
    %2061 = vmatprep.subr.mxu0 0.0
    %2062 = vmatpush2.msra.mxu0 0.0
    %2063 = vmatprep.subr.mxu0 0.0
    %2064 = vmatpush2.msra.mxu0 0.0
    %2065 = vmatprep.subr.mxu0 0.0
    %2066 = vmatpush2.msra.mxu0 0.0
    %2067 = vmatprep.subr.mxu0 0.0
    %2068 = vmatpush2.msra.mxu0 0.0
    %2069 = vmatprep.subr.mxu0 0.0
    %2070 = vmatpush2.msra.mxu0 0.0
    %2071 = vmatprep.subr.mxu0 0.0
    %2072 = vmatpush2.msra.mxu0 0.0
    %2073 = vmatprep.subr.mxu0 0.0
    %2074 = vmatpush2.msra.mxu0 0.0
    %2075 = vmatprep.subr.mxu0 0.0
    %2076 = vmatpush2.msra.mxu0 0.0
    %2077 = vmatprep.subr.mxu0 0.0
    %2078 = vmatpush2.msra.mxu0 0.0
    %2079 = vmatprep.subr.mxu0 0.0
    %2080 = vmatpush2.msra.mxu0 0.0
    %2081 = vmatprep.subr.mxu0 0.0
    %2082 = vmatpush2.msra.mxu0 0.0
    %2083 = vmatprep.subr.mxu0 0.0
    %2084 = vmatpush2.msra.mxu0 0.0
    %2085 = vmatprep.mubr.f32.mxu0 0.0
    %2086 = vmatmul.mubr.f32.gmra.mxu0 %v1427
    %v2087 = vpop.f32.mrf.mxu0
    %v2088 = vadd.f32 0.0, %v2087
    %v2089 = vpop.f32.mrf.mxu0
    %v2090 = vadd.f32 0.0, %v2089
    %2091 = vdwg.mxu0
    %v2092 = vadd.f32 %v1882, %v2017
    %v2093 = vadd.f32 %v1883, %v2019
    %v2094 = vadd.f32 %v1884, %v2088
    %v2095 = vadd.f32 %v1885, %v2090
    %v2096 = vtanh.pop %v2092
    %v2097 = vtanh.pop %v2093
    %v2098 = vtanh.pop %v2094
    %v2099 = vtanh.pop %v2095
    %v2100 = vadd.f32 %v2096, 1.0
    %v2101 = vmul.f32 %v2100, 0.5
    %v2102 = vadd.f32 %v2097, 1.0
    %v2103 = vmul.f32 %v2102, 0.5
    %v2104 = vadd.f32 %v2099, 1.0
    %v2105 = vmul.f32 %v2104, 0.5
    %v2106 = vmul.f32 %v2103, %v1425
    %v2107 = vmul.f32 %v2101, %v2098
    %v2108 = vadd.f32 %v2106, %v2107
    %v2109 = vtanh.pop %v2108
    %v2110 = vmul.f32 %v2105, %v2109
    %v2111 = vld [vmem:[#allocation4] sm:$0xff]
    %v2112 = vld [vmem:[#allocation4 + $0x8] sm:$0xff]
    %v2113 = vld [vmem:[#allocation4 + $0x10] sm:$0xff]
    %v2114 = vld [vmem:[#allocation4 + $0x18] sm:$0xff]
    %v2115 = vld [vmem:[#allocation4 + $0x20] sm:$0xff]
    %v2116 = vld [vmem:[#allocation4 + $0x28] sm:$0xff]
    %v2117 = vld [vmem:[#allocation4 + $0x30] sm:$0xff]
    %v2118 = vld [vmem:[#allocation4 + $0x38] sm:$0xff]
    %v2119 = vld [vmem:[#allocation4 + $0x40] sm:$0xff]
    %v2120 = vld [vmem:[#allocation4 + $0x48] sm:$0xff]
    %v2121 = vld [vmem:[#allocation4 + $0x50] sm:$0xff]
    %v2122 = vld [vmem:[#allocation4 + $0x58] sm:$0xff]
    %v2123 = vld [vmem:[#allocation4 + $0x60] sm:$0xff]
    %v2124 = vld [vmem:[#allocation4 + $0x68] sm:$0xff]
    %v2125 = vld [vmem:[#allocation4 + $0x70] sm:$0xff]
    %v2126 = vld [vmem:[#allocation4 + $0x78] sm:$0xff]
    %v2127 = vld [vmem:[#allocation4 + $0x80] sm:$0xff]
    %v2128 = vld [vmem:[#allocation4 + $0x88] sm:$0xff]
    %v2129 = vld [vmem:[#allocation4 + $0x90] sm:$0xff]
    %v2130 = vld [vmem:[#allocation4 + $0x98] sm:$0xff]
    %v2131 = vld [vmem:[#allocation4 + $0xa0] sm:$0xff]
    %v2132 = vld [vmem:[#allocation4 + $0xa8] sm:$0xff]
    %v2133 = vld [vmem:[#allocation4 + $0xb0] sm:$0xff]
    %v2134 = vld [vmem:[#allocation4 + $0xb8] sm:$0xff]
    %v2135 = vld [vmem:[#allocation4 + $0xc0] sm:$0xff]
    %v2136 = vld [vmem:[#allocation4 + $0xc8] sm:$0xff]
    %v2137 = vld [vmem:[#allocation4 + $0xd0] sm:$0xff]
    %v2138 = vld [vmem:[#allocation4 + $0xd8] sm:$0xff]
    %v2139 = vld [vmem:[#allocation4 + $0xe0] sm:$0xff]
    %v2140 = vld [vmem:[#allocation4 + $0xe8] sm:$0xff]
    %v2141 = vld [vmem:[#allocation4 + $0xf0] sm:$0xff]
    %v2142 = vld [vmem:[#allocation4 + $0xf8] sm:$0xff]
    %v2143 = vld [vmem:[#allocation4 + $0x100] sm:$0xff]
    %v2144 = vld [vmem:[#allocation4 + $0x108] sm:$0xff]
    %v2145 = vld [vmem:[#allocation4 + $0x110] sm:$0xff]
    %v2146 = vld [vmem:[#allocation4 + $0x118] sm:$0xff]
    %v2147 = vld [vmem:[#allocation4 + $0x120] sm:$0xff]
    %v2148 = vld [vmem:[#allocation4 + $0x128] sm:$0xff]
    %v2149 = vld [vmem:[#allocation4 + $0x130] sm:$0xff]
    %v2150 = vld [vmem:[#allocation4 + $0x138] sm:$0xff]
    %v2151 = vld [vmem:[#allocation4 + $0x140] sm:$0xff]
    %v2152 = vld [vmem:[#allocation4 + $0x148] sm:$0xff]
    %v2153 = vld [vmem:[#allocation4 + $0x150] sm:$0xff]
    %v2154 = vld [vmem:[#allocation4 + $0x158] sm:$0xff]
    %v2155 = vld [vmem:[#allocation4 + $0x160] sm:$0xff]
    %v2156 = vld [vmem:[#allocation4 + $0x168] sm:$0xff]
    %v2157 = vld [vmem:[#allocation4 + $0x170] sm:$0xff]
    %v2158 = vld [vmem:[#allocation4 + $0x178] sm:$0xff]
    %v2159 = vld [vmem:[#allocation4 + $0x180] sm:$0xff]
    %v2160 = vld [vmem:[#allocation4 + $0x188] sm:$0xff]
    %v2161 = vld [vmem:[#allocation4 + $0x190] sm:$0xff]
    %v2162 = vld [vmem:[#allocation4 + $0x198] sm:$0xff]
    %v2163 = vld [vmem:[#allocation4 + $0x1a0] sm:$0xff]
    %v2164 = vld [vmem:[#allocation4 + $0x1a8] sm:$0xff]
    %v2165 = vld [vmem:[#allocation4 + $0x1b0] sm:$0xff]
    %v2166 = vld [vmem:[#allocation4 + $0x1b8] sm:$0xff]
    %v2167 = vld [vmem:[#allocation4 + $0x1c0] sm:$0xff]
    %v2168 = vld [vmem:[#allocation4 + $0x1c8] sm:$0xff]
    %v2169 = vld [vmem:[#allocation4 + $0x1d0] sm:$0xff]
    %v2170 = vld [vmem:[#allocation4 + $0x1d8] sm:$0xff]
    %v2171 = vld [vmem:[#allocation4 + $0x1e0] sm:$0xff]
    %v2172 = vld [vmem:[#allocation4 + $0x1e8] sm:$0xff]
    %v2173 = vld [vmem:[#allocation4 + $0x1f0] sm:$0xff]
    %v2174 = vld [vmem:[#allocation4 + $0x1f8] sm:$0xff]
    %v2175 = vld [vmem:[#allocation5] sm:$0xff]
    %v2176 = vld [vmem:[#allocation5 + $0x8] sm:$0xff]
    %v2177 = vld [vmem:[#allocation5 + $0x10] sm:$0xff]
    %v2178 = vld [vmem:[#allocation5 + $0x18] sm:$0xff]
    %v2179 = vld [vmem:[#allocation5 + $0x20] sm:$0xff]
    %v2180 = vld [vmem:[#allocation5 + $0x28] sm:$0xff]
    %v2181 = vld [vmem:[#allocation5 + $0x30] sm:$0xff]
    %v2182 = vld [vmem:[#allocation5 + $0x38] sm:$0xff]
    %v2183 = vld [vmem:[#allocation5 + $0x40] sm:$0xff]
    %v2184 = vld [vmem:[#allocation5 + $0x48] sm:$0xff]
    %v2185 = vld [vmem:[#allocation5 + $0x50] sm:$0xff]
    %v2186 = vld [vmem:[#allocation5 + $0x58] sm:$0xff]
    %v2187 = vld [vmem:[#allocation5 + $0x60] sm:$0xff]
    %v2188 = vld [vmem:[#allocation5 + $0x68] sm:$0xff]
    %v2189 = vld [vmem:[#allocation5 + $0x70] sm:$0xff]
    %v2190 = vld [vmem:[#allocation5 + $0x78] sm:$0xff]
    %v2191 = vld [vmem:[#allocation5 + $0x80] sm:$0xff]
    %v2192 = vld [vmem:[#allocation5 + $0x88] sm:$0xff]
    %v2193 = vld [vmem:[#allocation5 + $0x90] sm:$0xff]
    %v2194 = vld [vmem:[#allocation5 + $0x98] sm:$0xff]
    %v2195 = vld [vmem:[#allocation5 + $0xa0] sm:$0xff]
    %v2196 = vld [vmem:[#allocation5 + $0xa8] sm:$0xff]
    %v2197 = vld [vmem:[#allocation5 + $0xb0] sm:$0xff]
    %v2198 = vld [vmem:[#allocation5 + $0xb8] sm:$0xff]
    %v2199 = vld [vmem:[#allocation5 + $0xc0] sm:$0xff]
    %v2200 = vld [vmem:[#allocation5 + $0xc8] sm:$0xff]
    %v2201 = vld [vmem:[#allocation5 + $0xd0] sm:$0xff]
    %v2202 = vld [vmem:[#allocation5 + $0xd8] sm:$0xff]
    %v2203 = vld [vmem:[#allocation5 + $0xe0] sm:$0xff]
    %v2204 = vld [vmem:[#allocation5 + $0xe8] sm:$0xff]
    %v2205 = vld [vmem:[#allocation5 + $0xf0] sm:$0xff]
    %v2206 = vld [vmem:[#allocation5 + $0xf8] sm:$0xff]
    %v2207 = vld [vmem:[#allocation5 + $0x100] sm:$0xff]
    %v2208 = vld [vmem:[#allocation5 + $0x108] sm:$0xff]
    %v2209 = vld [vmem:[#allocation5 + $0x110] sm:$0xff]
    %v2210 = vld [vmem:[#allocation5 + $0x118] sm:$0xff]
    %v2211 = vld [vmem:[#allocation5 + $0x120] sm:$0xff]
    %v2212 = vld [vmem:[#allocation5 + $0x128] sm:$0xff]
    %v2213 = vld [vmem:[#allocation5 + $0x130] sm:$0xff]
    %v2214 = vld [vmem:[#allocation5 + $0x138] sm:$0xff]
    %v2215 = vld [vmem:[#allocation5 + $0x140] sm:$0xff]
    %v2216 = vld [vmem:[#allocation5 + $0x148] sm:$0xff]
    %v2217 = vld [vmem:[#allocation5 + $0x150] sm:$0xff]
    %v2218 = vld [vmem:[#allocation5 + $0x158] sm:$0xff]
    %v2219 = vld [vmem:[#allocation5 + $0x160] sm:$0xff]
    %v2220 = vld [vmem:[#allocation5 + $0x168] sm:$0xff]
    %v2221 = vld [vmem:[#allocation5 + $0x170] sm:$0xff]
    %v2222 = vld [vmem:[#allocation5 + $0x178] sm:$0xff]
    %v2223 = vld [vmem:[#allocation5 + $0x180] sm:$0xff]
    %v2224 = vld [vmem:[#allocation5 + $0x188] sm:$0xff]
    %v2225 = vld [vmem:[#allocation5 + $0x190] sm:$0xff]
    %v2226 = vld [vmem:[#allocation5 + $0x198] sm:$0xff]
    %v2227 = vld [vmem:[#allocation5 + $0x1a0] sm:$0xff]
    %v2228 = vld [vmem:[#allocation5 + $0x1a8] sm:$0xff]
    %v2229 = vld [vmem:[#allocation5 + $0x1b0] sm:$0xff]
    %v2230 = vld [vmem:[#allocation5 + $0x1b8] sm:$0xff]
    %v2231 = vld [vmem:[#allocation5 + $0x1c0] sm:$0xff]
    %v2232 = vld [vmem:[#allocation5 + $0x1c8] sm:$0xff]
    %v2233 = vld [vmem:[#allocation5 + $0x1d0] sm:$0xff]
    %v2234 = vld [vmem:[#allocation5 + $0x1d8] sm:$0xff]
    %v2235 = vld [vmem:[#allocation5 + $0x1e0] sm:$0xff]
    %v2236 = vld [vmem:[#allocation5 + $0x1e8] sm:$0xff]
    %v2237 = vld [vmem:[#allocation5 + $0x1f0] sm:$0xff]
    %v2238 = vld [vmem:[#allocation5 + $0x1f8] sm:$0xff]
    %2239 = vmatprep.subr.mxu0 %v2236
    %2240 = vmatpush1.msra.mxu0 %v2235
    %2241 = vmatprep.subr.mxu0 %v2232
    %2242 = vmatpush1.msra.mxu0 %v2231
    %2243 = vmatprep.subr.mxu0 %v2228
    %2244 = vmatpush1.msra.mxu0 %v2227
    %2245 = vmatprep.subr.mxu0 %v2224
    %2246 = vmatpush1.msra.mxu0 %v2223
    %2247 = vmatprep.subr.mxu0 %v2220
    %2248 = vmatpush1.msra.mxu0 %v2219
    %2249 = vmatprep.subr.mxu0 %v2216
    %2250 = vmatpush1.msra.mxu0 %v2215
    %2251 = vmatprep.subr.mxu0 %v2212
    %2252 = vmatpush1.msra.mxu0 %v2211
    %2253 = vmatprep.subr.mxu0 %v2208
    %2254 = vmatpush1.msra.mxu0 %v2207
    %2255 = vmatprep.subr.mxu0 %v2204
    %2256 = vmatpush1.msra.mxu0 %v2203
    %2257 = vmatprep.subr.mxu0 %v2200
    %2258 = vmatpush1.msra.mxu0 %v2199
    %2259 = vmatprep.subr.mxu0 %v2196
    %2260 = vmatpush1.msra.mxu0 %v2195
    %2261 = vmatprep.subr.mxu0 %v2192
    %2262 = vmatpush1.msra.mxu0 %v2191
    %2263 = vmatprep.subr.mxu0 %v2188
    %2264 = vmatpush1.msra.mxu0 %v2187
    %2265 = vmatprep.subr.mxu0 %v2184
    %2266 = vmatpush1.msra.mxu0 %v2183
    %2267 = vmatprep.subr.mxu0 %v2180
    %2268 = vmatpush1.msra.mxu0 %v2179
    %2269 = vmatprep.subr.mxu0 %v2176
    %2270 = vmatpush1.msra.mxu0 %v2175
    %2271 = vmatprep.subr.mxu0 0.0
    %2272 = vmatpush2.msra.mxu0 0.0
    %2273 = vmatprep.subr.mxu0 0.0
    %2274 = vmatpush2.msra.mxu0 0.0
    %2275 = vmatprep.subr.mxu0 0.0
    %2276 = vmatpush2.msra.mxu0 0.0
    %2277 = vmatprep.subr.mxu0 0.0
    %2278 = vmatpush2.msra.mxu0 0.0
    %2279 = vmatprep.subr.mxu0 0.0
    %2280 = vmatpush2.msra.mxu0 0.0
    %2281 = vmatprep.subr.mxu0 0.0
    %2282 = vmatpush2.msra.mxu0 0.0
    %2283 = vmatprep.subr.mxu0 0.0
    %2284 = vmatpush2.msra.mxu0 0.0
    %2285 = vmatprep.subr.mxu0 0.0
    %2286 = vmatpush2.msra.mxu0 0.0
    %2287 = vmatprep.subr.mxu0 0.0
    %2288 = vmatpush2.msra.mxu0 0.0
    %2289 = vmatprep.subr.mxu0 0.0
    %2290 = vmatpush2.msra.mxu0 0.0
    %2291 = vmatprep.subr.mxu0 0.0
    %2292 = vmatpush2.msra.mxu0 0.0
    %2293 = vmatprep.subr.mxu0 0.0
    %2294 = vmatpush2.msra.mxu0 0.0
    %2295 = vmatprep.subr.mxu0 0.0
    %2296 = vmatpush2.msra.mxu0 0.0
    %2297 = vmatprep.subr.mxu0 0.0
    %2298 = vmatpush2.msra.mxu0 0.0
    %2299 = vmatprep.subr.mxu0 0.0
    %2300 = vmatpush2.msra.mxu0 0.0
    %2301 = vmatprep.subr.mxu0 0.0
    %2302 = vmatpush2.msra.mxu0 0.0
    %2303 = vmatprep.mubr.f32.mxu0 0.0
    %2304 = vmatmul.mubr.f32.gmra.mxu0 %v1880
    %v2305 = vpop.f32.mrf.mxu0
    %v2306 = vadd.f32 0.0, %v2305
    %v2307 = vpop.f32.mrf.mxu0
    %v2308 = vadd.f32 0.0, %v2307
    %2309 = vdwg.mxu0
    %2310 = vmatprep.subr.mxu0 %v2238
    %2311 = vmatpush1.msra.mxu0 %v2237
    %2312 = vmatprep.subr.mxu0 %v2234
    %2313 = vmatpush1.msra.mxu0 %v2233
    %2314 = vmatprep.subr.mxu0 %v2230
    %2315 = vmatpush1.msra.mxu0 %v2229
    %2316 = vmatprep.subr.mxu0 %v2226
    %2317 = vmatpush1.msra.mxu0 %v2225
    %2318 = vmatprep.subr.mxu0 %v2222
    %2319 = vmatpush1.msra.mxu0 %v2221
    %2320 = vmatprep.subr.mxu0 %v2218
    %2321 = vmatpush1.msra.mxu0 %v2217
    %2322 = vmatprep.subr.mxu0 %v2214
    %2323 = vmatpush1.msra.mxu0 %v2213
    %2324 = vmatprep.subr.mxu0 %v2210
    %2325 = vmatpush1.msra.mxu0 %v2209
    %2326 = vmatprep.subr.mxu0 %v2206
    %2327 = vmatpush1.msra.mxu0 %v2205
    %2328 = vmatprep.subr.mxu0 %v2202
    %2329 = vmatpush1.msra.mxu0 %v2201
    %2330 = vmatprep.subr.mxu0 %v2198
    %2331 = vmatpush1.msra.mxu0 %v2197
    %2332 = vmatprep.subr.mxu0 %v2194
    %2333 = vmatpush1.msra.mxu0 %v2193
    %2334 = vmatprep.subr.mxu0 %v2190
    %2335 = vmatpush1.msra.mxu0 %v2189
    %2336 = vmatprep.subr.mxu0 %v2186
    %2337 = vmatpush1.msra.mxu0 %v2185
    %2338 = vmatprep.subr.mxu0 %v2182
    %2339 = vmatpush1.msra.mxu0 %v2181
    %2340 = vmatprep.subr.mxu0 %v2178
    %2341 = vmatpush1.msra.mxu0 %v2177
    %2342 = vmatprep.subr.mxu0 0.0
    %2343 = vmatpush2.msra.mxu0 0.0
    %2344 = vmatprep.subr.mxu0 0.0
    %2345 = vmatpush2.msra.mxu0 0.0
    %2346 = vmatprep.subr.mxu0 0.0
    %2347 = vmatpush2.msra.mxu0 0.0
    %2348 = vmatprep.subr.mxu0 0.0
    %2349 = vmatpush2.msra.mxu0 0.0
    %2350 = vmatprep.subr.mxu0 0.0
    %2351 = vmatpush2.msra.mxu0 0.0
    %2352 = vmatprep.subr.mxu0 0.0
    %2353 = vmatpush2.msra.mxu0 0.0
    %2354 = vmatprep.subr.mxu0 0.0
    %2355 = vmatpush2.msra.mxu0 0.0
    %2356 = vmatprep.subr.mxu0 0.0
    %2357 = vmatpush2.msra.mxu0 0.0
    %2358 = vmatprep.subr.mxu0 0.0
    %2359 = vmatpush2.msra.mxu0 0.0
    %2360 = vmatprep.subr.mxu0 0.0
    %2361 = vmatpush2.msra.mxu0 0.0
    %2362 = vmatprep.subr.mxu0 0.0
    %2363 = vmatpush2.msra.mxu0 0.0
    %2364 = vmatprep.subr.mxu0 0.0
    %2365 = vmatpush2.msra.mxu0 0.0
    %2366 = vmatprep.subr.mxu0 0.0
    %2367 = vmatpush2.msra.mxu0 0.0
    %2368 = vmatprep.subr.mxu0 0.0
    %2369 = vmatpush2.msra.mxu0 0.0
    %2370 = vmatprep.subr.mxu0 0.0
    %2371 = vmatpush2.msra.mxu0 0.0
    %2372 = vmatprep.subr.mxu0 0.0
    %2373 = vmatpush2.msra.mxu0 0.0
    %2374 = vmatprep.mubr.f32.mxu0 0.0
    %2375 = vmatmul.mubr.f32.gmra.mxu0 %v1880
    %v2376 = vpop.f32.mrf.mxu0
    %v2377 = vadd.f32 0.0, %v2376
    %v2378 = vpop.f32.mrf.mxu0
    %v2379 = vadd.f32 0.0, %v2378
    %2380 = vdwg.mxu0
    %2381 = vmatprep.subr.mxu0 %v2172
    %2382 = vmatpush1.msra.mxu0 %v2171
    %2383 = vmatprep.subr.mxu0 %v2168
    %2384 = vmatpush1.msra.mxu0 %v2167
    %2385 = vmatprep.subr.mxu0 %v2164
    %2386 = vmatpush1.msra.mxu0 %v2163
    %2387 = vmatprep.subr.mxu0 %v2160
    %2388 = vmatpush1.msra.mxu0 %v2159
    %2389 = vmatprep.subr.mxu0 %v2156
    %2390 = vmatpush1.msra.mxu0 %v2155
    %2391 = vmatprep.subr.mxu0 %v2152
    %2392 = vmatpush1.msra.mxu0 %v2151
    %2393 = vmatprep.subr.mxu0 %v2148
    %2394 = vmatpush1.msra.mxu0 %v2147
    %2395 = vmatprep.subr.mxu0 %v2144
    %2396 = vmatpush1.msra.mxu0 %v2143
    %2397 = vmatprep.subr.mxu0 %v2140
    %2398 = vmatpush1.msra.mxu0 %v2139
    %2399 = vmatprep.subr.mxu0 %v2136
    %2400 = vmatpush1.msra.mxu0 %v2135
    %2401 = vmatprep.subr.mxu0 %v2132
    %2402 = vmatpush1.msra.mxu0 %v2131
    %2403 = vmatprep.subr.mxu0 %v2128
    %2404 = vmatpush1.msra.mxu0 %v2127
    %2405 = vmatprep.subr.mxu0 %v2124
    %2406 = vmatpush1.msra.mxu0 %v2123
    %2407 = vmatprep.subr.mxu0 %v2120
    %2408 = vmatpush1.msra.mxu0 %v2119
    %2409 = vmatprep.subr.mxu0 %v2116
    %2410 = vmatpush1.msra.mxu0 %v2115
    %2411 = vmatprep.subr.mxu0 %v2112
    %2412 = vmatpush1.msra.mxu0 %v2111
    %2413 = vmatprep.subr.mxu0 0.0
    %2414 = vmatpush2.msra.mxu0 0.0
    %2415 = vmatprep.subr.mxu0 0.0
    %2416 = vmatpush2.msra.mxu0 0.0
    %2417 = vmatprep.subr.mxu0 0.0
    %2418 = vmatpush2.msra.mxu0 0.0
    %2419 = vmatprep.subr.mxu0 0.0
    %2420 = vmatpush2.msra.mxu0 0.0
    %2421 = vmatprep.subr.mxu0 0.0
    %2422 = vmatpush2.msra.mxu0 0.0
    %2423 = vmatprep.subr.mxu0 0.0
    %2424 = vmatpush2.msra.mxu0 0.0
    %2425 = vmatprep.subr.mxu0 0.0
    %2426 = vmatpush2.msra.mxu0 0.0
    %2427 = vmatprep.subr.mxu0 0.0
    %2428 = vmatpush2.msra.mxu0 0.0
    %2429 = vmatprep.subr.mxu0 0.0
    %2430 = vmatpush2.msra.mxu0 0.0
    %2431 = vmatprep.subr.mxu0 0.0
    %2432 = vmatpush2.msra.mxu0 0.0
    %2433 = vmatprep.subr.mxu0 0.0
    %2434 = vmatpush2.msra.mxu0 0.0
    %2435 = vmatprep.subr.mxu0 0.0
    %2436 = vmatpush2.msra.mxu0 0.0
    %2437 = vmatprep.subr.mxu0 0.0
    %2438 = vmatpush2.msra.mxu0 0.0
    %2439 = vmatprep.subr.mxu0 0.0
    %2440 = vmatpush2.msra.mxu0 0.0
    %2441 = vmatprep.subr.mxu0 0.0
    %2442 = vmatpush2.msra.mxu0 0.0
    %2443 = vmatprep.subr.mxu0 0.0
    %2444 = vmatpush2.msra.mxu0 0.0
    %2445 = vmatprep.mubr.f32.mxu0 0.0
    %2446 = vmatmul.mubr.f32.gmra.mxu0 %v2110
    %v2447 = vpop.f32.mrf.mxu0
    %v2448 = vadd.f32 %v2306, %v2447
    %v2449 = vpop.f32.mrf.mxu0
    %v2450 = vadd.f32 %v2308, %v2449
    %2451 = vdwg.mxu0
    %2452 = vmatprep.subr.mxu0 %v2174
    %2453 = vmatpush1.msra.mxu0 %v2173
    %2454 = vmatprep.subr.mxu0 %v2170
    %2455 = vmatpush1.msra.mxu0 %v2169
    %2456 = vmatprep.subr.mxu0 %v2166
    %2457 = vmatpush1.msra.mxu0 %v2165
    %2458 = vmatprep.subr.mxu0 %v2162
    %2459 = vmatpush1.msra.mxu0 %v2161
    %2460 = vmatprep.subr.mxu0 %v2158
    %2461 = vmatpush1.msra.mxu0 %v2157
    %2462 = vmatprep.subr.mxu0 %v2154
    %2463 = vmatpush1.msra.mxu0 %v2153
    %2464 = vmatprep.subr.mxu0 %v2150
    %2465 = vmatpush1.msra.mxu0 %v2149
    %2466 = vmatprep.subr.mxu0 %v2146
    %2467 = vmatpush1.msra.mxu0 %v2145
    %2468 = vmatprep.subr.mxu0 %v2142
    %2469 = vmatpush1.msra.mxu0 %v2141
    %2470 = vmatprep.subr.mxu0 %v2138
    %2471 = vmatpush1.msra.mxu0 %v2137
    %2472 = vmatprep.subr.mxu0 %v2134
    %2473 = vmatpush1.msra.mxu0 %v2133
    %2474 = vmatprep.subr.mxu0 %v2130
    %2475 = vmatpush1.msra.mxu0 %v2129
    %2476 = vmatprep.subr.mxu0 %v2126
    %2477 = vmatpush1.msra.mxu0 %v2125
    %2478 = vmatprep.subr.mxu0 %v2122
    %2479 = vmatpush1.msra.mxu0 %v2121
    %2480 = vmatprep.subr.mxu0 %v2118
    %2481 = vmatpush1.msra.mxu0 %v2117
    %2482 = vmatprep.subr.mxu0 %v2114
    %2483 = vmatpush1.msra.mxu0 %v2113
    %2484 = vmatprep.subr.mxu0 0.0
    %2485 = vmatpush2.msra.mxu0 0.0
    %2486 = vmatprep.subr.mxu0 0.0
    %2487 = vmatpush2.msra.mxu0 0.0
    %2488 = vmatprep.subr.mxu0 0.0
    %2489 = vmatpush2.msra.mxu0 0.0
    %2490 = vmatprep.subr.mxu0 0.0
    %2491 = vmatpush2.msra.mxu0 0.0
    %2492 = vmatprep.subr.mxu0 0.0
    %2493 = vmatpush2.msra.mxu0 0.0
    %2494 = vmatprep.subr.mxu0 0.0
    %2495 = vmatpush2.msra.mxu0 0.0
    %2496 = vmatprep.subr.mxu0 0.0
    %2497 = vmatpush2.msra.mxu0 0.0
    %2498 = vmatprep.subr.mxu0 0.0
    %2499 = vmatpush2.msra.mxu0 0.0
    %2500 = vmatprep.subr.mxu0 0.0
    %2501 = vmatpush2.msra.mxu0 0.0
    %2502 = vmatprep.subr.mxu0 0.0
    %2503 = vmatpush2.msra.mxu0 0.0
    %2504 = vmatprep.subr.mxu0 0.0
    %2505 = vmatpush2.msra.mxu0 0.0
    %2506 = vmatprep.subr.mxu0 0.0
    %2507 = vmatpush2.msra.mxu0 0.0
    %2508 = vmatprep.subr.mxu0 0.0
    %2509 = vmatpush2.msra.mxu0 0.0
    %2510 = vmatprep.subr.mxu0 0.0
    %2511 = vmatpush2.msra.mxu0 0.0
    %2512 = vmatprep.subr.mxu0 0.0
    %2513 = vmatpush2.msra.mxu0 0.0
    %2514 = vmatprep.subr.mxu0 0.0
    %2515 = vmatpush2.msra.mxu0 0.0
    %2516 = vmatprep.mubr.f32.mxu0 0.0
    %2517 = vmatmul.mubr.f32.gmra.mxu0 %v2110
    %v2518 = vpop.f32.mrf.mxu0
    %v2519 = vadd.f32 %v2377, %v2518
    %v2520 = vpop.f32.mrf.mxu0
    %v2521 = vadd.f32 %v2379, %v2520
    %2522 = vdwg.mxu0
    %v2523 = vld [vmem:[#allocation12] sm:$0xf]
    %v2525 = vlaneseq
    %v2526 = vshrl.u32 %v2525, 7
    %v2527 = vsub.s32 0, %v2526
    %v2528 = vrot.slane %v2523, %v2527
    %v2529 = vlaneseq
    %v2530 = vshrl.u32 %v2529, 7
    %v2531 = vsub.s32 1, %v2530
    %v2532 = vrot.slane %v2523, %v2531
    %v2533 = vlaneseq
    %v2534 = vshrl.u32 %v2533, 7
    %v2535 = vsub.s32 2, %v2534
    %v2536 = vrot.slane %v2523, %v2535
    %v2537 = vlaneseq
    %v2538 = vshrl.u32 %v2537, 7
    %v2539 = vsub.s32 3, %v2538
    %v2540 = vrot.slane %v2523, %v2539
    %v2545 = vadd.f32 %v2448, %v2528
    %v2546 = vadd.f32 %v2450, %v2532
    %v2547 = vadd.f32 %v2519, %v2536
    %v2548 = vadd.f32 %v2521, %v2540
    %v2549 = vtanh.pop %v2545
    %v2550 = vtanh.pop %v2546
    %v2551 = vtanh.pop %v2547
    %v2552 = vtanh.pop %v2548
    %v2553 = vadd.f32 %v2549, 1.0
    %v2554 = vmul.f32 %v2553, 0.5
    %v2555 = vadd.f32 %v2550, 1.0
    %v2556 = vmul.f32 %v2555, 0.5
    %v2557 = vadd.f32 %v2552, 1.0
    %v2558 = vmul.f32 %v2557, 0.5
    %v2559 = vmul.f32 %v2556, %v1878
    %v2560 = vmul.f32 %v2554, %v2551
    %v2561 = vadd.f32 %v2559, %v2560
    %v2562 = vtanh.pop %v2561
    %v2563 = vmul.f32 %v2558, %v2562
    %2564 = vst [vmem:[#allocation17 + $0x8] sm:$0xff] %v2563
    %v2565 = vld [vmem:[#allocation2 + $0x40] sm:$0xff]
    %v2566 = vld [vmem:[#allocation2 + $0x48] sm:$0xff]
    %v2567 = vld [vmem:[#allocation2 + $0x50] sm:$0xff]
    %v2568 = vld [vmem:[#allocation2 + $0x58] sm:$0xff]
    %v2569 = vld [vmem:[#allocation3] sm:$0xff]
    %v2570 = vld [vmem:[#allocation3 + $0x8] sm:$0xff]
    %v2571 = vld [vmem:[#allocation3 + $0x10] sm:$0xff]
    %v2572 = vld [vmem:[#allocation3 + $0x18] sm:$0xff]
    %v2573 = vld [vmem:[#allocation3 + $0x20] sm:$0xff]
    %v2574 = vld [vmem:[#allocation3 + $0x28] sm:$0xff]
    %v2575 = vld [vmem:[#allocation3 + $0x30] sm:$0xff]
    %v2576 = vld [vmem:[#allocation3 + $0x38] sm:$0xff]
    %v2577 = vld [vmem:[#allocation3 + $0x40] sm:$0xff]
    %v2578 = vld [vmem:[#allocation3 + $0x48] sm:$0xff]
    %v2579 = vld [vmem:[#allocation3 + $0x50] sm:$0xff]
    %v2580 = vld [vmem:[#allocation3 + $0x58] sm:$0xff]
    %v2581 = vld [vmem:[#allocation3 + $0x60] sm:$0xff]
    %v2582 = vld [vmem:[#allocation3 + $0x68] sm:$0xff]
    %v2583 = vld [vmem:[#allocation3 + $0x70] sm:$0xff]
    %v2584 = vld [vmem:[#allocation3 + $0x78] sm:$0xff]
    %v2585 = vld [vmem:[#allocation3 + $0x80] sm:$0xff]
    %v2586 = vld [vmem:[#allocation3 + $0x88] sm:$0xff]
    %v2587 = vld [vmem:[#allocation3 + $0x90] sm:$0xff]
    %v2588 = vld [vmem:[#allocation3 + $0x98] sm:$0xff]
    %v2589 = vld [vmem:[#allocation3 + $0xa0] sm:$0xff]
    %v2590 = vld [vmem:[#allocation3 + $0xa8] sm:$0xff]
    %v2591 = vld [vmem:[#allocation3 + $0xb0] sm:$0xff]
    %v2592 = vld [vmem:[#allocation3 + $0xb8] sm:$0xff]
    %v2593 = vld [vmem:[#allocation3 + $0xc0] sm:$0xff]
    %v2594 = vld [vmem:[#allocation3 + $0xc8] sm:$0xff]
    %v2595 = vld [vmem:[#allocation3 + $0xd0] sm:$0xff]
    %v2596 = vld [vmem:[#allocation3 + $0xd8] sm:$0xff]
    %v2597 = vld [vmem:[#allocation3 + $0xe0] sm:$0xff]
    %v2598 = vld [vmem:[#allocation3 + $0xe8] sm:$0xff]
    %v2599 = vld [vmem:[#allocation3 + $0xf0] sm:$0xff]
    %v2600 = vld [vmem:[#allocation3 + $0xf8] sm:$0xff]
    %v2601 = vld [vmem:[#allocation3 + $0x100] sm:$0xff]
    %v2602 = vld [vmem:[#allocation3 + $0x108] sm:$0xff]
    %v2603 = vld [vmem:[#allocation3 + $0x110] sm:$0xff]
    %v2604 = vld [vmem:[#allocation3 + $0x118] sm:$0xff]
    %v2605 = vld [vmem:[#allocation3 + $0x120] sm:$0xff]
    %v2606 = vld [vmem:[#allocation3 + $0x128] sm:$0xff]
    %v2607 = vld [vmem:[#allocation3 + $0x130] sm:$0xff]
    %v2608 = vld [vmem:[#allocation3 + $0x138] sm:$0xff]
    %v2609 = vld [vmem:[#allocation3 + $0x140] sm:$0xff]
    %v2610 = vld [vmem:[#allocation3 + $0x148] sm:$0xff]
    %v2611 = vld [vmem:[#allocation3 + $0x150] sm:$0xff]
    %v2612 = vld [vmem:[#allocation3 + $0x158] sm:$0xff]
    %v2613 = vld [vmem:[#allocation3 + $0x160] sm:$0xff]
    %v2614 = vld [vmem:[#allocation3 + $0x168] sm:$0xff]
    %v2615 = vld [vmem:[#allocation3 + $0x170] sm:$0xff]
    %v2616 = vld [vmem:[#allocation3 + $0x178] sm:$0xff]
    %v2617 = vld [vmem:[#allocation3 + $0x180] sm:$0xff]
    %v2618 = vld [vmem:[#allocation3 + $0x188] sm:$0xff]
    %v2619 = vld [vmem:[#allocation3 + $0x190] sm:$0xff]
    %v2620 = vld [vmem:[#allocation3 + $0x198] sm:$0xff]
    %v2621 = vld [vmem:[#allocation3 + $0x1a0] sm:$0xff]
    %v2622 = vld [vmem:[#allocation3 + $0x1a8] sm:$0xff]
    %v2623 = vld [vmem:[#allocation3 + $0x1b0] sm:$0xff]
    %v2624 = vld [vmem:[#allocation3 + $0x1b8] sm:$0xff]
    %v2625 = vld [vmem:[#allocation3 + $0x1c0] sm:$0xff]
    %v2626 = vld [vmem:[#allocation3 + $0x1c8] sm:$0xff]
    %v2627 = vld [vmem:[#allocation3 + $0x1d0] sm:$0xff]
    %v2628 = vld [vmem:[#allocation3 + $0x1d8] sm:$0xff]
    %v2629 = vld [vmem:[#allocation3 + $0x1e0] sm:$0xff]
    %v2630 = vld [vmem:[#allocation3 + $0x1e8] sm:$0xff]
    %v2631 = vld [vmem:[#allocation3 + $0x1f0] sm:$0xff]
    %v2632 = vld [vmem:[#allocation3 + $0x1f8] sm:$0xff]
    %2633 = vmatprep.subr.mxu0 %v2630
    %2634 = vmatpush1.msra.mxu0 %v2629
    %2635 = vmatprep.subr.mxu0 %v2626
    %2636 = vmatpush1.msra.mxu0 %v2625
    %2637 = vmatprep.subr.mxu0 %v2622
    %2638 = vmatpush1.msra.mxu0 %v2621
    %2639 = vmatprep.subr.mxu0 %v2618
    %2640 = vmatpush1.msra.mxu0 %v2617
    %2641 = vmatprep.subr.mxu0 %v2614
    %2642 = vmatpush1.msra.mxu0 %v2613
    %2643 = vmatprep.subr.mxu0 %v2610
    %2644 = vmatpush1.msra.mxu0 %v2609
    %2645 = vmatprep.subr.mxu0 %v2606
    %2646 = vmatpush1.msra.mxu0 %v2605
    %2647 = vmatprep.subr.mxu0 %v2602
    %2648 = vmatpush1.msra.mxu0 %v2601
    %2649 = vmatprep.subr.mxu0 %v2598
    %2650 = vmatpush1.msra.mxu0 %v2597
    %2651 = vmatprep.subr.mxu0 %v2594
    %2652 = vmatpush1.msra.mxu0 %v2593
    %2653 = vmatprep.subr.mxu0 %v2590
    %2654 = vmatpush1.msra.mxu0 %v2589
    %2655 = vmatprep.subr.mxu0 %v2586
    %2656 = vmatpush1.msra.mxu0 %v2585
    %2657 = vmatprep.subr.mxu0 %v2582
    %2658 = vmatpush1.msra.mxu0 %v2581
    %2659 = vmatprep.subr.mxu0 %v2578
    %2660 = vmatpush1.msra.mxu0 %v2577
    %2661 = vmatprep.subr.mxu0 %v2574
    %2662 = vmatpush1.msra.mxu0 %v2573
    %2663 = vmatprep.subr.mxu0 %v2570
    %2664 = vmatpush1.msra.mxu0 %v2569
    %2665 = vmatprep.subr.mxu0 0.0
    %2666 = vmatpush2.msra.mxu0 0.0
    %2667 = vmatprep.subr.mxu0 0.0
    %2668 = vmatpush2.msra.mxu0 0.0
    %2669 = vmatprep.subr.mxu0 0.0
    %2670 = vmatpush2.msra.mxu0 0.0
    %2671 = vmatprep.subr.mxu0 0.0
    %2672 = vmatpush2.msra.mxu0 0.0
    %2673 = vmatprep.subr.mxu0 0.0
    %2674 = vmatpush2.msra.mxu0 0.0
    %2675 = vmatprep.subr.mxu0 0.0
    %2676 = vmatpush2.msra.mxu0 0.0
    %2677 = vmatprep.subr.mxu0 0.0
    %2678 = vmatpush2.msra.mxu0 0.0
    %2679 = vmatprep.subr.mxu0 0.0
    %2680 = vmatpush2.msra.mxu0 0.0
    %2681 = vmatprep.subr.mxu0 0.0
    %2682 = vmatpush2.msra.mxu0 0.0
    %2683 = vmatprep.subr.mxu0 0.0
    %2684 = vmatpush2.msra.mxu0 0.0
    %2685 = vmatprep.subr.mxu0 0.0
    %2686 = vmatpush2.msra.mxu0 0.0
    %2687 = vmatprep.subr.mxu0 0.0
    %2688 = vmatpush2.msra.mxu0 0.0
    %2689 = vmatprep.subr.mxu0 0.0
    %2690 = vmatpush2.msra.mxu0 0.0
    %2691 = vmatprep.subr.mxu0 0.0
    %2692 = vmatpush2.msra.mxu0 0.0
    %2693 = vmatprep.subr.mxu0 0.0
    %2694 = vmatpush2.msra.mxu0 0.0
    %2695 = vmatprep.subr.mxu0 0.0
    %2696 = vmatpush2.msra.mxu0 0.0
    %2697 = vmatprep.mubr.f32.mxu0 0.0
    %2698 = vmatmul.mubr.f32.gmra.mxu0 %v2110
    %v2699 = vpop.f32.mrf.mxu0
    %v2700 = vadd.f32 0.0, %v2699
    %v2701 = vpop.f32.mrf.mxu0
    %v2702 = vadd.f32 0.0, %v2701
    %2703 = vdwg.mxu0
    %2704 = vmatprep.subr.mxu0 %v2632
    %2705 = vmatpush1.msra.mxu0 %v2631
    %2706 = vmatprep.subr.mxu0 %v2628
    %2707 = vmatpush1.msra.mxu0 %v2627
    %2708 = vmatprep.subr.mxu0 %v2624
    %2709 = vmatpush1.msra.mxu0 %v2623
    %2710 = vmatprep.subr.mxu0 %v2620
    %2711 = vmatpush1.msra.mxu0 %v2619
    %2712 = vmatprep.subr.mxu0 %v2616
    %2713 = vmatpush1.msra.mxu0 %v2615
    %2714 = vmatprep.subr.mxu0 %v2612
    %2715 = vmatpush1.msra.mxu0 %v2611
    %2716 = vmatprep.subr.mxu0 %v2608
    %2717 = vmatpush1.msra.mxu0 %v2607
    %2718 = vmatprep.subr.mxu0 %v2604
    %2719 = vmatpush1.msra.mxu0 %v2603
    %2720 = vmatprep.subr.mxu0 %v2600
    %2721 = vmatpush1.msra.mxu0 %v2599
    %2722 = vmatprep.subr.mxu0 %v2596
    %2723 = vmatpush1.msra.mxu0 %v2595
    %2724 = vmatprep.subr.mxu0 %v2592
    %2725 = vmatpush1.msra.mxu0 %v2591
    %2726 = vmatprep.subr.mxu0 %v2588
    %2727 = vmatpush1.msra.mxu0 %v2587
    %2728 = vmatprep.subr.mxu0 %v2584
    %2729 = vmatpush1.msra.mxu0 %v2583
    %2730 = vmatprep.subr.mxu0 %v2580
    %2731 = vmatpush1.msra.mxu0 %v2579
    %2732 = vmatprep.subr.mxu0 %v2576
    %2733 = vmatpush1.msra.mxu0 %v2575
    %2734 = vmatprep.subr.mxu0 %v2572
    %2735 = vmatpush1.msra.mxu0 %v2571
    %2736 = vmatprep.subr.mxu0 0.0
    %2737 = vmatpush2.msra.mxu0 0.0
    %2738 = vmatprep.subr.mxu0 0.0
    %2739 = vmatpush2.msra.mxu0 0.0
    %2740 = vmatprep.subr.mxu0 0.0
    %2741 = vmatpush2.msra.mxu0 0.0
    %2742 = vmatprep.subr.mxu0 0.0
    %2743 = vmatpush2.msra.mxu0 0.0
    %2744 = vmatprep.subr.mxu0 0.0
    %2745 = vmatpush2.msra.mxu0 0.0
    %2746 = vmatprep.subr.mxu0 0.0
    %2747 = vmatpush2.msra.mxu0 0.0
    %2748 = vmatprep.subr.mxu0 0.0
    %2749 = vmatpush2.msra.mxu0 0.0
    %2750 = vmatprep.subr.mxu0 0.0
    %2751 = vmatpush2.msra.mxu0 0.0
    %2752 = vmatprep.subr.mxu0 0.0
    %2753 = vmatpush2.msra.mxu0 0.0
    %2754 = vmatprep.subr.mxu0 0.0
    %2755 = vmatpush2.msra.mxu0 0.0
    %2756 = vmatprep.subr.mxu0 0.0
    %2757 = vmatpush2.msra.mxu0 0.0
    %2758 = vmatprep.subr.mxu0 0.0
    %2759 = vmatpush2.msra.mxu0 0.0
    %2760 = vmatprep.subr.mxu0 0.0
    %2761 = vmatpush2.msra.mxu0 0.0
    %2762 = vmatprep.subr.mxu0 0.0
    %2763 = vmatpush2.msra.mxu0 0.0
    %2764 = vmatprep.subr.mxu0 0.0
    %2765 = vmatpush2.msra.mxu0 0.0
    %2766 = vmatprep.subr.mxu0 0.0
    %2767 = vmatpush2.msra.mxu0 0.0
    %2768 = vmatprep.mubr.f32.mxu0 0.0
    %2769 = vmatmul.mubr.f32.gmra.mxu0 %v2110
    %v2770 = vpop.f32.mrf.mxu0
    %v2771 = vadd.f32 0.0, %v2770
    %v2772 = vpop.f32.mrf.mxu0
    %v2773 = vadd.f32 0.0, %v2772
    %2774 = vdwg.mxu0
    %v2775 = vadd.f32 %v2565, %v2700
    %v2776 = vadd.f32 %v2566, %v2702
    %v2777 = vadd.f32 %v2567, %v2771
    %v2778 = vadd.f32 %v2568, %v2773
    %v2779 = vtanh.pop %v2775
    %v2780 = vtanh.pop %v2776
    %v2781 = vtanh.pop %v2777
    %v2782 = vtanh.pop %v2778
    %v2783 = vadd.f32 %v2779, 1.0
    %v2784 = vmul.f32 %v2783, 0.5
    %v2785 = vadd.f32 %v2780, 1.0
    %v2786 = vmul.f32 %v2785, 0.5
    %v2787 = vadd.f32 %v2782, 1.0
    %v2788 = vmul.f32 %v2787, 0.5
    %v2789 = vmul.f32 %v2786, %v2108
    %v2790 = vmul.f32 %v2784, %v2781
    %v2791 = vadd.f32 %v2789, %v2790
    %v2792 = vtanh.pop %v2791
    %v2793 = vmul.f32 %v2788, %v2792
    %v2794 = vld [vmem:[#allocation4] sm:$0xff]
    %v2795 = vld [vmem:[#allocation4 + $0x8] sm:$0xff]
    %v2796 = vld [vmem:[#allocation4 + $0x10] sm:$0xff]
    %v2797 = vld [vmem:[#allocation4 + $0x18] sm:$0xff]
    %v2798 = vld [vmem:[#allocation4 + $0x20] sm:$0xff]
    %v2799 = vld [vmem:[#allocation4 + $0x28] sm:$0xff]
    %v2800 = vld [vmem:[#allocation4 + $0x30] sm:$0xff]
    %v2801 = vld [vmem:[#allocation4 + $0x38] sm:$0xff]
    %v2802 = vld [vmem:[#allocation4 + $0x40] sm:$0xff]
    %v2803 = vld [vmem:[#allocation4 + $0x48] sm:$0xff]
    %v2804 = vld [vmem:[#allocation4 + $0x50] sm:$0xff]
    %v2805 = vld [vmem:[#allocation4 + $0x58] sm:$0xff]
    %v2806 = vld [vmem:[#allocation4 + $0x60] sm:$0xff]
    %v2807 = vld [vmem:[#allocation4 + $0x68] sm:$0xff]
    %v2808 = vld [vmem:[#allocation4 + $0x70] sm:$0xff]
    %v2809 = vld [vmem:[#allocation4 + $0x78] sm:$0xff]
    %v2810 = vld [vmem:[#allocation4 + $0x80] sm:$0xff]
    %v2811 = vld [vmem:[#allocation4 + $0x88] sm:$0xff]
    %v2812 = vld [vmem:[#allocation4 + $0x90] sm:$0xff]
    %v2813 = vld [vmem:[#allocation4 + $0x98] sm:$0xff]
    %v2814 = vld [vmem:[#allocation4 + $0xa0] sm:$0xff]
    %v2815 = vld [vmem:[#allocation4 + $0xa8] sm:$0xff]
    %v2816 = vld [vmem:[#allocation4 + $0xb0] sm:$0xff]
    %v2817 = vld [vmem:[#allocation4 + $0xb8] sm:$0xff]
    %v2818 = vld [vmem:[#allocation4 + $0xc0] sm:$0xff]
    %v2819 = vld [vmem:[#allocation4 + $0xc8] sm:$0xff]
    %v2820 = vld [vmem:[#allocation4 + $0xd0] sm:$0xff]
    %v2821 = vld [vmem:[#allocation4 + $0xd8] sm:$0xff]
    %v2822 = vld [vmem:[#allocation4 + $0xe0] sm:$0xff]
    %v2823 = vld [vmem:[#allocation4 + $0xe8] sm:$0xff]
    %v2824 = vld [vmem:[#allocation4 + $0xf0] sm:$0xff]
    %v2825 = vld [vmem:[#allocation4 + $0xf8] sm:$0xff]
    %v2826 = vld [vmem:[#allocation4 + $0x100] sm:$0xff]
    %v2827 = vld [vmem:[#allocation4 + $0x108] sm:$0xff]
    %v2828 = vld [vmem:[#allocation4 + $0x110] sm:$0xff]
    %v2829 = vld [vmem:[#allocation4 + $0x118] sm:$0xff]
    %v2830 = vld [vmem:[#allocation4 + $0x120] sm:$0xff]
    %v2831 = vld [vmem:[#allocation4 + $0x128] sm:$0xff]
    %v2832 = vld [vmem:[#allocation4 + $0x130] sm:$0xff]
    %v2833 = vld [vmem:[#allocation4 + $0x138] sm:$0xff]
    %v2834 = vld [vmem:[#allocation4 + $0x140] sm:$0xff]
    %v2835 = vld [vmem:[#allocation4 + $0x148] sm:$0xff]
    %v2836 = vld [vmem:[#allocation4 + $0x150] sm:$0xff]
    %v2837 = vld [vmem:[#allocation4 + $0x158] sm:$0xff]
    %v2838 = vld [vmem:[#allocation4 + $0x160] sm:$0xff]
    %v2839 = vld [vmem:[#allocation4 + $0x168] sm:$0xff]
    %v2840 = vld [vmem:[#allocation4 + $0x170] sm:$0xff]
    %v2841 = vld [vmem:[#allocation4 + $0x178] sm:$0xff]
    %v2842 = vld [vmem:[#allocation4 + $0x180] sm:$0xff]
    %v2843 = vld [vmem:[#allocation4 + $0x188] sm:$0xff]
    %v2844 = vld [vmem:[#allocation4 + $0x190] sm:$0xff]
    %v2845 = vld [vmem:[#allocation4 + $0x198] sm:$0xff]
    %v2846 = vld [vmem:[#allocation4 + $0x1a0] sm:$0xff]
    %v2847 = vld [vmem:[#allocation4 + $0x1a8] sm:$0xff]
    %v2848 = vld [vmem:[#allocation4 + $0x1b0] sm:$0xff]
    %v2849 = vld [vmem:[#allocation4 + $0x1b8] sm:$0xff]
    %v2850 = vld [vmem:[#allocation4 + $0x1c0] sm:$0xff]
    %v2851 = vld [vmem:[#allocation4 + $0x1c8] sm:$0xff]
    %v2852 = vld [vmem:[#allocation4 + $0x1d0] sm:$0xff]
    %v2853 = vld [vmem:[#allocation4 + $0x1d8] sm:$0xff]
    %v2854 = vld [vmem:[#allocation4 + $0x1e0] sm:$0xff]
    %v2855 = vld [vmem:[#allocation4 + $0x1e8] sm:$0xff]
    %v2856 = vld [vmem:[#allocation4 + $0x1f0] sm:$0xff]
    %v2857 = vld [vmem:[#allocation4 + $0x1f8] sm:$0xff]
    %v2858 = vld [vmem:[#allocation5] sm:$0xff]
    %v2859 = vld [vmem:[#allocation5 + $0x8] sm:$0xff]
    %v2860 = vld [vmem:[#allocation5 + $0x10] sm:$0xff]
    %v2861 = vld [vmem:[#allocation5 + $0x18] sm:$0xff]
    %v2862 = vld [vmem:[#allocation5 + $0x20] sm:$0xff]
    %v2863 = vld [vmem:[#allocation5 + $0x28] sm:$0xff]
    %v2864 = vld [vmem:[#allocation5 + $0x30] sm:$0xff]
    %v2865 = vld [vmem:[#allocation5 + $0x38] sm:$0xff]
    %v2866 = vld [vmem:[#allocation5 + $0x40] sm:$0xff]
    %v2867 = vld [vmem:[#allocation5 + $0x48] sm:$0xff]
    %v2868 = vld [vmem:[#allocation5 + $0x50] sm:$0xff]
    %v2869 = vld [vmem:[#allocation5 + $0x58] sm:$0xff]
    %v2870 = vld [vmem:[#allocation5 + $0x60] sm:$0xff]
    %v2871 = vld [vmem:[#allocation5 + $0x68] sm:$0xff]
    %v2872 = vld [vmem:[#allocation5 + $0x70] sm:$0xff]
    %v2873 = vld [vmem:[#allocation5 + $0x78] sm:$0xff]
    %v2874 = vld [vmem:[#allocation5 + $0x80] sm:$0xff]
    %v2875 = vld [vmem:[#allocation5 + $0x88] sm:$0xff]
    %v2876 = vld [vmem:[#allocation5 + $0x90] sm:$0xff]
    %v2877 = vld [vmem:[#allocation5 + $0x98] sm:$0xff]
    %v2878 = vld [vmem:[#allocation5 + $0xa0] sm:$0xff]
    %v2879 = vld [vmem:[#allocation5 + $0xa8] sm:$0xff]
    %v2880 = vld [vmem:[#allocation5 + $0xb0] sm:$0xff]
    %v2881 = vld [vmem:[#allocation5 + $0xb8] sm:$0xff]
    %v2882 = vld [vmem:[#allocation5 + $0xc0] sm:$0xff]
    %v2883 = vld [vmem:[#allocation5 + $0xc8] sm:$0xff]
    %v2884 = vld [vmem:[#allocation5 + $0xd0] sm:$0xff]
    %v2885 = vld [vmem:[#allocation5 + $0xd8] sm:$0xff]
    %v2886 = vld [vmem:[#allocation5 + $0xe0] sm:$0xff]
    %v2887 = vld [vmem:[#allocation5 + $0xe8] sm:$0xff]
    %v2888 = vld [vmem:[#allocation5 + $0xf0] sm:$0xff]
    %v2889 = vld [vmem:[#allocation5 + $0xf8] sm:$0xff]
    %v2890 = vld [vmem:[#allocation5 + $0x100] sm:$0xff]
    %v2891 = vld [vmem:[#allocation5 + $0x108] sm:$0xff]
    %v2892 = vld [vmem:[#allocation5 + $0x110] sm:$0xff]
    %v2893 = vld [vmem:[#allocation5 + $0x118] sm:$0xff]
    %v2894 = vld [vmem:[#allocation5 + $0x120] sm:$0xff]
    %v2895 = vld [vmem:[#allocation5 + $0x128] sm:$0xff]
    %v2896 = vld [vmem:[#allocation5 + $0x130] sm:$0xff]
    %v2897 = vld [vmem:[#allocation5 + $0x138] sm:$0xff]
    %v2898 = vld [vmem:[#allocation5 + $0x140] sm:$0xff]
    %v2899 = vld [vmem:[#allocation5 + $0x148] sm:$0xff]
    %v2900 = vld [vmem:[#allocation5 + $0x150] sm:$0xff]
    %v2901 = vld [vmem:[#allocation5 + $0x158] sm:$0xff]
    %v2902 = vld [vmem:[#allocation5 + $0x160] sm:$0xff]
    %v2903 = vld [vmem:[#allocation5 + $0x168] sm:$0xff]
    %v2904 = vld [vmem:[#allocation5 + $0x170] sm:$0xff]
    %v2905 = vld [vmem:[#allocation5 + $0x178] sm:$0xff]
    %v2906 = vld [vmem:[#allocation5 + $0x180] sm:$0xff]
    %v2907 = vld [vmem:[#allocation5 + $0x188] sm:$0xff]
    %v2908 = vld [vmem:[#allocation5 + $0x190] sm:$0xff]
    %v2909 = vld [vmem:[#allocation5 + $0x198] sm:$0xff]
    %v2910 = vld [vmem:[#allocation5 + $0x1a0] sm:$0xff]
    %v2911 = vld [vmem:[#allocation5 + $0x1a8] sm:$0xff]
    %v2912 = vld [vmem:[#allocation5 + $0x1b0] sm:$0xff]
    %v2913 = vld [vmem:[#allocation5 + $0x1b8] sm:$0xff]
    %v2914 = vld [vmem:[#allocation5 + $0x1c0] sm:$0xff]
    %v2915 = vld [vmem:[#allocation5 + $0x1c8] sm:$0xff]
    %v2916 = vld [vmem:[#allocation5 + $0x1d0] sm:$0xff]
    %v2917 = vld [vmem:[#allocation5 + $0x1d8] sm:$0xff]
    %v2918 = vld [vmem:[#allocation5 + $0x1e0] sm:$0xff]
    %v2919 = vld [vmem:[#allocation5 + $0x1e8] sm:$0xff]
    %v2920 = vld [vmem:[#allocation5 + $0x1f0] sm:$0xff]
    %v2921 = vld [vmem:[#allocation5 + $0x1f8] sm:$0xff]
    %2922 = vmatprep.subr.mxu0 %v2919
    %2923 = vmatpush1.msra.mxu0 %v2918
    %2924 = vmatprep.subr.mxu0 %v2915
    %2925 = vmatpush1.msra.mxu0 %v2914
    %2926 = vmatprep.subr.mxu0 %v2911
    %2927 = vmatpush1.msra.mxu0 %v2910
    %2928 = vmatprep.subr.mxu0 %v2907
    %2929 = vmatpush1.msra.mxu0 %v2906
    %2930 = vmatprep.subr.mxu0 %v2903
    %2931 = vmatpush1.msra.mxu0 %v2902
    %2932 = vmatprep.subr.mxu0 %v2899
    %2933 = vmatpush1.msra.mxu0 %v2898
    %2934 = vmatprep.subr.mxu0 %v2895
    %2935 = vmatpush1.msra.mxu0 %v2894
    %2936 = vmatprep.subr.mxu0 %v2891
    %2937 = vmatpush1.msra.mxu0 %v2890
    %2938 = vmatprep.subr.mxu0 %v2887
    %2939 = vmatpush1.msra.mxu0 %v2886
    %2940 = vmatprep.subr.mxu0 %v2883
    %2941 = vmatpush1.msra.mxu0 %v2882
    %2942 = vmatprep.subr.mxu0 %v2879
    %2943 = vmatpush1.msra.mxu0 %v2878
    %2944 = vmatprep.subr.mxu0 %v2875
    %2945 = vmatpush1.msra.mxu0 %v2874
    %2946 = vmatprep.subr.mxu0 %v2871
    %2947 = vmatpush1.msra.mxu0 %v2870
    %2948 = vmatprep.subr.mxu0 %v2867
    %2949 = vmatpush1.msra.mxu0 %v2866
    %2950 = vmatprep.subr.mxu0 %v2863
    %2951 = vmatpush1.msra.mxu0 %v2862
    %2952 = vmatprep.subr.mxu0 %v2859
    %2953 = vmatpush1.msra.mxu0 %v2858
    %2954 = vmatprep.subr.mxu0 0.0
    %2955 = vmatpush2.msra.mxu0 0.0
    %2956 = vmatprep.subr.mxu0 0.0
    %2957 = vmatpush2.msra.mxu0 0.0
    %2958 = vmatprep.subr.mxu0 0.0
    %2959 = vmatpush2.msra.mxu0 0.0
    %2960 = vmatprep.subr.mxu0 0.0
    %2961 = vmatpush2.msra.mxu0 0.0
    %2962 = vmatprep.subr.mxu0 0.0
    %2963 = vmatpush2.msra.mxu0 0.0
    %2964 = vmatprep.subr.mxu0 0.0
    %2965 = vmatpush2.msra.mxu0 0.0
    %2966 = vmatprep.subr.mxu0 0.0
    %2967 = vmatpush2.msra.mxu0 0.0
    %2968 = vmatprep.subr.mxu0 0.0
    %2969 = vmatpush2.msra.mxu0 0.0
    %2970 = vmatprep.subr.mxu0 0.0
    %2971 = vmatpush2.msra.mxu0 0.0
    %2972 = vmatprep.subr.mxu0 0.0
    %2973 = vmatpush2.msra.mxu0 0.0
    %2974 = vmatprep.subr.mxu0 0.0
    %2975 = vmatpush2.msra.mxu0 0.0
    %2976 = vmatprep.subr.mxu0 0.0
    %2977 = vmatpush2.msra.mxu0 0.0
    %2978 = vmatprep.subr.mxu0 0.0
    %2979 = vmatpush2.msra.mxu0 0.0
    %2980 = vmatprep.subr.mxu0 0.0
    %2981 = vmatpush2.msra.mxu0 0.0
    %2982 = vmatprep.subr.mxu0 0.0
    %2983 = vmatpush2.msra.mxu0 0.0
    %2984 = vmatprep.subr.mxu0 0.0
    %2985 = vmatpush2.msra.mxu0 0.0
    %2986 = vmatprep.mubr.f32.mxu0 0.0
    %2987 = vmatmul.mubr.f32.gmra.mxu0 %v2563
    %v2988 = vpop.f32.mrf.mxu0
    %v2989 = vadd.f32 0.0, %v2988
    %v2990 = vpop.f32.mrf.mxu0
    %v2991 = vadd.f32 0.0, %v2990
    %2992 = vdwg.mxu0
    %2993 = vmatprep.subr.mxu0 %v2921
    %2994 = vmatpush1.msra.mxu0 %v2920
    %2995 = vmatprep.subr.mxu0 %v2917
    %2996 = vmatpush1.msra.mxu0 %v2916
    %2997 = vmatprep.subr.mxu0 %v2913
    %2998 = vmatpush1.msra.mxu0 %v2912
    %2999 = vmatprep.subr.mxu0 %v2909
    %3000 = vmatpush1.msra.mxu0 %v2908
    %3001 = vmatprep.subr.mxu0 %v2905
    %3002 = vmatpush1.msra.mxu0 %v2904
    %3003 = vmatprep.subr.mxu0 %v2901
    %3004 = vmatpush1.msra.mxu0 %v2900
    %3005 = vmatprep.subr.mxu0 %v2897
    %3006 = vmatpush1.msra.mxu0 %v2896
    %3007 = vmatprep.subr.mxu0 %v2893
    %3008 = vmatpush1.msra.mxu0 %v2892
    %3009 = vmatprep.subr.mxu0 %v2889
    %3010 = vmatpush1.msra.mxu0 %v2888
    %3011 = vmatprep.subr.mxu0 %v2885
    %3012 = vmatpush1.msra.mxu0 %v2884
    %3013 = vmatprep.subr.mxu0 %v2881
    %3014 = vmatpush1.msra.mxu0 %v2880
    %3015 = vmatprep.subr.mxu0 %v2877
    %3016 = vmatpush1.msra.mxu0 %v2876
    %3017 = vmatprep.subr.mxu0 %v2873
    %3018 = vmatpush1.msra.mxu0 %v2872
    %3019 = vmatprep.subr.mxu0 %v2869
    %3020 = vmatpush1.msra.mxu0 %v2868
    %3021 = vmatprep.subr.mxu0 %v2865
    %3022 = vmatpush1.msra.mxu0 %v2864
    %3023 = vmatprep.subr.mxu0 %v2861
    %3024 = vmatpush1.msra.mxu0 %v2860
    %3025 = vmatprep.subr.mxu0 0.0
    %3026 = vmatpush2.msra.mxu0 0.0
    %3027 = vmatprep.subr.mxu0 0.0
    %3028 = vmatpush2.msra.mxu0 0.0
    %3029 = vmatprep.subr.mxu0 0.0
    %3030 = vmatpush2.msra.mxu0 0.0
    %3031 = vmatprep.subr.mxu0 0.0
    %3032 = vmatpush2.msra.mxu0 0.0
    %3033 = vmatprep.subr.mxu0 0.0
    %3034 = vmatpush2.msra.mxu0 0.0
    %3035 = vmatprep.subr.mxu0 0.0
    %3036 = vmatpush2.msra.mxu0 0.0
    %3037 = vmatprep.subr.mxu0 0.0
    %3038 = vmatpush2.msra.mxu0 0.0
    %3039 = vmatprep.subr.mxu0 0.0
    %3040 = vmatpush2.msra.mxu0 0.0
    %3041 = vmatprep.subr.mxu0 0.0
    %3042 = vmatpush2.msra.mxu0 0.0
    %3043 = vmatprep.subr.mxu0 0.0
    %3044 = vmatpush2.msra.mxu0 0.0
    %3045 = vmatprep.subr.mxu0 0.0
    %3046 = vmatpush2.msra.mxu0 0.0
    %3047 = vmatprep.subr.mxu0 0.0
    %3048 = vmatpush2.msra.mxu0 0.0
    %3049 = vmatprep.subr.mxu0 0.0
    %3050 = vmatpush2.msra.mxu0 0.0
    %3051 = vmatprep.subr.mxu0 0.0
    %3052 = vmatpush2.msra.mxu0 0.0
    %3053 = vmatprep.subr.mxu0 0.0
    %3054 = vmatpush2.msra.mxu0 0.0
    %3055 = vmatprep.subr.mxu0 0.0
    %3056 = vmatpush2.msra.mxu0 0.0
    %3057 = vmatprep.mubr.f32.mxu0 0.0
    %3058 = vmatmul.mubr.f32.gmra.mxu0 %v2563
    %v3059 = vpop.f32.mrf.mxu0
    %v3060 = vadd.f32 0.0, %v3059
    %v3061 = vpop.f32.mrf.mxu0
    %v3062 = vadd.f32 0.0, %v3061
    %3063 = vdwg.mxu0
    %3064 = vmatprep.subr.mxu0 %v2855
    %3065 = vmatpush1.msra.mxu0 %v2854
    %3066 = vmatprep.subr.mxu0 %v2851
    %3067 = vmatpush1.msra.mxu0 %v2850
    %3068 = vmatprep.subr.mxu0 %v2847
    %3069 = vmatpush1.msra.mxu0 %v2846
    %3070 = vmatprep.subr.mxu0 %v2843
    %3071 = vmatpush1.msra.mxu0 %v2842
    %3072 = vmatprep.subr.mxu0 %v2839
    %3073 = vmatpush1.msra.mxu0 %v2838
    %3074 = vmatprep.subr.mxu0 %v2835
    %3075 = vmatpush1.msra.mxu0 %v2834
    %3076 = vmatprep.subr.mxu0 %v2831
    %3077 = vmatpush1.msra.mxu0 %v2830
    %3078 = vmatprep.subr.mxu0 %v2827
    %3079 = vmatpush1.msra.mxu0 %v2826
    %3080 = vmatprep.subr.mxu0 %v2823
    %3081 = vmatpush1.msra.mxu0 %v2822
    %3082 = vmatprep.subr.mxu0 %v2819
    %3083 = vmatpush1.msra.mxu0 %v2818
    %3084 = vmatprep.subr.mxu0 %v2815
    %3085 = vmatpush1.msra.mxu0 %v2814
    %3086 = vmatprep.subr.mxu0 %v2811
    %3087 = vmatpush1.msra.mxu0 %v2810
    %3088 = vmatprep.subr.mxu0 %v2807
    %3089 = vmatpush1.msra.mxu0 %v2806
    %3090 = vmatprep.subr.mxu0 %v2803
    %3091 = vmatpush1.msra.mxu0 %v2802
    %3092 = vmatprep.subr.mxu0 %v2799
    %3093 = vmatpush1.msra.mxu0 %v2798
    %3094 = vmatprep.subr.mxu0 %v2795
    %3095 = vmatpush1.msra.mxu0 %v2794
    %3096 = vmatprep.subr.mxu0 0.0
    %3097 = vmatpush2.msra.mxu0 0.0
    %3098 = vmatprep.subr.mxu0 0.0
    %3099 = vmatpush2.msra.mxu0 0.0
    %3100 = vmatprep.subr.mxu0 0.0
    %3101 = vmatpush2.msra.mxu0 0.0
    %3102 = vmatprep.subr.mxu0 0.0
    %3103 = vmatpush2.msra.mxu0 0.0
    %3104 = vmatprep.subr.mxu0 0.0
    %3105 = vmatpush2.msra.mxu0 0.0
    %3106 = vmatprep.subr.mxu0 0.0
    %3107 = vmatpush2.msra.mxu0 0.0
    %3108 = vmatprep.subr.mxu0 0.0
    %3109 = vmatpush2.msra.mxu0 0.0
    %3110 = vmatprep.subr.mxu0 0.0
    %3111 = vmatpush2.msra.mxu0 0.0
    %3112 = vmatprep.subr.mxu0 0.0
    %3113 = vmatpush2.msra.mxu0 0.0
    %3114 = vmatprep.subr.mxu0 0.0
    %3115 = vmatpush2.msra.mxu0 0.0
    %3116 = vmatprep.subr.mxu0 0.0
    %3117 = vmatpush2.msra.mxu0 0.0
    %3118 = vmatprep.subr.mxu0 0.0
    %3119 = vmatpush2.msra.mxu0 0.0
    %3120 = vmatprep.subr.mxu0 0.0
    %3121 = vmatpush2.msra.mxu0 0.0
    %3122 = vmatprep.subr.mxu0 0.0
    %3123 = vmatpush2.msra.mxu0 0.0
    %3124 = vmatprep.subr.mxu0 0.0
    %3125 = vmatpush2.msra.mxu0 0.0
    %3126 = vmatprep.subr.mxu0 0.0
    %3127 = vmatpush2.msra.mxu0 0.0
    %3128 = vmatprep.mubr.f32.mxu0 0.0
    %3129 = vmatmul.mubr.f32.gmra.mxu0 %v2793
    %v3130 = vpop.f32.mrf.mxu0
    %v3131 = vadd.f32 %v2989, %v3130
    %v3132 = vpop.f32.mrf.mxu0
    %v3133 = vadd.f32 %v2991, %v3132
    %3134 = vdwg.mxu0
    %3135 = vmatprep.subr.mxu0 %v2857
    %3136 = vmatpush1.msra.mxu0 %v2856
    %3137 = vmatprep.subr.mxu0 %v2853
    %3138 = vmatpush1.msra.mxu0 %v2852
    %3139 = vmatprep.subr.mxu0 %v2849
    %3140 = vmatpush1.msra.mxu0 %v2848
    %3141 = vmatprep.subr.mxu0 %v2845
    %3142 = vmatpush1.msra.mxu0 %v2844
    %3143 = vmatprep.subr.mxu0 %v2841
    %3144 = vmatpush1.msra.mxu0 %v2840
    %3145 = vmatprep.subr.mxu0 %v2837
    %3146 = vmatpush1.msra.mxu0 %v2836
    %3147 = vmatprep.subr.mxu0 %v2833
    %3148 = vmatpush1.msra.mxu0 %v2832
    %3149 = vmatprep.subr.mxu0 %v2829
    %3150 = vmatpush1.msra.mxu0 %v2828
    %3151 = vmatprep.subr.mxu0 %v2825
    %3152 = vmatpush1.msra.mxu0 %v2824
    %3153 = vmatprep.subr.mxu0 %v2821
    %3154 = vmatpush1.msra.mxu0 %v2820
    %3155 = vmatprep.subr.mxu0 %v2817
    %3156 = vmatpush1.msra.mxu0 %v2816
    %3157 = vmatprep.subr.mxu0 %v2813
    %3158 = vmatpush1.msra.mxu0 %v2812
    %3159 = vmatprep.subr.mxu0 %v2809
    %3160 = vmatpush1.msra.mxu0 %v2808
    %3161 = vmatprep.subr.mxu0 %v2805
    %3162 = vmatpush1.msra.mxu0 %v2804
    %3163 = vmatprep.subr.mxu0 %v2801
    %3164 = vmatpush1.msra.mxu0 %v2800
    %3165 = vmatprep.subr.mxu0 %v2797
    %3166 = vmatpush1.msra.mxu0 %v2796
    %3167 = vmatprep.subr.mxu0 0.0
    %3168 = vmatpush2.msra.mxu0 0.0
    %3169 = vmatprep.subr.mxu0 0.0
    %3170 = vmatpush2.msra.mxu0 0.0
    %3171 = vmatprep.subr.mxu0 0.0
    %3172 = vmatpush2.msra.mxu0 0.0
    %3173 = vmatprep.subr.mxu0 0.0
    %3174 = vmatpush2.msra.mxu0 0.0
    %3175 = vmatprep.subr.mxu0 0.0
    %3176 = vmatpush2.msra.mxu0 0.0
    %3177 = vmatprep.subr.mxu0 0.0
    %3178 = vmatpush2.msra.mxu0 0.0
    %3179 = vmatprep.subr.mxu0 0.0
    %3180 = vmatpush2.msra.mxu0 0.0
    %3181 = vmatprep.subr.mxu0 0.0
    %3182 = vmatpush2.msra.mxu0 0.0
    %3183 = vmatprep.subr.mxu0 0.0
    %3184 = vmatpush2.msra.mxu0 0.0
    %3185 = vmatprep.subr.mxu0 0.0
    %3186 = vmatpush2.msra.mxu0 0.0
    %3187 = vmatprep.subr.mxu0 0.0
    %3188 = vmatpush2.msra.mxu0 0.0
    %3189 = vmatprep.subr.mxu0 0.0
    %3190 = vmatpush2.msra.mxu0 0.0
    %3191 = vmatprep.subr.mxu0 0.0
    %3192 = vmatpush2.msra.mxu0 0.0
    %3193 = vmatprep.subr.mxu0 0.0
    %3194 = vmatpush2.msra.mxu0 0.0
    %3195 = vmatprep.subr.mxu0 0.0
    %3196 = vmatpush2.msra.mxu0 0.0
    %3197 = vmatprep.subr.mxu0 0.0
    %3198 = vmatpush2.msra.mxu0 0.0
    %3199 = vmatprep.mubr.f32.mxu0 0.0
    %3200 = vmatmul.mubr.f32.gmra.mxu0 %v2793
    %v3201 = vpop.f32.mrf.mxu0
    %v3202 = vadd.f32 %v3060, %v3201
    %v3203 = vpop.f32.mrf.mxu0
    %v3204 = vadd.f32 %v3062, %v3203
    %3205 = vdwg.mxu0
    %v3206 = vld [vmem:[#allocation12] sm:$0xf]
    %v3208 = vlaneseq
    %v3209 = vshrl.u32 %v3208, 7
    %v3210 = vsub.s32 0, %v3209
    %v3211 = vrot.slane %v3206, %v3210
    %v3212 = vlaneseq
    %v3213 = vshrl.u32 %v3212, 7
    %v3214 = vsub.s32 1, %v3213
    %v3215 = vrot.slane %v3206, %v3214
    %v3216 = vlaneseq
    %v3217 = vshrl.u32 %v3216, 7
    %v3218 = vsub.s32 2, %v3217
    %v3219 = vrot.slane %v3206, %v3218
    %v3220 = vlaneseq
    %v3221 = vshrl.u32 %v3220, 7
    %v3222 = vsub.s32 3, %v3221
    %v3223 = vrot.slane %v3206, %v3222
    %v3228 = vadd.f32 %v3131, %v3211
    %v3229 = vadd.f32 %v3133, %v3215
    %v3230 = vadd.f32 %v3202, %v3219
    %v3231 = vadd.f32 %v3204, %v3223
    %v3232 = vtanh.pop %v3228
    %v3233 = vtanh.pop %v3229
    %v3234 = vtanh.pop %v3230
    %v3235 = vtanh.pop %v3231
    %v3236 = vadd.f32 %v3232, 1.0
    %v3237 = vmul.f32 %v3236, 0.5
    %v3238 = vadd.f32 %v3233, 1.0
    %v3239 = vmul.f32 %v3238, 0.5
    %v3240 = vadd.f32 %v3235, 1.0
    %v3241 = vmul.f32 %v3240, 0.5
    %v3242 = vmul.f32 %v3239, %v2561
    %v3243 = vmul.f32 %v3237, %v3234
    %v3244 = vadd.f32 %v3242, %v3243
    %v3245 = vtanh.pop %v3244
    %v3246 = vmul.f32 %v3241, %v3245
    %3247 = vst [vmem:[#allocation17 + $0x10] sm:$0xff] %v3246
    %v3248 = vld [vmem:[#allocation2 + $0x60] sm:$0xff]
    %v3249 = vld [vmem:[#allocation2 + $0x68] sm:$0xff]
    %v3250 = vld [vmem:[#allocation2 + $0x70] sm:$0xff]
    %v3251 = vld [vmem:[#allocation2 + $0x78] sm:$0xff]
    %v3252 = vld [vmem:[#allocation3] sm:$0xff]
    %v3253 = vld [vmem:[#allocation3 + $0x8] sm:$0xff]
    %v3254 = vld [vmem:[#allocation3 + $0x10] sm:$0xff]
    %v3255 = vld [vmem:[#allocation3 + $0x18] sm:$0xff]
    %v3256 = vld [vmem:[#allocation3 + $0x20] sm:$0xff]
    %v3257 = vld [vmem:[#allocation3 + $0x28] sm:$0xff]
    %v3258 = vld [vmem:[#allocation3 + $0x30] sm:$0xff]
    %v3259 = vld [vmem:[#allocation3 + $0x38] sm:$0xff]
    %v3260 = vld [vmem:[#allocation3 + $0x40] sm:$0xff]
    %v3261 = vld [vmem:[#allocation3 + $0x48] sm:$0xff]
    %v3262 = vld [vmem:[#allocation3 + $0x50] sm:$0xff]
    %v3263 = vld [vmem:[#allocation3 + $0x58] sm:$0xff]
    %v3264 = vld [vmem:[#allocation3 + $0x60] sm:$0xff]
    %v3265 = vld [vmem:[#allocation3 + $0x68] sm:$0xff]
    %v3266 = vld [vmem:[#allocation3 + $0x70] sm:$0xff]
    %v3267 = vld [vmem:[#allocation3 + $0x78] sm:$0xff]
    %v3268 = vld [vmem:[#allocation3 + $0x80] sm:$0xff]
    %v3269 = vld [vmem:[#allocation3 + $0x88] sm:$0xff]
    %v3270 = vld [vmem:[#allocation3 + $0x90] sm:$0xff]
    %v3271 = vld [vmem:[#allocation3 + $0x98] sm:$0xff]
    %v3272 = vld [vmem:[#allocation3 + $0xa0] sm:$0xff]
    %v3273 = vld [vmem:[#allocation3 + $0xa8] sm:$0xff]
    %v3274 = vld [vmem:[#allocation3 + $0xb0] sm:$0xff]
    %v3275 = vld [vmem:[#allocation3 + $0xb8] sm:$0xff]
    %v3276 = vld [vmem:[#allocation3 + $0xc0] sm:$0xff]
    %v3277 = vld [vmem:[#allocation3 + $0xc8] sm:$0xff]
    %v3278 = vld [vmem:[#allocation3 + $0xd0] sm:$0xff]
    %v3279 = vld [vmem:[#allocation3 + $0xd8] sm:$0xff]
    %v3280 = vld [vmem:[#allocation3 + $0xe0] sm:$0xff]
    %v3281 = vld [vmem:[#allocation3 + $0xe8] sm:$0xff]
    %v3282 = vld [vmem:[#allocation3 + $0xf0] sm:$0xff]
    %v3283 = vld [vmem:[#allocation3 + $0xf8] sm:$0xff]
    %v3284 = vld [vmem:[#allocation3 + $0x100] sm:$0xff]
    %v3285 = vld [vmem:[#allocation3 + $0x108] sm:$0xff]
    %v3286 = vld [vmem:[#allocation3 + $0x110] sm:$0xff]
    %v3287 = vld [vmem:[#allocation3 + $0x118] sm:$0xff]
    %v3288 = vld [vmem:[#allocation3 + $0x120] sm:$0xff]
    %v3289 = vld [vmem:[#allocation3 + $0x128] sm:$0xff]
    %v3290 = vld [vmem:[#allocation3 + $0x130] sm:$0xff]
    %v3291 = vld [vmem:[#allocation3 + $0x138] sm:$0xff]
    %v3292 = vld [vmem:[#allocation3 + $0x140] sm:$0xff]
    %v3293 = vld [vmem:[#allocation3 + $0x148] sm:$0xff]
    %v3294 = vld [vmem:[#allocation3 + $0x150] sm:$0xff]
    %v3295 = vld [vmem:[#allocation3 + $0x158] sm:$0xff]
    %v3296 = vld [vmem:[#allocation3 + $0x160] sm:$0xff]
    %v3297 = vld [vmem:[#allocation3 + $0x168] sm:$0xff]
    %v3298 = vld [vmem:[#allocation3 + $0x170] sm:$0xff]
    %v3299 = vld [vmem:[#allocation3 + $0x178] sm:$0xff]
    %v3300 = vld [vmem:[#allocation3 + $0x180] sm:$0xff]
    %v3301 = vld [vmem:[#allocation3 + $0x188] sm:$0xff]
    %v3302 = vld [vmem:[#allocation3 + $0x190] sm:$0xff]
    %v3303 = vld [vmem:[#allocation3 + $0x198] sm:$0xff]
    %v3304 = vld [vmem:[#allocation3 + $0x1a0] sm:$0xff]
    %v3305 = vld [vmem:[#allocation3 + $0x1a8] sm:$0xff]
    %v3306 = vld [vmem:[#allocation3 + $0x1b0] sm:$0xff]
    %v3307 = vld [vmem:[#allocation3 + $0x1b8] sm:$0xff]
    %v3308 = vld [vmem:[#allocation3 + $0x1c0] sm:$0xff]
    %v3309 = vld [vmem:[#allocation3 + $0x1c8] sm:$0xff]
    %v3310 = vld [vmem:[#allocation3 + $0x1d0] sm:$0xff]
    %v3311 = vld [vmem:[#allocation3 + $0x1d8] sm:$0xff]
    %v3312 = vld [vmem:[#allocation3 + $0x1e0] sm:$0xff]
    %v3313 = vld [vmem:[#allocation3 + $0x1e8] sm:$0xff]
    %v3314 = vld [vmem:[#allocation3 + $0x1f0] sm:$0xff]
    %v3315 = vld [vmem:[#allocation3 + $0x1f8] sm:$0xff]
    %3316 = vmatprep.subr.mxu0 %v3313
    %3317 = vmatpush1.msra.mxu0 %v3312
    %3318 = vmatprep.subr.mxu0 %v3309
    %3319 = vmatpush1.msra.mxu0 %v3308
    %3320 = vmatprep.subr.mxu0 %v3305
    %3321 = vmatpush1.msra.mxu0 %v3304
    %3322 = vmatprep.subr.mxu0 %v3301
    %3323 = vmatpush1.msra.mxu0 %v3300
    %3324 = vmatprep.subr.mxu0 %v3297
    %3325 = vmatpush1.msra.mxu0 %v3296
    %3326 = vmatprep.subr.mxu0 %v3293
    %3327 = vmatpush1.msra.mxu0 %v3292
    %3328 = vmatprep.subr.mxu0 %v3289
    %3329 = vmatpush1.msra.mxu0 %v3288
    %3330 = vmatprep.subr.mxu0 %v3285
    %3331 = vmatpush1.msra.mxu0 %v3284
    %3332 = vmatprep.subr.mxu0 %v3281
    %3333 = vmatpush1.msra.mxu0 %v3280
    %3334 = vmatprep.subr.mxu0 %v3277
    %3335 = vmatpush1.msra.mxu0 %v3276
    %3336 = vmatprep.subr.mxu0 %v3273
    %3337 = vmatpush1.msra.mxu0 %v3272
    %3338 = vmatprep.subr.mxu0 %v3269
    %3339 = vmatpush1.msra.mxu0 %v3268
    %3340 = vmatprep.subr.mxu0 %v3265
    %3341 = vmatpush1.msra.mxu0 %v3264
    %3342 = vmatprep.subr.mxu0 %v3261
    %3343 = vmatpush1.msra.mxu0 %v3260
    %3344 = vmatprep.subr.mxu0 %v3257
    %3345 = vmatpush1.msra.mxu0 %v3256
    %3346 = vmatprep.subr.mxu0 %v3253
    %3347 = vmatpush1.msra.mxu0 %v3252
    %3348 = vmatprep.subr.mxu0 0.0
    %3349 = vmatpush2.msra.mxu0 0.0
    %3350 = vmatprep.subr.mxu0 0.0
    %3351 = vmatpush2.msra.mxu0 0.0
    %3352 = vmatprep.subr.mxu0 0.0
    %3353 = vmatpush2.msra.mxu0 0.0
    %3354 = vmatprep.subr.mxu0 0.0
    %3355 = vmatpush2.msra.mxu0 0.0
    %3356 = vmatprep.subr.mxu0 0.0
    %3357 = vmatpush2.msra.mxu0 0.0
    %3358 = vmatprep.subr.mxu0 0.0
    %3359 = vmatpush2.msra.mxu0 0.0
    %3360 = vmatprep.subr.mxu0 0.0
    %3361 = vmatpush2.msra.mxu0 0.0
    %3362 = vmatprep.subr.mxu0 0.0
    %3363 = vmatpush2.msra.mxu0 0.0
    %3364 = vmatprep.subr.mxu0 0.0
    %3365 = vmatpush2.msra.mxu0 0.0
    %3366 = vmatprep.subr.mxu0 0.0
    %3367 = vmatpush2.msra.mxu0 0.0
    %3368 = vmatprep.subr.mxu0 0.0
    %3369 = vmatpush2.msra.mxu0 0.0
    %3370 = vmatprep.subr.mxu0 0.0
    %3371 = vmatpush2.msra.mxu0 0.0
    %3372 = vmatprep.subr.mxu0 0.0
    %3373 = vmatpush2.msra.mxu0 0.0
    %3374 = vmatprep.subr.mxu0 0.0
    %3375 = vmatpush2.msra.mxu0 0.0
    %3376 = vmatprep.subr.mxu0 0.0
    %3377 = vmatpush2.msra.mxu0 0.0
    %3378 = vmatprep.subr.mxu0 0.0
    %3379 = vmatpush2.msra.mxu0 0.0
    %3380 = vmatprep.mubr.f32.mxu0 0.0
    %3381 = vmatmul.mubr.f32.gmra.mxu0 %v2793
    %v3382 = vpop.f32.mrf.mxu0
    %v3383 = vadd.f32 0.0, %v3382
    %v3384 = vpop.f32.mrf.mxu0
    %v3385 = vadd.f32 0.0, %v3384
    %3386 = vdwg.mxu0
    %3387 = vmatprep.subr.mxu0 %v3315
    %3388 = vmatpush1.msra.mxu0 %v3314
    %3389 = vmatprep.subr.mxu0 %v3311
    %3390 = vmatpush1.msra.mxu0 %v3310
    %3391 = vmatprep.subr.mxu0 %v3307
    %3392 = vmatpush1.msra.mxu0 %v3306
    %3393 = vmatprep.subr.mxu0 %v3303
    %3394 = vmatpush1.msra.mxu0 %v3302
    %3395 = vmatprep.subr.mxu0 %v3299
    %3396 = vmatpush1.msra.mxu0 %v3298
    %3397 = vmatprep.subr.mxu0 %v3295
    %3398 = vmatpush1.msra.mxu0 %v3294
    %3399 = vmatprep.subr.mxu0 %v3291
    %3400 = vmatpush1.msra.mxu0 %v3290
    %3401 = vmatprep.subr.mxu0 %v3287
    %3402 = vmatpush1.msra.mxu0 %v3286
    %3403 = vmatprep.subr.mxu0 %v3283
    %3404 = vmatpush1.msra.mxu0 %v3282
    %3405 = vmatprep.subr.mxu0 %v3279
    %3406 = vmatpush1.msra.mxu0 %v3278
    %3407 = vmatprep.subr.mxu0 %v3275
    %3408 = vmatpush1.msra.mxu0 %v3274
    %3409 = vmatprep.subr.mxu0 %v3271
    %3410 = vmatpush1.msra.mxu0 %v3270
    %3411 = vmatprep.subr.mxu0 %v3267
    %3412 = vmatpush1.msra.mxu0 %v3266
    %3413 = vmatprep.subr.mxu0 %v3263
    %3414 = vmatpush1.msra.mxu0 %v3262
    %3415 = vmatprep.subr.mxu0 %v3259
    %3416 = vmatpush1.msra.mxu0 %v3258
    %3417 = vmatprep.subr.mxu0 %v3255
    %3418 = vmatpush1.msra.mxu0 %v3254
    %3419 = vmatprep.subr.mxu0 0.0
    %3420 = vmatpush2.msra.mxu0 0.0
    %3421 = vmatprep.subr.mxu0 0.0
    %3422 = vmatpush2.msra.mxu0 0.0
    %3423 = vmatprep.subr.mxu0 0.0
    %3424 = vmatpush2.msra.mxu0 0.0
    %3425 = vmatprep.subr.mxu0 0.0
    %3426 = vmatpush2.msra.mxu0 0.0
    %3427 = vmatprep.subr.mxu0 0.0
    %3428 = vmatpush2.msra.mxu0 0.0
    %3429 = vmatprep.subr.mxu0 0.0
    %3430 = vmatpush2.msra.mxu0 0.0
    %3431 = vmatprep.subr.mxu0 0.0
    %3432 = vmatpush2.msra.mxu0 0.0
    %3433 = vmatprep.subr.mxu0 0.0
    %3434 = vmatpush2.msra.mxu0 0.0
    %3435 = vmatprep.subr.mxu0 0.0
    %3436 = vmatpush2.msra.mxu0 0.0
    %3437 = vmatprep.subr.mxu0 0.0
    %3438 = vmatpush2.msra.mxu0 0.0
    %3439 = vmatprep.subr.mxu0 0.0
    %3440 = vmatpush2.msra.mxu0 0.0
    %3441 = vmatprep.subr.mxu0 0.0
    %3442 = vmatpush2.msra.mxu0 0.0
    %3443 = vmatprep.subr.mxu0 0.0
    %3444 = vmatpush2.msra.mxu0 0.0
    %3445 = vmatprep.subr.mxu0 0.0
    %3446 = vmatpush2.msra.mxu0 0.0
    %3447 = vmatprep.subr.mxu0 0.0
    %3448 = vmatpush2.msra.mxu0 0.0
    %3449 = vmatprep.subr.mxu0 0.0
    %3450 = vmatpush2.msra.mxu0 0.0
    %3451 = vmatprep.mubr.f32.mxu0 0.0
    %3452 = vmatmul.mubr.f32.gmra.mxu0 %v2793
    %v3453 = vpop.f32.mrf.mxu0
    %v3454 = vadd.f32 0.0, %v3453
    %v3455 = vpop.f32.mrf.mxu0
    %v3456 = vadd.f32 0.0, %v3455
    %3457 = vdwg.mxu0
    %v3458 = vadd.f32 %v3248, %v3383
    %v3459 = vadd.f32 %v3249, %v3385
    %v3460 = vadd.f32 %v3250, %v3454
    %v3461 = vadd.f32 %v3251, %v3456
    %v3462 = vtanh.pop %v3458
    %v3463 = vtanh.pop %v3459
    %v3464 = vtanh.pop %v3460
    %v3465 = vtanh.pop %v3461
    %v3466 = vadd.f32 %v3462, 1.0
    %v3467 = vmul.f32 %v3466, 0.5
    %v3468 = vadd.f32 %v3463, 1.0
    %v3469 = vmul.f32 %v3468, 0.5
    %v3470 = vadd.f32 %v3465, 1.0
    %v3471 = vmul.f32 %v3470, 0.5
    %v3472 = vmul.f32 %v3469, %v2791
    %v3473 = vmul.f32 %v3467, %v3464
    %v3474 = vadd.f32 %v3472, %v3473
    %v3475 = vtanh.pop %v3474
    %v3476 = vmul.f32 %v3471, %v3475
    %v3477 = vld [vmem:[#allocation4] sm:$0xff]
    %v3478 = vld [vmem:[#allocation4 + $0x8] sm:$0xff]
    %v3479 = vld [vmem:[#allocation4 + $0x10] sm:$0xff]
    %v3480 = vld [vmem:[#allocation4 + $0x18] sm:$0xff]
    %v3481 = vld [vmem:[#allocation4 + $0x20] sm:$0xff]
    %v3482 = vld [vmem:[#allocation4 + $0x28] sm:$0xff]
    %v3483 = vld [vmem:[#allocation4 + $0x30] sm:$0xff]
    %v3484 = vld [vmem:[#allocation4 + $0x38] sm:$0xff]
    %v3485 = vld [vmem:[#allocation4 + $0x40] sm:$0xff]
    %v3486 = vld [vmem:[#allocation4 + $0x48] sm:$0xff]
    %v3487 = vld [vmem:[#allocation4 + $0x50] sm:$0xff]
    %v3488 = vld [vmem:[#allocation4 + $0x58] sm:$0xff]
    %v3489 = vld [vmem:[#allocation4 + $0x60] sm:$0xff]
    %v3490 = vld [vmem:[#allocation4 + $0x68] sm:$0xff]
    %v3491 = vld [vmem:[#allocation4 + $0x70] sm:$0xff]
    %v3492 = vld [vmem:[#allocation4 + $0x78] sm:$0xff]
    %v3493 = vld [vmem:[#allocation4 + $0x80] sm:$0xff]
    %v3494 = vld [vmem:[#allocation4 + $0x88] sm:$0xff]
    %v3495 = vld [vmem:[#allocation4 + $0x90] sm:$0xff]
    %v3496 = vld [vmem:[#allocation4 + $0x98] sm:$0xff]
    %v3497 = vld [vmem:[#allocation4 + $0xa0] sm:$0xff]
    %v3498 = vld [vmem:[#allocation4 + $0xa8] sm:$0xff]
    %v3499 = vld [vmem:[#allocation4 + $0xb0] sm:$0xff]
    %v3500 = vld [vmem:[#allocation4 + $0xb8] sm:$0xff]
    %v3501 = vld [vmem:[#allocation4 + $0xc0] sm:$0xff]
    %v3502 = vld [vmem:[#allocation4 + $0xc8] sm:$0xff]
    %v3503 = vld [vmem:[#allocation4 + $0xd0] sm:$0xff]
    %v3504 = vld [vmem:[#allocation4 + $0xd8] sm:$0xff]
    %v3505 = vld [vmem:[#allocation4 + $0xe0] sm:$0xff]
    %v3506 = vld [vmem:[#allocation4 + $0xe8] sm:$0xff]
    %v3507 = vld [vmem:[#allocation4 + $0xf0] sm:$0xff]
    %v3508 = vld [vmem:[#allocation4 + $0xf8] sm:$0xff]
    %v3509 = vld [vmem:[#allocation4 + $0x100] sm:$0xff]
    %v3510 = vld [vmem:[#allocation4 + $0x108] sm:$0xff]
    %v3511 = vld [vmem:[#allocation4 + $0x110] sm:$0xff]
    %v3512 = vld [vmem:[#allocation4 + $0x118] sm:$0xff]
    %v3513 = vld [vmem:[#allocation4 + $0x120] sm:$0xff]
    %v3514 = vld [vmem:[#allocation4 + $0x128] sm:$0xff]
    %v3515 = vld [vmem:[#allocation4 + $0x130] sm:$0xff]
    %v3516 = vld [vmem:[#allocation4 + $0x138] sm:$0xff]
    %v3517 = vld [vmem:[#allocation4 + $0x140] sm:$0xff]
    %v3518 = vld [vmem:[#allocation4 + $0x148] sm:$0xff]
    %v3519 = vld [vmem:[#allocation4 + $0x150] sm:$0xff]
    %v3520 = vld [vmem:[#allocation4 + $0x158] sm:$0xff]
    %v3521 = vld [vmem:[#allocation4 + $0x160] sm:$0xff]
    %v3522 = vld [vmem:[#allocation4 + $0x168] sm:$0xff]
    %v3523 = vld [vmem:[#allocation4 + $0x170] sm:$0xff]
    %v3524 = vld [vmem:[#allocation4 + $0x178] sm:$0xff]
    %v3525 = vld [vmem:[#allocation4 + $0x180] sm:$0xff]
    %v3526 = vld [vmem:[#allocation4 + $0x188] sm:$0xff]
    %v3527 = vld [vmem:[#allocation4 + $0x190] sm:$0xff]
    %v3528 = vld [vmem:[#allocation4 + $0x198] sm:$0xff]
    %v3529 = vld [vmem:[#allocation4 + $0x1a0] sm:$0xff]
    %v3530 = vld [vmem:[#allocation4 + $0x1a8] sm:$0xff]
    %v3531 = vld [vmem:[#allocation4 + $0x1b0] sm:$0xff]
    %v3532 = vld [vmem:[#allocation4 + $0x1b8] sm:$0xff]
    %v3533 = vld [vmem:[#allocation4 + $0x1c0] sm:$0xff]
    %v3534 = vld [vmem:[#allocation4 + $0x1c8] sm:$0xff]
    %v3535 = vld [vmem:[#allocation4 + $0x1d0] sm:$0xff]
    %v3536 = vld [vmem:[#allocation4 + $0x1d8] sm:$0xff]
    %v3537 = vld [vmem:[#allocation4 + $0x1e0] sm:$0xff]
    %v3538 = vld [vmem:[#allocation4 + $0x1e8] sm:$0xff]
    %v3539 = vld [vmem:[#allocation4 + $0x1f0] sm:$0xff]
    %v3540 = vld [vmem:[#allocation4 + $0x1f8] sm:$0xff]
    %v3541 = vld [vmem:[#allocation5] sm:$0xff]
    %v3542 = vld [vmem:[#allocation5 + $0x8] sm:$0xff]
    %v3543 = vld [vmem:[#allocation5 + $0x10] sm:$0xff]
    %v3544 = vld [vmem:[#allocation5 + $0x18] sm:$0xff]
    %v3545 = vld [vmem:[#allocation5 + $0x20] sm:$0xff]
    %v3546 = vld [vmem:[#allocation5 + $0x28] sm:$0xff]
    %v3547 = vld [vmem:[#allocation5 + $0x30] sm:$0xff]
    %v3548 = vld [vmem:[#allocation5 + $0x38] sm:$0xff]
    %v3549 = vld [vmem:[#allocation5 + $0x40] sm:$0xff]
    %v3550 = vld [vmem:[#allocation5 + $0x48] sm:$0xff]
    %v3551 = vld [vmem:[#allocation5 + $0x50] sm:$0xff]
    %v3552 = vld [vmem:[#allocation5 + $0x58] sm:$0xff]
    %v3553 = vld [vmem:[#allocation5 + $0x60] sm:$0xff]
    %v3554 = vld [vmem:[#allocation5 + $0x68] sm:$0xff]
    %v3555 = vld [vmem:[#allocation5 + $0x70] sm:$0xff]
    %v3556 = vld [vmem:[#allocation5 + $0x78] sm:$0xff]
    %v3557 = vld [vmem:[#allocation5 + $0x80] sm:$0xff]
    %v3558 = vld [vmem:[#allocation5 + $0x88] sm:$0xff]
    %v3559 = vld [vmem:[#allocation5 + $0x90] sm:$0xff]
    %v3560 = vld [vmem:[#allocation5 + $0x98] sm:$0xff]
    %v3561 = vld [vmem:[#allocation5 + $0xa0] sm:$0xff]
    %v3562 = vld [vmem:[#allocation5 + $0xa8] sm:$0xff]
    %v3563 = vld [vmem:[#allocation5 + $0xb0] sm:$0xff]
    %v3564 = vld [vmem:[#allocation5 + $0xb8] sm:$0xff]
    %v3565 = vld [vmem:[#allocation5 + $0xc0] sm:$0xff]
    %v3566 = vld [vmem:[#allocation5 + $0xc8] sm:$0xff]
    %v3567 = vld [vmem:[#allocation5 + $0xd0] sm:$0xff]
    %v3568 = vld [vmem:[#allocation5 + $0xd8] sm:$0xff]
    %v3569 = vld [vmem:[#allocation5 + $0xe0] sm:$0xff]
    %v3570 = vld [vmem:[#allocation5 + $0xe8] sm:$0xff]
    %v3571 = vld [vmem:[#allocation5 + $0xf0] sm:$0xff]
    %v3572 = vld [vmem:[#allocation5 + $0xf8] sm:$0xff]
    %v3573 = vld [vmem:[#allocation5 + $0x100] sm:$0xff]
    %v3574 = vld [vmem:[#allocation5 + $0x108] sm:$0xff]
    %v3575 = vld [vmem:[#allocation5 + $0x110] sm:$0xff]
    %v3576 = vld [vmem:[#allocation5 + $0x118] sm:$0xff]
    %v3577 = vld [vmem:[#allocation5 + $0x120] sm:$0xff]
    %v3578 = vld [vmem:[#allocation5 + $0x128] sm:$0xff]
    %v3579 = vld [vmem:[#allocation5 + $0x130] sm:$0xff]
    %v3580 = vld [vmem:[#allocation5 + $0x138] sm:$0xff]
    %v3581 = vld [vmem:[#allocation5 + $0x140] sm:$0xff]
    %v3582 = vld [vmem:[#allocation5 + $0x148] sm:$0xff]
    %v3583 = vld [vmem:[#allocation5 + $0x150] sm:$0xff]
    %v3584 = vld [vmem:[#allocation5 + $0x158] sm:$0xff]
    %v3585 = vld [vmem:[#allocation5 + $0x160] sm:$0xff]
    %v3586 = vld [vmem:[#allocation5 + $0x168] sm:$0xff]
    %v3587 = vld [vmem:[#allocation5 + $0x170] sm:$0xff]
    %v3588 = vld [vmem:[#allocation5 + $0x178] sm:$0xff]
    %v3589 = vld [vmem:[#allocation5 + $0x180] sm:$0xff]
    %v3590 = vld [vmem:[#allocation5 + $0x188] sm:$0xff]
    %v3591 = vld [vmem:[#allocation5 + $0x190] sm:$0xff]
    %v3592 = vld [vmem:[#allocation5 + $0x198] sm:$0xff]
    %v3593 = vld [vmem:[#allocation5 + $0x1a0] sm:$0xff]
    %v3594 = vld [vmem:[#allocation5 + $0x1a8] sm:$0xff]
    %v3595 = vld [vmem:[#allocation5 + $0x1b0] sm:$0xff]
    %v3596 = vld [vmem:[#allocation5 + $0x1b8] sm:$0xff]
    %v3597 = vld [vmem:[#allocation5 + $0x1c0] sm:$0xff]
    %v3598 = vld [vmem:[#allocation5 + $0x1c8] sm:$0xff]
    %v3599 = vld [vmem:[#allocation5 + $0x1d0] sm:$0xff]
    %v3600 = vld [vmem:[#allocation5 + $0x1d8] sm:$0xff]
    %v3601 = vld [vmem:[#allocation5 + $0x1e0] sm:$0xff]
    %v3602 = vld [vmem:[#allocation5 + $0x1e8] sm:$0xff]
    %v3603 = vld [vmem:[#allocation5 + $0x1f0] sm:$0xff]
    %v3604 = vld [vmem:[#allocation5 + $0x1f8] sm:$0xff]
    %3605 = vmatprep.subr.mxu0 %v3602
    %3606 = vmatpush1.msra.mxu0 %v3601
    %3607 = vmatprep.subr.mxu0 %v3598
    %3608 = vmatpush1.msra.mxu0 %v3597
    %3609 = vmatprep.subr.mxu0 %v3594
    %3610 = vmatpush1.msra.mxu0 %v3593
    %3611 = vmatprep.subr.mxu0 %v3590
    %3612 = vmatpush1.msra.mxu0 %v3589
    %3613 = vmatprep.subr.mxu0 %v3586
    %3614 = vmatpush1.msra.mxu0 %v3585
    %3615 = vmatprep.subr.mxu0 %v3582
    %3616 = vmatpush1.msra.mxu0 %v3581
    %3617 = vmatprep.subr.mxu0 %v3578
    %3618 = vmatpush1.msra.mxu0 %v3577
    %3619 = vmatprep.subr.mxu0 %v3574
    %3620 = vmatpush1.msra.mxu0 %v3573
    %3621 = vmatprep.subr.mxu0 %v3570
    %3622 = vmatpush1.msra.mxu0 %v3569
    %3623 = vmatprep.subr.mxu0 %v3566
    %3624 = vmatpush1.msra.mxu0 %v3565
    %3625 = vmatprep.subr.mxu0 %v3562
    %3626 = vmatpush1.msra.mxu0 %v3561
    %3627 = vmatprep.subr.mxu0 %v3558
    %3628 = vmatpush1.msra.mxu0 %v3557
    %3629 = vmatprep.subr.mxu0 %v3554
    %3630 = vmatpush1.msra.mxu0 %v3553
    %3631 = vmatprep.subr.mxu0 %v3550
    %3632 = vmatpush1.msra.mxu0 %v3549
    %3633 = vmatprep.subr.mxu0 %v3546
    %3634 = vmatpush1.msra.mxu0 %v3545
    %3635 = vmatprep.subr.mxu0 %v3542
    %3636 = vmatpush1.msra.mxu0 %v3541
    %3637 = vmatprep.subr.mxu0 0.0
    %3638 = vmatpush2.msra.mxu0 0.0
    %3639 = vmatprep.subr.mxu0 0.0
    %3640 = vmatpush2.msra.mxu0 0.0
    %3641 = vmatprep.subr.mxu0 0.0
    %3642 = vmatpush2.msra.mxu0 0.0
    %3643 = vmatprep.subr.mxu0 0.0
    %3644 = vmatpush2.msra.mxu0 0.0
    %3645 = vmatprep.subr.mxu0 0.0
    %3646 = vmatpush2.msra.mxu0 0.0
    %3647 = vmatprep.subr.mxu0 0.0
    %3648 = vmatpush2.msra.mxu0 0.0
    %3649 = vmatprep.subr.mxu0 0.0
    %3650 = vmatpush2.msra.mxu0 0.0
    %3651 = vmatprep.subr.mxu0 0.0
    %3652 = vmatpush2.msra.mxu0 0.0
    %3653 = vmatprep.subr.mxu0 0.0
    %3654 = vmatpush2.msra.mxu0 0.0
    %3655 = vmatprep.subr.mxu0 0.0
    %3656 = vmatpush2.msra.mxu0 0.0
    %3657 = vmatprep.subr.mxu0 0.0
    %3658 = vmatpush2.msra.mxu0 0.0
    %3659 = vmatprep.subr.mxu0 0.0
    %3660 = vmatpush2.msra.mxu0 0.0
    %3661 = vmatprep.subr.mxu0 0.0
    %3662 = vmatpush2.msra.mxu0 0.0
    %3663 = vmatprep.subr.mxu0 0.0
    %3664 = vmatpush2.msra.mxu0 0.0
    %3665 = vmatprep.subr.mxu0 0.0
    %3666 = vmatpush2.msra.mxu0 0.0
    %3667 = vmatprep.subr.mxu0 0.0
    %3668 = vmatpush2.msra.mxu0 0.0
    %3669 = vmatprep.mubr.f32.mxu0 0.0
    %3670 = vmatmul.mubr.f32.gmra.mxu0 %v3246
    %v3671 = vpop.f32.mrf.mxu0
    %v3672 = vadd.f32 0.0, %v3671
    %v3673 = vpop.f32.mrf.mxu0
    %v3674 = vadd.f32 0.0, %v3673
    %3675 = vdwg.mxu0
    %3676 = vmatprep.subr.mxu0 %v3604
    %3677 = vmatpush1.msra.mxu0 %v3603
    %3678 = vmatprep.subr.mxu0 %v3600
    %3679 = vmatpush1.msra.mxu0 %v3599
    %3680 = vmatprep.subr.mxu0 %v3596
    %3681 = vmatpush1.msra.mxu0 %v3595
    %3682 = vmatprep.subr.mxu0 %v3592
    %3683 = vmatpush1.msra.mxu0 %v3591
    %3684 = vmatprep.subr.mxu0 %v3588
    %3685 = vmatpush1.msra.mxu0 %v3587
    %3686 = vmatprep.subr.mxu0 %v3584
    %3687 = vmatpush1.msra.mxu0 %v3583
    %3688 = vmatprep.subr.mxu0 %v3580
    %3689 = vmatpush1.msra.mxu0 %v3579
    %3690 = vmatprep.subr.mxu0 %v3576
    %3691 = vmatpush1.msra.mxu0 %v3575
    %3692 = vmatprep.subr.mxu0 %v3572
    %3693 = vmatpush1.msra.mxu0 %v3571
    %3694 = vmatprep.subr.mxu0 %v3568
    %3695 = vmatpush1.msra.mxu0 %v3567
    %3696 = vmatprep.subr.mxu0 %v3564
    %3697 = vmatpush1.msra.mxu0 %v3563
    %3698 = vmatprep.subr.mxu0 %v3560
    %3699 = vmatpush1.msra.mxu0 %v3559
    %3700 = vmatprep.subr.mxu0 %v3556
    %3701 = vmatpush1.msra.mxu0 %v3555
    %3702 = vmatprep.subr.mxu0 %v3552
    %3703 = vmatpush1.msra.mxu0 %v3551
    %3704 = vmatprep.subr.mxu0 %v3548
    %3705 = vmatpush1.msra.mxu0 %v3547
    %3706 = vmatprep.subr.mxu0 %v3544
    %3707 = vmatpush1.msra.mxu0 %v3543
    %3708 = vmatprep.subr.mxu0 0.0
    %3709 = vmatpush2.msra.mxu0 0.0
    %3710 = vmatprep.subr.mxu0 0.0
    %3711 = vmatpush2.msra.mxu0 0.0
    %3712 = vmatprep.subr.mxu0 0.0
    %3713 = vmatpush2.msra.mxu0 0.0
    %3714 = vmatprep.subr.mxu0 0.0
    %3715 = vmatpush2.msra.mxu0 0.0
    %3716 = vmatprep.subr.mxu0 0.0
    %3717 = vmatpush2.msra.mxu0 0.0
    %3718 = vmatprep.subr.mxu0 0.0
    %3719 = vmatpush2.msra.mxu0 0.0
    %3720 = vmatprep.subr.mxu0 0.0
    %3721 = vmatpush2.msra.mxu0 0.0
    %3722 = vmatprep.subr.mxu0 0.0
    %3723 = vmatpush2.msra.mxu0 0.0
    %3724 = vmatprep.subr.mxu0 0.0
    %3725 = vmatpush2.msra.mxu0 0.0
    %3726 = vmatprep.subr.mxu0 0.0
    %3727 = vmatpush2.msra.mxu0 0.0
    %3728 = vmatprep.subr.mxu0 0.0
    %3729 = vmatpush2.msra.mxu0 0.0
    %3730 = vmatprep.subr.mxu0 0.0
    %3731 = vmatpush2.msra.mxu0 0.0
    %3732 = vmatprep.subr.mxu0 0.0
    %3733 = vmatpush2.msra.mxu0 0.0
    %3734 = vmatprep.subr.mxu0 0.0
    %3735 = vmatpush2.msra.mxu0 0.0
    %3736 = vmatprep.subr.mxu0 0.0
    %3737 = vmatpush2.msra.mxu0 0.0
    %3738 = vmatprep.subr.mxu0 0.0
    %3739 = vmatpush2.msra.mxu0 0.0
    %3740 = vmatprep.mubr.f32.mxu0 0.0
    %3741 = vmatmul.mubr.f32.gmra.mxu0 %v3246
    %v3742 = vpop.f32.mrf.mxu0
    %v3743 = vadd.f32 0.0, %v3742
    %v3744 = vpop.f32.mrf.mxu0
    %v3745 = vadd.f32 0.0, %v3744
    %3746 = vdwg.mxu0
    %3747 = vmatprep.subr.mxu0 %v3538
    %3748 = vmatpush1.msra.mxu0 %v3537
    %3749 = vmatprep.subr.mxu0 %v3534
    %3750 = vmatpush1.msra.mxu0 %v3533
    %3751 = vmatprep.subr.mxu0 %v3530
    %3752 = vmatpush1.msra.mxu0 %v3529
    %3753 = vmatprep.subr.mxu0 %v3526
    %3754 = vmatpush1.msra.mxu0 %v3525
    %3755 = vmatprep.subr.mxu0 %v3522
    %3756 = vmatpush1.msra.mxu0 %v3521
    %3757 = vmatprep.subr.mxu0 %v3518
    %3758 = vmatpush1.msra.mxu0 %v3517
    %3759 = vmatprep.subr.mxu0 %v3514
    %3760 = vmatpush1.msra.mxu0 %v3513
    %3761 = vmatprep.subr.mxu0 %v3510
    %3762 = vmatpush1.msra.mxu0 %v3509
    %3763 = vmatprep.subr.mxu0 %v3506
    %3764 = vmatpush1.msra.mxu0 %v3505
    %3765 = vmatprep.subr.mxu0 %v3502
    %3766 = vmatpush1.msra.mxu0 %v3501
    %3767 = vmatprep.subr.mxu0 %v3498
    %3768 = vmatpush1.msra.mxu0 %v3497
    %3769 = vmatprep.subr.mxu0 %v3494
    %3770 = vmatpush1.msra.mxu0 %v3493
    %3771 = vmatprep.subr.mxu0 %v3490
    %3772 = vmatpush1.msra.mxu0 %v3489
    %3773 = vmatprep.subr.mxu0 %v3486
    %3774 = vmatpush1.msra.mxu0 %v3485
    %3775 = vmatprep.subr.mxu0 %v3482
    %3776 = vmatpush1.msra.mxu0 %v3481
    %3777 = vmatprep.subr.mxu0 %v3478
    %3778 = vmatpush1.msra.mxu0 %v3477
    %3779 = vmatprep.subr.mxu0 0.0
    %3780 = vmatpush2.msra.mxu0 0.0
    %3781 = vmatprep.subr.mxu0 0.0
    %3782 = vmatpush2.msra.mxu0 0.0
    %3783 = vmatprep.subr.mxu0 0.0
    %3784 = vmatpush2.msra.mxu0 0.0
    %3785 = vmatprep.subr.mxu0 0.0
    %3786 = vmatpush2.msra.mxu0 0.0
    %3787 = vmatprep.subr.mxu0 0.0
    %3788 = vmatpush2.msra.mxu0 0.0
    %3789 = vmatprep.subr.mxu0 0.0
    %3790 = vmatpush2.msra.mxu0 0.0
    %3791 = vmatprep.subr.mxu0 0.0
    %3792 = vmatpush2.msra.mxu0 0.0
    %3793 = vmatprep.subr.mxu0 0.0
    %3794 = vmatpush2.msra.mxu0 0.0
    %3795 = vmatprep.subr.mxu0 0.0
    %3796 = vmatpush2.msra.mxu0 0.0
    %3797 = vmatprep.subr.mxu0 0.0
    %3798 = vmatpush2.msra.mxu0 0.0
    %3799 = vmatprep.subr.mxu0 0.0
    %3800 = vmatpush2.msra.mxu0 0.0
    %3801 = vmatprep.subr.mxu0 0.0
    %3802 = vmatpush2.msra.mxu0 0.0
    %3803 = vmatprep.subr.mxu0 0.0
    %3804 = vmatpush2.msra.mxu0 0.0
    %3805 = vmatprep.subr.mxu0 0.0
    %3806 = vmatpush2.msra.mxu0 0.0
    %3807 = vmatprep.subr.mxu0 0.0
    %3808 = vmatpush2.msra.mxu0 0.0
    %3809 = vmatprep.subr.mxu0 0.0
    %3810 = vmatpush2.msra.mxu0 0.0
    %3811 = vmatprep.mubr.f32.mxu0 0.0
    %3812 = vmatmul.mubr.f32.gmra.mxu0 %v3476
    %v3813 = vpop.f32.mrf.mxu0
    %v3814 = vadd.f32 %v3672, %v3813
    %v3815 = vpop.f32.mrf.mxu0
    %v3816 = vadd.f32 %v3674, %v3815
    %3817 = vdwg.mxu0
    %3818 = vmatprep.subr.mxu0 %v3540
    %3819 = vmatpush1.msra.mxu0 %v3539
    %3820 = vmatprep.subr.mxu0 %v3536
    %3821 = vmatpush1.msra.mxu0 %v3535
    %3822 = vmatprep.subr.mxu0 %v3532
    %3823 = vmatpush1.msra.mxu0 %v3531
    %3824 = vmatprep.subr.mxu0 %v3528
    %3825 = vmatpush1.msra.mxu0 %v3527
    %3826 = vmatprep.subr.mxu0 %v3524
    %3827 = vmatpush1.msra.mxu0 %v3523
    %3828 = vmatprep.subr.mxu0 %v3520
    %3829 = vmatpush1.msra.mxu0 %v3519
    %3830 = vmatprep.subr.mxu0 %v3516
    %3831 = vmatpush1.msra.mxu0 %v3515
    %3832 = vmatprep.subr.mxu0 %v3512
    %3833 = vmatpush1.msra.mxu0 %v3511
    %3834 = vmatprep.subr.mxu0 %v3508
    %3835 = vmatpush1.msra.mxu0 %v3507
    %3836 = vmatprep.subr.mxu0 %v3504
    %3837 = vmatpush1.msra.mxu0 %v3503
    %3838 = vmatprep.subr.mxu0 %v3500
    %3839 = vmatpush1.msra.mxu0 %v3499
    %3840 = vmatprep.subr.mxu0 %v3496
    %3841 = vmatpush1.msra.mxu0 %v3495
    %3842 = vmatprep.subr.mxu0 %v3492
    %3843 = vmatpush1.msra.mxu0 %v3491
    %3844 = vmatprep.subr.mxu0 %v3488
    %3845 = vmatpush1.msra.mxu0 %v3487
    %3846 = vmatprep.subr.mxu0 %v3484
    %3847 = vmatpush1.msra.mxu0 %v3483
    %3848 = vmatprep.subr.mxu0 %v3480
    %3849 = vmatpush1.msra.mxu0 %v3479
    %3850 = vmatprep.subr.mxu0 0.0
    %3851 = vmatpush2.msra.mxu0 0.0
    %3852 = vmatprep.subr.mxu0 0.0
    %3853 = vmatpush2.msra.mxu0 0.0
    %3854 = vmatprep.subr.mxu0 0.0
    %3855 = vmatpush2.msra.mxu0 0.0
    %3856 = vmatprep.subr.mxu0 0.0
    %3857 = vmatpush2.msra.mxu0 0.0
    %3858 = vmatprep.subr.mxu0 0.0
    %3859 = vmatpush2.msra.mxu0 0.0
    %3860 = vmatprep.subr.mxu0 0.0
    %3861 = vmatpush2.msra.mxu0 0.0
    %3862 = vmatprep.subr.mxu0 0.0
    %3863 = vmatpush2.msra.mxu0 0.0
    %3864 = vmatprep.subr.mxu0 0.0
    %3865 = vmatpush2.msra.mxu0 0.0
    %3866 = vmatprep.subr.mxu0 0.0
    %3867 = vmatpush2.msra.mxu0 0.0
    %3868 = vmatprep.subr.mxu0 0.0
    %3869 = vmatpush2.msra.mxu0 0.0
    %3870 = vmatprep.subr.mxu0 0.0
    %3871 = vmatpush2.msra.mxu0 0.0
    %3872 = vmatprep.subr.mxu0 0.0
    %3873 = vmatpush2.msra.mxu0 0.0
    %3874 = vmatprep.subr.mxu0 0.0
    %3875 = vmatpush2.msra.mxu0 0.0
    %3876 = vmatprep.subr.mxu0 0.0
    %3877 = vmatpush2.msra.mxu0 0.0
    %3878 = vmatprep.subr.mxu0 0.0
    %3879 = vmatpush2.msra.mxu0 0.0
    %3880 = vmatprep.subr.mxu0 0.0
    %3881 = vmatpush2.msra.mxu0 0.0
    %3882 = vmatprep.mubr.f32.mxu0 0.0
    %3883 = vmatmul.mubr.f32.gmra.mxu0 %v3476
    %v3884 = vpop.f32.mrf.mxu0
    %v3885 = vadd.f32 %v3743, %v3884
    %v3886 = vpop.f32.mrf.mxu0
    %v3887 = vadd.f32 %v3745, %v3886
    %3888 = vdwg.mxu0
    %v3889 = vld [vmem:[#allocation12] sm:$0xf]
    %v3891 = vlaneseq
    %v3892 = vshrl.u32 %v3891, 7
    %v3893 = vsub.s32 0, %v3892
    %v3894 = vrot.slane %v3889, %v3893
    %v3895 = vlaneseq
    %v3896 = vshrl.u32 %v3895, 7
    %v3897 = vsub.s32 1, %v3896
    %v3898 = vrot.slane %v3889, %v3897
    %v3899 = vlaneseq
    %v3900 = vshrl.u32 %v3899, 7
    %v3901 = vsub.s32 2, %v3900
    %v3902 = vrot.slane %v3889, %v3901
    %v3903 = vlaneseq
    %v3904 = vshrl.u32 %v3903, 7
    %v3905 = vsub.s32 3, %v3904
    %v3906 = vrot.slane %v3889, %v3905
    %v3911 = vadd.f32 %v3814, %v3894
    %v3912 = vadd.f32 %v3816, %v3898
    %v3913 = vadd.f32 %v3885, %v3902
    %v3914 = vadd.f32 %v3887, %v3906
    %v3915 = vtanh.pop %v3911
    %v3916 = vtanh.pop %v3912
    %v3917 = vtanh.pop %v3913
    %v3918 = vtanh.pop %v3914
    %v3919 = vadd.f32 %v3915, 1.0
    %v3920 = vmul.f32 %v3919, 0.5
    %v3921 = vadd.f32 %v3916, 1.0
    %v3922 = vmul.f32 %v3921, 0.5
    %v3923 = vadd.f32 %v3918, 1.0
    %v3924 = vmul.f32 %v3923, 0.5
    %v3925 = vmul.f32 %v3922, %v3244
    %v3926 = vmul.f32 %v3920, %v3917
    %v3927 = vadd.f32 %v3925, %v3926
    %v3928 = vtanh.pop %v3927
    %v3929 = vmul.f32 %v3924, %v3928
    %3930 = vst [vmem:[#allocation17 + $0x18] sm:$0xff] %v3929
    %v3931 = vld [vmem:[#allocation2 + $0x80] sm:$0xff]
    %v3932 = vld [vmem:[#allocation2 + $0x88] sm:$0xff]
    %v3933 = vld [vmem:[#allocation2 + $0x90] sm:$0xff]
    %v3934 = vld [vmem:[#allocation2 + $0x98] sm:$0xff]
    %v3935 = vld [vmem:[#allocation3] sm:$0xff]
    %v3936 = vld [vmem:[#allocation3 + $0x8] sm:$0xff]
    %v3937 = vld [vmem:[#allocation3 + $0x10] sm:$0xff]
    %v3938 = vld [vmem:[#allocation3 + $0x18] sm:$0xff]
    %v3939 = vld [vmem:[#allocation3 + $0x20] sm:$0xff]
    %v3940 = vld [vmem:[#allocation3 + $0x28] sm:$0xff]
    %v3941 = vld [vmem:[#allocation3 + $0x30] sm:$0xff]
    %v3942 = vld [vmem:[#allocation3 + $0x38] sm:$0xff]
    %v3943 = vld [vmem:[#allocation3 + $0x40] sm:$0xff]
    %v3944 = vld [vmem:[#allocation3 + $0x48] sm:$0xff]
    %v3945 = vld [vmem:[#allocation3 + $0x50] sm:$0xff]
    %v3946 = vld [vmem:[#allocation3 + $0x58] sm:$0xff]
    %v3947 = vld [vmem:[#allocation3 + $0x60] sm:$0xff]
    %v3948 = vld [vmem:[#allocation3 + $0x68] sm:$0xff]
    %v3949 = vld [vmem:[#allocation3 + $0x70] sm:$0xff]
    %v3950 = vld [vmem:[#allocation3 + $0x78] sm:$0xff]
    %v3951 = vld [vmem:[#allocation3 + $0x80] sm:$0xff]
    %v3952 = vld [vmem:[#allocation3 + $0x88] sm:$0xff]
    %v3953 = vld [vmem:[#allocation3 + $0x90] sm:$0xff]
    %v3954 = vld [vmem:[#allocation3 + $0x98] sm:$0xff]
    %v3955 = vld [vmem:[#allocation3 + $0xa0] sm:$0xff]
    %v3956 = vld [vmem:[#allocation3 + $0xa8] sm:$0xff]
    %v3957 = vld [vmem:[#allocation3 + $0xb0] sm:$0xff]
    %v3958 = vld [vmem:[#allocation3 + $0xb8] sm:$0xff]
    %v3959 = vld [vmem:[#allocation3 + $0xc0] sm:$0xff]
    %v3960 = vld [vmem:[#allocation3 + $0xc8] sm:$0xff]
    %v3961 = vld [vmem:[#allocation3 + $0xd0] sm:$0xff]
    %v3962 = vld [vmem:[#allocation3 + $0xd8] sm:$0xff]
    %v3963 = vld [vmem:[#allocation3 + $0xe0] sm:$0xff]
    %v3964 = vld [vmem:[#allocation3 + $0xe8] sm:$0xff]
    %v3965 = vld [vmem:[#allocation3 + $0xf0] sm:$0xff]
    %v3966 = vld [vmem:[#allocation3 + $0xf8] sm:$0xff]
    %v3967 = vld [vmem:[#allocation3 + $0x100] sm:$0xff]
    %v3968 = vld [vmem:[#allocation3 + $0x108] sm:$0xff]
    %v3969 = vld [vmem:[#allocation3 + $0x110] sm:$0xff]
    %v3970 = vld [vmem:[#allocation3 + $0x118] sm:$0xff]
    %v3971 = vld [vmem:[#allocation3 + $0x120] sm:$0xff]
    %v3972 = vld [vmem:[#allocation3 + $0x128] sm:$0xff]
    %v3973 = vld [vmem:[#allocation3 + $0x130] sm:$0xff]
    %v3974 = vld [vmem:[#allocation3 + $0x138] sm:$0xff]
    %v3975 = vld [vmem:[#allocation3 + $0x140] sm:$0xff]
    %v3976 = vld [vmem:[#allocation3 + $0x148] sm:$0xff]
    %v3977 = vld [vmem:[#allocation3 + $0x150] sm:$0xff]
    %v3978 = vld [vmem:[#allocation3 + $0x158] sm:$0xff]
    %v3979 = vld [vmem:[#allocation3 + $0x160] sm:$0xff]
    %v3980 = vld [vmem:[#allocation3 + $0x168] sm:$0xff]
    %v3981 = vld [vmem:[#allocation3 + $0x170] sm:$0xff]
    %v3982 = vld [vmem:[#allocation3 + $0x178] sm:$0xff]
    %v3983 = vld [vmem:[#allocation3 + $0x180] sm:$0xff]
    %v3984 = vld [vmem:[#allocation3 + $0x188] sm:$0xff]
    %v3985 = vld [vmem:[#allocation3 + $0x190] sm:$0xff]
    %v3986 = vld [vmem:[#allocation3 + $0x198] sm:$0xff]
    %v3987 = vld [vmem:[#allocation3 + $0x1a0] sm:$0xff]
    %v3988 = vld [vmem:[#allocation3 + $0x1a8] sm:$0xff]
    %v3989 = vld [vmem:[#allocation3 + $0x1b0] sm:$0xff]
    %v3990 = vld [vmem:[#allocation3 + $0x1b8] sm:$0xff]
    %v3991 = vld [vmem:[#allocation3 + $0x1c0] sm:$0xff]
    %v3992 = vld [vmem:[#allocation3 + $0x1c8] sm:$0xff]
    %v3993 = vld [vmem:[#allocation3 + $0x1d0] sm:$0xff]
    %v3994 = vld [vmem:[#allocation3 + $0x1d8] sm:$0xff]
    %v3995 = vld [vmem:[#allocation3 + $0x1e0] sm:$0xff]
    %v3996 = vld [vmem:[#allocation3 + $0x1e8] sm:$0xff]
    %v3997 = vld [vmem:[#allocation3 + $0x1f0] sm:$0xff]
    %v3998 = vld [vmem:[#allocation3 + $0x1f8] sm:$0xff]
    %3999 = vmatprep.subr.mxu0 %v3996
    %4000 = vmatpush1.msra.mxu0 %v3995
    %4001 = vmatprep.subr.mxu0 %v3992
    %4002 = vmatpush1.msra.mxu0 %v3991
    %4003 = vmatprep.subr.mxu0 %v3988
    %4004 = vmatpush1.msra.mxu0 %v3987
    %4005 = vmatprep.subr.mxu0 %v3984
    %4006 = vmatpush1.msra.mxu0 %v3983
    %4007 = vmatprep.subr.mxu0 %v3980
    %4008 = vmatpush1.msra.mxu0 %v3979
    %4009 = vmatprep.subr.mxu0 %v3976
    %4010 = vmatpush1.msra.mxu0 %v3975
    %4011 = vmatprep.subr.mxu0 %v3972
    %4012 = vmatpush1.msra.mxu0 %v3971
    %4013 = vmatprep.subr.mxu0 %v3968
    %4014 = vmatpush1.msra.mxu0 %v3967
    %4015 = vmatprep.subr.mxu0 %v3964
    %4016 = vmatpush1.msra.mxu0 %v3963
    %4017 = vmatprep.subr.mxu0 %v3960
    %4018 = vmatpush1.msra.mxu0 %v3959
    %4019 = vmatprep.subr.mxu0 %v3956
    %4020 = vmatpush1.msra.mxu0 %v3955
    %4021 = vmatprep.subr.mxu0 %v3952
    %4022 = vmatpush1.msra.mxu0 %v3951
    %4023 = vmatprep.subr.mxu0 %v3948
    %4024 = vmatpush1.msra.mxu0 %v3947
    %4025 = vmatprep.subr.mxu0 %v3944
    %4026 = vmatpush1.msra.mxu0 %v3943
    %4027 = vmatprep.subr.mxu0 %v3940
    %4028 = vmatpush1.msra.mxu0 %v3939
    %4029 = vmatprep.subr.mxu0 %v3936
    %4030 = vmatpush1.msra.mxu0 %v3935
    %4031 = vmatprep.subr.mxu0 0.0
    %4032 = vmatpush2.msra.mxu0 0.0
    %4033 = vmatprep.subr.mxu0 0.0
    %4034 = vmatpush2.msra.mxu0 0.0
    %4035 = vmatprep.subr.mxu0 0.0
    %4036 = vmatpush2.msra.mxu0 0.0
    %4037 = vmatprep.subr.mxu0 0.0
    %4038 = vmatpush2.msra.mxu0 0.0
    %4039 = vmatprep.subr.mxu0 0.0
    %4040 = vmatpush2.msra.mxu0 0.0
    %4041 = vmatprep.subr.mxu0 0.0
    %4042 = vmatpush2.msra.mxu0 0.0
    %4043 = vmatprep.subr.mxu0 0.0
    %4044 = vmatpush2.msra.mxu0 0.0
    %4045 = vmatprep.subr.mxu0 0.0
    %4046 = vmatpush2.msra.mxu0 0.0
    %4047 = vmatprep.subr.mxu0 0.0
    %4048 = vmatpush2.msra.mxu0 0.0
    %4049 = vmatprep.subr.mxu0 0.0
    %4050 = vmatpush2.msra.mxu0 0.0
    %4051 = vmatprep.subr.mxu0 0.0
    %4052 = vmatpush2.msra.mxu0 0.0
    %4053 = vmatprep.subr.mxu0 0.0
    %4054 = vmatpush2.msra.mxu0 0.0
    %4055 = vmatprep.subr.mxu0 0.0
    %4056 = vmatpush2.msra.mxu0 0.0
    %4057 = vmatprep.subr.mxu0 0.0
    %4058 = vmatpush2.msra.mxu0 0.0
    %4059 = vmatprep.subr.mxu0 0.0
    %4060 = vmatpush2.msra.mxu0 0.0
    %4061 = vmatprep.subr.mxu0 0.0
    %4062 = vmatpush2.msra.mxu0 0.0
    %4063 = vmatprep.mubr.f32.mxu0 0.0
    %4064 = vmatmul.mubr.f32.gmra.mxu0 %v3476
    %v4065 = vpop.f32.mrf.mxu0
    %v4066 = vadd.f32 0.0, %v4065
    %v4067 = vpop.f32.mrf.mxu0
    %v4068 = vadd.f32 0.0, %v4067
    %4069 = vdwg.mxu0
    %4070 = vmatprep.subr.mxu0 %v3998
    %4071 = vmatpush1.msra.mxu0 %v3997
    %4072 = vmatprep.subr.mxu0 %v3994
    %4073 = vmatpush1.msra.mxu0 %v3993
    %4074 = vmatprep.subr.mxu0 %v3990
    %4075 = vmatpush1.msra.mxu0 %v3989
    %4076 = vmatprep.subr.mxu0 %v3986
    %4077 = vmatpush1.msra.mxu0 %v3985
    %4078 = vmatprep.subr.mxu0 %v3982
    %4079 = vmatpush1.msra.mxu0 %v3981
    %4080 = vmatprep.subr.mxu0 %v3978
    %4081 = vmatpush1.msra.mxu0 %v3977
    %4082 = vmatprep.subr.mxu0 %v3974
    %4083 = vmatpush1.msra.mxu0 %v3973
    %4084 = vmatprep.subr.mxu0 %v3970
    %4085 = vmatpush1.msra.mxu0 %v3969
    %4086 = vmatprep.subr.mxu0 %v3966
    %4087 = vmatpush1.msra.mxu0 %v3965
    %4088 = vmatprep.subr.mxu0 %v3962
    %4089 = vmatpush1.msra.mxu0 %v3961
    %4090 = vmatprep.subr.mxu0 %v3958
    %4091 = vmatpush1.msra.mxu0 %v3957
    %4092 = vmatprep.subr.mxu0 %v3954
    %4093 = vmatpush1.msra.mxu0 %v3953
    %4094 = vmatprep.subr.mxu0 %v3950
    %4095 = vmatpush1.msra.mxu0 %v3949
    %4096 = vmatprep.subr.mxu0 %v3946
    %4097 = vmatpush1.msra.mxu0 %v3945
    %4098 = vmatprep.subr.mxu0 %v3942
    %4099 = vmatpush1.msra.mxu0 %v3941
    %4100 = vmatprep.subr.mxu0 %v3938
    %4101 = vmatpush1.msra.mxu0 %v3937
    %4102 = vmatprep.subr.mxu0 0.0
    %4103 = vmatpush2.msra.mxu0 0.0
    %4104 = vmatprep.subr.mxu0 0.0
    %4105 = vmatpush2.msra.mxu0 0.0
    %4106 = vmatprep.subr.mxu0 0.0
    %4107 = vmatpush2.msra.mxu0 0.0
    %4108 = vmatprep.subr.mxu0 0.0
    %4109 = vmatpush2.msra.mxu0 0.0
    %4110 = vmatprep.subr.mxu0 0.0
    %4111 = vmatpush2.msra.mxu0 0.0
    %4112 = vmatprep.subr.mxu0 0.0
    %4113 = vmatpush2.msra.mxu0 0.0
    %4114 = vmatprep.subr.mxu0 0.0
    %4115 = vmatpush2.msra.mxu0 0.0
    %4116 = vmatprep.subr.mxu0 0.0
    %4117 = vmatpush2.msra.mxu0 0.0
    %4118 = vmatprep.subr.mxu0 0.0
    %4119 = vmatpush2.msra.mxu0 0.0
    %4120 = vmatprep.subr.mxu0 0.0
    %4121 = vmatpush2.msra.mxu0 0.0
    %4122 = vmatprep.subr.mxu0 0.0
    %4123 = vmatpush2.msra.mxu0 0.0
    %4124 = vmatprep.subr.mxu0 0.0
    %4125 = vmatpush2.msra.mxu0 0.0
    %4126 = vmatprep.subr.mxu0 0.0
    %4127 = vmatpush2.msra.mxu0 0.0
    %4128 = vmatprep.subr.mxu0 0.0
    %4129 = vmatpush2.msra.mxu0 0.0
    %4130 = vmatprep.subr.mxu0 0.0
    %4131 = vmatpush2.msra.mxu0 0.0
    %4132 = vmatprep.subr.mxu0 0.0
    %4133 = vmatpush2.msra.mxu0 0.0
    %4134 = vmatprep.mubr.f32.mxu0 0.0
    %4135 = vmatmul.mubr.f32.gmra.mxu0 %v3476
    %v4136 = vpop.f32.mrf.mxu0
    %v4137 = vadd.f32 0.0, %v4136
    %v4138 = vpop.f32.mrf.mxu0
    %v4139 = vadd.f32 0.0, %v4138
    %4140 = vdwg.mxu0
    %v4141 = vadd.f32 %v3931, %v4066
    %v4142 = vadd.f32 %v3932, %v4068
    %v4143 = vadd.f32 %v3933, %v4137
    %v4144 = vadd.f32 %v3934, %v4139
    %v4145 = vtanh.pop %v4141
    %v4146 = vtanh.pop %v4142
    %v4147 = vtanh.pop %v4143
    %v4148 = vtanh.pop %v4144
    %v4149 = vadd.f32 %v4145, 1.0
    %v4150 = vmul.f32 %v4149, 0.5
    %v4151 = vadd.f32 %v4146, 1.0
    %v4152 = vmul.f32 %v4151, 0.5
    %v4153 = vadd.f32 %v4148, 1.0
    %v4154 = vmul.f32 %v4153, 0.5
    %v4155 = vmul.f32 %v4152, %v3474
    %v4156 = vmul.f32 %v4150, %v4147
    %v4157 = vadd.f32 %v4155, %v4156
    %v4158 = vtanh.pop %v4157
    %v4159 = vmul.f32 %v4154, %v4158
    %v4160 = vld [vmem:[#allocation4] sm:$0xff]
    %v4161 = vld [vmem:[#allocation4 + $0x8] sm:$0xff]
    %v4162 = vld [vmem:[#allocation4 + $0x10] sm:$0xff]
    %v4163 = vld [vmem:[#allocation4 + $0x18] sm:$0xff]
    %v4164 = vld [vmem:[#allocation4 + $0x20] sm:$0xff]
    %v4165 = vld [vmem:[#allocation4 + $0x28] sm:$0xff]
    %v4166 = vld [vmem:[#allocation4 + $0x30] sm:$0xff]
    %v4167 = vld [vmem:[#allocation4 + $0x38] sm:$0xff]
    %v4168 = vld [vmem:[#allocation4 + $0x40] sm:$0xff]
    %v4169 = vld [vmem:[#allocation4 + $0x48] sm:$0xff]
    %v4170 = vld [vmem:[#allocation4 + $0x50] sm:$0xff]
    %v4171 = vld [vmem:[#allocation4 + $0x58] sm:$0xff]
    %v4172 = vld [vmem:[#allocation4 + $0x60] sm:$0xff]
    %v4173 = vld [vmem:[#allocation4 + $0x68] sm:$0xff]
    %v4174 = vld [vmem:[#allocation4 + $0x70] sm:$0xff]
    %v4175 = vld [vmem:[#allocation4 + $0x78] sm:$0xff]
    %v4176 = vld [vmem:[#allocation4 + $0x80] sm:$0xff]
    %v4177 = vld [vmem:[#allocation4 + $0x88] sm:$0xff]
    %v4178 = vld [vmem:[#allocation4 + $0x90] sm:$0xff]
    %v4179 = vld [vmem:[#allocation4 + $0x98] sm:$0xff]
    %v4180 = vld [vmem:[#allocation4 + $0xa0] sm:$0xff]
    %v4181 = vld [vmem:[#allocation4 + $0xa8] sm:$0xff]
    %v4182 = vld [vmem:[#allocation4 + $0xb0] sm:$0xff]
    %v4183 = vld [vmem:[#allocation4 + $0xb8] sm:$0xff]
    %v4184 = vld [vmem:[#allocation4 + $0xc0] sm:$0xff]
    %v4185 = vld [vmem:[#allocation4 + $0xc8] sm:$0xff]
    %v4186 = vld [vmem:[#allocation4 + $0xd0] sm:$0xff]
    %v4187 = vld [vmem:[#allocation4 + $0xd8] sm:$0xff]
    %v4188 = vld [vmem:[#allocation4 + $0xe0] sm:$0xff]
    %v4189 = vld [vmem:[#allocation4 + $0xe8] sm:$0xff]
    %v4190 = vld [vmem:[#allocation4 + $0xf0] sm:$0xff]
    %v4191 = vld [vmem:[#allocation4 + $0xf8] sm:$0xff]
    %v4192 = vld [vmem:[#allocation4 + $0x100] sm:$0xff]
    %v4193 = vld [vmem:[#allocation4 + $0x108] sm:$0xff]
    %v4194 = vld [vmem:[#allocation4 + $0x110] sm:$0xff]
    %v4195 = vld [vmem:[#allocation4 + $0x118] sm:$0xff]
    %v4196 = vld [vmem:[#allocation4 + $0x120] sm:$0xff]
    %v4197 = vld [vmem:[#allocation4 + $0x128] sm:$0xff]
    %v4198 = vld [vmem:[#allocation4 + $0x130] sm:$0xff]
    %v4199 = vld [vmem:[#allocation4 + $0x138] sm:$0xff]
    %v4200 = vld [vmem:[#allocation4 + $0x140] sm:$0xff]
    %v4201 = vld [vmem:[#allocation4 + $0x148] sm:$0xff]
    %v4202 = vld [vmem:[#allocation4 + $0x150] sm:$0xff]
    %v4203 = vld [vmem:[#allocation4 + $0x158] sm:$0xff]
    %v4204 = vld [vmem:[#allocation4 + $0x160] sm:$0xff]
    %v4205 = vld [vmem:[#allocation4 + $0x168] sm:$0xff]
    %v4206 = vld [vmem:[#allocation4 + $0x170] sm:$0xff]
    %v4207 = vld [vmem:[#allocation4 + $0x178] sm:$0xff]
    %v4208 = vld [vmem:[#allocation4 + $0x180] sm:$0xff]
    %v4209 = vld [vmem:[#allocation4 + $0x188] sm:$0xff]
    %v4210 = vld [vmem:[#allocation4 + $0x190] sm:$0xff]
    %v4211 = vld [vmem:[#allocation4 + $0x198] sm:$0xff]
    %v4212 = vld [vmem:[#allocation4 + $0x1a0] sm:$0xff]
    %v4213 = vld [vmem:[#allocation4 + $0x1a8] sm:$0xff]
    %v4214 = vld [vmem:[#allocation4 + $0x1b0] sm:$0xff]
    %v4215 = vld [vmem:[#allocation4 + $0x1b8] sm:$0xff]
    %v4216 = vld [vmem:[#allocation4 + $0x1c0] sm:$0xff]
    %v4217 = vld [vmem:[#allocation4 + $0x1c8] sm:$0xff]
    %v4218 = vld [vmem:[#allocation4 + $0x1d0] sm:$0xff]
    %v4219 = vld [vmem:[#allocation4 + $0x1d8] sm:$0xff]
    %v4220 = vld [vmem:[#allocation4 + $0x1e0] sm:$0xff]
    %v4221 = vld [vmem:[#allocation4 + $0x1e8] sm:$0xff]
    %v4222 = vld [vmem:[#allocation4 + $0x1f0] sm:$0xff]
    %v4223 = vld [vmem:[#allocation4 + $0x1f8] sm:$0xff]
    %v4224 = vld [vmem:[#allocation5] sm:$0xff]
    %v4225 = vld [vmem:[#allocation5 + $0x8] sm:$0xff]
    %v4226 = vld [vmem:[#allocation5 + $0x10] sm:$0xff]
    %v4227 = vld [vmem:[#allocation5 + $0x18] sm:$0xff]
    %v4228 = vld [vmem:[#allocation5 + $0x20] sm:$0xff]
    %v4229 = vld [vmem:[#allocation5 + $0x28] sm:$0xff]
    %v4230 = vld [vmem:[#allocation5 + $0x30] sm:$0xff]
    %v4231 = vld [vmem:[#allocation5 + $0x38] sm:$0xff]
    %v4232 = vld [vmem:[#allocation5 + $0x40] sm:$0xff]
    %v4233 = vld [vmem:[#allocation5 + $0x48] sm:$0xff]
    %v4234 = vld [vmem:[#allocation5 + $0x50] sm:$0xff]
    %v4235 = vld [vmem:[#allocation5 + $0x58] sm:$0xff]
    %v4236 = vld [vmem:[#allocation5 + $0x60] sm:$0xff]
    %v4237 = vld [vmem:[#allocation5 + $0x68] sm:$0xff]
    %v4238 = vld [vmem:[#allocation5 + $0x70] sm:$0xff]
    %v4239 = vld [vmem:[#allocation5 + $0x78] sm:$0xff]
    %v4240 = vld [vmem:[#allocation5 + $0x80] sm:$0xff]
    %v4241 = vld [vmem:[#allocation5 + $0x88] sm:$0xff]
    %v4242 = vld [vmem:[#allocation5 + $0x90] sm:$0xff]
    %v4243 = vld [vmem:[#allocation5 + $0x98] sm:$0xff]
    %v4244 = vld [vmem:[#allocation5 + $0xa0] sm:$0xff]
    %v4245 = vld [vmem:[#allocation5 + $0xa8] sm:$0xff]
    %v4246 = vld [vmem:[#allocation5 + $0xb0] sm:$0xff]
    %v4247 = vld [vmem:[#allocation5 + $0xb8] sm:$0xff]
    %v4248 = vld [vmem:[#allocation5 + $0xc0] sm:$0xff]
    %v4249 = vld [vmem:[#allocation5 + $0xc8] sm:$0xff]
    %v4250 = vld [vmem:[#allocation5 + $0xd0] sm:$0xff]
    %v4251 = vld [vmem:[#allocation5 + $0xd8] sm:$0xff]
    %v4252 = vld [vmem:[#allocation5 + $0xe0] sm:$0xff]
    %v4253 = vld [vmem:[#allocation5 + $0xe8] sm:$0xff]
    %v4254 = vld [vmem:[#allocation5 + $0xf0] sm:$0xff]
    %v4255 = vld [vmem:[#allocation5 + $0xf8] sm:$0xff]
    %v4256 = vld [vmem:[#allocation5 + $0x100] sm:$0xff]
    %v4257 = vld [vmem:[#allocation5 + $0x108] sm:$0xff]
    %v4258 = vld [vmem:[#allocation5 + $0x110] sm:$0xff]
    %v4259 = vld [vmem:[#allocation5 + $0x118] sm:$0xff]
    %v4260 = vld [vmem:[#allocation5 + $0x120] sm:$0xff]
    %v4261 = vld [vmem:[#allocation5 + $0x128] sm:$0xff]
    %v4262 = vld [vmem:[#allocation5 + $0x130] sm:$0xff]
    %v4263 = vld [vmem:[#allocation5 + $0x138] sm:$0xff]
    %v4264 = vld [vmem:[#allocation5 + $0x140] sm:$0xff]
    %v4265 = vld [vmem:[#allocation5 + $0x148] sm:$0xff]
    %v4266 = vld [vmem:[#allocation5 + $0x150] sm:$0xff]
    %v4267 = vld [vmem:[#allocation5 + $0x158] sm:$0xff]
    %v4268 = vld [vmem:[#allocation5 + $0x160] sm:$0xff]
    %v4269 = vld [vmem:[#allocation5 + $0x168] sm:$0xff]
    %v4270 = vld [vmem:[#allocation5 + $0x170] sm:$0xff]
    %v4271 = vld [vmem:[#allocation5 + $0x178] sm:$0xff]
    %v4272 = vld [vmem:[#allocation5 + $0x180] sm:$0xff]
    %v4273 = vld [vmem:[#allocation5 + $0x188] sm:$0xff]
    %v4274 = vld [vmem:[#allocation5 + $0x190] sm:$0xff]
    %v4275 = vld [vmem:[#allocation5 + $0x198] sm:$0xff]
    %v4276 = vld [vmem:[#allocation5 + $0x1a0] sm:$0xff]
    %v4277 = vld [vmem:[#allocation5 + $0x1a8] sm:$0xff]
    %v4278 = vld [vmem:[#allocation5 + $0x1b0] sm:$0xff]
    %v4279 = vld [vmem:[#allocation5 + $0x1b8] sm:$0xff]
    %v4280 = vld [vmem:[#allocation5 + $0x1c0] sm:$0xff]
    %v4281 = vld [vmem:[#allocation5 + $0x1c8] sm:$0xff]
    %v4282 = vld [vmem:[#allocation5 + $0x1d0] sm:$0xff]
    %v4283 = vld [vmem:[#allocation5 + $0x1d8] sm:$0xff]
    %v4284 = vld [vmem:[#allocation5 + $0x1e0] sm:$0xff]
    %v4285 = vld [vmem:[#allocation5 + $0x1e8] sm:$0xff]
    %v4286 = vld [vmem:[#allocation5 + $0x1f0] sm:$0xff]
    %v4287 = vld [vmem:[#allocation5 + $0x1f8] sm:$0xff]
    %4288 = vmatprep.subr.mxu0 %v4285
    %4289 = vmatpush1.msra.mxu0 %v4284
    %4290 = vmatprep.subr.mxu0 %v4281
    %4291 = vmatpush1.msra.mxu0 %v4280
    %4292 = vmatprep.subr.mxu0 %v4277
    %4293 = vmatpush1.msra.mxu0 %v4276
    %4294 = vmatprep.subr.mxu0 %v4273
    %4295 = vmatpush1.msra.mxu0 %v4272
    %4296 = vmatprep.subr.mxu0 %v4269
    %4297 = vmatpush1.msra.mxu0 %v4268
    %4298 = vmatprep.subr.mxu0 %v4265
    %4299 = vmatpush1.msra.mxu0 %v4264
    %4300 = vmatprep.subr.mxu0 %v4261
    %4301 = vmatpush1.msra.mxu0 %v4260
    %4302 = vmatprep.subr.mxu0 %v4257
    %4303 = vmatpush1.msra.mxu0 %v4256
    %4304 = vmatprep.subr.mxu0 %v4253
    %4305 = vmatpush1.msra.mxu0 %v4252
    %4306 = vmatprep.subr.mxu0 %v4249
    %4307 = vmatpush1.msra.mxu0 %v4248
    %4308 = vmatprep.subr.mxu0 %v4245
    %4309 = vmatpush1.msra.mxu0 %v4244
    %4310 = vmatprep.subr.mxu0 %v4241
    %4311 = vmatpush1.msra.mxu0 %v4240
    %4312 = vmatprep.subr.mxu0 %v4237
    %4313 = vmatpush1.msra.mxu0 %v4236
    %4314 = vmatprep.subr.mxu0 %v4233
    %4315 = vmatpush1.msra.mxu0 %v4232
    %4316 = vmatprep.subr.mxu0 %v4229
    %4317 = vmatpush1.msra.mxu0 %v4228
    %4318 = vmatprep.subr.mxu0 %v4225
    %4319 = vmatpush1.msra.mxu0 %v4224
    %4320 = vmatprep.subr.mxu0 0.0
    %4321 = vmatpush2.msra.mxu0 0.0
    %4322 = vmatprep.subr.mxu0 0.0
    %4323 = vmatpush2.msra.mxu0 0.0
    %4324 = vmatprep.subr.mxu0 0.0
    %4325 = vmatpush2.msra.mxu0 0.0
    %4326 = vmatprep.subr.mxu0 0.0
    %4327 = vmatpush2.msra.mxu0 0.0
    %4328 = vmatprep.subr.mxu0 0.0
    %4329 = vmatpush2.msra.mxu0 0.0
    %4330 = vmatprep.subr.mxu0 0.0
    %4331 = vmatpush2.msra.mxu0 0.0
    %4332 = vmatprep.subr.mxu0 0.0
    %4333 = vmatpush2.msra.mxu0 0.0
    %4334 = vmatprep.subr.mxu0 0.0
    %4335 = vmatpush2.msra.mxu0 0.0
    %4336 = vmatprep.subr.mxu0 0.0
    %4337 = vmatpush2.msra.mxu0 0.0
    %4338 = vmatprep.subr.mxu0 0.0
    %4339 = vmatpush2.msra.mxu0 0.0
    %4340 = vmatprep.subr.mxu0 0.0
    %4341 = vmatpush2.msra.mxu0 0.0
    %4342 = vmatprep.subr.mxu0 0.0
    %4343 = vmatpush2.msra.mxu0 0.0
    %4344 = vmatprep.subr.mxu0 0.0
    %4345 = vmatpush2.msra.mxu0 0.0
    %4346 = vmatprep.subr.mxu0 0.0
    %4347 = vmatpush2.msra.mxu0 0.0
    %4348 = vmatprep.subr.mxu0 0.0
    %4349 = vmatpush2.msra.mxu0 0.0
    %4350 = vmatprep.subr.mxu0 0.0
    %4351 = vmatpush2.msra.mxu0 0.0
    %4352 = vmatprep.mubr.f32.mxu0 0.0
    %4353 = vmatmul.mubr.f32.gmra.mxu0 %v3929
    %v4354 = vpop.f32.mrf.mxu0
    %v4355 = vadd.f32 0.0, %v4354
    %v4356 = vpop.f32.mrf.mxu0
    %v4357 = vadd.f32 0.0, %v4356
    %4358 = vdwg.mxu0
    %4359 = vmatprep.subr.mxu0 %v4287
    %4360 = vmatpush1.msra.mxu0 %v4286
    %4361 = vmatprep.subr.mxu0 %v4283
    %4362 = vmatpush1.msra.mxu0 %v4282
    %4363 = vmatprep.subr.mxu0 %v4279
    %4364 = vmatpush1.msra.mxu0 %v4278
    %4365 = vmatprep.subr.mxu0 %v4275
    %4366 = vmatpush1.msra.mxu0 %v4274
    %4367 = vmatprep.subr.mxu0 %v4271
    %4368 = vmatpush1.msra.mxu0 %v4270
    %4369 = vmatprep.subr.mxu0 %v4267
    %4370 = vmatpush1.msra.mxu0 %v4266
    %4371 = vmatprep.subr.mxu0 %v4263
    %4372 = vmatpush1.msra.mxu0 %v4262
    %4373 = vmatprep.subr.mxu0 %v4259
    %4374 = vmatpush1.msra.mxu0 %v4258
    %4375 = vmatprep.subr.mxu0 %v4255
    %4376 = vmatpush1.msra.mxu0 %v4254
    %4377 = vmatprep.subr.mxu0 %v4251
    %4378 = vmatpush1.msra.mxu0 %v4250
    %4379 = vmatprep.subr.mxu0 %v4247
    %4380 = vmatpush1.msra.mxu0 %v4246
    %4381 = vmatprep.subr.mxu0 %v4243
    %4382 = vmatpush1.msra.mxu0 %v4242
    %4383 = vmatprep.subr.mxu0 %v4239
    %4384 = vmatpush1.msra.mxu0 %v4238
    %4385 = vmatprep.subr.mxu0 %v4235
    %4386 = vmatpush1.msra.mxu0 %v4234
    %4387 = vmatprep.subr.mxu0 %v4231
    %4388 = vmatpush1.msra.mxu0 %v4230
    %4389 = vmatprep.subr.mxu0 %v4227
    %4390 = vmatpush1.msra.mxu0 %v4226
    %4391 = vmatprep.subr.mxu0 0.0
    %4392 = vmatpush2.msra.mxu0 0.0
    %4393 = vmatprep.subr.mxu0 0.0
    %4394 = vmatpush2.msra.mxu0 0.0
    %4395 = vmatprep.subr.mxu0 0.0
    %4396 = vmatpush2.msra.mxu0 0.0
    %4397 = vmatprep.subr.mxu0 0.0
    %4398 = vmatpush2.msra.mxu0 0.0
    %4399 = vmatprep.subr.mxu0 0.0
    %4400 = vmatpush2.msra.mxu0 0.0
    %4401 = vmatprep.subr.mxu0 0.0
    %4402 = vmatpush2.msra.mxu0 0.0
    %4403 = vmatprep.subr.mxu0 0.0
    %4404 = vmatpush2.msra.mxu0 0.0
    %4405 = vmatprep.subr.mxu0 0.0
    %4406 = vmatpush2.msra.mxu0 0.0
    %4407 = vmatprep.subr.mxu0 0.0
    %4408 = vmatpush2.msra.mxu0 0.0
    %4409 = vmatprep.subr.mxu0 0.0
    %4410 = vmatpush2.msra.mxu0 0.0
    %4411 = vmatprep.subr.mxu0 0.0
    %4412 = vmatpush2.msra.mxu0 0.0
    %4413 = vmatprep.subr.mxu0 0.0
    %4414 = vmatpush2.msra.mxu0 0.0
    %4415 = vmatprep.subr.mxu0 0.0
    %4416 = vmatpush2.msra.mxu0 0.0
    %4417 = vmatprep.subr.mxu0 0.0
    %4418 = vmatpush2.msra.mxu0 0.0
    %4419 = vmatprep.subr.mxu0 0.0
    %4420 = vmatpush2.msra.mxu0 0.0
    %4421 = vmatprep.subr.mxu0 0.0
    %4422 = vmatpush2.msra.mxu0 0.0
    %4423 = vmatprep.mubr.f32.mxu0 0.0
    %4424 = vmatmul.mubr.f32.gmra.mxu0 %v3929
    %v4425 = vpop.f32.mrf.mxu0
    %v4426 = vadd.f32 0.0, %v4425
    %v4427 = vpop.f32.mrf.mxu0
    %v4428 = vadd.f32 0.0, %v4427
    %4429 = vdwg.mxu0
    %4430 = vmatprep.subr.mxu0 %v4221
    %4431 = vmatpush1.msra.mxu0 %v4220
    %4432 = vmatprep.subr.mxu0 %v4217
    %4433 = vmatpush1.msra.mxu0 %v4216
    %4434 = vmatprep.subr.mxu0 %v4213
    %4435 = vmatpush1.msra.mxu0 %v4212
    %4436 = vmatprep.subr.mxu0 %v4209
    %4437 = vmatpush1.msra.mxu0 %v4208
    %4438 = vmatprep.subr.mxu0 %v4205
    %4439 = vmatpush1.msra.mxu0 %v4204
    %4440 = vmatprep.subr.mxu0 %v4201
    %4441 = vmatpush1.msra.mxu0 %v4200
    %4442 = vmatprep.subr.mxu0 %v4197
    %4443 = vmatpush1.msra.mxu0 %v4196
    %4444 = vmatprep.subr.mxu0 %v4193
    %4445 = vmatpush1.msra.mxu0 %v4192
    %4446 = vmatprep.subr.mxu0 %v4189
    %4447 = vmatpush1.msra.mxu0 %v4188
    %4448 = vmatprep.subr.mxu0 %v4185
    %4449 = vmatpush1.msra.mxu0 %v4184
    %4450 = vmatprep.subr.mxu0 %v4181
    %4451 = vmatpush1.msra.mxu0 %v4180
    %4452 = vmatprep.subr.mxu0 %v4177
    %4453 = vmatpush1.msra.mxu0 %v4176
    %4454 = vmatprep.subr.mxu0 %v4173
    %4455 = vmatpush1.msra.mxu0 %v4172
    %4456 = vmatprep.subr.mxu0 %v4169
    %4457 = vmatpush1.msra.mxu0 %v4168
    %4458 = vmatprep.subr.mxu0 %v4165
    %4459 = vmatpush1.msra.mxu0 %v4164
    %4460 = vmatprep.subr.mxu0 %v4161
    %4461 = vmatpush1.msra.mxu0 %v4160
    %4462 = vmatprep.subr.mxu0 0.0
    %4463 = vmatpush2.msra.mxu0 0.0
    %4464 = vmatprep.subr.mxu0 0.0
    %4465 = vmatpush2.msra.mxu0 0.0
    %4466 = vmatprep.subr.mxu0 0.0
    %4467 = vmatpush2.msra.mxu0 0.0
    %4468 = vmatprep.subr.mxu0 0.0
    %4469 = vmatpush2.msra.mxu0 0.0
    %4470 = vmatprep.subr.mxu0 0.0
    %4471 = vmatpush2.msra.mxu0 0.0
    %4472 = vmatprep.subr.mxu0 0.0
    %4473 = vmatpush2.msra.mxu0 0.0
    %4474 = vmatprep.subr.mxu0 0.0
    %4475 = vmatpush2.msra.mxu0 0.0
    %4476 = vmatprep.subr.mxu0 0.0
    %4477 = vmatpush2.msra.mxu0 0.0
    %4478 = vmatprep.subr.mxu0 0.0
    %4479 = vmatpush2.msra.mxu0 0.0
    %4480 = vmatprep.subr.mxu0 0.0
    %4481 = vmatpush2.msra.mxu0 0.0
    %4482 = vmatprep.subr.mxu0 0.0
    %4483 = vmatpush2.msra.mxu0 0.0
    %4484 = vmatprep.subr.mxu0 0.0
    %4485 = vmatpush2.msra.mxu0 0.0
    %4486 = vmatprep.subr.mxu0 0.0
    %4487 = vmatpush2.msra.mxu0 0.0
    %4488 = vmatprep.subr.mxu0 0.0
    %4489 = vmatpush2.msra.mxu0 0.0
    %4490 = vmatprep.subr.mxu0 0.0
    %4491 = vmatpush2.msra.mxu0 0.0
    %4492 = vmatprep.subr.mxu0 0.0
    %4493 = vmatpush2.msra.mxu0 0.0
    %4494 = vmatprep.mubr.f32.mxu0 0.0
    %4495 = vmatmul.mubr.f32.gmra.mxu0 %v4159
    %v4496 = vpop.f32.mrf.mxu0
    %v4497 = vadd.f32 %v4355, %v4496
    %v4498 = vpop.f32.mrf.mxu0
    %v4499 = vadd.f32 %v4357, %v4498
    %4500 = vdwg.mxu0
    %4501 = vmatprep.subr.mxu0 %v4223
    %4502 = vmatpush1.msra.mxu0 %v4222
    %4503 = vmatprep.subr.mxu0 %v4219
    %4504 = vmatpush1.msra.mxu0 %v4218
    %4505 = vmatprep.subr.mxu0 %v4215
    %4506 = vmatpush1.msra.mxu0 %v4214
    %4507 = vmatprep.subr.mxu0 %v4211
    %4508 = vmatpush1.msra.mxu0 %v4210
    %4509 = vmatprep.subr.mxu0 %v4207
    %4510 = vmatpush1.msra.mxu0 %v4206
    %4511 = vmatprep.subr.mxu0 %v4203
    %4512 = vmatpush1.msra.mxu0 %v4202
    %4513 = vmatprep.subr.mxu0 %v4199
    %4514 = vmatpush1.msra.mxu0 %v4198
    %4515 = vmatprep.subr.mxu0 %v4195
    %4516 = vmatpush1.msra.mxu0 %v4194
    %4517 = vmatprep.subr.mxu0 %v4191
    %4518 = vmatpush1.msra.mxu0 %v4190
    %4519 = vmatprep.subr.mxu0 %v4187
    %4520 = vmatpush1.msra.mxu0 %v4186
    %4521 = vmatprep.subr.mxu0 %v4183
    %4522 = vmatpush1.msra.mxu0 %v4182
    %4523 = vmatprep.subr.mxu0 %v4179
    %4524 = vmatpush1.msra.mxu0 %v4178
    %4525 = vmatprep.subr.mxu0 %v4175
    %4526 = vmatpush1.msra.mxu0 %v4174
    %4527 = vmatprep.subr.mxu0 %v4171
    %4528 = vmatpush1.msra.mxu0 %v4170
    %4529 = vmatprep.subr.mxu0 %v4167
    %4530 = vmatpush1.msra.mxu0 %v4166
    %4531 = vmatprep.subr.mxu0 %v4163
    %4532 = vmatpush1.msra.mxu0 %v4162
    %4533 = vmatprep.subr.mxu0 0.0
    %4534 = vmatpush2.msra.mxu0 0.0
    %4535 = vmatprep.subr.mxu0 0.0
    %4536 = vmatpush2.msra.mxu0 0.0
    %4537 = vmatprep.subr.mxu0 0.0
    %4538 = vmatpush2.msra.mxu0 0.0
    %4539 = vmatprep.subr.mxu0 0.0
    %4540 = vmatpush2.msra.mxu0 0.0
    %4541 = vmatprep.subr.mxu0 0.0
    %4542 = vmatpush2.msra.mxu0 0.0
    %4543 = vmatprep.subr.mxu0 0.0
    %4544 = vmatpush2.msra.mxu0 0.0
    %4545 = vmatprep.subr.mxu0 0.0
    %4546 = vmatpush2.msra.mxu0 0.0
    %4547 = vmatprep.subr.mxu0 0.0
    %4548 = vmatpush2.msra.mxu0 0.0
    %4549 = vmatprep.subr.mxu0 0.0
    %4550 = vmatpush2.msra.mxu0 0.0
    %4551 = vmatprep.subr.mxu0 0.0
    %4552 = vmatpush2.msra.mxu0 0.0
    %4553 = vmatprep.subr.mxu0 0.0
    %4554 = vmatpush2.msra.mxu0 0.0
    %4555 = vmatprep.subr.mxu0 0.0
    %4556 = vmatpush2.msra.mxu0 0.0
    %4557 = vmatprep.subr.mxu0 0.0
    %4558 = vmatpush2.msra.mxu0 0.0
    %4559 = vmatprep.subr.mxu0 0.0
    %4560 = vmatpush2.msra.mxu0 0.0
    %4561 = vmatprep.subr.mxu0 0.0
    %4562 = vmatpush2.msra.mxu0 0.0
    %4563 = vmatprep.subr.mxu0 0.0
    %4564 = vmatpush2.msra.mxu0 0.0
    %4565 = vmatprep.mubr.f32.mxu0 0.0
    %4566 = vmatmul.mubr.f32.gmra.mxu0 %v4159
    %v4567 = vpop.f32.mrf.mxu0
    %v4568 = vadd.f32 %v4426, %v4567
    %v4569 = vpop.f32.mrf.mxu0
    %v4570 = vadd.f32 %v4428, %v4569
    %4571 = vdwg.mxu0
    %v4572 = vld [vmem:[#allocation12] sm:$0xf]
    %v4574 = vlaneseq
    %v4575 = vshrl.u32 %v4574, 7
    %v4576 = vsub.s32 0, %v4575
    %v4577 = vrot.slane %v4572, %v4576
    %v4578 = vlaneseq
    %v4579 = vshrl.u32 %v4578, 7
    %v4580 = vsub.s32 1, %v4579
    %v4581 = vrot.slane %v4572, %v4580
    %v4582 = vlaneseq
    %v4583 = vshrl.u32 %v4582, 7
    %v4584 = vsub.s32 2, %v4583
    %v4585 = vrot.slane %v4572, %v4584
    %v4586 = vlaneseq
    %v4587 = vshrl.u32 %v4586, 7
    %v4588 = vsub.s32 3, %v4587
    %v4589 = vrot.slane %v4572, %v4588
    %v4594 = vadd.f32 %v4497, %v4577
    %v4595 = vadd.f32 %v4499, %v4581
    %v4596 = vadd.f32 %v4568, %v4585
    %v4597 = vadd.f32 %v4570, %v4589
    %v4598 = vtanh.pop %v4594
    %v4599 = vtanh.pop %v4595
    %v4600 = vtanh.pop %v4596
    %v4601 = vtanh.pop %v4597
    %v4602 = vadd.f32 %v4598, 1.0
    %v4603 = vmul.f32 %v4602, 0.5
    %v4604 = vadd.f32 %v4599, 1.0
    %v4605 = vmul.f32 %v4604, 0.5
    %v4606 = vadd.f32 %v4601, 1.0
    %v4607 = vmul.f32 %v4606, 0.5
    %v4608 = vmul.f32 %v4605, %v3927
    %v4609 = vmul.f32 %v4603, %v4600
    %v4610 = vadd.f32 %v4608, %v4609
    %v4611 = vtanh.pop %v4610
    %v4612 = vmul.f32 %v4607, %v4611
    %4613 = vst [vmem:[#allocation17 + $0x20] sm:$0xff] %v4612
    %v4614 = vld [vmem:[#allocation2 + $0xa0] sm:$0xff]
    %v4615 = vld [vmem:[#allocation2 + $0xa8] sm:$0xff]
    %v4616 = vld [vmem:[#allocation2 + $0xb0] sm:$0xff]
    %v4617 = vld [vmem:[#allocation2 + $0xb8] sm:$0xff]
    %v4618 = vld [vmem:[#allocation3] sm:$0xff]
    %v4619 = vld [vmem:[#allocation3 + $0x8] sm:$0xff]
    %v4620 = vld [vmem:[#allocation3 + $0x10] sm:$0xff]
    %v4621 = vld [vmem:[#allocation3 + $0x18] sm:$0xff]
    %v4622 = vld [vmem:[#allocation3 + $0x20] sm:$0xff]
    %v4623 = vld [vmem:[#allocation3 + $0x28] sm:$0xff]
    %v4624 = vld [vmem:[#allocation3 + $0x30] sm:$0xff]
    %v4625 = vld [vmem:[#allocation3 + $0x38] sm:$0xff]
    %v4626 = vld [vmem:[#allocation3 + $0x40] sm:$0xff]
    %v4627 = vld [vmem:[#allocation3 + $0x48] sm:$0xff]
    %v4628 = vld [vmem:[#allocation3 + $0x50] sm:$0xff]
    %v4629 = vld [vmem:[#allocation3 + $0x58] sm:$0xff]
    %v4630 = vld [vmem:[#allocation3 + $0x60] sm:$0xff]
    %v4631 = vld [vmem:[#allocation3 + $0x68] sm:$0xff]
    %v4632 = vld [vmem:[#allocation3 + $0x70] sm:$0xff]
    %v4633 = vld [vmem:[#allocation3 + $0x78] sm:$0xff]
    %v4634 = vld [vmem:[#allocation3 + $0x80] sm:$0xff]
    %v4635 = vld [vmem:[#allocation3 + $0x88] sm:$0xff]
    %v4636 = vld [vmem:[#allocation3 + $0x90] sm:$0xff]
    %v4637 = vld [vmem:[#allocation3 + $0x98] sm:$0xff]
    %v4638 = vld [vmem:[#allocation3 + $0xa0] sm:$0xff]
    %v4639 = vld [vmem:[#allocation3 + $0xa8] sm:$0xff]
    %v4640 = vld [vmem:[#allocation3 + $0xb0] sm:$0xff]
    %v4641 = vld [vmem:[#allocation3 + $0xb8] sm:$0xff]
    %v4642 = vld [vmem:[#allocation3 + $0xc0] sm:$0xff]
    %v4643 = vld [vmem:[#allocation3 + $0xc8] sm:$0xff]
    %v4644 = vld [vmem:[#allocation3 + $0xd0] sm:$0xff]
    %v4645 = vld [vmem:[#allocation3 + $0xd8] sm:$0xff]
    %v4646 = vld [vmem:[#allocation3 + $0xe0] sm:$0xff]
    %v4647 = vld [vmem:[#allocation3 + $0xe8] sm:$0xff]
    %v4648 = vld [vmem:[#allocation3 + $0xf0] sm:$0xff]
    %v4649 = vld [vmem:[#allocation3 + $0xf8] sm:$0xff]
    %v4650 = vld [vmem:[#allocation3 + $0x100] sm:$0xff]
    %v4651 = vld [vmem:[#allocation3 + $0x108] sm:$0xff]
    %v4652 = vld [vmem:[#allocation3 + $0x110] sm:$0xff]
    %v4653 = vld [vmem:[#allocation3 + $0x118] sm:$0xff]
    %v4654 = vld [vmem:[#allocation3 + $0x120] sm:$0xff]
    %v4655 = vld [vmem:[#allocation3 + $0x128] sm:$0xff]
    %v4656 = vld [vmem:[#allocation3 + $0x130] sm:$0xff]
    %v4657 = vld [vmem:[#allocation3 + $0x138] sm:$0xff]
    %v4658 = vld [vmem:[#allocation3 + $0x140] sm:$0xff]
    %v4659 = vld [vmem:[#allocation3 + $0x148] sm:$0xff]
    %v4660 = vld [vmem:[#allocation3 + $0x150] sm:$0xff]
    %v4661 = vld [vmem:[#allocation3 + $0x158] sm:$0xff]
    %v4662 = vld [vmem:[#allocation3 + $0x160] sm:$0xff]
    %v4663 = vld [vmem:[#allocation3 + $0x168] sm:$0xff]
    %v4664 = vld [vmem:[#allocation3 + $0x170] sm:$0xff]
    %v4665 = vld [vmem:[#allocation3 + $0x178] sm:$0xff]
    %v4666 = vld [vmem:[#allocation3 + $0x180] sm:$0xff]
    %v4667 = vld [vmem:[#allocation3 + $0x188] sm:$0xff]
    %v4668 = vld [vmem:[#allocation3 + $0x190] sm:$0xff]
    %v4669 = vld [vmem:[#allocation3 + $0x198] sm:$0xff]
    %v4670 = vld [vmem:[#allocation3 + $0x1a0] sm:$0xff]
    %v4671 = vld [vmem:[#allocation3 + $0x1a8] sm:$0xff]
    %v4672 = vld [vmem:[#allocation3 + $0x1b0] sm:$0xff]
    %v4673 = vld [vmem:[#allocation3 + $0x1b8] sm:$0xff]
    %v4674 = vld [vmem:[#allocation3 + $0x1c0] sm:$0xff]
    %v4675 = vld [vmem:[#allocation3 + $0x1c8] sm:$0xff]
    %v4676 = vld [vmem:[#allocation3 + $0x1d0] sm:$0xff]
    %v4677 = vld [vmem:[#allocation3 + $0x1d8] sm:$0xff]
    %v4678 = vld [vmem:[#allocation3 + $0x1e0] sm:$0xff]
    %v4679 = vld [vmem:[#allocation3 + $0x1e8] sm:$0xff]
    %v4680 = vld [vmem:[#allocation3 + $0x1f0] sm:$0xff]
    %v4681 = vld [vmem:[#allocation3 + $0x1f8] sm:$0xff]
    %4682 = vmatprep.subr.mxu0 %v4679
    %4683 = vmatpush1.msra.mxu0 %v4678
    %4684 = vmatprep.subr.mxu0 %v4675
    %4685 = vmatpush1.msra.mxu0 %v4674
    %4686 = vmatprep.subr.mxu0 %v4671
    %4687 = vmatpush1.msra.mxu0 %v4670
    %4688 = vmatprep.subr.mxu0 %v4667
    %4689 = vmatpush1.msra.mxu0 %v4666
    %4690 = vmatprep.subr.mxu0 %v4663
    %4691 = vmatpush1.msra.mxu0 %v4662
    %4692 = vmatprep.subr.mxu0 %v4659
    %4693 = vmatpush1.msra.mxu0 %v4658
    %4694 = vmatprep.subr.mxu0 %v4655
    %4695 = vmatpush1.msra.mxu0 %v4654
    %4696 = vmatprep.subr.mxu0 %v4651
    %4697 = vmatpush1.msra.mxu0 %v4650
    %4698 = vmatprep.subr.mxu0 %v4647
    %4699 = vmatpush1.msra.mxu0 %v4646
    %4700 = vmatprep.subr.mxu0 %v4643
    %4701 = vmatpush1.msra.mxu0 %v4642
    %4702 = vmatprep.subr.mxu0 %v4639
    %4703 = vmatpush1.msra.mxu0 %v4638
    %4704 = vmatprep.subr.mxu0 %v4635
    %4705 = vmatpush1.msra.mxu0 %v4634
    %4706 = vmatprep.subr.mxu0 %v4631
    %4707 = vmatpush1.msra.mxu0 %v4630
    %4708 = vmatprep.subr.mxu0 %v4627
    %4709 = vmatpush1.msra.mxu0 %v4626
    %4710 = vmatprep.subr.mxu0 %v4623
    %4711 = vmatpush1.msra.mxu0 %v4622
    %4712 = vmatprep.subr.mxu0 %v4619
    %4713 = vmatpush1.msra.mxu0 %v4618
    %4714 = vmatprep.subr.mxu0 0.0
    %4715 = vmatpush2.msra.mxu0 0.0
    %4716 = vmatprep.subr.mxu0 0.0
    %4717 = vmatpush2.msra.mxu0 0.0
    %4718 = vmatprep.subr.mxu0 0.0
    %4719 = vmatpush2.msra.mxu0 0.0
    %4720 = vmatprep.subr.mxu0 0.0
    %4721 = vmatpush2.msra.mxu0 0.0
    %4722 = vmatprep.subr.mxu0 0.0
    %4723 = vmatpush2.msra.mxu0 0.0
    %4724 = vmatprep.subr.mxu0 0.0
    %4725 = vmatpush2.msra.mxu0 0.0
    %4726 = vmatprep.subr.mxu0 0.0
    %4727 = vmatpush2.msra.mxu0 0.0
    %4728 = vmatprep.subr.mxu0 0.0
    %4729 = vmatpush2.msra.mxu0 0.0
    %4730 = vmatprep.subr.mxu0 0.0
    %4731 = vmatpush2.msra.mxu0 0.0
    %4732 = vmatprep.subr.mxu0 0.0
    %4733 = vmatpush2.msra.mxu0 0.0
    %4734 = vmatprep.subr.mxu0 0.0
    %4735 = vmatpush2.msra.mxu0 0.0
    %4736 = vmatprep.subr.mxu0 0.0
    %4737 = vmatpush2.msra.mxu0 0.0
    %4738 = vmatprep.subr.mxu0 0.0
    %4739 = vmatpush2.msra.mxu0 0.0
    %4740 = vmatprep.subr.mxu0 0.0
    %4741 = vmatpush2.msra.mxu0 0.0
    %4742 = vmatprep.subr.mxu0 0.0
    %4743 = vmatpush2.msra.mxu0 0.0
    %4744 = vmatprep.subr.mxu0 0.0
    %4745 = vmatpush2.msra.mxu0 0.0
    %4746 = vmatprep.mubr.f32.mxu0 0.0
    %4747 = vmatmul.mubr.f32.gmra.mxu0 %v4159
    %v4748 = vpop.f32.mrf.mxu0
    %v4749 = vadd.f32 0.0, %v4748
    %v4750 = vpop.f32.mrf.mxu0
    %v4751 = vadd.f32 0.0, %v4750
    %4752 = vdwg.mxu0
    %4753 = vmatprep.subr.mxu0 %v4681
    %4754 = vmatpush1.msra.mxu0 %v4680
    %4755 = vmatprep.subr.mxu0 %v4677
    %4756 = vmatpush1.msra.mxu0 %v4676
    %4757 = vmatprep.subr.mxu0 %v4673
    %4758 = vmatpush1.msra.mxu0 %v4672
    %4759 = vmatprep.subr.mxu0 %v4669
    %4760 = vmatpush1.msra.mxu0 %v4668
    %4761 = vmatprep.subr.mxu0 %v4665
    %4762 = vmatpush1.msra.mxu0 %v4664
    %4763 = vmatprep.subr.mxu0 %v4661
    %4764 = vmatpush1.msra.mxu0 %v4660
    %4765 = vmatprep.subr.mxu0 %v4657
    %4766 = vmatpush1.msra.mxu0 %v4656
    %4767 = vmatprep.subr.mxu0 %v4653
    %4768 = vmatpush1.msra.mxu0 %v4652
    %4769 = vmatprep.subr.mxu0 %v4649
    %4770 = vmatpush1.msra.mxu0 %v4648
    %4771 = vmatprep.subr.mxu0 %v4645
    %4772 = vmatpush1.msra.mxu0 %v4644
    %4773 = vmatprep.subr.mxu0 %v4641
    %4774 = vmatpush1.msra.mxu0 %v4640
    %4775 = vmatprep.subr.mxu0 %v4637
    %4776 = vmatpush1.msra.mxu0 %v4636
    %4777 = vmatprep.subr.mxu0 %v4633
    %4778 = vmatpush1.msra.mxu0 %v4632
    %4779 = vmatprep.subr.mxu0 %v4629
    %4780 = vmatpush1.msra.mxu0 %v4628
    %4781 = vmatprep.subr.mxu0 %v4625
    %4782 = vmatpush1.msra.mxu0 %v4624
    %4783 = vmatprep.subr.mxu0 %v4621
    %4784 = vmatpush1.msra.mxu0 %v4620
    %4785 = vmatprep.subr.mxu0 0.0
    %4786 = vmatpush2.msra.mxu0 0.0
    %4787 = vmatprep.subr.mxu0 0.0
    %4788 = vmatpush2.msra.mxu0 0.0
    %4789 = vmatprep.subr.mxu0 0.0
    %4790 = vmatpush2.msra.mxu0 0.0
    %4791 = vmatprep.subr.mxu0 0.0
    %4792 = vmatpush2.msra.mxu0 0.0
    %4793 = vmatprep.subr.mxu0 0.0
    %4794 = vmatpush2.msra.mxu0 0.0
    %4795 = vmatprep.subr.mxu0 0.0
    %4796 = vmatpush2.msra.mxu0 0.0
    %4797 = vmatprep.subr.mxu0 0.0
    %4798 = vmatpush2.msra.mxu0 0.0
    %4799 = vmatprep.subr.mxu0 0.0
    %4800 = vmatpush2.msra.mxu0 0.0
    %4801 = vmatprep.subr.mxu0 0.0
    %4802 = vmatpush2.msra.mxu0 0.0
    %4803 = vmatprep.subr.mxu0 0.0
    %4804 = vmatpush2.msra.mxu0 0.0
    %4805 = vmatprep.subr.mxu0 0.0
    %4806 = vmatpush2.msra.mxu0 0.0
    %4807 = vmatprep.subr.mxu0 0.0
    %4808 = vmatpush2.msra.mxu0 0.0
    %4809 = vmatprep.subr.mxu0 0.0
    %4810 = vmatpush2.msra.mxu0 0.0
    %4811 = vmatprep.subr.mxu0 0.0
    %4812 = vmatpush2.msra.mxu0 0.0
    %4813 = vmatprep.subr.mxu0 0.0
    %4814 = vmatpush2.msra.mxu0 0.0
    %4815 = vmatprep.subr.mxu0 0.0
    %4816 = vmatpush2.msra.mxu0 0.0
    %4817 = vmatprep.mubr.f32.mxu0 0.0
    %4818 = vmatmul.mubr.f32.gmra.mxu0 %v4159
    %v4819 = vpop.f32.mrf.mxu0
    %v4820 = vadd.f32 0.0, %v4819
    %v4821 = vpop.f32.mrf.mxu0
    %v4822 = vadd.f32 0.0, %v4821
    %4823 = vdwg.mxu0
    %v4824 = vadd.f32 %v4614, %v4749
    %v4825 = vadd.f32 %v4615, %v4751
    %v4826 = vadd.f32 %v4616, %v4820
    %v4827 = vadd.f32 %v4617, %v4822
    %v4828 = vtanh.pop %v4824
    %v4829 = vtanh.pop %v4825
    %v4830 = vtanh.pop %v4826
    %v4831 = vtanh.pop %v4827
    %v4832 = vadd.f32 %v4828, 1.0
    %v4833 = vmul.f32 %v4832, 0.5
    %v4834 = vadd.f32 %v4829, 1.0
    %v4835 = vmul.f32 %v4834, 0.5
    %v4836 = vadd.f32 %v4831, 1.0
    %v4837 = vmul.f32 %v4836, 0.5
    %v4838 = vmul.f32 %v4835, %v4157
    %v4839 = vmul.f32 %v4833, %v4830
    %v4840 = vadd.f32 %v4838, %v4839
    %v4841 = vtanh.pop %v4840
    %v4842 = vmul.f32 %v4837, %v4841
    %v4843 = vld [vmem:[#allocation4] sm:$0xff]
    %v4844 = vld [vmem:[#allocation4 + $0x8] sm:$0xff]
    %v4845 = vld [vmem:[#allocation4 + $0x10] sm:$0xff]
    %v4846 = vld [vmem:[#allocation4 + $0x18] sm:$0xff]
    %v4847 = vld [vmem:[#allocation4 + $0x20] sm:$0xff]
    %v4848 = vld [vmem:[#allocation4 + $0x28] sm:$0xff]
    %v4849 = vld [vmem:[#allocation4 + $0x30] sm:$0xff]
    %v4850 = vld [vmem:[#allocation4 + $0x38] sm:$0xff]
    %v4851 = vld [vmem:[#allocation4 + $0x40] sm:$0xff]
    %v4852 = vld [vmem:[#allocation4 + $0x48] sm:$0xff]
    %v4853 = vld [vmem:[#allocation4 + $0x50] sm:$0xff]
    %v4854 = vld [vmem:[#allocation4 + $0x58] sm:$0xff]
    %v4855 = vld [vmem:[#allocation4 + $0x60] sm:$0xff]
    %v4856 = vld [vmem:[#allocation4 + $0x68] sm:$0xff]
    %v4857 = vld [vmem:[#allocation4 + $0x70] sm:$0xff]
    %v4858 = vld [vmem:[#allocation4 + $0x78] sm:$0xff]
    %v4859 = vld [vmem:[#allocation4 + $0x80] sm:$0xff]
    %v4860 = vld [vmem:[#allocation4 + $0x88] sm:$0xff]
    %v4861 = vld [vmem:[#allocation4 + $0x90] sm:$0xff]
    %v4862 = vld [vmem:[#allocation4 + $0x98] sm:$0xff]
    %v4863 = vld [vmem:[#allocation4 + $0xa0] sm:$0xff]
    %v4864 = vld [vmem:[#allocation4 + $0xa8] sm:$0xff]
    %v4865 = vld [vmem:[#allocation4 + $0xb0] sm:$0xff]
    %v4866 = vld [vmem:[#allocation4 + $0xb8] sm:$0xff]
    %v4867 = vld [vmem:[#allocation4 + $0xc0] sm:$0xff]
    %v4868 = vld [vmem:[#allocation4 + $0xc8] sm:$0xff]
    %v4869 = vld [vmem:[#allocation4 + $0xd0] sm:$0xff]
    %v4870 = vld [vmem:[#allocation4 + $0xd8] sm:$0xff]
    %v4871 = vld [vmem:[#allocation4 + $0xe0] sm:$0xff]
    %v4872 = vld [vmem:[#allocation4 + $0xe8] sm:$0xff]
    %v4873 = vld [vmem:[#allocation4 + $0xf0] sm:$0xff]
    %v4874 = vld [vmem:[#allocation4 + $0xf8] sm:$0xff]
    %v4875 = vld [vmem:[#allocation4 + $0x100] sm:$0xff]
    %v4876 = vld [vmem:[#allocation4 + $0x108] sm:$0xff]
    %v4877 = vld [vmem:[#allocation4 + $0x110] sm:$0xff]
    %v4878 = vld [vmem:[#allocation4 + $0x118] sm:$0xff]
    %v4879 = vld [vmem:[#allocation4 + $0x120] sm:$0xff]
    %v4880 = vld [vmem:[#allocation4 + $0x128] sm:$0xff]
    %v4881 = vld [vmem:[#allocation4 + $0x130] sm:$0xff]
    %v4882 = vld [vmem:[#allocation4 + $0x138] sm:$0xff]
    %v4883 = vld [vmem:[#allocation4 + $0x140] sm:$0xff]
    %v4884 = vld [vmem:[#allocation4 + $0x148] sm:$0xff]
    %v4885 = vld [vmem:[#allocation4 + $0x150] sm:$0xff]
    %v4886 = vld [vmem:[#allocation4 + $0x158] sm:$0xff]
    %v4887 = vld [vmem:[#allocation4 + $0x160] sm:$0xff]
    %v4888 = vld [vmem:[#allocation4 + $0x168] sm:$0xff]
    %v4889 = vld [vmem:[#allocation4 + $0x170] sm:$0xff]
    %v4890 = vld [vmem:[#allocation4 + $0x178] sm:$0xff]
    %v4891 = vld [vmem:[#allocation4 + $0x180] sm:$0xff]
    %v4892 = vld [vmem:[#allocation4 + $0x188] sm:$0xff]
    %v4893 = vld [vmem:[#allocation4 + $0x190] sm:$0xff]
    %v4894 = vld [vmem:[#allocation4 + $0x198] sm:$0xff]
    %v4895 = vld [vmem:[#allocation4 + $0x1a0] sm:$0xff]
    %v4896 = vld [vmem:[#allocation4 + $0x1a8] sm:$0xff]
    %v4897 = vld [vmem:[#allocation4 + $0x1b0] sm:$0xff]
    %v4898 = vld [vmem:[#allocation4 + $0x1b8] sm:$0xff]
    %v4899 = vld [vmem:[#allocation4 + $0x1c0] sm:$0xff]
    %v4900 = vld [vmem:[#allocation4 + $0x1c8] sm:$0xff]
    %v4901 = vld [vmem:[#allocation4 + $0x1d0] sm:$0xff]
    %v4902 = vld [vmem:[#allocation4 + $0x1d8] sm:$0xff]
    %v4903 = vld [vmem:[#allocation4 + $0x1e0] sm:$0xff]
    %v4904 = vld [vmem:[#allocation4 + $0x1e8] sm:$0xff]
    %v4905 = vld [vmem:[#allocation4 + $0x1f0] sm:$0xff]
    %v4906 = vld [vmem:[#allocation4 + $0x1f8] sm:$0xff]
    %v4907 = vld [vmem:[#allocation5] sm:$0xff]
    %v4908 = vld [vmem:[#allocation5 + $0x8] sm:$0xff]
    %v4909 = vld [vmem:[#allocation5 + $0x10] sm:$0xff]
    %v4910 = vld [vmem:[#allocation5 + $0x18] sm:$0xff]
    %v4911 = vld [vmem:[#allocation5 + $0x20] sm:$0xff]
    %v4912 = vld [vmem:[#allocation5 + $0x28] sm:$0xff]
    %v4913 = vld [vmem:[#allocation5 + $0x30] sm:$0xff]
    %v4914 = vld [vmem:[#allocation5 + $0x38] sm:$0xff]
    %v4915 = vld [vmem:[#allocation5 + $0x40] sm:$0xff]
    %v4916 = vld [vmem:[#allocation5 + $0x48] sm:$0xff]
    %v4917 = vld [vmem:[#allocation5 + $0x50] sm:$0xff]
    %v4918 = vld [vmem:[#allocation5 + $0x58] sm:$0xff]
    %v4919 = vld [vmem:[#allocation5 + $0x60] sm:$0xff]
    %v4920 = vld [vmem:[#allocation5 + $0x68] sm:$0xff]
    %v4921 = vld [vmem:[#allocation5 + $0x70] sm:$0xff]
    %v4922 = vld [vmem:[#allocation5 + $0x78] sm:$0xff]
    %v4923 = vld [vmem:[#allocation5 + $0x80] sm:$0xff]
    %v4924 = vld [vmem:[#allocation5 + $0x88] sm:$0xff]
    %v4925 = vld [vmem:[#allocation5 + $0x90] sm:$0xff]
    %v4926 = vld [vmem:[#allocation5 + $0x98] sm:$0xff]
    %v4927 = vld [vmem:[#allocation5 + $0xa0] sm:$0xff]
    %v4928 = vld [vmem:[#allocation5 + $0xa8] sm:$0xff]
    %v4929 = vld [vmem:[#allocation5 + $0xb0] sm:$0xff]
    %v4930 = vld [vmem:[#allocation5 + $0xb8] sm:$0xff]
    %v4931 = vld [vmem:[#allocation5 + $0xc0] sm:$0xff]
    %v4932 = vld [vmem:[#allocation5 + $0xc8] sm:$0xff]
    %v4933 = vld [vmem:[#allocation5 + $0xd0] sm:$0xff]
    %v4934 = vld [vmem:[#allocation5 + $0xd8] sm:$0xff]
    %v4935 = vld [vmem:[#allocation5 + $0xe0] sm:$0xff]
    %v4936 = vld [vmem:[#allocation5 + $0xe8] sm:$0xff]
    %v4937 = vld [vmem:[#allocation5 + $0xf0] sm:$0xff]
    %v4938 = vld [vmem:[#allocation5 + $0xf8] sm:$0xff]
    %v4939 = vld [vmem:[#allocation5 + $0x100] sm:$0xff]
    %v4940 = vld [vmem:[#allocation5 + $0x108] sm:$0xff]
    %v4941 = vld [vmem:[#allocation5 + $0x110] sm:$0xff]
    %v4942 = vld [vmem:[#allocation5 + $0x118] sm:$0xff]
    %v4943 = vld [vmem:[#allocation5 + $0x120] sm:$0xff]
    %v4944 = vld [vmem:[#allocation5 + $0x128] sm:$0xff]
    %v4945 = vld [vmem:[#allocation5 + $0x130] sm:$0xff]
    %v4946 = vld [vmem:[#allocation5 + $0x138] sm:$0xff]
    %v4947 = vld [vmem:[#allocation5 + $0x140] sm:$0xff]
    %v4948 = vld [vmem:[#allocation5 + $0x148] sm:$0xff]
    %v4949 = vld [vmem:[#allocation5 + $0x150] sm:$0xff]
    %v4950 = vld [vmem:[#allocation5 + $0x158] sm:$0xff]
    %v4951 = vld [vmem:[#allocation5 + $0x160] sm:$0xff]
    %v4952 = vld [vmem:[#allocation5 + $0x168] sm:$0xff]
    %v4953 = vld [vmem:[#allocation5 + $0x170] sm:$0xff]
    %v4954 = vld [vmem:[#allocation5 + $0x178] sm:$0xff]
    %v4955 = vld [vmem:[#allocation5 + $0x180] sm:$0xff]
    %v4956 = vld [vmem:[#allocation5 + $0x188] sm:$0xff]
    %v4957 = vld [vmem:[#allocation5 + $0x190] sm:$0xff]
    %v4958 = vld [vmem:[#allocation5 + $0x198] sm:$0xff]
    %v4959 = vld [vmem:[#allocation5 + $0x1a0] sm:$0xff]
    %v4960 = vld [vmem:[#allocation5 + $0x1a8] sm:$0xff]
    %v4961 = vld [vmem:[#allocation5 + $0x1b0] sm:$0xff]
    %v4962 = vld [vmem:[#allocation5 + $0x1b8] sm:$0xff]
    %v4963 = vld [vmem:[#allocation5 + $0x1c0] sm:$0xff]
    %v4964 = vld [vmem:[#allocation5 + $0x1c8] sm:$0xff]
    %v4965 = vld [vmem:[#allocation5 + $0x1d0] sm:$0xff]
    %v4966 = vld [vmem:[#allocation5 + $0x1d8] sm:$0xff]
    %v4967 = vld [vmem:[#allocation5 + $0x1e0] sm:$0xff]
    %v4968 = vld [vmem:[#allocation5 + $0x1e8] sm:$0xff]
    %v4969 = vld [vmem:[#allocation5 + $0x1f0] sm:$0xff]
    %v4970 = vld [vmem:[#allocation5 + $0x1f8] sm:$0xff]
    %4971 = vmatprep.subr.mxu0 %v4968
    %4972 = vmatpush1.msra.mxu0 %v4967
    %4973 = vmatprep.subr.mxu0 %v4964
    %4974 = vmatpush1.msra.mxu0 %v4963
    %4975 = vmatprep.subr.mxu0 %v4960
    %4976 = vmatpush1.msra.mxu0 %v4959
    %4977 = vmatprep.subr.mxu0 %v4956
    %4978 = vmatpush1.msra.mxu0 %v4955
    %4979 = vmatprep.subr.mxu0 %v4952
    %4980 = vmatpush1.msra.mxu0 %v4951
    %4981 = vmatprep.subr.mxu0 %v4948
    %4982 = vmatpush1.msra.mxu0 %v4947
    %4983 = vmatprep.subr.mxu0 %v4944
    %4984 = vmatpush1.msra.mxu0 %v4943
    %4985 = vmatprep.subr.mxu0 %v4940
    %4986 = vmatpush1.msra.mxu0 %v4939
    %4987 = vmatprep.subr.mxu0 %v4936
    %4988 = vmatpush1.msra.mxu0 %v4935
    %4989 = vmatprep.subr.mxu0 %v4932
    %4990 = vmatpush1.msra.mxu0 %v4931
    %4991 = vmatprep.subr.mxu0 %v4928
    %4992 = vmatpush1.msra.mxu0 %v4927
    %4993 = vmatprep.subr.mxu0 %v4924
    %4994 = vmatpush1.msra.mxu0 %v4923
    %4995 = vmatprep.subr.mxu0 %v4920
    %4996 = vmatpush1.msra.mxu0 %v4919
    %4997 = vmatprep.subr.mxu0 %v4916
    %4998 = vmatpush1.msra.mxu0 %v4915
    %4999 = vmatprep.subr.mxu0 %v4912
    %5000 = vmatpush1.msra.mxu0 %v4911
    %5001 = vmatprep.subr.mxu0 %v4908
    %5002 = vmatpush1.msra.mxu0 %v4907
    %5003 = vmatprep.subr.mxu0 0.0
    %5004 = vmatpush2.msra.mxu0 0.0
    %5005 = vmatprep.subr.mxu0 0.0
    %5006 = vmatpush2.msra.mxu0 0.0
    %5007 = vmatprep.subr.mxu0 0.0
    %5008 = vmatpush2.msra.mxu0 0.0
    %5009 = vmatprep.subr.mxu0 0.0
    %5010 = vmatpush2.msra.mxu0 0.0
    %5011 = vmatprep.subr.mxu0 0.0
    %5012 = vmatpush2.msra.mxu0 0.0
    %5013 = vmatprep.subr.mxu0 0.0
    %5014 = vmatpush2.msra.mxu0 0.0
    %5015 = vmatprep.subr.mxu0 0.0
    %5016 = vmatpush2.msra.mxu0 0.0
    %5017 = vmatprep.subr.mxu0 0.0
    %5018 = vmatpush2.msra.mxu0 0.0
    %5019 = vmatprep.subr.mxu0 0.0
    %5020 = vmatpush2.msra.mxu0 0.0
    %5021 = vmatprep.subr.mxu0 0.0
    %5022 = vmatpush2.msra.mxu0 0.0
    %5023 = vmatprep.subr.mxu0 0.0
    %5024 = vmatpush2.msra.mxu0 0.0
    %5025 = vmatprep.subr.mxu0 0.0
    %5026 = vmatpush2.msra.mxu0 0.0
    %5027 = vmatprep.subr.mxu0 0.0
    %5028 = vmatpush2.msra.mxu0 0.0
    %5029 = vmatprep.subr.mxu0 0.0
    %5030 = vmatpush2.msra.mxu0 0.0
    %5031 = vmatprep.subr.mxu0 0.0
    %5032 = vmatpush2.msra.mxu0 0.0
    %5033 = vmatprep.subr.mxu0 0.0
    %5034 = vmatpush2.msra.mxu0 0.0
    %5035 = vmatprep.mubr.f32.mxu0 0.0
    %5036 = vmatmul.mubr.f32.gmra.mxu0 %v4612
    %v5037 = vpop.f32.mrf.mxu0
    %v5038 = vadd.f32 0.0, %v5037
    %v5039 = vpop.f32.mrf.mxu0
    %v5040 = vadd.f32 0.0, %v5039
    %5041 = vdwg.mxu0
    %5042 = vmatprep.subr.mxu0 %v4970
    %5043 = vmatpush1.msra.mxu0 %v4969
    %5044 = vmatprep.subr.mxu0 %v4966
    %5045 = vmatpush1.msra.mxu0 %v4965
    %5046 = vmatprep.subr.mxu0 %v4962
    %5047 = vmatpush1.msra.mxu0 %v4961
    %5048 = vmatprep.subr.mxu0 %v4958
    %5049 = vmatpush1.msra.mxu0 %v4957
    %5050 = vmatprep.subr.mxu0 %v4954
    %5051 = vmatpush1.msra.mxu0 %v4953
    %5052 = vmatprep.subr.mxu0 %v4950
    %5053 = vmatpush1.msra.mxu0 %v4949
    %5054 = vmatprep.subr.mxu0 %v4946
    %5055 = vmatpush1.msra.mxu0 %v4945
    %5056 = vmatprep.subr.mxu0 %v4942
    %5057 = vmatpush1.msra.mxu0 %v4941
    %5058 = vmatprep.subr.mxu0 %v4938
    %5059 = vmatpush1.msra.mxu0 %v4937
    %5060 = vmatprep.subr.mxu0 %v4934
    %5061 = vmatpush1.msra.mxu0 %v4933
    %5062 = vmatprep.subr.mxu0 %v4930
    %5063 = vmatpush1.msra.mxu0 %v4929
    %5064 = vmatprep.subr.mxu0 %v4926
    %5065 = vmatpush1.msra.mxu0 %v4925
    %5066 = vmatprep.subr.mxu0 %v4922
    %5067 = vmatpush1.msra.mxu0 %v4921
    %5068 = vmatprep.subr.mxu0 %v4918
    %5069 = vmatpush1.msra.mxu0 %v4917
    %5070 = vmatprep.subr.mxu0 %v4914
    %5071 = vmatpush1.msra.mxu0 %v4913
    %5072 = vmatprep.subr.mxu0 %v4910
    %5073 = vmatpush1.msra.mxu0 %v4909
    %5074 = vmatprep.subr.mxu0 0.0
    %5075 = vmatpush2.msra.mxu0 0.0
    %5076 = vmatprep.subr.mxu0 0.0
    %5077 = vmatpush2.msra.mxu0 0.0
    %5078 = vmatprep.subr.mxu0 0.0
    %5079 = vmatpush2.msra.mxu0 0.0
    %5080 = vmatprep.subr.mxu0 0.0
    %5081 = vmatpush2.msra.mxu0 0.0
    %5082 = vmatprep.subr.mxu0 0.0
    %5083 = vmatpush2.msra.mxu0 0.0
    %5084 = vmatprep.subr.mxu0 0.0
    %5085 = vmatpush2.msra.mxu0 0.0
    %5086 = vmatprep.subr.mxu0 0.0
    %5087 = vmatpush2.msra.mxu0 0.0
    %5088 = vmatprep.subr.mxu0 0.0
    %5089 = vmatpush2.msra.mxu0 0.0
    %5090 = vmatprep.subr.mxu0 0.0
    %5091 = vmatpush2.msra.mxu0 0.0
    %5092 = vmatprep.subr.mxu0 0.0
    %5093 = vmatpush2.msra.mxu0 0.0
    %5094 = vmatprep.subr.mxu0 0.0
    %5095 = vmatpush2.msra.mxu0 0.0
    %5096 = vmatprep.subr.mxu0 0.0
    %5097 = vmatpush2.msra.mxu0 0.0
    %5098 = vmatprep.subr.mxu0 0.0
    %5099 = vmatpush2.msra.mxu0 0.0
    %5100 = vmatprep.subr.mxu0 0.0
    %5101 = vmatpush2.msra.mxu0 0.0
    %5102 = vmatprep.subr.mxu0 0.0
    %5103 = vmatpush2.msra.mxu0 0.0
    %5104 = vmatprep.subr.mxu0 0.0
    %5105 = vmatpush2.msra.mxu0 0.0
    %5106 = vmatprep.mubr.f32.mxu0 0.0
    %5107 = vmatmul.mubr.f32.gmra.mxu0 %v4612
    %v5108 = vpop.f32.mrf.mxu0
    %v5109 = vadd.f32 0.0, %v5108
    %v5110 = vpop.f32.mrf.mxu0
    %v5111 = vadd.f32 0.0, %v5110
    %5112 = vdwg.mxu0
    %5113 = vmatprep.subr.mxu0 %v4904
    %5114 = vmatpush1.msra.mxu0 %v4903
    %5115 = vmatprep.subr.mxu0 %v4900
    %5116 = vmatpush1.msra.mxu0 %v4899
    %5117 = vmatprep.subr.mxu0 %v4896
    %5118 = vmatpush1.msra.mxu0 %v4895
    %5119 = vmatprep.subr.mxu0 %v4892
    %5120 = vmatpush1.msra.mxu0 %v4891
    %5121 = vmatprep.subr.mxu0 %v4888
    %5122 = vmatpush1.msra.mxu0 %v4887
    %5123 = vmatprep.subr.mxu0 %v4884
    %5124 = vmatpush1.msra.mxu0 %v4883
    %5125 = vmatprep.subr.mxu0 %v4880
    %5126 = vmatpush1.msra.mxu0 %v4879
    %5127 = vmatprep.subr.mxu0 %v4876
    %5128 = vmatpush1.msra.mxu0 %v4875
    %5129 = vmatprep.subr.mxu0 %v4872
    %5130 = vmatpush1.msra.mxu0 %v4871
    %5131 = vmatprep.subr.mxu0 %v4868
    %5132 = vmatpush1.msra.mxu0 %v4867
    %5133 = vmatprep.subr.mxu0 %v4864
    %5134 = vmatpush1.msra.mxu0 %v4863
    %5135 = vmatprep.subr.mxu0 %v4860
    %5136 = vmatpush1.msra.mxu0 %v4859
    %5137 = vmatprep.subr.mxu0 %v4856
    %5138 = vmatpush1.msra.mxu0 %v4855
    %5139 = vmatprep.subr.mxu0 %v4852
    %5140 = vmatpush1.msra.mxu0 %v4851
    %5141 = vmatprep.subr.mxu0 %v4848
    %5142 = vmatpush1.msra.mxu0 %v4847
    %5143 = vmatprep.subr.mxu0 %v4844
    %5144 = vmatpush1.msra.mxu0 %v4843
    %5145 = vmatprep.subr.mxu0 0.0
    %5146 = vmatpush2.msra.mxu0 0.0
    %5147 = vmatprep.subr.mxu0 0.0
    %5148 = vmatpush2.msra.mxu0 0.0
    %5149 = vmatprep.subr.mxu0 0.0
    %5150 = vmatpush2.msra.mxu0 0.0
    %5151 = vmatprep.subr.mxu0 0.0
    %5152 = vmatpush2.msra.mxu0 0.0
    %5153 = vmatprep.subr.mxu0 0.0
    %5154 = vmatpush2.msra.mxu0 0.0
    %5155 = vmatprep.subr.mxu0 0.0
    %5156 = vmatpush2.msra.mxu0 0.0
    %5157 = vmatprep.subr.mxu0 0.0
    %5158 = vmatpush2.msra.mxu0 0.0
    %5159 = vmatprep.subr.mxu0 0.0
    %5160 = vmatpush2.msra.mxu0 0.0
    %5161 = vmatprep.subr.mxu0 0.0
    %5162 = vmatpush2.msra.mxu0 0.0
    %5163 = vmatprep.subr.mxu0 0.0
    %5164 = vmatpush2.msra.mxu0 0.0
    %5165 = vmatprep.subr.mxu0 0.0
    %5166 = vmatpush2.msra.mxu0 0.0
    %5167 = vmatprep.subr.mxu0 0.0
    %5168 = vmatpush2.msra.mxu0 0.0
    %5169 = vmatprep.subr.mxu0 0.0
    %5170 = vmatpush2.msra.mxu0 0.0
    %5171 = vmatprep.subr.mxu0 0.0
    %5172 = vmatpush2.msra.mxu0 0.0
    %5173 = vmatprep.subr.mxu0 0.0
    %5174 = vmatpush2.msra.mxu0 0.0
    %5175 = vmatprep.subr.mxu0 0.0
    %5176 = vmatpush2.msra.mxu0 0.0
    %5177 = vmatprep.mubr.f32.mxu0 0.0
    %5178 = vmatmul.mubr.f32.gmra.mxu0 %v4842
    %v5179 = vpop.f32.mrf.mxu0
    %v5180 = vadd.f32 %v5038, %v5179
    %v5181 = vpop.f32.mrf.mxu0
    %v5182 = vadd.f32 %v5040, %v5181
    %5183 = vdwg.mxu0
    %5184 = vmatprep.subr.mxu0 %v4906
    %5185 = vmatpush1.msra.mxu0 %v4905
    %5186 = vmatprep.subr.mxu0 %v4902
    %5187 = vmatpush1.msra.mxu0 %v4901
    %5188 = vmatprep.subr.mxu0 %v4898
    %5189 = vmatpush1.msra.mxu0 %v4897
    %5190 = vmatprep.subr.mxu0 %v4894
    %5191 = vmatpush1.msra.mxu0 %v4893
    %5192 = vmatprep.subr.mxu0 %v4890
    %5193 = vmatpush1.msra.mxu0 %v4889
    %5194 = vmatprep.subr.mxu0 %v4886
    %5195 = vmatpush1.msra.mxu0 %v4885
    %5196 = vmatprep.subr.mxu0 %v4882
    %5197 = vmatpush1.msra.mxu0 %v4881
    %5198 = vmatprep.subr.mxu0 %v4878
    %5199 = vmatpush1.msra.mxu0 %v4877
    %5200 = vmatprep.subr.mxu0 %v4874
    %5201 = vmatpush1.msra.mxu0 %v4873
    %5202 = vmatprep.subr.mxu0 %v4870
    %5203 = vmatpush1.msra.mxu0 %v4869
    %5204 = vmatprep.subr.mxu0 %v4866
    %5205 = vmatpush1.msra.mxu0 %v4865
    %5206 = vmatprep.subr.mxu0 %v4862
    %5207 = vmatpush1.msra.mxu0 %v4861
    %5208 = vmatprep.subr.mxu0 %v4858
    %5209 = vmatpush1.msra.mxu0 %v4857
    %5210 = vmatprep.subr.mxu0 %v4854
    %5211 = vmatpush1.msra.mxu0 %v4853
    %5212 = vmatprep.subr.mxu0 %v4850
    %5213 = vmatpush1.msra.mxu0 %v4849
    %5214 = vmatprep.subr.mxu0 %v4846
    %5215 = vmatpush1.msra.mxu0 %v4845
    %5216 = vmatprep.subr.mxu0 0.0
    %5217 = vmatpush2.msra.mxu0 0.0
    %5218 = vmatprep.subr.mxu0 0.0
    %5219 = vmatpush2.msra.mxu0 0.0
    %5220 = vmatprep.subr.mxu0 0.0
    %5221 = vmatpush2.msra.mxu0 0.0
    %5222 = vmatprep.subr.mxu0 0.0
    %5223 = vmatpush2.msra.mxu0 0.0
    %5224 = vmatprep.subr.mxu0 0.0
    %5225 = vmatpush2.msra.mxu0 0.0
    %5226 = vmatprep.subr.mxu0 0.0
    %5227 = vmatpush2.msra.mxu0 0.0
    %5228 = vmatprep.subr.mxu0 0.0
    %5229 = vmatpush2.msra.mxu0 0.0
    %5230 = vmatprep.subr.mxu0 0.0
    %5231 = vmatpush2.msra.mxu0 0.0
    %5232 = vmatprep.subr.mxu0 0.0
    %5233 = vmatpush2.msra.mxu0 0.0
    %5234 = vmatprep.subr.mxu0 0.0
    %5235 = vmatpush2.msra.mxu0 0.0
    %5236 = vmatprep.subr.mxu0 0.0
    %5237 = vmatpush2.msra.mxu0 0.0
    %5238 = vmatprep.subr.mxu0 0.0
    %5239 = vmatpush2.msra.mxu0 0.0
    %5240 = vmatprep.subr.mxu0 0.0
    %5241 = vmatpush2.msra.mxu0 0.0
    %5242 = vmatprep.subr.mxu0 0.0
    %5243 = vmatpush2.msra.mxu0 0.0
    %5244 = vmatprep.subr.mxu0 0.0
    %5245 = vmatpush2.msra.mxu0 0.0
    %5246 = vmatprep.subr.mxu0 0.0
    %5247 = vmatpush2.msra.mxu0 0.0
    %5248 = vmatprep.mubr.f32.mxu0 0.0
    %5249 = vmatmul.mubr.f32.gmra.mxu0 %v4842
    %v5250 = vpop.f32.mrf.mxu0
    %v5251 = vadd.f32 %v5109, %v5250
    %v5252 = vpop.f32.mrf.mxu0
    %v5253 = vadd.f32 %v5111, %v5252
    %5254 = vdwg.mxu0
    %v5255 = vld [vmem:[#allocation12] sm:$0xf]
    %v5257 = vlaneseq
    %v5258 = vshrl.u32 %v5257, 7
    %v5259 = vsub.s32 0, %v5258
    %v5260 = vrot.slane %v5255, %v5259
    %v5261 = vlaneseq
    %v5262 = vshrl.u32 %v5261, 7
    %v5263 = vsub.s32 1, %v5262
    %v5264 = vrot.slane %v5255, %v5263
    %v5265 = vlaneseq
    %v5266 = vshrl.u32 %v5265, 7
    %v5267 = vsub.s32 2, %v5266
    %v5268 = vrot.slane %v5255, %v5267
    %v5269 = vlaneseq
    %v5270 = vshrl.u32 %v5269, 7
    %v5271 = vsub.s32 3, %v5270
    %v5272 = vrot.slane %v5255, %v5271
    %v5277 = vadd.f32 %v5180, %v5260
    %v5278 = vadd.f32 %v5182, %v5264
    %v5279 = vadd.f32 %v5251, %v5268
    %v5280 = vadd.f32 %v5253, %v5272
    %v5281 = vtanh.pop %v5277
    %v5282 = vtanh.pop %v5278
    %v5283 = vtanh.pop %v5279
    %v5284 = vtanh.pop %v5280
    %v5285 = vadd.f32 %v5281, 1.0
    %v5286 = vmul.f32 %v5285, 0.5
    %v5287 = vadd.f32 %v5282, 1.0
    %v5288 = vmul.f32 %v5287, 0.5
    %v5289 = vadd.f32 %v5284, 1.0
    %v5290 = vmul.f32 %v5289, 0.5
    %v5291 = vmul.f32 %v5288, %v4610
    %v5292 = vmul.f32 %v5286, %v5283
    %v5293 = vadd.f32 %v5291, %v5292
    %v5294 = vtanh.pop %v5293
    %v5295 = vmul.f32 %v5290, %v5294
    %5296 = vst [vmem:[#allocation17 + $0x28] sm:$0xff] %v5295
    %v5297 = vmul.f32 %v4842, 0.70710677
    %v5298 = vmul.f32 %v5295, 0.70710677
    %v5299 = vld [vmem:[#allocation17] sm:$0xff]
    %v5300 = vld [vmem:[#allocation17 + $0x8] sm:$0xff]
    %v5301 = vld [vmem:[#allocation17 + $0x10] sm:$0xff]
    %v5302 = vld [vmem:[#allocation17 + $0x18] sm:$0xff]
    %v5303 = vld [vmem:[#allocation17 + $0x20] sm:$0xff]
    %v5304 = vld [vmem:[#allocation17 + $0x28] sm:$0xff]
    %v5305 = vld [vmem:[%s10] sm:$0xff]
    %v5306 = vld [vmem:[%s10 + $0x8] sm:$0xff]
    %v5307 = vld [vmem:[%s10 + $0x10] sm:$0xff]
    %v5308 = vld [vmem:[%s10 + $0x18] sm:$0xff]
    %v5309 = vld [vmem:[%s10 + $0x20] sm:$0xff]
    %v5310 = vld [vmem:[%s10 + $0x28] sm:$0xff]
    %v5311 = vld [vmem:[%s10 + $0x30] sm:$0xff]
    %v5312 = vld [vmem:[%s10 + $0x38] sm:$0xff]
    %v5313 = vld [vmem:[%s10 + $0x40] sm:$0xff]
    %v5314 = vld [vmem:[%s10 + $0x48] sm:$0xff]
    %v5315 = vld [vmem:[%s10 + $0x50] sm:$0xff]
    %v5316 = vld [vmem:[%s10 + $0x58] sm:$0xff]
    %v5317 = vld [vmem:[%s10 + $0x60] sm:$0xff]
    %v5318 = vld [vmem:[%s10 + $0x68] sm:$0xff]
    %v5319 = vld [vmem:[%s10 + $0x70] sm:$0xff]
    %v5320 = vld [vmem:[%s10 + $0x78] sm:$0xff]
    %v5321 = vunpack.c.l.bf16 %v5305
    %v5322 = vunpack.c.h.bf16 %v5305
    %v5323 = vunpack.c.l.bf16 %v5306
    %v5324 = vunpack.c.h.bf16 %v5306
    %v5325 = vunpack.c.l.bf16 %v5307
    %v5326 = vunpack.c.h.bf16 %v5307
    %v5327 = vunpack.c.l.bf16 %v5308
    %v5328 = vunpack.c.h.bf16 %v5308
    %v5329 = vunpack.c.l.bf16 %v5309
    %v5330 = vunpack.c.h.bf16 %v5309
    %v5331 = vunpack.c.l.bf16 %v5310
    %v5332 = vunpack.c.h.bf16 %v5310
    %v5333 = vunpack.c.l.bf16 %v5311
    %v5334 = vunpack.c.h.bf16 %v5311
    %v5335 = vunpack.c.l.bf16 %v5312
    %v5336 = vunpack.c.h.bf16 %v5312
    %v5337 = vunpack.c.l.bf16 %v5313
    %v5338 = vunpack.c.h.bf16 %v5313
    %v5339 = vunpack.c.l.bf16 %v5314
    %v5340 = vunpack.c.h.bf16 %v5314
    %v5341 = vunpack.c.l.bf16 %v5315
    %v5342 = vunpack.c.h.bf16 %v5315
    %v5343 = vunpack.c.l.bf16 %v5316
    %v5344 = vunpack.c.h.bf16 %v5316
    %v5345 = vunpack.c.l.bf16 %v5317
    %v5346 = vunpack.c.h.bf16 %v5317
    %v5347 = vunpack.c.l.bf16 %v5318
    %v5348 = vunpack.c.h.bf16 %v5318
    %v5349 = vunpack.c.l.bf16 %v5319
    %v5350 = vunpack.c.h.bf16 %v5319
    %v5351 = vunpack.c.l.bf16 %v5320
    %v5352 = vunpack.c.h.bf16 %v5320
    %v5353 = vld [vmem:[#allocation14] sm:$0x3]
    %v5355 = vlaneseq
    %v5356 = vshrl.u32 %v5355, 7
    %v5357 = vsub.s32 0, %v5356
    %v5358 = vrot.slane %v5353, %v5357
    %v5359 = vlaneseq
    %v5360 = vshrl.u32 %v5359, 7
    %v5361 = vsub.s32 1, %v5360
    %v5362 = vrot.slane %v5353, %v5361
    %5365 = vmatprep.subr.mxu0 %v5352
    %5366 = vmatpush1.msra.mxu0 %v5351
    %5367 = vmatprep.subr.mxu0 %v5350
    %5368 = vmatpush1.msra.mxu0 %v5349
    %5369 = vmatprep.subr.mxu0 %v5348
    %5370 = vmatpush1.msra.mxu0 %v5347
    %5371 = vmatprep.subr.mxu0 %v5346
    %5372 = vmatpush1.msra.mxu0 %v5345
    %5373 = vmatprep.subr.mxu0 %v5344
    %5374 = vmatpush1.msra.mxu0 %v5343
    %5375 = vmatprep.subr.mxu0 %v5342
    %5376 = vmatpush1.msra.mxu0 %v5341
    %5377 = vmatprep.subr.mxu0 %v5340
    %5378 = vmatpush1.msra.mxu0 %v5339
    %5379 = vmatprep.subr.mxu0 %v5338
    %5380 = vmatpush1.msra.mxu0 %v5337
    %5381 = vmatprep.subr.mxu0 %v5336
    %5382 = vmatpush1.msra.mxu0 %v5335
    %5383 = vmatprep.subr.mxu0 %v5334
    %5384 = vmatpush1.msra.mxu0 %v5333
    %5385 = vmatprep.subr.mxu0 %v5332
    %5386 = vmatpush1.msra.mxu0 %v5331
    %5387 = vmatprep.subr.mxu0 %v5330
    %5388 = vmatpush1.msra.mxu0 %v5329
    %5389 = vmatprep.subr.mxu0 %v5328
    %5390 = vmatpush1.msra.mxu0 %v5327
    %5391 = vmatprep.subr.mxu0 %v5326
    %5392 = vmatpush1.msra.mxu0 %v5325
    %5393 = vmatprep.subr.mxu0 %v5324
    %5394 = vmatpush1.msra.mxu0 %v5323
    %5395 = vmatprep.subr.mxu0 %v5322
    %5396 = vmatpush1.msra.mxu0 %v5321
    %5397 = vmatprep.subr.mxu0 0.0
    %5398 = vmatpush2.msra.mxu0 0.0
    %5399 = vmatprep.subr.mxu0 0.0
    %5400 = vmatpush2.msra.mxu0 0.0
    %5401 = vmatprep.subr.mxu0 0.0
    %5402 = vmatpush2.msra.mxu0 0.0
    %5403 = vmatprep.subr.mxu0 0.0
    %5404 = vmatpush2.msra.mxu0 0.0
    %5405 = vmatprep.subr.mxu0 0.0
    %5406 = vmatpush2.msra.mxu0 0.0
    %5407 = vmatprep.subr.mxu0 0.0
    %5408 = vmatpush2.msra.mxu0 0.0
    %5409 = vmatprep.subr.mxu0 0.0
    %5410 = vmatpush2.msra.mxu0 0.0
    %5411 = vmatprep.subr.mxu0 0.0
    %5412 = vmatpush2.msra.mxu0 0.0
    %5413 = vmatprep.subr.mxu0 0.0
    %5414 = vmatpush2.msra.mxu0 0.0
    %5415 = vmatprep.subr.mxu0 0.0
    %5416 = vmatpush2.msra.mxu0 0.0
    %5417 = vmatprep.subr.mxu0 0.0
    %5418 = vmatpush2.msra.mxu0 0.0
    %5419 = vmatprep.subr.mxu0 0.0
    %5420 = vmatpush2.msra.mxu0 0.0
    %5421 = vmatprep.subr.mxu0 0.0
    %5422 = vmatpush2.msra.mxu0 0.0
    %5423 = vmatprep.subr.mxu0 0.0
    %5424 = vmatpush2.msra.mxu0 0.0
    %5425 = vmatprep.subr.mxu0 0.0
    %5426 = vmatpush2.msra.mxu0 0.0
    %5427 = vmatprep.subr.mxu0 0.0
    %5428 = vmatpush2.msra.mxu0 0.0
    %5429 = vmatprep.mubr.f32.mxu0 0.0
    %5430 = vmatmul.mubr.f32.gmra.mxu0 %v5299
    %v5431 = vpop.f32.mrf.mxu0
    %v5432 = vadd.f32 %v5358, %v5431
    %v5433 = vpop.f32.mrf.mxu0
    %v5434 = vadd.f32 %v5362, %v5433
    %5435 = vmatprep.mubr.f32.mxu0 0.0
    %5436 = vmatmul.mubr.f32.gmra.mxu0 %v5300
    %v5437 = vpop.f32.mrf.mxu0
    %v5438 = vadd.f32 %v5358, %v5437
    %v5439 = vpop.f32.mrf.mxu0
    %v5440 = vadd.f32 %v5362, %v5439
    %5441 = vmatprep.mubr.f32.mxu0 0.0
    %5442 = vmatmul.mubr.f32.gmra.mxu0 %v5301
    %v5443 = vpop.f32.mrf.mxu0
    %v5444 = vadd.f32 %v5358, %v5443
    %v5445 = vpop.f32.mrf.mxu0
    %v5446 = vadd.f32 %v5362, %v5445
    %5447 = vmatprep.mubr.f32.mxu0 0.0
    %5448 = vmatmul.mubr.f32.gmra.mxu0 %v5302
    %v5449 = vpop.f32.mrf.mxu0
    %v5450 = vadd.f32 %v5358, %v5449
    %v5451 = vpop.f32.mrf.mxu0
    %v5452 = vadd.f32 %v5362, %v5451
    %5453 = vmatprep.mubr.f32.mxu0 0.0
    %5454 = vmatmul.mubr.f32.gmra.mxu0 %v5303
    %v5455 = vpop.f32.mrf.mxu0
    %v5456 = vadd.f32 %v5358, %v5455
    %v5457 = vpop.f32.mrf.mxu0
    %v5458 = vadd.f32 %v5362, %v5457
    %5459 = vmatprep.mubr.f32.mxu0 0.0
    %5460 = vmatmul.mubr.f32.gmra.mxu0 %v5304
    %v5461 = vpop.f32.mrf.mxu0
    %v5462 = vadd.f32 %v5358, %v5461
    %v5463 = vpop.f32.mrf.mxu0
    %v5464 = vadd.f32 %v5362, %v5463
    %5465 = vdwg.mxu0
    %v5466 = vtanh.pop %v5432
    %v5467 = vtanh.pop %v5434
    %v5468 = vtanh.pop %v5438
    %v5469 = vtanh.pop %v5440
    %v5470 = vtanh.pop %v5444
    %v5471 = vtanh.pop %v5446
    %v5472 = vtanh.pop %v5450
    %v5473 = vtanh.pop %v5452
    %v5474 = vtanh.pop %v5456
    %v5475 = vtanh.pop %v5458
    %v5476 = vtanh.pop %v5462
    %v5477 = vtanh.pop %v5464
    %v5478 = vmul.f32 %v5466, %v5297
    %v5479 = vmul.f32 %v5467, %v5298
    %v5480 = vmul.f32 %v5468, %v5297
    %v5481 = vmul.f32 %v5469, %v5298
    %v5482 = vmul.f32 %v5470, %v5297
    %v5483 = vmul.f32 %v5471, %v5298
    %v5484 = vmul.f32 %v5472, %v5297
    %v5485 = vmul.f32 %v5473, %v5298
    %v5486 = vmul.f32 %v5474, %v5297
    %v5487 = vmul.f32 %v5475, %v5298
    %v5488 = vmul.f32 %v5476, %v5297
    %v5489 = vmul.f32 %v5477, %v5298
    %v5490 = vadd.f32 %v5478, %v5479
    %5491 = vadd.xlane.f32.xlu0 %v5490
    %v5492 = vpop.xlane.xlu0 %5491
    %v5493 = vadd.f32 %v5480, %v5481
    %5494 = vadd.xlane.f32.xlu0 %v5493
    %v5495 = vpop.xlane.xlu0 %5494
    %v5496 = vadd.f32 %v5482, %v5483
    %5497 = vadd.xlane.f32.xlu0 %v5496
    %v5498 = vpop.xlane.xlu0 %5497
    %v5499 = vadd.f32 %v5484, %v5485
    %5500 = vadd.xlane.f32.xlu0 %v5499
    %v5501 = vpop.xlane.xlu0 %5500
    %v5502 = vadd.f32 %v5486, %v5487
    %5503 = vadd.xlane.f32.xlu0 %v5502
    %v5504 = vpop.xlane.xlu0 %5503
    %v5505 = vadd.f32 %v5488, %v5489
    %5506 = vadd.xlane.f32.xlu0 %v5505
    %v5507 = vpop.xlane.xlu0 %5506
    %v5508 = vmax.f32 %v5492, %v5504
    %v5509 = vmax.f32 %v5495, %v5507
    %v5510 = vmax.f32 %v5508, %v5509
    %v5511 = vmax.f32 %v5498, %v5501
    %v5512 = vmax.f32 %v5510, %v5511
    %v5513 = vsub.f32 %v5492, %v5512
    %v5514 = vsub.f32 %v5495, %v5512
    %v5515 = vsub.f32 %v5498, %v5512
    %v5516 = vsub.f32 %v5501, %v5512
    %v5517 = vsub.f32 %v5504, %v5512
    %v5518 = vsub.f32 %v5507, %v5512
    %v5519 = vmul.f32 %v5513, 1.442695
    %v5520 = vpow.pop %v5519
    %v5521 = vmul.f32 %v5514, 1.442695
    %v5522 = vpow.pop %v5521
    %v5523 = vmul.f32 %v5515, 1.442695
    %v5524 = vpow.pop %v5523
    %v5525 = vmul.f32 %v5516, 1.442695
    %v5526 = vpow.pop %v5525
    %v5527 = vmul.f32 %v5517, 1.442695
    %v5528 = vpow.pop %v5527
    %v5529 = vmul.f32 %v5518, 1.442695
    %v5530 = vpow.pop %v5529
    %v5531 = vadd.f32 %v5520, %v5522
    %v5532 = vadd.f32 %v5531, %v5524
    %v5533 = vadd.f32 %v5532, %v5526
    %v5534 = vadd.f32 %v5533, %v5528
    %v5535 = vadd.f32 %v5534, %v5530
    %v5536 = vrcp.pop %v5535
    %v5537 = vmul.f32 %v5520, %v5536
    %v5538 = vmul.f32 %v5522, %v5536
    %v5539 = vmul.f32 %v5524, %v5536
    %v5540 = vmul.f32 %v5526, %v5536
    %v5541 = vmul.f32 %v5528, %v5536
    %v5542 = vmul.f32 %v5530, %v5536
    %v5543 = vmul.f32 %v5299, %v5537
    %v5544 = vmul.f32 %v5300, %v5538
    %v5545 = vmul.f32 %v5301, %v5539
    %v5546 = vmul.f32 %v5302, %v5540
    %v5547 = vmul.f32 %v5303, %v5541
    %v5548 = vmul.f32 %v5304, %v5542
    %5549 = vst [vmem:[#allocation17] sm:$0xff] %v5543
    %5550 = vst [vmem:[#allocation17 + $0x8] sm:$0xff] %v5544
    %5551 = vst [vmem:[#allocation17 + $0x10] sm:$0xff] %v5545
    %5552 = vst [vmem:[#allocation17 + $0x18] sm:$0xff] %v5546
    %5553 = vst [vmem:[#allocation17 + $0x20] sm:$0xff] %v5547
    %5554 = vst [vmem:[#allocation17 + $0x28] sm:$0xff] %v5548
    // Predicated region
    $region98: #{tpu_custom_call.1} parent=1 // pred_check
      _
    $region99: #{tpu_custom_call.1} parent=1 // pred_check_branch
      %5556 = sbr.rel (0) target = $region101
    $region100: #{tpu_custom_call.1} parent=1 // pred_region
      %s5558 = ssub.s32 768, 768
      %5559 = vsyncadd [#allocation8], %s5558
      %s5560 = sshll.u32 [#allocation17], 4
      %s5561 = int_to_ptr.vmem [resolvable:$true] %s5560
      %5566 = dma.vmem_to_hbm [thread:$0]  %s5561, 768, %s18, [#allocation8], 128, 128, 8
    $region101: #{tpu_custom_call.1} parent=1 // pred_fallthru
      _
    // Predicated region
    $region102: #{tpu_custom_call.1} parent=1 // pred_check
      _
    $region103: #{tpu_custom_call.1} parent=1 // pred_check_branch
      %5568 = sbr.rel (0) target = $region105
    $region104: #{tpu_custom_call.1} parent=1 // pred_region
      _
    $region105: #{tpu_custom_call.1} parent=1 // pred_fallthru
      _
    // Predicated region
    $region106: #{tpu_custom_call.1} parent=1 // pred_check
      _
    $region107: #{tpu_custom_call.1} parent=1 // pred_check_branch
      %5570 = sbr.rel (0) target = $region109
    $region108: #{tpu_custom_call.1} parent=1 // pred_region
      %5571 = dma.done [#allocation8], 768
    $region109: #{tpu_custom_call.1} parent=1 // pred_fallthru
      _
    // Predicated region
    $region110: #{tpu_custom_call.1} parent=1 // pred_check
      _
    $region111: #{tpu_custom_call.1} parent=1 // pred_check_branch
      %5573 = sbr.rel (0) target = $region113
    $region112: #{tpu_custom_call.1} parent=1 // pred_region
      _
    $region113: #{tpu_custom_call.1} parent=1 // pred_fallthru
      _
    %5574 = vsyncpa [#allocation7], 1
    %5575 = vsyncpa [#allocation10], 1
    %5576 = vsyncpa [#allocation13], 1
    %5577 = vsyncpa [#allocation16], 1
    %5578 = vsyncpa [#allocation8], 1

</llo_original>
